<compile_context>
chip_gen: v6e
topology: v6e:2x2x1
jax: 0.10.0
libtpu: 0.0.40
codegen_flags: <defaults>
</compile_context>

<pallas_src>
import functools

import jax
import jax.numpy as jnp
from jax.experimental import pallas as pl
from jax.experimental.pallas import tpu as pltpu


def _round_up(x, m):
    return (x + m - 1) // m * m


def _vmem_capacity_bytes():
    """VMEM capacity of the current chip (fallback: v7x's 64 MiB per core)."""
    try:
        cap = int(pltpu.get_tpu_info().vmem_capacity_bytes)
        if cap > 0:
            return cap
    except Exception:
        pass
    return 64 * 1024 * 1024


def _conv_block_kernel(x_ref, w_ref, scale_ref, bias_ref, o_ref, *scratch,
                       NB, H, W, Cin, K, pooling, Ho, Wo, fold_taps):
    """One grid step = one (batch-block, output-channel-tile) pair.

    x_ref    : (NB, H, W, Cin)       un-padded NHWC activations (compute dtype)
    w_ref    : (K*K*Cin, TCo)        im2col-ordered conv weights for this tile
    scale_ref: (1, TCo)              gamma / sqrt(var + eps)
    bias_ref : (1, TCo)              (conv_b - mean) * scale + beta
    o_ref    : (NB, Ho, Wo, Cs)      Cs = Cout (single tile) or TCo (tiled)
    scratch  : xpad (NB, H+2, W+2, Cin) [+ col (NB*H*W, K*K*Cin) if fold_taps]
    """
    if fold_taps:
        xpad_ref, col_ref = scratch
    else:
        (xpad_ref,) = scratch

    P = 1                                  # Conv2d(..., padding=1)
    M = NB * H * W
    co = pl.program_id(1)                  # output-channel tile (inner axis)

    @pl.when(co == 0)
    def _prepare_inputs():
        # Fused `padding=1`: zero only the 1-pixel halo (the interior is fully
        # overwritten below).  The scratch persists across the (arbitrary)
        # channel-tile axis, so this runs once per batch block.
        zrow = jnp.zeros((NB, P, W + 2 * P, Cin), xpad_ref.dtype)
        zcol = jnp.zeros((NB, H + 2 * P, P, Cin), xpad_ref.dtype)
        xpad_ref[:, :P, :, :] = zrow
        xpad_ref[:, P + H:, :, :] = zrow
        xpad_ref[:, :, :P, :] = zcol
        xpad_ref[:, :, P + W:, :] = zcol
        xpad_ref[:, P:P + H, P:P + W, :] = x_ref[...]

        if fold_taps:
            # im2col: fold the K*K taps into the matmul contraction.  Each tap's
            # (M, Cin) view lands in its own contiguous lane slot, so one MXU
            # matmul with contraction K*K*Cin replaces K*K matmuls whose
            # contraction is only Cin.
            for kh in range(K):
                for kw in range(K):
                    tap = kh * K + kw
                    col_ref[:, tap * Cin:(tap + 1) * Cin] = (
                        xpad_ref[:, kh:kh + H, kw:kw + W, :].reshape(M, Cin))

    if fold_taps:
        acc = jnp.dot(col_ref[...], w_ref[...],
                      preferred_element_type=jnp.float32)
    else:
        # Wide-Cin path: each per-tap matmul already has a full contraction dim.
        acc = jnp.zeros((M, w_ref.shape[-1]), jnp.float32)
        for kh in range(K):
            for kw in range(K):
                tap = kh * K + kw
                patch = xpad_ref[:, kh:kh + H, kw:kw + W, :].reshape(M, Cin)
                acc = acc + jnp.dot(patch, w_ref[tap * Cin:(tap + 1) * Cin, :],
                                    preferred_element_type=jnp.float32)

    # Conv bias + eval-mode BatchNorm + ReLU fused into one f32 FMA + max.
    y = jnp.maximum(acc * scale_ref[...] + bias_ref[...], 0.0)
    y = y.reshape(NB, H, W, y.shape[-1])

    if pooling:
        # MaxPool2d(kernel_size=2, stride=2) with floor semantics for odd H / W.
        c = y.shape[-1]
        y = y[:, :2 * Ho, :2 * Wo, :]
        y = jnp.max(y.reshape(NB, Ho, 2, 2 * Wo, c), axis=2)   # pool along H
        y = jnp.max(y.reshape(NB, Ho, Wo, 2, c), axis=3)       # pool along W

    # TODO(synk): nn.Dropout(0.5) is stochastic in train mode; implemented as
    # eval-mode identity (consistent with the eval-mode BatchNorm fusion above).
    # Only the real output channels of this tile are written back to HBM.
    o_ref[...] = y[..., :o_ref.shape[-1]].astype(o_ref.dtype)


def _pick_batch_block(N, H, W, Cin, K, KKC, TCo, block_co, Ho, Wo,
                      in_itemsize, out_itemsize, fold_taps, budget_bytes):
    """Largest batch block (divisor of N, leaving >= 2 grid steps when N >= 2)
    whose per-step VMEM footprint fits the budget."""
    def r8(v):
        return _round_up(max(v, 1), 8)

    def rl(v):
        return _round_up(max(v, 1), 128)

    def vmem_bytes(nb):
        m = nb * H * W
        b = 2 * nb * H * r8(W) * rl(Cin) * in_itemsize                 # x, 2 bufs
        b += nb * (H + K - 1) * r8(W + K - 1) * rl(Cin) * in_itemsize  # xpad
        if fold_taps:
            b += r8(m) * rl(KKC) * in_itemsize                         # im2col
        b += 3 * r8(m) * rl(TCo) * 4            # f32 acc + epilogue + pool temps
        b += 2 * nb * Ho * r8(Wo) * rl(block_co) * out_itemsize        # out, 2 bufs
        b += 2 * r8(KKC) * rl(TCo) * in_itemsize + 4 * rl(TCo) * 4     # w/scale/bias
        return b

    nb = N if N < 2 else N // 2        # keep >= 2 batch steps for megacore
    while nb > 1 and (N % nb != 0 or vmem_bytes(nb) > budget_bytes):
        nb -= 1
    return max(1, nb)


def conv_block_forward(x_nchw, conv_w, conv_b, bn_gamma, bn_beta, bn_mean,
                       bn_var, *, pooling=False, eps=1e-5,
                       compute_dtype=jnp.bfloat16, out_dtype=None,
                       batch_block=None, fold_taps=None):
    """ConvolutionalBlock forward (inference). NCHW in / NCHW out.

    compute_dtype: storage / MXU dtype of activations & weights (bf16 default,
    MXU-native on v5e/v6e/v7x).  Accumulation and the BN/ReLU epilogue are f32.
    """
    N, Cin, H, W = x_nchw.shape
    Cout, Cin_w, K, K2 = conv_w.shape
    assert Cin_w == Cin and K == K2 == 3, "module uses kernel_size=3, padding=1"
    out_dtype = x_nchw.dtype if out_dtype is None else out_dtype

    KKC = K * K * Cin
    CP = _round_up(Cout, 128)                 # lane-dense matmul output width
    TCo = 256 if CP % 256 == 0 else 128       # output-channel tile (MXU native)
    n_co = CP // TCo
    out_ch = Cout if n_co == 1 else CP        # HBM output channel count
    block_co = Cout if n_co == 1 else TCo     # per-step output channel block
    Ho, Wo = (H // 2, W // 2) if pooling else (H, W)
    fold = (Cin < 128) if fold_taps is None else bool(fold_taps)

    # NCHW -> NHWC so channels sit on the lane axis.
    # TODO(synk): callers providing / consuming NHWC directly would save the two
    # full-tensor transpose passes in this wrapper.
    x = jnp.transpose(x_nchw, (0, 2, 3, 1)).astype(compute_dtype)

    # OIHW -> (kh, kw, cin)-major im2col weight matrix, Cout zero-padded to CP
    # (padded columns are never stored back to HBM).
    wmat = jnp.transpose(conv_w, (2, 3, 1, 0)).reshape(KKC, Cout)
    wmat = jnp.pad(wmat, ((0, 0), (0, CP - Cout))).astype(compute_dtype)

    # Fuse conv bias + eval-mode BatchNorm into per-channel scale / bias (f32).
    scale = (bn_gamma / jnp.sqrt(bn_var + eps)).astype(jnp.float32)
    bias = ((conv_b - bn_mean) * scale + bn_beta).astype(jnp.float32)
    scale_p = jnp.pad(scale, (0, CP - Cout)).reshape(1, CP)
    bias_p = jnp.pad(bias, (0, CP - Cout)).reshape(1, CP)

    in_itemsize = jnp.dtype(compute_dtype).itemsize
    out_itemsize = jnp.dtype(out_dtype).itemsize

    # Generation-aware VMEM budget (v7x: 64 MiB/core; v5e/v6e: 128 MiB).
    vmem_cap = _vmem_capacity_bytes()
    budget = min(int(vmem_cap * 0.45), 96 * 1024 * 1024)
    vmem_limit = min(int(vmem_cap * 0.75), 100 * 1024 * 1024)

    if batch_block is None:
        NB = _pick_batch_block(N, H, W, Cin, K, KKC, TCo, block_co, Ho, Wo,
                               in_itemsize, out_itemsize, fold, budget)
    else:
        NB = batch_block
    assert N % NB == 0, (N, NB)
    M = NB * H * W

    kernel = functools.partial(_conv_block_kernel, NB=NB, H=H, W=W, Cin=Cin,
                               K=K, pooling=pooling, Ho=Ho, Wo=Wo,
                               fold_taps=fold)

    scratch_shapes = [pltpu.VMEM((NB, H + 2, W + 2, Cin), compute_dtype)]
    if fold:
        scratch_shapes.append(pltpu.VMEM((M, KKC), compute_dtype))

    cost = pl.CostEstimate(
        flops=2 * N * H * W * K * K * Cin * Cout,
        transcendentals=0,
        bytes_accessed=(x.size * in_itemsize + wmat.size * in_itemsize
                        + N * Ho * Wo * out_ch * out_itemsize))

    out = pl.pallas_call(
        kernel,
        out_shape=jax.ShapeDtypeStruct((N, Ho, Wo, out_ch), out_dtype),
        grid_spec=pltpu.PrefetchScalarGridSpec(
            num_scalar_prefetch=0,
            grid=(N // NB, n_co),
            in_specs=[
                pl.BlockSpec((NB, H, W, Cin), lambda b, c: (b, 0, 0, 0)),
                pl.BlockSpec((KKC, TCo), lambda b, c: (0, c)),
                pl.BlockSpec((1, TCo), lambda b, c: (0, c)),
                pl.BlockSpec((1, TCo), lambda b, c: (0, c)),
            ],
            out_specs=pl.BlockSpec((NB, Ho, Wo, block_co),
                                   lambda b, c: (b, 0, 0, c)),
            scratch_shapes=scratch_shapes,
        ),
        compiler_params=pltpu.CompilerParams(
            dimension_semantics=("parallel", "arbitrary"),
            vmem_limit_bytes=vmem_limit),
        cost_estimate=cost,
    )(x, wmat, scale_p, bias_p)

    if out_ch != Cout:
        out = out[..., :Cout]
    return jnp.transpose(out, (0, 3, 1, 2))


def _reference_forward(x, conv_w, conv_b, gamma, beta, mean, var,
                       *, pooling=False, eps=1e-5):
    """Pure-JAX reference of the same eval-mode forward pass (NCHW)."""
    y = jax.lax.conv_general_dilated(
        x, conv_w, window_strides=(1, 1), padding=((1, 1), (1, 1)),
        dimension_numbers=('NCHW', 'OIHW', 'NCHW'))
    y = y + conv_b[None, :, None, None]
    inv = 1.0 / jnp.sqrt(var + eps)
    y = (y - mean[None, :, None, None]) * (gamma * inv)[None, :, None, None] \
        + beta[None, :, None, None]
    y = jnp.maximum(y, 0.0)
    if pooling:
        y = jax.lax.reduce_window(y, -jnp.inf, jax.lax.max,
                                  (1, 1, 2, 2), (1, 1, 2, 2), 'VALID')
    return y


if __name__ == "__main__":
    # Deterministic synthetic parameters (shapes implied by the module __init__).
    N, Cin, Cout, H, W, K = 2, 4, 8, 16, 16, 3
    key = jax.random.PRNGKey(0)
    kx, kw_, kb, kg, kbeta, km, kv = jax.random.split(key, 7)

    x = jax.random.normal(kx, (N, Cin, H, W), dtype=jnp.float32)
    conv_w = 0.1 * jax.random.normal(kw_, (Cout, Cin, K, K), dtype=jnp.float32)
    conv_b = 0.1 * jax.random.normal(kb, (Cout,), dtype=jnp.float32)
    bn_gamma = 1.0 + 0.1 * jax.random.normal(kg, (Cout,), dtype=jnp.float32)
    bn_beta = 0.1 * jax.random.normal(kbeta, (Cout,), dtype=jnp.float32)
    bn_mean = 0.1 * jax.random.normal(km, (Cout,), dtype=jnp.float32)
    bn_var = jnp.abs(1.0 + 0.1 * jax.random.normal(kv, (Cout,), dtype=jnp.float32))

    args = (x, conv_w, conv_b, bn_gamma, bn_beta, bn_mean, bn_var)
    ref = _reference_forward(*args, pooling=False)
    ref_p = _reference_forward(*args, pooling=True)

    def run(fold, **kw):
        return jax.block_until_ready(
            conv_block_forward(*args, fold_taps=fold, **kw))

    # Prefer the folded-im2col matmul path; gracefully fall back to per-tap
    # matmuls if this Mosaic build rejects the unaligned lane-window stores used
    # to assemble the im2col buffer.
    fold = True
    try:
        out = run(True, pooling=False, compute_dtype=jnp.float32)
    except Exception:
        fold = False
        out = run(False, pooling=False, compute_dtype=jnp.float32)

    assert out.shape == (N, Cout, H, W)
    assert jnp.allclose(out, ref, rtol=1e-2, atol=1e-2), "f32 conv mismatch"

    # f32 path with MaxPool2d(2, 2).
    out_p = run(fold, pooling=True, compute_dtype=jnp.float32)
    assert out_p.shape == (N, Cout, H // 2, W // 2)
    assert jnp.allclose(out_p, ref_p, rtol=1e-2, atol=1e-2), "pooled mismatch"

    # Default bf16 storage/MXU path (f32 accumulation + f32 epilogue).
    out_bf = run(fold, pooling=False)
    assert out_bf.shape == (N, Cout, H, W)
    assert jnp.allclose(out_bf, ref, rtol=6e-2, atol=6e-2), "bf16 conv mismatch"

    print("KERNEL_OK")
</pallas_src>

<mosaic_0001>
module attributes {stable_mosaic.version = 11 : i64} {
  func.func @_conv_block_kernel(%arg0: i32, %arg1: i32, %arg2: memref<1x16x16x4xf32, #tpu.memory_space<vmem>>, %arg3: memref<36x128xf32, #tpu.memory_space<vmem>>, %arg4: memref<1x128xf32, #tpu.memory_space<vmem>>, %arg5: memref<1x128xf32, #tpu.memory_space<vmem>>, %arg6: memref<1x16x16x8xf32, #tpu.memory_space<vmem>>, %arg7: memref<1x18x18x4xf32, #tpu.memory_space<vmem>>, %arg8: memref<256x36xf32, #tpu.memory_space<vmem>>) attributes {dimension_semantics = [#tpu.dimension_semantics<parallel>, #tpu.dimension_semantics<arbitrary>], iteration_bounds = array<i64: 2, 1>, scalar_prefetch = 0 : i64, scratch_operands = 2 : i64, tpu.core_type = #tpu.core_type<tc>, window_params = [{transform_indices = @transform_0, window_bounds = array<i64: 1, 16, 16, 4>}, {transform_indices = @transform_1, window_bounds = array<i64: 36, 128>}, {transform_indices = @transform_2, window_bounds = array<i64: 1, 128>}, {transform_indices = @transform_3, window_bounds = array<i64: 1, 128>}, {transform_indices = @transform_4, window_bounds = array<i64: 1, 16, 16, 8>}]} {
    %c0_i32 = arith.constant 0 : i32
    %0 = arith.cmpi eq, %arg1, %c0_i32 : i32
    %1 = arith.extui %0 : i1 to i32
    %c0_i32_0 = arith.constant 0 : i32
    %2 = arith.cmpi ne, %1, %c0_i32_0 : i32
    scf.if %2 {
      %cst_13 = arith.constant 0.000000e+00 : f32
      %17 = vector.broadcast %cst_13 : f32 to vector<1x1x18x4xf32>
      %cst_14 = arith.constant 0.000000e+00 : f32
      %18 = vector.broadcast %cst_14 : f32 to vector<1x18x1x4xf32>
      %c0_15 = arith.constant 0 : index
      %c0_16 = arith.constant 0 : index
      %c0_17 = arith.constant 0 : index
      %c0_18 = arith.constant 0 : index
      %19 = vector.load %arg7[%c0_15, %c0_16, %c0_17, %c0_18] : memref<1x18x18x4xf32, #tpu.memory_space<vmem>>, vector<1x1x18x4xf32>
      tpu.vector_store %arg7[%c0_15, %c0_16, %c0_17, %c0_18], %17 {strides = array<i32>} : memref<1x18x18x4xf32, #tpu.memory_space<vmem>>, vector<1x1x18x4xf32>,
      %c0_19 = arith.constant 0 : index
      %c17 = arith.constant 17 : index
      %c0_20 = arith.constant 0 : index
      %c0_21 = arith.constant 0 : index
      %20 = vector.load %arg7[%c0_19, %c17, %c0_20, %c0_21] : memref<1x18x18x4xf32, #tpu.memory_space<vmem>>, vector<1x1x18x4xf32>
      tpu.vector_store %arg7[%c0_19, %c17, %c0_20, %c0_21], %17 {strides = array<i32>} : memref<1x18x18x4xf32, #tpu.memory_space<vmem>>, vector<1x1x18x4xf32>,
      %c0_22 = arith.constant 0 : index
      %c0_23 = arith.constant 0 : index
      %c0_24 = arith.constant 0 : index
      %c0_25 = arith.constant 0 : index
      %21 = vector.load %arg7[%c0_22, %c0_23, %c0_24, %c0_25] : memref<1x18x18x4xf32, #tpu.memory_space<vmem>>, vector<1x18x1x4xf32>
      tpu.vector_store %arg7[%c0_22, %c0_23, %c0_24, %c0_25], %18 {strides = array<i32>} : memref<1x18x18x4xf32, #tpu.memory_space<vmem>>, vector<1x18x1x4xf32>,
      %c0_26 = arith.constant 0 : index
      %c0_27 = arith.constant 0 : index
      %c17_28 = arith.constant 17 : index
      %c0_29 = arith.constant 0 : index
      %22 = vector.load %arg7[%c0_26, %c0_27, %c17_28, %c0_29] : memref<1x18x18x4xf32, #tpu.memory_space<vmem>>, vector<1x18x1x4xf32>
      tpu.vector_store %arg7[%c0_26, %c0_27, %c17_28, %c0_29], %18 {strides = array<i32>} : memref<1x18x18x4xf32, #tpu.memory_space<vmem>>, vector<1x18x1x4xf32>,
      %c0_30 = arith.constant 0 : index
      %c0_31 = arith.constant 0 : index
      %c0_32 = arith.constant 0 : index
      %c0_33 = arith.constant 0 : index
      %23 = vector.load %arg2[%c0_30, %c0_31, %c0_32, %c0_33] : memref<1x16x16x4xf32, #tpu.memory_space<vmem>>, vector<1x16x16x4xf32>
      %c0_34 = arith.constant 0 : index
      %c1 = arith.constant 1 : index
      %c1_35 = arith.constant 1 : index
      %c0_36 = arith.constant 0 : index
      %24 = vector.load %arg7[%c0_34, %c1, %c1_35, %c0_36] : memref<1x18x18x4xf32, #tpu.memory_space<vmem>>, vector<1x16x16x4xf32>
      tpu.vector_store %arg7[%c0_34, %c1, %c1_35, %c0_36], %23 {strides = array<i32>} : memref<1x18x18x4xf32, #tpu.memory_space<vmem>>, vector<1x16x16x4xf32>,
      %c0_37 = arith.constant 0 : index
      %c0_38 = arith.constant 0 : index
      %c0_39 = arith.constant 0 : index
      %c0_40 = arith.constant 0 : index
      %25 = vector.load %arg7[%c0_37, %c0_38, %c0_39, %c0_40] : memref<1x18x18x4xf32, #tpu.memory_space<vmem>>, vector<1x16x16x4xf32>
      %26 = vector.shape_cast %25 : vector<1x16x16x4xf32> to vector<256x4xf32>
      %c0_41 = arith.constant 0 : index
      %c0_42 = arith.constant 0 : index
      %27 = vector.load %arg8[%c0_41, %c0_42] : memref<256x36xf32, #tpu.memory_space<vmem>>, vector<256x4xf32>
      tpu.vector_store %arg8[%c0_41, %c0_42], %26 {strides = array<i32>} : memref<256x36xf32, #tpu.memory_space<vmem>>, vector<256x4xf32>,
      %c0_43 = arith.constant 0 : index
      %c0_44 = arith.constant 0 : index
      %c1_45 = arith.constant 1 : index
      %c0_46 = arith.constant 0 : index
      %28 = vector.load %arg7[%c0_43, %c0_44, %c1_45, %c0_46] : memref<1x18x18x4xf32, #tpu.memory_space<vmem>>, vector<1x16x16x4xf32>
      %29 = vector.shape_cast %28 : vector<1x16x16x4xf32> to vector<256x4xf32>
      %c0_47 = arith.constant 0 : index
      %c4 = arith.constant 4 : index
      %30 = vector.load %arg8[%c0_47, %c4] : memref<256x36xf32, #tpu.memory_space<vmem>>, vector<256x4xf32>
      tpu.vector_store %arg8[%c0_47, %c4], %29 {strides = array<i32>} : memref<256x36xf32, #tpu.memory_space<vmem>>, vector<256x4xf32>,
      %c0_48 = arith.constant 0 : index
      %c0_49 = arith.constant 0 : index
      %c2 = arith.constant 2 : index
      %c0_50 = arith.constant 0 : index
      %31 = vector.load %arg7[%c0_48, %c0_49, %c2, %c0_50] : memref<1x18x18x4xf32, #tpu.memory_space<vmem>>, vector<1x16x16x4xf32>
      %32 = vector.shape_cast %31 : vector<1x16x16x4xf32> to vector<256x4xf32>
      %c0_51 = arith.constant 0 : index
      %c8 = arith.constant 8 : index
      %33 = vector.load %arg8[%c0_51, %c8] : memref<256x36xf32, #tpu.memory_space<vmem>>, vector<256x4xf32>
      tpu.vector_store %arg8[%c0_51, %c8], %32 {strides = array<i32>} : memref<256x36xf32, #tpu.memory_space<vmem>>, vector<256x4xf32>,
      %c0_52 = arith.constant 0 : index
      %c1_53 = arith.constant 1 : index
      %c0_54 = arith.constant 0 : index
      %c0_55 = arith.constant 0 : index
      %34 = vector.load %arg7[%c0_52, %c1_53, %c0_54, %c0_55] : memref<1x18x18x4xf32, #tpu.memory_space<vmem>>, vector<1x16x16x4xf32>
      %35 = vector.shape_cast %34 : vector<1x16x16x4xf32> to vector<256x4xf32>
      %c0_56 = arith.constant 0 : index
      %c12 = arith.constant 12 : index
      %36 = vector.load %arg8[%c0_56, %c12] : memref<256x36xf32, #tpu.memory_space<vmem>>, vector<256x4xf32>
      tpu.vector_store %arg8[%c0_56, %c12], %35 {strides = array<i32>} : memref<256x36xf32, #tpu.memory_space<vmem>>, vector<256x4xf32>,
      %c0_57 = arith.constant 0 : index
      %c1_58 = arith.constant 1 : index
      %c1_59 = arith.constant 1 : index
      %c0_60 = arith.constant 0 : index
      %37 = vector.load %arg7[%c0_57, %c1_58, %c1_59, %c0_60] : memref<1x18x18x4xf32, #tpu.memory_space<vmem>>, vector<1x16x16x4xf32>
      %38 = vector.shape_cast %37 : vector<1x16x16x4xf32> to vector<256x4xf32>
      %c0_61 = arith.constant 0 : index
      %c16 = arith.constant 16 : index
      %39 = vector.load %arg8[%c0_61, %c16] : memref<256x36xf32, #tpu.memory_space<vmem>>, vector<256x4xf32>
      tpu.vector_store %arg8[%c0_61, %c16], %38 {strides = array<i32>} : memref<256x36xf32, #tpu.memory_space<vmem>>, vector<256x4xf32>,
      %c0_62 = arith.constant 0 : index
      %c1_63 = arith.constant 1 : index
      %c2_64 = arith.constant 2 : index
      %c0_65 = arith.constant 0 : index
      %40 = vector.load %arg7[%c0_62, %c1_63, %c2_64, %c0_65] : memref<1x18x18x4xf32, #tpu.memory_space<vmem>>, vector<1x16x16x4xf32>
      %41 = vector.shape_cast %40 : vector<1x16x16x4xf32> to vector<256x4xf32>
      %c0_66 = arith.constant 0 : index
      %c20 = arith.constant 20 : index
      %42 = vector.load %arg8[%c0_66, %c20] : memref<256x36xf32, #tpu.memory_space<vmem>>, vector<256x4xf32>
      tpu.vector_store %arg8[%c0_66, %c20], %41 {strides = array<i32>} : memref<256x36xf32, #tpu.memory_space<vmem>>, vector<256x4xf32>,
      %c0_67 = arith.constant 0 : index
      %c2_68 = arith.constant 2 : index
      %c0_69 = arith.constant 0 : index
      %c0_70 = arith.constant 0 : index
      %43 = vector.load %arg7[%c0_67, %c2_68, %c0_69, %c0_70] : memref<1x18x18x4xf32, #tpu.memory_space<vmem>>, vector<1x16x16x4xf32>
      %44 = vector.shape_cast %43 : vector<1x16x16x4xf32> to vector<256x4xf32>
      %c0_71 = arith.constant 0 : index
      %c24 = arith.constant 24 : index
      %45 = vector.load %arg8[%c0_71, %c24] : memref<256x36xf32, #tpu.memory_space<vmem>>, vector<256x4xf32>
      tpu.vector_store %arg8[%c0_71, %c24], %44 {strides = array<i32>} : memref<256x36xf32, #tpu.memory_space<vmem>>, vector<256x4xf32>,
      %c0_72 = arith.constant 0 : index
      %c2_73 = arith.constant 2 : index
      %c1_74 = arith.constant 1 : index
      %c0_75 = arith.constant 0 : index
      %46 = vector.load %arg7[%c0_72, %c2_73, %c1_74, %c0_75] : memref<1x18x18x4xf32, #tpu.memory_space<vmem>>, vector<1x16x16x4xf32>
      %47 = vector.shape_cast %46 : vector<1x16x16x4xf32> to vector<256x4xf32>
      %c0_76 = arith.constant 0 : index
      %c28 = arith.constant 28 : index
      %48 = vector.load %arg8[%c0_76, %c28] : memref<256x36xf32, #tpu.memory_space<vmem>>, vector<256x4xf32>
      tpu.vector_store %arg8[%c0_76, %c28], %47 {strides = array<i32>} : memref<256x36xf32, #tpu.memory_space<vmem>>, vector<256x4xf32>,
      %c0_77 = arith.constant 0 : index
      %c2_78 = arith.constant 2 : index
      %c2_79 = arith.constant 2 : index
      %c0_80 = arith.constant 0 : index
      %49 = vector.load %arg7[%c0_77, %c2_78, %c2_79, %c0_80] : memref<1x18x18x4xf32, #tpu.memory_space<vmem>>, vector<1x16x16x4xf32>
      %50 = vector.shape_cast %49 : vector<1x16x16x4xf32> to vector<256x4xf32>
      %c0_81 = arith.constant 0 : index
      %c32 = arith.constant 32 : index
      %51 = vector.load %arg8[%c0_81, %c32] : memref<256x36xf32, #tpu.memory_space<vmem>>, vector<256x4xf32>
      tpu.vector_store %arg8[%c0_81, %c32], %50 {strides = array<i32>} : memref<256x36xf32, #tpu.memory_space<vmem>>, vector<256x4xf32>,
    } else {
    }
    %c0 = arith.constant 0 : index
    %c0_1 = arith.constant 0 : index
    %3 = vector.load %arg8[%c0, %c0_1] : memref<256x36xf32, #tpu.memory_space<vmem>>, vector<256x36xf32>
    %c0_2 = arith.constant 0 : index
    %c0_3 = arith.constant 0 : index
    %4 = vector.load %arg3[%c0_2, %c0_3] : memref<36x128xf32, #tpu.memory_space<vmem>>, vector<36x128xf32>
    %cst = arith.constant dense<0.000000e+00> : vector<256x128xf32>
    %5 = tpu.matmul %3, %4, %cst {dimension_numbers = #tpu.dot_dimension_numbers<[1], [0], [0], [1], [0, 0, 1, 1], [], []>} : vector<256x36xf32>, vector<36x128xf32>, vector<256x128xf32> -> vector<256x128xf32>
    %c0_4 = arith.constant 0 : index
    %c0_5 = arith.constant 0 : index
    %6 = vector.load %arg4[%c0_4, %c0_5] : memref<1x128xf32, #tpu.memory_space<vmem>>, vector<1x128xf32>
    %7 = vector.broadcast %6 : vector<1x128xf32> to vector<256x128xf32>
    %8 = arith.mulf %5, %7 : vector<256x128xf32>
    %c0_6 = arith.constant 0 : index
    %c0_7 = arith.constant 0 : index
    %9 = vector.load %arg5[%c0_6, %c0_7] : memref<1x128xf32, #tpu.memory_space<vmem>>, vector<1x128xf32>
    %10 = vector.broadcast %9 : vector<1x128xf32> to vector<256x128xf32>
    %11 = arith.addf %8, %10 : vector<256x128xf32>
    %cst_8 = arith.constant 0.000000e+00 : f32
    %12 = vector.broadcast %cst_8 : f32 to vector<256x128xf32>
    %13 = arith.maximumf %11, %12 : vector<256x128xf32>
    %14 = vector.shape_cast %13 : vector<256x128xf32> to vector<1x16x16x128xf32>
    %15 = vector.extract_strided_slice %14 {offsets = [0, 0, 0, 0], sizes = [1, 16, 16, 8], strides = [1, 1, 1, 1]} : vector<1x16x16x128xf32> to vector<1x16x16x8xf32>
    %c0_9 = arith.constant 0 : index
    %c0_10 = arith.constant 0 : index
    %c0_11 = arith.constant 0 : index
    %c0_12 = arith.constant 0 : index
    %16 = vector.load %arg6[%c0_9, %c0_10, %c0_11, %c0_12] : memref<1x16x16x8xf32, #tpu.memory_space<vmem>>, vector<1x16x16x8xf32>
    tpu.vector_store %arg6[%c0_9, %c0_10, %c0_11, %c0_12], %15 {strides = array<i32>} : memref<1x16x16x8xf32, #tpu.memory_space<vmem>>, vector<1x16x16x8xf32>,
    return
  }
  func.func @transform_0(%arg0: i32, %arg1: i32) -> (i32, i32, i32, i32) {
    %c0_i32 = arith.constant 0 : i32
    %c0_i32_0 = arith.constant 0 : i32
    %c0_i32_1 = arith.constant 0 : i32
    %c0_i32_2 = arith.constant 0 : i32
    return %arg0, %c0_i32, %c0_i32_0, %c0_i32_1 : i32, i32, i32, i32
  }
  func.func @transform_1(%arg0: i32, %arg1: i32) -> (i32, i32) {
    %c0_i32 = arith.constant 0 : i32
    %c0_i32_0 = arith.constant 0 : i32
    return %c0_i32, %arg1 : i32, i32
  }
  func.func @transform_2(%arg0: i32, %arg1: i32) -> (i32, i32) {
    %c0_i32 = arith.constant 0 : i32
    %c0_i32_0 = arith.constant 0 : i32
    return %c0_i32, %arg1 : i32, i32
  }
  func.func @transform_3(%arg0: i32, %arg1: i32) -> (i32, i32) {
    %c0_i32 = arith.constant 0 : i32
    %c0_i32_0 = arith.constant 0 : i32
    return %c0_i32, %arg1 : i32, i32
  }
  func.func @transform_4(%arg0: i32, %arg1: i32) -> (i32, i32, i32, i32) {
    %c0_i32 = arith.constant 0 : i32
    %c0_i32_0 = arith.constant 0 : i32
    %c0_i32_1 = arith.constant 0 : i32
    return %arg0, %c0_i32, %c0_i32_0, %arg1 : i32, i32, i32, i32
  }
}

module attributes {stable_mosaic.version = 11 : i64} {
  func.func @_conv_block_kernel(%arg0: i32, %arg1: i32, %arg2: memref<1x16x16x4xf32, #tpu.memory_space<vmem>>, %arg3: memref<36x128xf32, #tpu.memory_space<vmem>>, %arg4: memref<1x128xf32, #tpu.memory_space<vmem>>, %arg5: memref<1x128xf32, #tpu.memory_space<vmem>>, %arg6: memref<1x16x16x8xf32, #tpu.memory_space<vmem>>, %arg7: memref<1x18x18x4xf32, #tpu.memory_space<vmem>>) attributes {dimension_semantics = [#tpu.dimension_semantics<parallel>, #tpu.dimension_semantics<arbitrary>], iteration_bounds = array<i64: 2, 1>, scalar_prefetch = 0 : i64, scratch_operands = 1 : i64, tpu.core_type = #tpu.core_type<tc>, window_params = [{transform_indices = @transform_0, window_bounds = array<i64: 1, 16, 16, 4>}, {transform_indices = @transform_1, window_bounds = array<i64: 36, 128>}, {transform_indices = @transform_2, window_bounds = array<i64: 1, 128>}, {transform_indices = @transform_3, window_bounds = array<i64: 1, 128>}, {transform_indices = @transform_4, window_bounds = array<i64: 1, 16, 16, 8>}]} {
    %c0_i32 = arith.constant 0 : i32
    %0 = arith.cmpi eq, %arg1, %c0_i32 : i32
    %1 = arith.extui %0 : i1 to i32
    %c0_i32_0 = arith.constant 0 : i32
    %2 = arith.cmpi ne, %1, %c0_i32_0 : i32
    scf.if %2 {
      %cst_62 = arith.constant 0.000000e+00 : f32
      %60 = vector.broadcast %cst_62 : f32 to vector<1x1x18x4xf32>
      %cst_63 = arith.constant 0.000000e+00 : f32
      %61 = vector.broadcast %cst_63 : f32 to vector<1x18x1x4xf32>
      %c0_64 = arith.constant 0 : index
      %c0_65 = arith.constant 0 : index
      %c0_66 = arith.constant 0 : index
      %c0_67 = arith.constant 0 : index
      %62 = vector.load %arg7[%c0_64, %c0_65, %c0_66, %c0_67] : memref<1x18x18x4xf32, #tpu.memory_space<vmem>>, vector<1x1x18x4xf32>
      tpu.vector_store %arg7[%c0_64, %c0_65, %c0_66, %c0_67], %60 {strides = array<i32>} : memref<1x18x18x4xf32, #tpu.memory_space<vmem>>, vector<1x1x18x4xf32>,
      %c0_68 = arith.constant 0 : index
      %c17 = arith.constant 17 : index
      %c0_69 = arith.constant 0 : index
      %c0_70 = arith.constant 0 : index
      %63 = vector.load %arg7[%c0_68, %c17, %c0_69, %c0_70] : memref<1x18x18x4xf32, #tpu.memory_space<vmem>>, vector<1x1x18x4xf32>
      tpu.vector_store %arg7[%c0_68, %c17, %c0_69, %c0_70], %60 {strides = array<i32>} : memref<1x18x18x4xf32, #tpu.memory_space<vmem>>, vector<1x1x18x4xf32>,
      %c0_71 = arith.constant 0 : index
      %c0_72 = arith.constant 0 : index
      %c0_73 = arith.constant 0 : index
      %c0_74 = arith.constant 0 : index
      %64 = vector.load %arg7[%c0_71, %c0_72, %c0_73, %c0_74] : memref<1x18x18x4xf32, #tpu.memory_space<vmem>>, vector<1x18x1x4xf32>
      tpu.vector_store %arg7[%c0_71, %c0_72, %c0_73, %c0_74], %61 {strides = array<i32>} : memref<1x18x18x4xf32, #tpu.memory_space<vmem>>, vector<1x18x1x4xf32>,
      %c0_75 = arith.constant 0 : index
      %c0_76 = arith.constant 0 : index
      %c17_77 = arith.constant 17 : index
      %c0_78 = arith.constant 0 : index
      %65 = vector.load %arg7[%c0_75, %c0_76, %c17_77, %c0_78] : memref<1x18x18x4xf32, #tpu.memory_space<vmem>>, vector<1x18x1x4xf32>
      tpu.vector_store %arg7[%c0_75, %c0_76, %c17_77, %c0_78], %61 {strides = array<i32>} : memref<1x18x18x4xf32, #tpu.memory_space<vmem>>, vector<1x18x1x4xf32>,
      %c0_79 = arith.constant 0 : index
      %c0_80 = arith.constant 0 : index
      %c0_81 = arith.constant 0 : index
      %c0_82 = arith.constant 0 : index
      %66 = vector.load %arg2[%c0_79, %c0_80, %c0_81, %c0_82] : memref<1x16x16x4xf32, #tpu.memory_space<vmem>>, vector<1x16x16x4xf32>
      %c0_83 = arith.constant 0 : index
      %c1_84 = arith.constant 1 : index
      %c1_85 = arith.constant 1 : index
      %c0_86 = arith.constant 0 : index
      %67 = vector.load %arg7[%c0_83, %c1_84, %c1_85, %c0_86] : memref<1x18x18x4xf32, #tpu.memory_space<vmem>>, vector<1x16x16x4xf32>
      tpu.vector_store %arg7[%c0_83, %c1_84, %c1_85, %c0_86], %66 {strides = array<i32>} : memref<1x18x18x4xf32, #tpu.memory_space<vmem>>, vector<1x16x16x4xf32>,
    } else {
    }
    %cst = arith.constant 0.000000e+00 : f32
    %3 = vector.broadcast %cst : f32 to vector<256x128xf32>
    %c0 = arith.constant 0 : index
    %c0_1 = arith.constant 0 : index
    %c0_2 = arith.constant 0 : index
    %c0_3 = arith.constant 0 : index
    %4 = vector.load %arg7[%c0, %c0_1, %c0_2, %c0_3] : memref<1x18x18x4xf32, #tpu.memory_space<vmem>>, vector<1x16x16x4xf32>
    %5 = vector.shape_cast %4 : vector<1x16x16x4xf32> to vector<256x4xf32>
    %c0_4 = arith.constant 0 : index
    %c0_5 = arith.constant 0 : index
    %6 = vector.load %arg3[%c0_4, %c0_5] : memref<36x128xf32, #tpu.memory_space<vmem>>, vector<4x128xf32>
    %cst_6 = arith.constant dense<0.000000e+00> : vector<256x128xf32>
    %7 = tpu.matmul %5, %6, %cst_6 {dimension_numbers = #tpu.dot_dimension_numbers<[1], [0], [0], [1], [0, 0, 1, 1], [], []>} : vector<256x4xf32>, vector<4x128xf32>, vector<256x128xf32> -> vector<256x128xf32>
    %8 = arith.addf %3, %7 : vector<256x128xf32>
    %c0_7 = arith.constant 0 : index
    %c0_8 = arith.constant 0 : index
    %c1 = arith.constant 1 : index
    %c0_9 = arith.constant 0 : index
    %9 = vector.load %arg7[%c0_7, %c0_8, %c1, %c0_9] : memref<1x18x18x4xf32, #tpu.memory_space<vmem>>, vector<1x16x16x4xf32>
    %10 = vector.shape_cast %9 : vector<1x16x16x4xf32> to vector<256x4xf32>
    %c4 = arith.constant 4 : index
    %c0_10 = arith.constant 0 : index
    %11 = vector.load %arg3[%c4, %c0_10] : memref<36x128xf32, #tpu.memory_space<vmem>>, vector<4x128xf32>
    %cst_11 = arith.constant dense<0.000000e+00> : vector<256x128xf32>
    %12 = tpu.matmul %10, %11, %cst_11 {dimension_numbers = #tpu.dot_dimension_numbers<[1], [0], [0], [1], [0, 0, 1, 1], [], []>} : vector<256x4xf32>, vector<4x128xf32>, vector<256x128xf32> -> vector<256x128xf32>
    %13 = arith.addf %8, %12 : vector<256x128xf32>
    %c0_12 = arith.constant 0 : index
    %c0_13 = arith.constant 0 : index
    %c2 = arith.constant 2 : index
    %c0_14 = arith.constant 0 : index
    %14 = vector.load %arg7[%c0_12, %c0_13, %c2, %c0_14] : memref<1x18x18x4xf32, #tpu.memory_space<vmem>>, vector<1x16x16x4xf32>
    %15 = vector.shape_cast %14 : vector<1x16x16x4xf32> to vector<256x4xf32>
    %c8 = arith.constant 8 : index
    %c0_15 = arith.constant 0 : index
    %16 = vector.load %arg3[%c8, %c0_15] : memref<36x128xf32, #tpu.memory_space<vmem>>, vector<4x128xf32>
    %cst_16 = arith.constant dense<0.000000e+00> : vector<256x128xf32>
    %17 = tpu.matmul %15, %16, %cst_16 {dimension_numbers = #tpu.dot_dimension_numbers<[1], [0], [0], [1], [0, 0, 1, 1], [], []>} : vector<256x4xf32>, vector<4x128xf32>, vector<256x128xf32> -> vector<256x128xf32>
    %18 = arith.addf %13, %17 : vector<256x128xf32>
    %c0_17 = arith.constant 0 : index
    %c1_18 = arith.constant 1 : index
    %c0_19 = arith.constant 0 : index
    %c0_20 = arith.constant 0 : index
    %19 = vector.load %arg7[%c0_17, %c1_18, %c0_19, %c0_20] : memref<1x18x18x4xf32, #tpu.memory_space<vmem>>, vector<1x16x16x4xf32>
    %20 = vector.shape_cast %19 : vector<1x16x16x4xf32> to vector<256x4xf32>
    %c12 = arith.constant 12 : index
    %c0_21 = arith.constant 0 : index
    %21 = vector.load %arg3[%c12, %c0_21] : memref<36x128xf32, #tpu.memory_space<vmem>>, vector<4x128xf32>
    %cst_22 = arith.constant dense<0.000000e+00> : vector<256x128xf32>
    %22 = tpu.matmul %20, %21, %cst_22 {dimension_numbers = #tpu.dot_dimension_numbers<[1], [0], [0], [1], [0, 0, 1, 1], [], []>} : vector<256x4xf32>, vector<4x128xf32>, vector<256x128xf32> -> vector<256x128xf32>
    %23 = arith.addf %18, %22 : vector<256x128xf32>
    %c0_23 = arith.constant 0 : index
    %c1_24 = arith.constant 1 : index
    %c1_25 = arith.constant 1 : index
    %c0_26 = arith.constant 0 : index
    %24 = vector.load %arg7[%c0_23, %c1_24, %c1_25, %c0_26] : memref<1x18x18x4xf32, #tpu.memory_space<vmem>>, vector<1x16x16x4xf32>
    %25 = vector.shape_cast %24 : vector<1x16x16x4xf32> to vector<256x4xf32>
    %c16 = arith.constant 16 : index
    %c0_27 = arith.constant 0 : index
    %26 = vector.load %arg3[%c16, %c0_27] : memref<36x128xf32, #tpu.memory_space<vmem>>, vector<4x128xf32>
    %cst_28 = arith.constant dense<0.000000e+00> : vector<256x128xf32>
    %27 = tpu.matmul %25, %26, %cst_28 {dimension_numbers = #tpu.dot_dimension_numbers<[1], [0], [0], [1], [0, 0, 1, 1], [], []>} : vector<256x4xf32>, vector<4x128xf32>, vector<256x128xf32> -> vector<256x128xf32>
    %28 = arith.addf %23, %27 : vector<256x128xf32>
    %c0_29 = arith.constant 0 : index
    %c1_30 = arith.constant 1 : index
    %c2_31 = arith.constant 2 : index
    %c0_32 = arith.constant 0 : index
    %29 = vector.load %arg7[%c0_29, %c1_30, %c2_31, %c0_32] : memref<1x18x18x4xf32, #tpu.memory_space<vmem>>, vector<1x16x16x4xf32>
    %30 = vector.shape_cast %29 : vector<1x16x16x4xf32> to vector<256x4xf32>
    %c20 = arith.constant 20 : index
    %c0_33 = arith.constant 0 : index
    %31 = vector.load %arg3[%c20, %c0_33] : memref<36x128xf32, #tpu.memory_space<vmem>>, vector<4x128xf32>
    %cst_34 = arith.constant dense<0.000000e+00> : vector<256x128xf32>
    %32 = tpu.matmul %30, %31, %cst_34 {dimension_numbers = #tpu.dot_dimension_numbers<[1], [0], [0], [1], [0, 0, 1, 1], [], []>} : vector<256x4xf32>, vector<4x128xf32>, vector<256x128xf32> -> vector<256x128xf32>
    %33 = arith.addf %28, %32 : vector<256x128xf32>
    %c0_35 = arith.constant 0 : index
    %c2_36 = arith.constant 2 : index
    %c0_37 = arith.constant 0 : index
    %c0_38 = arith.constant 0 : index
    %34 = vector.load %arg7[%c0_35, %c2_36, %c0_37, %c0_38] : memref<1x18x18x4xf32, #tpu.memory_space<vmem>>, vector<1x16x16x4xf32>
    %35 = vector.shape_cast %34 : vector<1x16x16x4xf32> to vector<256x4xf32>
    %c24 = arith.constant 24 : index
    %c0_39 = arith.constant 0 : index
    %36 = vector.load %arg3[%c24, %c0_39] : memref<36x128xf32, #tpu.memory_space<vmem>>, vector<4x128xf32>
    %cst_40 = arith.constant dense<0.000000e+00> : vector<256x128xf32>
    %37 = tpu.matmul %35, %36, %cst_40 {dimension_numbers = #tpu.dot_dimension_numbers<[1], [0], [0], [1], [0, 0, 1, 1], [], []>} : vector<256x4xf32>, vector<4x128xf32>, vector<256x128xf32> -> vector<256x128xf32>
    %38 = arith.addf %33, %37 : vector<256x128xf32>
    %c0_41 = arith.constant 0 : index
    %c2_42 = arith.constant 2 : index
    %c1_43 = arith.constant 1 : index
    %c0_44 = arith.constant 0 : index
    %39 = vector.load %arg7[%c0_41, %c2_42, %c1_43, %c0_44] : memref<1x18x18x4xf32, #tpu.memory_space<vmem>>, vector<1x16x16x4xf32>
    %40 = vector.shape_cast %39 : vector<1x16x16x4xf32> to vector<256x4xf32>
    %c28 = arith.constant 28 : index
    %c0_45 = arith.constant 0 : index
    %41 = vector.load %arg3[%c28, %c0_45] : memref<36x128xf32, #tpu.memory_space<vmem>>, vector<4x128xf32>
    %cst_46 = arith.constant dense<0.000000e+00> : vector<256x128xf32>
    %42 = tpu.matmul %40, %41, %cst_46 {dimension_numbers = #tpu.dot_dimension_numbers<[1], [0], [0], [1], [0, 0, 1, 1], [], []>} : vector<256x4xf32>, vector<4x128xf32>, vector<256x128xf32> -> vector<256x128xf32>
    %43 = arith.addf %38, %42 : vector<256x128xf32>
    %c0_47 = arith.constant 0 : index
    %c2_48 = arith.constant 2 : index
    %c2_49 = arith.constant 2 : index
    %c0_50 = arith.constant 0 : index
    %44 = vector.load %arg7[%c0_47, %c2_48, %c2_49, %c0_50] : memref<1x18x18x4xf32, #tpu.memory_space<vmem>>, vector<1x16x16x4xf32>
    %45 = vector.shape_cast %44 : vector<1x16x16x4xf32> to vector<256x4xf32>
    %c32 = arith.constant 32 : index
    %c0_51 = arith.constant 0 : index
    %46 = vector.load %arg3[%c32, %c0_51] : memref<36x128xf32, #tpu.memory_space<vmem>>, vector<4x128xf32>
    %cst_52 = arith.constant dense<0.000000e+00> : vector<256x128xf32>
    %47 = tpu.matmul %45, %46, %cst_52 {dimension_numbers = #tpu.dot_dimension_numbers<[1], [0], [0], [1], [0, 0, 1, 1], [], []>} : vector<256x4xf32>, vector<4x128xf32>, vector<256x128xf32> -> vector<256x128xf32>
    %48 = arith.addf %43, %47 : vector<256x128xf32>
    %c0_53 = arith.constant 0 : index
    %c0_54 = arith.constant 0 : index
    %49 = vector.load %arg4[%c0_53, %c0_54] : memref<1x128xf32, #tpu.memory_space<vmem>>, vector<1x128xf32>
    %50 = vector.broadcast %49 : vector<1x128xf32> to vector<256x128xf32>
    %51 = arith.mulf %48, %50 : vector<256x128xf32>
    %c0_55 = arith.constant 0 : index
    %c0_56 = arith.constant 0 : index
    %52 = vector.load %arg5[%c0_55, %c0_56] : memref<1x128xf32, #tpu.memory_space<vmem>>, vector<1x128xf32>
    %53 = vector.broadcast %52 : vector<1x128xf32> to vector<256x128xf32>
    %54 = arith.addf %51, %53 : vector<256x128xf32>
    %cst_57 = arith.constant 0.000000e+00 : f32
    %55 = vector.broadcast %cst_57 : f32 to vector<256x128xf32>
    %56 = arith.maximumf %54, %55 : vector<256x128xf32>
    %57 = vector.shape_cast %56 : vector<256x128xf32> to vector<1x16x16x128xf32>
    %58 = vector.extract_strided_slice %57 {offsets = [0, 0, 0, 0], sizes = [1, 16, 16, 8], strides = [1, 1, 1, 1]} : vector<1x16x16x128xf32> to vector<1x16x16x8xf32>
    %c0_58 = arith.constant 0 : index
    %c0_59 = arith.constant 0 : index
    %c0_60 = arith.constant 0 : index
    %c0_61 = arith.constant 0 : index
    %59 = vector.load %arg6[%c0_58, %c0_59, %c0_60, %c0_61] : memref<1x16x16x8xf32, #tpu.memory_space<vmem>>, vector<1x16x16x8xf32>
    tpu.vector_store %arg6[%c0_58, %c0_59, %c0_60, %c0_61], %58 {strides = array<i32>} : memref<1x16x16x8xf32, #tpu.memory_space<vmem>>, vector<1x16x16x8xf32>,
    return
  }
  func.func @transform_0(%arg0: i32, %arg1: i32) -> (i32, i32, i32, i32) {
    %c0_i32 = arith.constant 0 : i32
    %c0_i32_0 = arith.constant 0 : i32
    %c0_i32_1 = arith.constant 0 : i32
    %c0_i32_2 = arith.constant 0 : i32
    return %arg0, %c0_i32, %c0_i32_0, %c0_i32_1 : i32, i32, i32, i32
  }
  func.func @transform_1(%arg0: i32, %arg1: i32) -> (i32, i32) {
    %c0_i32 = arith.constant 0 : i32
    %c0_i32_0 = arith.constant 0 : i32
    return %c0_i32, %arg1 : i32, i32
  }
  func.func @transform_2(%arg0: i32, %arg1: i32) -> (i32, i32) {
    %c0_i32 = arith.constant 0 : i32
    %c0_i32_0 = arith.constant 0 : i32
    return %c0_i32, %arg1 : i32, i32
  }
  func.func @transform_3(%arg0: i32, %arg1: i32) -> (i32, i32) {
    %c0_i32 = arith.constant 0 : i32
    %c0_i32_0 = arith.constant 0 : i32
    return %c0_i32, %arg1 : i32, i32
  }
  func.func @transform_4(%arg0: i32, %arg1: i32) -> (i32, i32, i32, i32) {
    %c0_i32 = arith.constant 0 : i32
    %c0_i32_0 = arith.constant 0 : i32
    %c0_i32_1 = arith.constant 0 : i32
    return %arg0, %c0_i32, %c0_i32_0, %arg1 : i32, i32, i32, i32
  }
}

</mosaic_0001>

<llo_original>
// kernel: tpu_custom_call.1
$region0: #{tpu_custom_call.1}
  #allocation0 [shape = 'u32[]', space=smem, size = 0x4, offset = 0x4, fixed_abs, tag = 'smem constant byte address 0x4 - core index']
  #allocation1 [shape = 'u32[144,128]{1,0:T(1,128)}', space=vmem, size = 0x12000, scoped, tag = 'internal scratch']
  #allocation2 [shape = 'f32[1,18,18,4]{3,2,1,0:T(8,128)}', space=vmem, size = 0x36000, scoped, tag = 'scratch operand']
  #allocation3 [shape = 'f32[256,36]{1,0:T(8,128)}', space=vmem, size = 0x20000, scoped, tag = 'scratch operand']
  %s0 = inlined_call_operand.vmem [shape: f32[2,16,16,4], index: 0, kind: input, shape index: {}]
  %s1 = inlined_call_operand.vmem [shape: f32[36,128], index: 1, kind: input, shape index: {}]
  %s2 = inlined_call_operand.vmem [shape: f32[1,128], index: 2, kind: input, shape index: {}]
  %s3 = inlined_call_operand.vmem [shape: f32[1,128], index: 3, kind: input, shape index: {}]
  %s4 = inlined_call_operand.vmem [shape: f32[2,16,16,8], index: 4, kind: output, shape index: {}]
  %s5 = sld [smem:[#allocation0]]
  $region53: #{tpu_custom_call.1} parent=0
    _
  %s7 = ssub.s32 1, %s5
  %s8 = scalar_select 0, %s7, %s5
  loop: start=0, step=1, limit=4
  $region2: #{tpu_custom_call.1} parent=0 // loop_pre_header
    _
  $region3: #{tpu_custom_call.1} parent=0 // loop_header
    %s10 = sphi 0, %s14
    %p11 = scmp.ge.s32.totalorder %s10, 4
    %s17 = sphi 0, %s29
    %s18 = sphi 0, %s25
    %s19 = sphi 0, %s17
    %s20 = sphi 0, %s18
    %s21 = sphi 0, %s19
    %s22 = sphi 0, %s20
    %s32 = sphi 0, %s34
    %s35 = sphi 0, %s32
    %s36 = sphi 0, %s35
    %s52 = sphi 0, %s36
    %s58 = sphi 0, %s60
    %s61 = sphi 0, %s58
    %s62 = sphi 0, %s61
    %s78 = sphi 0, %s62
    %s84 = sphi 0, %s86
    %s87 = sphi 0, %s84
    %s88 = sphi 0, %s87
    %s104 = sphi 0, %s88
    %s110 = sphi 0, %s112
    %s113 = sphi 0, %s110
    %s114 = sphi 0, %s113
    %s130 = sphi 0, %s114
    %s138 = sphi 0, %s140
    %s141 = sphi 0, %s138
    %s142 = sphi 0, %s141
    %s158 = sphi 0, %s142
  $region4: #{tpu_custom_call.1} parent=0 // loop_header_branch
    %13 = sbr.rel (%p11) target = $region8
  $region5: #{tpu_custom_call.1} parent=0 // loop_body
    %s15 = ssub.s32 %s10, 1
    %s16 = ssub.s32 %s10, 2
    %s23 = sadd.s32 1, %s18
    %p24 = scmp.ge.s32.totalorder %s23, 1
    %s25 = scalar_select %p24, 0, %s23
    %s26 = sadd.s32 1, %s17
    %s27 = scalar_select %p24, %s26, %s17
    %p28 = scmp.ge.s32.totalorder %s27, 2
    %s29 = scalar_select %p28, 0, %s27
    %s30 = ssub.s32 %s17, %s29
    %p31 = scmp.eq.s32.totalorder %s30, 0
    %s33 = sadd.s32 %s32, 1
    %s34 = scalar_select %p31, %s32, %s33
    %p37 = pneg %p31
    %p38 = scmp.eq.s32.totalorder %s10, 1
    %p39 = por %p37, %p38
    %p40 = scmp.ne.s32.totalorder %s32, %s35
    %p41 = scmp.eq.s32.totalorder %s10, 0
    %p42 = por %p40, %p41
    %p43 = scmp.ne.s32.totalorder %s32, %s35
    %p44 = scmp.eq.s32.totalorder %s15, 1
    %p45 = por %p43, %p44
    %p46 = scmp.ne.s32.totalorder %s35, %s36
    %p47 = scmp.eq.s32.totalorder %s15, 0
    %p48 = por %p46, %p47
    %p49 = scmp.ne.s32.totalorder %s35, %s36
    %p50 = scmp.eq.s32.totalorder %s16, 1
    %p51 = por %p49, %p50
    %p53 = scmp.ne.s32.totalorder %s36, %s52
    %p54 = scmp.eq.s32.totalorder %s16, 0
    %p55 = por %p53, %p54
    %s56 = ssub.s32 %s18, %s25
    %p57 = scmp.eq.s32.totalorder %s56, 0
    %s59 = sadd.s32 %s58, 1
    %s60 = scalar_select %p57, %s58, %s59
    %p63 = pneg %p57
    %p64 = scmp.eq.s32.totalorder %s10, 1
    %p65 = por %p63, %p64
    %p66 = scmp.ne.s32.totalorder %s58, %s61
    %p67 = scmp.eq.s32.totalorder %s10, 0
    %p68 = por %p66, %p67
    %p69 = scmp.ne.s32.totalorder %s58, %s61
    %p70 = scmp.eq.s32.totalorder %s15, 1
    %p71 = por %p69, %p70
    %p72 = scmp.ne.s32.totalorder %s61, %s62
    %p73 = scmp.eq.s32.totalorder %s15, 0
    %p74 = por %p72, %p73
    %p75 = scmp.ne.s32.totalorder %s61, %s62
    %p76 = scmp.eq.s32.totalorder %s16, 1
    %p77 = por %p75, %p76
    %p79 = scmp.ne.s32.totalorder %s62, %s78
    %p80 = scmp.eq.s32.totalorder %s16, 0
    %p81 = por %p79, %p80
    %s82 = ssub.s32 %s18, %s25
    %p83 = scmp.eq.s32.totalorder %s82, 0
    %s85 = sadd.s32 %s84, 1
    %s86 = scalar_select %p83, %s84, %s85
    %p89 = pneg %p83
    %p90 = scmp.eq.s32.totalorder %s10, 1
    %p91 = por %p89, %p90
    %p92 = scmp.ne.s32.totalorder %s84, %s87
    %p93 = scmp.eq.s32.totalorder %s10, 0
    %p94 = por %p92, %p93
    %p95 = scmp.ne.s32.totalorder %s84, %s87
    %p96 = scmp.eq.s32.totalorder %s15, 1
    %p97 = por %p95, %p96
    %p98 = scmp.ne.s32.totalorder %s87, %s88
    %p99 = scmp.eq.s32.totalorder %s15, 0
    %p100 = por %p98, %p99
    %p101 = scmp.ne.s32.totalorder %s87, %s88
    %p102 = scmp.eq.s32.totalorder %s16, 1
    %p103 = por %p101, %p102
    %p105 = scmp.ne.s32.totalorder %s88, %s104
    %p106 = scmp.eq.s32.totalorder %s16, 0
    %p107 = por %p105, %p106
    %s108 = ssub.s32 %s18, %s25
    %p109 = scmp.eq.s32.totalorder %s108, 0
    %s111 = sadd.s32 %s110, 1
    %s112 = scalar_select %p109, %s110, %s111
    %p115 = pneg %p109
    %p116 = scmp.eq.s32.totalorder %s10, 1
    %p117 = por %p115, %p116
    %p118 = scmp.ne.s32.totalorder %s110, %s113
    %p119 = scmp.eq.s32.totalorder %s10, 0
    %p120 = por %p118, %p119
    %p121 = scmp.ne.s32.totalorder %s110, %s113
    %p122 = scmp.eq.s32.totalorder %s15, 1
    %p123 = por %p121, %p122
    %p124 = scmp.ne.s32.totalorder %s113, %s114
    %p125 = scmp.eq.s32.totalorder %s15, 0
    %p126 = por %p124, %p125
    %p127 = scmp.ne.s32.totalorder %s113, %s114
    %p128 = scmp.eq.s32.totalorder %s16, 1
    %p129 = por %p127, %p128
    %p131 = scmp.ne.s32.totalorder %s114, %s130
    %p132 = scmp.eq.s32.totalorder %s16, 0
    %p133 = por %p131, %p132
    %s134 = ssub.s32 %s17, %s29
    %s135 = ssub.s32 %s18, %s25
    %s136 = sor.u32 %s134, %s135
    %p137 = scmp.eq.s32.totalorder %s136, 0
    %s139 = sadd.s32 %s138, 1
    %s140 = scalar_select %p137, %s138, %s139
    %p143 = pneg %p137
    %p144 = scmp.eq.s32.totalorder %s10, 1
    %p145 = por %p143, %p144
    %p146 = scmp.ne.s32.totalorder %s138, %s141
    %p147 = scmp.eq.s32.totalorder %s10, 0
    %p148 = por %p146, %p147
    %p149 = scmp.ne.s32.totalorder %s138, %s141
    %p150 = scmp.eq.s32.totalorder %s15, 1
    %p151 = por %p149, %p150
    %p152 = scmp.ne.s32.totalorder %s141, %s142
    %p153 = scmp.eq.s32.totalorder %s15, 0
    %p154 = por %p152, %p153
    %p155 = scmp.ne.s32.totalorder %s141, %s142
    %p156 = scmp.eq.s32.totalorder %s16, 1
    %p157 = por %p155, %p156
    %p159 = scmp.ne.s32.totalorder %s142, %s158
    %p160 = scmp.eq.s32.totalorder %s16, 0
    %p161 = por %p159, %p160
    %p162 = scmp.le.s32.totalorder 1, %s10
    %p163 = scmp.lt.s32.totalorder %s10, 3
    %p164 = pnand %p162, %p163
    %p165 = pneg %p164
    // Predicated region
    $region9: #{tpu_custom_call.1} parent=5 // pred_check
      _
    $region10: #{tpu_custom_call.1} parent=5 // pred_check_branch
      %167 = sbr.rel (%p164) target = $region12
    $region11: #{tpu_custom_call.1} parent=5 // pred_region
      %s168 = ssub.s32 %s10, 1
      // Predicated region
      $region13: #{tpu_custom_call.1} parent=11 // pred_check
        %p169 = pneg %p74
      $region14: #{tpu_custom_call.1} parent=11 // pred_check_branch
        %171 = sbr.rel (%p169) target = $region16
      $region15: #{tpu_custom_call.1} parent=11 // pred_region
        %p172 = scmp.lt.s32.totalorder %s20, 0
        %s173 = scalar_select %p172, %s20, 0
        %s174 = smul.addr %s173, 8
        %s175 = scalar_lea.vmem %s1, %s174
      $region16: #{tpu_custom_call.1} parent=11 // pred_fallthru
        _
      // Predicated region
      $region17: #{tpu_custom_call.1} parent=11 // pred_check
        %p176 = pneg %p100
      $region18: #{tpu_custom_call.1} parent=11 // pred_check_branch
        %178 = sbr.rel (%p176) target = $region20
      $region19: #{tpu_custom_call.1} parent=11 // pred_region
        %p179 = scmp.lt.s32.totalorder %s20, 0
        %s180 = scalar_select %p179, %s20, 0
        %s181 = scalar_lea.vmem %s2, %s180
      $region20: #{tpu_custom_call.1} parent=11 // pred_fallthru
        _
      // Predicated region
      $region21: #{tpu_custom_call.1} parent=11 // pred_check
        %p182 = pneg %p126
      $region22: #{tpu_custom_call.1} parent=11 // pred_check_branch
        %184 = sbr.rel (%p182) target = $region24
      $region23: #{tpu_custom_call.1} parent=11 // pred_region
        %p185 = scmp.lt.s32.totalorder %s20, 0
        %s186 = scalar_select %p185, %s20, 0
        %s187 = scalar_lea.vmem %s3, %s186
      $region24: #{tpu_custom_call.1} parent=11 // pred_fallthru
        _
    $region12: #{tpu_custom_call.1} parent=5 // pred_fallthru
      _
    %p188 = scmp.lt.s32.totalorder %s10, 2
    // Predicated region
    $region25: #{tpu_custom_call.1} parent=5 // pred_check
      %p189 = pneg %p188
    $region26: #{tpu_custom_call.1} parent=5 // pred_check_branch
      %191 = sbr.rel (%p189) target = $region28
    $region27: #{tpu_custom_call.1} parent=5 // pred_region
      // Predicated region
      $region29: #{tpu_custom_call.1} parent=27 // pred_check
        %p192 = pneg %p42
      $region30: #{tpu_custom_call.1} parent=27 // pred_check_branch
        %194 = sbr.rel (%p192) target = $region32
      $region31: #{tpu_custom_call.1} parent=27 // pred_region
        %p195 = scmp.lt.s32.totalorder %s17, 1
        %s196 = scalar_select %p195, %s17, 1
        %s197 = smul.addr %s196, 32
        %s198 = smul.addr %s197, 8
        %s199 = scalar_lea.vmem %s0, %s198
      $region32: #{tpu_custom_call.1} parent=27 // pred_fallthru
        _
    $region28: #{tpu_custom_call.1} parent=5 // pred_fallthru
      _
    %p200 = scmp.le.s32.totalorder 1, %s10
    %p201 = scmp.lt.s32.totalorder %s10, 3
    %p202 = pnand %p200, %p201
    %p203 = pneg %p202
    // Predicated region
    $region33: #{tpu_custom_call.1} parent=5 // pred_check
      _
    $region34: #{tpu_custom_call.1} parent=5 // pred_check_branch
      %205 = sbr.rel (%p202) target = $region36
    $region35: #{tpu_custom_call.1} parent=5 // pred_region
      %s206 = ssub.s32 %s10, 1
      %p207 = scmp.lt.s32.totalorder %s19, 1
      %s208 = scalar_select %p207, %s19, 1
      %s209 = smul.addr %s208, 32
      %s210 = smul.addr %s209, 8
      %s211 = scalar_lea.vmem %s0, %s210
      %p212 = pneg %p48
      %p213 = pneg %p45
      %p214 = scmp.lt.s32.totalorder %s20, 0
      %s215 = scalar_select %p214, %s20, 0
      %s216 = smul.addr %s215, 8
      %s217 = scalar_lea.vmem %s1, %s216
      %p218 = pneg %p74
      %p219 = pneg %p71
      %p220 = scmp.lt.s32.totalorder %s20, 0
      %s221 = scalar_select %p220, %s20, 0
      %s222 = scalar_lea.vmem %s2, %s221
      %p223 = pneg %p100
      %p224 = pneg %p97
      %p225 = scmp.lt.s32.totalorder %s20, 0
      %s226 = scalar_select %p225, %s20, 0
      %s227 = scalar_lea.vmem %s3, %s226
      %p228 = pneg %p126
      %p229 = pneg %p123
      %p230 = pneg %p154
      %p231 = pneg %p151
      %p232 = scmp.lt.s32.totalorder %s19, 1
      %s233 = scalar_select %p232, %s19, 1
      %p234 = scmp.lt.s32.totalorder %s20, 0
      %s235 = scalar_select %p234, %s20, 0
      %s236 = smul.addr %s233, 32
      %s237 = sadd.s32 %s235, %s236
      %s238 = smul.addr %s237, 8
      %s239 = scalar_lea.vmem %s4, %s238
      %p240 = scmp.lt.s32.totalorder %s19, 1
      %s241 = scalar_select %p240, %s19, 1
      %s242 = smul.addr %s241, 32
      %s243 = smul.addr %s242, 8
      %s244 = scalar_lea.vmem %s0, %s243
      %p245 = scmp.lt.s32.totalorder %s20, 0
      %s246 = scalar_select %p245, %s20, 0
      %s247 = smul.addr %s246, 8
      %s248 = scalar_lea.vmem %s1, %s247
      %p249 = scmp.lt.s32.totalorder %s20, 0
      %s250 = scalar_select %p249, %s20, 0
      %s251 = scalar_lea.vmem %s2, %s250
      %p252 = scmp.lt.s32.totalorder %s20, 0
      %s253 = scalar_select %p252, %s20, 0
      %s254 = scalar_lea.vmem %s3, %s253
      %p255 = scmp.lt.s32.totalorder %s19, 1
      %s256 = scalar_select %p255, %s19, 1
      %p257 = scmp.lt.s32.totalorder %s20, 0
      %s258 = scalar_select %p257, %s20, 0
      %s259 = smul.addr %s256, 32
      %s260 = sadd.s32 %s258, %s259
      %s261 = smul.addr %s260, 8
      %s262 = scalar_lea.vmem %s4, %s261
      %p263 = scmp.eq.s32.totalorder %s20, 0
      // Predicated region
      $region37: #{tpu_custom_call.1} parent=35 // pred_check
        %p264 = pneg %p263
      $region38: #{tpu_custom_call.1} parent=35 // pred_check_branch
        %266 = sbr.rel (%p264) target = $region40
      $region39: #{tpu_custom_call.1} parent=35 // pred_region
        %vm267 = vcmask 31744
        %268 = vst.msk [vmem:[#allocation2] sm:$0xff] %vm267, 0.0
        %269 = vst.msk [vmem:[#allocation2 + $0x8] sm:$0xff] %vm267, 0.0
        %vm270 = vcmask 25600
        %271 = vst.msk [vmem:[#allocation2 + $0x10] sm:$0x3] %vm270, 0.0
        %s272 = scalar_lea.vmem [#allocation2], 408
        %273 = vst.msk [vmem:[%s272] sm:$0xff] %vm267, 0.0
        %274 = vst.msk [vmem:[%s272 + $0x8] sm:$0xff] %vm267, 0.0
        %275 = vst.msk [vmem:[%s272 + $0x10] sm:$0x3] %vm270, 0.0
        %vm276 = vcmask 24576
        %277 = vst.msk [vmem:[#allocation2] sm:$0x1] %vm276, 0.0
        %278 = vst.msk [vmem:[#allocation2 + $0x18] sm:$0x1] %vm276, 0.0
        %279 = vst.msk [vmem:[#allocation2 + $0x30] sm:$0x1] %vm276, 0.0
        %280 = vst.msk [vmem:[#allocation2 + $0x48] sm:$0x1] %vm276, 0.0
        %281 = vst.msk [vmem:[#allocation2 + $0x60] sm:$0x1] %vm276, 0.0
        %282 = vst.msk [vmem:[#allocation2 + $0x78] sm:$0x1] %vm276, 0.0
        %283 = vst.msk [vmem:[#allocation2 + $0x90] sm:$0x1] %vm276, 0.0
        %284 = vst.msk [vmem:[#allocation2 + $0xa8] sm:$0x1] %vm276, 0.0
        %285 = vst.msk [vmem:[#allocation2 + $0xc0] sm:$0x1] %vm276, 0.0
        %286 = vst.msk [vmem:[#allocation2 + $0xd8] sm:$0x1] %vm276, 0.0
        %287 = vst.msk [vmem:[#allocation2 + $0xf0] sm:$0x1] %vm276, 0.0
        %288 = vst.msk [vmem:[#allocation2 + $0x108] sm:$0x1] %vm276, 0.0
        %289 = vst.msk [vmem:[#allocation2 + $0x120] sm:$0x1] %vm276, 0.0
        %290 = vst.msk [vmem:[#allocation2 + $0x138] sm:$0x1] %vm276, 0.0
        %291 = vst.msk [vmem:[#allocation2 + $0x150] sm:$0x1] %vm276, 0.0
        %292 = vst.msk [vmem:[#allocation2 + $0x168] sm:$0x1] %vm276, 0.0
        %293 = vst.msk [vmem:[#allocation2 + $0x180] sm:$0x1] %vm276, 0.0
        %294 = vst.msk [vmem:[#allocation2 + $0x198] sm:$0x1] %vm276, 0.0
        %295 = vst.msk [vmem:[#allocation2 + $0x11] sm:$0x1] %vm276, 0.0
        %296 = vst.msk [vmem:[#allocation2 + $0x29] sm:$0x1] %vm276, 0.0
        %297 = vst.msk [vmem:[#allocation2 + $0x41] sm:$0x1] %vm276, 0.0
        %298 = vst.msk [vmem:[#allocation2 + $0x59] sm:$0x1] %vm276, 0.0
        %299 = vst.msk [vmem:[#allocation2 + $0x71] sm:$0x1] %vm276, 0.0
        %300 = vst.msk [vmem:[#allocation2 + $0x89] sm:$0x1] %vm276, 0.0
        %301 = vst.msk [vmem:[#allocation2 + $0xa1] sm:$0x1] %vm276, 0.0
        %302 = vst.msk [vmem:[#allocation2 + $0xb9] sm:$0x1] %vm276, 0.0
        %303 = vst.msk [vmem:[#allocation2 + $0xd1] sm:$0x1] %vm276, 0.0
        %304 = vst.msk [vmem:[#allocation2 + $0xe9] sm:$0x1] %vm276, 0.0
        %305 = vst.msk [vmem:[#allocation2 + $0x101] sm:$0x1] %vm276, 0.0
        %306 = vst.msk [vmem:[#allocation2 + $0x119] sm:$0x1] %vm276, 0.0
        %307 = vst.msk [vmem:[#allocation2 + $0x131] sm:$0x1] %vm276, 0.0
        %308 = vst.msk [vmem:[#allocation2 + $0x149] sm:$0x1] %vm276, 0.0
        %309 = vst.msk [vmem:[#allocation2 + $0x161] sm:$0x1] %vm276, 0.0
        %310 = vst.msk [vmem:[#allocation2 + $0x179] sm:$0x1] %vm276, 0.0
        %311 = vst.msk [vmem:[#allocation2 + $0x191] sm:$0x1] %vm276, 0.0
        %312 = vst.msk [vmem:[#allocation2 + $0x1a9] sm:$0x1] %vm276, 0.0
        %v313 = vld [vmem:[%s244] sm:$0xff]
        %v314 = vld [vmem:[%s244 + $0x8] sm:$0xff]
        %v315 = vld [vmem:[%s244 + $0x10] sm:$0xff]
        %v316 = vld [vmem:[%s244 + $0x18] sm:$0xff]
        %v317 = vld [vmem:[%s244 + $0x20] sm:$0xff]
        %v318 = vld [vmem:[%s244 + $0x28] sm:$0xff]
        %v319 = vld [vmem:[%s244 + $0x30] sm:$0xff]
        %v320 = vld [vmem:[%s244 + $0x38] sm:$0xff]
        %v321 = vld [vmem:[%s244 + $0x40] sm:$0xff]
        %v322 = vld [vmem:[%s244 + $0x48] sm:$0xff]
        %v323 = vld [vmem:[%s244 + $0x50] sm:$0xff]
        %v324 = vld [vmem:[%s244 + $0x58] sm:$0xff]
        %v325 = vld [vmem:[%s244 + $0x60] sm:$0xff]
        %v326 = vld [vmem:[%s244 + $0x68] sm:$0xff]
        %v327 = vld [vmem:[%s244 + $0x70] sm:$0xff]
        %v328 = vld [vmem:[%s244 + $0x78] sm:$0xff]
        %v329 = vld [vmem:[%s244 + $0x80] sm:$0xff]
        %v330 = vld [vmem:[%s244 + $0x88] sm:$0xff]
        %v331 = vld [vmem:[%s244 + $0x90] sm:$0xff]
        %v332 = vld [vmem:[%s244 + $0x98] sm:$0xff]
        %v333 = vld [vmem:[%s244 + $0xa0] sm:$0xff]
        %v334 = vld [vmem:[%s244 + $0xa8] sm:$0xff]
        %v335 = vld [vmem:[%s244 + $0xb0] sm:$0xff]
        %v336 = vld [vmem:[%s244 + $0xb8] sm:$0xff]
        %v337 = vld [vmem:[%s244 + $0xc0] sm:$0xff]
        %v338 = vld [vmem:[%s244 + $0xc8] sm:$0xff]
        %v339 = vld [vmem:[%s244 + $0xd0] sm:$0xff]
        %v340 = vld [vmem:[%s244 + $0xd8] sm:$0xff]
        %v341 = vld [vmem:[%s244 + $0xe0] sm:$0xff]
        %v342 = vld [vmem:[%s244 + $0xe8] sm:$0xff]
        %v343 = vld [vmem:[%s244 + $0xf0] sm:$0xff]
        %v344 = vld [vmem:[%s244 + $0xf8] sm:$0xff]
        %s345 = scalar_lea.vmem [#allocation2], 24
        %346 = vst.msk [vmem:[%s345 + $0x1] sm:$0xff] %vm267, %v313
        %347 = vst.msk [vmem:[%s345 + $0x9] sm:$0xff] %vm267, %v314
        %348 = vst.msk [vmem:[%s345 + $0x19] sm:$0xff] %vm267, %v315
        %349 = vst.msk [vmem:[%s345 + $0x21] sm:$0xff] %vm267, %v316
        %350 = vst.msk [vmem:[%s345 + $0x31] sm:$0xff] %vm267, %v317
        %351 = vst.msk [vmem:[%s345 + $0x39] sm:$0xff] %vm267, %v318
        %352 = vst.msk [vmem:[%s345 + $0x49] sm:$0xff] %vm267, %v319
        %353 = vst.msk [vmem:[%s345 + $0x51] sm:$0xff] %vm267, %v320
        %354 = vst.msk [vmem:[%s345 + $0x61] sm:$0xff] %vm267, %v321
        %355 = vst.msk [vmem:[%s345 + $0x69] sm:$0xff] %vm267, %v322
        %356 = vst.msk [vmem:[%s345 + $0x79] sm:$0xff] %vm267, %v323
        %357 = vst.msk [vmem:[%s345 + $0x81] sm:$0xff] %vm267, %v324
        %358 = vst.msk [vmem:[%s345 + $0x91] sm:$0xff] %vm267, %v325
        %359 = vst.msk [vmem:[%s345 + $0x99] sm:$0xff] %vm267, %v326
        %360 = vst.msk [vmem:[%s345 + $0xa9] sm:$0xff] %vm267, %v327
        %361 = vst.msk [vmem:[%s345 + $0xb1] sm:$0xff] %vm267, %v328
        %362 = vst.msk [vmem:[%s345 + $0xc1] sm:$0xff] %vm267, %v329
        %363 = vst.msk [vmem:[%s345 + $0xc9] sm:$0xff] %vm267, %v330
        %364 = vst.msk [vmem:[%s345 + $0xd9] sm:$0xff] %vm267, %v331
        %365 = vst.msk [vmem:[%s345 + $0xe1] sm:$0xff] %vm267, %v332
        %366 = vst.msk [vmem:[%s345 + $0xf1] sm:$0xff] %vm267, %v333
        %367 = vst.msk [vmem:[%s345 + $0xf9] sm:$0xff] %vm267, %v334
        %368 = vst.msk [vmem:[%s345 + $0x109] sm:$0xff] %vm267, %v335
        %369 = vst.msk [vmem:[%s345 + $0x111] sm:$0xff] %vm267, %v336
        %370 = vst.msk [vmem:[%s345 + $0x121] sm:$0xff] %vm267, %v337
        %371 = vst.msk [vmem:[%s345 + $0x129] sm:$0xff] %vm267, %v338
        %372 = vst.msk [vmem:[%s345 + $0x139] sm:$0xff] %vm267, %v339
        %373 = vst.msk [vmem:[%s345 + $0x141] sm:$0xff] %vm267, %v340
        %374 = vst.msk [vmem:[%s345 + $0x151] sm:$0xff] %vm267, %v341
        %375 = vst.msk [vmem:[%s345 + $0x159] sm:$0xff] %vm267, %v342
        %376 = vst.msk [vmem:[%s345 + $0x169] sm:$0xff] %vm267, %v343
        %377 = vst.msk [vmem:[%s345 + $0x171] sm:$0xff] %vm267, %v344
        %v378 = vld [vmem:[#allocation2] sm:$0xff]
        %v379 = vld [vmem:[#allocation2 + $0x8] sm:$0xff]
        %v380 = vld [vmem:[#allocation2 + $0x18] sm:$0xff]
        %v381 = vld [vmem:[#allocation2 + $0x20] sm:$0xff]
        %v382 = vld [vmem:[#allocation2 + $0x30] sm:$0xff]
        %v383 = vld [vmem:[#allocation2 + $0x38] sm:$0xff]
        %v384 = vld [vmem:[#allocation2 + $0x48] sm:$0xff]
        %v385 = vld [vmem:[#allocation2 + $0x50] sm:$0xff]
        %v386 = vld [vmem:[#allocation2 + $0x60] sm:$0xff]
        %v387 = vld [vmem:[#allocation2 + $0x68] sm:$0xff]
        %v388 = vld [vmem:[#allocation2 + $0x78] sm:$0xff]
        %v389 = vld [vmem:[#allocation2 + $0x80] sm:$0xff]
        %v390 = vld [vmem:[#allocation2 + $0x90] sm:$0xff]
        %v391 = vld [vmem:[#allocation2 + $0x98] sm:$0xff]
        %v392 = vld [vmem:[#allocation2 + $0xa8] sm:$0xff]
        %v393 = vld [vmem:[#allocation2 + $0xb0] sm:$0xff]
        %v394 = vld [vmem:[#allocation2 + $0xc0] sm:$0xff]
        %v395 = vld [vmem:[#allocation2 + $0xc8] sm:$0xff]
        %v396 = vld [vmem:[#allocation2 + $0xd8] sm:$0xff]
        %v397 = vld [vmem:[#allocation2 + $0xe0] sm:$0xff]
        %v398 = vld [vmem:[#allocation2 + $0xf0] sm:$0xff]
        %v399 = vld [vmem:[#allocation2 + $0xf8] sm:$0xff]
        %v400 = vld [vmem:[#allocation2 + $0x108] sm:$0xff]
        %v401 = vld [vmem:[#allocation2 + $0x110] sm:$0xff]
        %v402 = vld [vmem:[#allocation2 + $0x120] sm:$0xff]
        %v403 = vld [vmem:[#allocation2 + $0x128] sm:$0xff]
        %v404 = vld [vmem:[#allocation2 + $0x138] sm:$0xff]
        %v405 = vld [vmem:[#allocation2 + $0x140] sm:$0xff]
        %v406 = vld [vmem:[#allocation2 + $0x150] sm:$0xff]
        %v407 = vld [vmem:[#allocation2 + $0x158] sm:$0xff]
        %v408 = vld [vmem:[#allocation2 + $0x168] sm:$0xff]
        %v409 = vld [vmem:[#allocation2 + $0x170] sm:$0xff]
        %410 = vst.msk [vmem:[#allocation3] sm:$0xff] %vm267, %v378
        %411 = vst.msk [vmem:[#allocation3 + $0x8] sm:$0xff] %vm267, %v379
        %412 = vst.msk [vmem:[#allocation3 + $0x10] sm:$0xff] %vm267, %v380
        %413 = vst.msk [vmem:[#allocation3 + $0x18] sm:$0xff] %vm267, %v381
        %414 = vst.msk [vmem:[#allocation3 + $0x20] sm:$0xff] %vm267, %v382
        %415 = vst.msk [vmem:[#allocation3 + $0x28] sm:$0xff] %vm267, %v383
        %416 = vst.msk [vmem:[#allocation3 + $0x30] sm:$0xff] %vm267, %v384
        %417 = vst.msk [vmem:[#allocation3 + $0x38] sm:$0xff] %vm267, %v385
        %418 = vst.msk [vmem:[#allocation3 + $0x40] sm:$0xff] %vm267, %v386
        %419 = vst.msk [vmem:[#allocation3 + $0x48] sm:$0xff] %vm267, %v387
        %420 = vst.msk [vmem:[#allocation3 + $0x50] sm:$0xff] %vm267, %v388
        %421 = vst.msk [vmem:[#allocation3 + $0x58] sm:$0xff] %vm267, %v389
        %422 = vst.msk [vmem:[#allocation3 + $0x60] sm:$0xff] %vm267, %v390
        %423 = vst.msk [vmem:[#allocation3 + $0x68] sm:$0xff] %vm267, %v391
        %424 = vst.msk [vmem:[#allocation3 + $0x70] sm:$0xff] %vm267, %v392
        %425 = vst.msk [vmem:[#allocation3 + $0x78] sm:$0xff] %vm267, %v393
        %426 = vst.msk [vmem:[#allocation3 + $0x80] sm:$0xff] %vm267, %v394
        %427 = vst.msk [vmem:[#allocation3 + $0x88] sm:$0xff] %vm267, %v395
        %428 = vst.msk [vmem:[#allocation3 + $0x90] sm:$0xff] %vm267, %v396
        %429 = vst.msk [vmem:[#allocation3 + $0x98] sm:$0xff] %vm267, %v397
        %430 = vst.msk [vmem:[#allocation3 + $0xa0] sm:$0xff] %vm267, %v398
        %431 = vst.msk [vmem:[#allocation3 + $0xa8] sm:$0xff] %vm267, %v399
        %432 = vst.msk [vmem:[#allocation3 + $0xb0] sm:$0xff] %vm267, %v400
        %433 = vst.msk [vmem:[#allocation3 + $0xb8] sm:$0xff] %vm267, %v401
        %434 = vst.msk [vmem:[#allocation3 + $0xc0] sm:$0xff] %vm267, %v402
        %435 = vst.msk [vmem:[#allocation3 + $0xc8] sm:$0xff] %vm267, %v403
        %436 = vst.msk [vmem:[#allocation3 + $0xd0] sm:$0xff] %vm267, %v404
        %437 = vst.msk [vmem:[#allocation3 + $0xd8] sm:$0xff] %vm267, %v405
        %438 = vst.msk [vmem:[#allocation3 + $0xe0] sm:$0xff] %vm267, %v406
        %439 = vst.msk [vmem:[#allocation3 + $0xe8] sm:$0xff] %vm267, %v407
        %440 = vst.msk [vmem:[#allocation3 + $0xf0] sm:$0xff] %vm267, %v408
        %441 = vst.msk [vmem:[#allocation3 + $0xf8] sm:$0xff] %vm267, %v409
        %v442 = vld [vmem:[#allocation2 + $0x1] sm:$0xff]
        %v443 = vld [vmem:[#allocation2 + $0x9] sm:$0xff]
        %v444 = vld [vmem:[#allocation2 + $0x19] sm:$0xff]
        %v445 = vld [vmem:[#allocation2 + $0x21] sm:$0xff]
        %v446 = vld [vmem:[#allocation2 + $0x31] sm:$0xff]
        %v447 = vld [vmem:[#allocation2 + $0x39] sm:$0xff]
        %v448 = vld [vmem:[#allocation2 + $0x49] sm:$0xff]
        %v449 = vld [vmem:[#allocation2 + $0x51] sm:$0xff]
        %v450 = vld [vmem:[#allocation2 + $0x61] sm:$0xff]
        %v451 = vld [vmem:[#allocation2 + $0x69] sm:$0xff]
        %v452 = vld [vmem:[#allocation2 + $0x79] sm:$0xff]
        %v453 = vld [vmem:[#allocation2 + $0x81] sm:$0xff]
        %v454 = vld [vmem:[#allocation2 + $0x91] sm:$0xff]
        %v455 = vld [vmem:[#allocation2 + $0x99] sm:$0xff]
        %v456 = vld [vmem:[#allocation2 + $0xa9] sm:$0xff]
        %v457 = vld [vmem:[#allocation2 + $0xb1] sm:$0xff]
        %v458 = vld [vmem:[#allocation2 + $0xc1] sm:$0xff]
        %v459 = vld [vmem:[#allocation2 + $0xc9] sm:$0xff]
        %v460 = vld [vmem:[#allocation2 + $0xd9] sm:$0xff]
        %v461 = vld [vmem:[#allocation2 + $0xe1] sm:$0xff]
        %v462 = vld [vmem:[#allocation2 + $0xf1] sm:$0xff]
        %v463 = vld [vmem:[#allocation2 + $0xf9] sm:$0xff]
        %v464 = vld [vmem:[#allocation2 + $0x109] sm:$0xff]
        %v465 = vld [vmem:[#allocation2 + $0x111] sm:$0xff]
        %v466 = vld [vmem:[#allocation2 + $0x121] sm:$0xff]
        %v467 = vld [vmem:[#allocation2 + $0x129] sm:$0xff]
        %v468 = vld [vmem:[#allocation2 + $0x139] sm:$0xff]
        %v469 = vld [vmem:[#allocation2 + $0x141] sm:$0xff]
        %v470 = vld [vmem:[#allocation2 + $0x151] sm:$0xff]
        %v471 = vld [vmem:[#allocation2 + $0x159] sm:$0xff]
        %v472 = vld [vmem:[#allocation2 + $0x169] sm:$0xff]
        %v473 = vld [vmem:[#allocation2 + $0x171] sm:$0xff]
        %506 = vrot.lane.b32.xlu0 %v442, 4
        %v507 = vpop.permute.xlu0 %506
        %508 = vrot.lane.b32.xlu0 %v443, 4
        %v509 = vpop.permute.xlu0 %508
        %510 = vrot.lane.b32.xlu0 %v444, 4
        %v511 = vpop.permute.xlu0 %510
        %512 = vrot.lane.b32.xlu0 %v445, 4
        %v513 = vpop.permute.xlu0 %512
        %514 = vrot.lane.b32.xlu0 %v446, 4
        %v515 = vpop.permute.xlu0 %514
        %516 = vrot.lane.b32.xlu0 %v447, 4
        %v517 = vpop.permute.xlu0 %516
        %518 = vrot.lane.b32.xlu0 %v448, 4
        %v519 = vpop.permute.xlu0 %518
        %520 = vrot.lane.b32.xlu0 %v449, 4
        %v521 = vpop.permute.xlu0 %520
        %522 = vrot.lane.b32.xlu0 %v450, 4
        %v523 = vpop.permute.xlu0 %522
        %524 = vrot.lane.b32.xlu0 %v451, 4
        %v525 = vpop.permute.xlu0 %524
        %526 = vrot.lane.b32.xlu0 %v452, 4
        %v527 = vpop.permute.xlu0 %526
        %528 = vrot.lane.b32.xlu0 %v453, 4
        %v529 = vpop.permute.xlu0 %528
        %530 = vrot.lane.b32.xlu0 %v454, 4
        %v531 = vpop.permute.xlu0 %530
        %532 = vrot.lane.b32.xlu0 %v455, 4
        %v533 = vpop.permute.xlu0 %532
        %534 = vrot.lane.b32.xlu0 %v456, 4
        %v535 = vpop.permute.xlu0 %534
        %536 = vrot.lane.b32.xlu0 %v457, 4
        %v537 = vpop.permute.xlu0 %536
        %538 = vrot.lane.b32.xlu0 %v458, 4
        %v539 = vpop.permute.xlu0 %538
        %540 = vrot.lane.b32.xlu0 %v459, 4
        %v541 = vpop.permute.xlu0 %540
        %542 = vrot.lane.b32.xlu0 %v460, 4
        %v543 = vpop.permute.xlu0 %542
        %544 = vrot.lane.b32.xlu0 %v461, 4
        %v545 = vpop.permute.xlu0 %544
        %546 = vrot.lane.b32.xlu0 %v462, 4
        %v547 = vpop.permute.xlu0 %546
        %548 = vrot.lane.b32.xlu0 %v463, 4
        %v549 = vpop.permute.xlu0 %548
        %550 = vrot.lane.b32.xlu0 %v464, 4
        %v551 = vpop.permute.xlu0 %550
        %552 = vrot.lane.b32.xlu0 %v465, 4
        %v553 = vpop.permute.xlu0 %552
        %554 = vrot.lane.b32.xlu0 %v466, 4
        %v555 = vpop.permute.xlu0 %554
        %556 = vrot.lane.b32.xlu0 %v467, 4
        %v557 = vpop.permute.xlu0 %556
        %558 = vrot.lane.b32.xlu0 %v468, 4
        %v559 = vpop.permute.xlu0 %558
        %560 = vrot.lane.b32.xlu0 %v469, 4
        %v561 = vpop.permute.xlu0 %560
        %562 = vrot.lane.b32.xlu0 %v470, 4
        %v563 = vpop.permute.xlu0 %562
        %564 = vrot.lane.b32.xlu0 %v471, 4
        %v565 = vpop.permute.xlu0 %564
        %566 = vrot.lane.b32.xlu0 %v472, 4
        %v567 = vpop.permute.xlu0 %566
        %568 = vrot.lane.b32.xlu0 %v473, 4
        %v569 = vpop.permute.xlu0 %568
        %vm602 = vcmask 64544
        %603 = vst.msk [vmem:[#allocation3] sm:$0xff] %vm602, %v507
        %604 = vst.msk [vmem:[#allocation3 + $0x8] sm:$0xff] %vm602, %v509
        %605 = vst.msk [vmem:[#allocation3 + $0x10] sm:$0xff] %vm602, %v511
        %606 = vst.msk [vmem:[#allocation3 + $0x18] sm:$0xff] %vm602, %v513
        %607 = vst.msk [vmem:[#allocation3 + $0x20] sm:$0xff] %vm602, %v515
        %608 = vst.msk [vmem:[#allocation3 + $0x28] sm:$0xff] %vm602, %v517
        %609 = vst.msk [vmem:[#allocation3 + $0x30] sm:$0xff] %vm602, %v519
        %610 = vst.msk [vmem:[#allocation3 + $0x38] sm:$0xff] %vm602, %v521
        %611 = vst.msk [vmem:[#allocation3 + $0x40] sm:$0xff] %vm602, %v523
        %612 = vst.msk [vmem:[#allocation3 + $0x48] sm:$0xff] %vm602, %v525
        %613 = vst.msk [vmem:[#allocation3 + $0x50] sm:$0xff] %vm602, %v527
        %614 = vst.msk [vmem:[#allocation3 + $0x58] sm:$0xff] %vm602, %v529
        %615 = vst.msk [vmem:[#allocation3 + $0x60] sm:$0xff] %vm602, %v531
        %616 = vst.msk [vmem:[#allocation3 + $0x68] sm:$0xff] %vm602, %v533
        %617 = vst.msk [vmem:[#allocation3 + $0x70] sm:$0xff] %vm602, %v535
        %618 = vst.msk [vmem:[#allocation3 + $0x78] sm:$0xff] %vm602, %v537
        %619 = vst.msk [vmem:[#allocation3 + $0x80] sm:$0xff] %vm602, %v539
        %620 = vst.msk [vmem:[#allocation3 + $0x88] sm:$0xff] %vm602, %v541
        %621 = vst.msk [vmem:[#allocation3 + $0x90] sm:$0xff] %vm602, %v543
        %622 = vst.msk [vmem:[#allocation3 + $0x98] sm:$0xff] %vm602, %v545
        %623 = vst.msk [vmem:[#allocation3 + $0xa0] sm:$0xff] %vm602, %v547
        %624 = vst.msk [vmem:[#allocation3 + $0xa8] sm:$0xff] %vm602, %v549
        %625 = vst.msk [vmem:[#allocation3 + $0xb0] sm:$0xff] %vm602, %v551
        %626 = vst.msk [vmem:[#allocation3 + $0xb8] sm:$0xff] %vm602, %v553
        %627 = vst.msk [vmem:[#allocation3 + $0xc0] sm:$0xff] %vm602, %v555
        %628 = vst.msk [vmem:[#allocation3 + $0xc8] sm:$0xff] %vm602, %v557
        %629 = vst.msk [vmem:[#allocation3 + $0xd0] sm:$0xff] %vm602, %v559
        %630 = vst.msk [vmem:[#allocation3 + $0xd8] sm:$0xff] %vm602, %v561
        %631 = vst.msk [vmem:[#allocation3 + $0xe0] sm:$0xff] %vm602, %v563
        %632 = vst.msk [vmem:[#allocation3 + $0xe8] sm:$0xff] %vm602, %v565
        %633 = vst.msk [vmem:[#allocation3 + $0xf0] sm:$0xff] %vm602, %v567
        %634 = vst.msk [vmem:[#allocation3 + $0xf8] sm:$0xff] %vm602, %v569
        %v635 = vld [vmem:[#allocation2 + $0x2] sm:$0xff]
        %v636 = vld [vmem:[#allocation2 + $0xa] sm:$0xff]
        %v637 = vld [vmem:[#allocation2 + $0x1a] sm:$0xff]
        %v638 = vld [vmem:[#allocation2 + $0x22] sm:$0xff]
        %v639 = vld [vmem:[#allocation2 + $0x32] sm:$0xff]
        %v640 = vld [vmem:[#allocation2 + $0x3a] sm:$0xff]
        %v641 = vld [vmem:[#allocation2 + $0x4a] sm:$0xff]
        %v642 = vld [vmem:[#allocation2 + $0x52] sm:$0xff]
        %v643 = vld [vmem:[#allocation2 + $0x62] sm:$0xff]
        %v644 = vld [vmem:[#allocation2 + $0x6a] sm:$0xff]
        %v645 = vld [vmem:[#allocation2 + $0x7a] sm:$0xff]
        %v646 = vld [vmem:[#allocation2 + $0x82] sm:$0xff]
        %v647 = vld [vmem:[#allocation2 + $0x92] sm:$0xff]
        %v648 = vld [vmem:[#allocation2 + $0x9a] sm:$0xff]
        %v649 = vld [vmem:[#allocation2 + $0xaa] sm:$0xff]
        %v650 = vld [vmem:[#allocation2 + $0xb2] sm:$0xff]
        %v651 = vld [vmem:[#allocation2 + $0xc2] sm:$0xff]
        %v652 = vld [vmem:[#allocation2 + $0xca] sm:$0xff]
        %v653 = vld [vmem:[#allocation2 + $0xda] sm:$0xff]
        %v654 = vld [vmem:[#allocation2 + $0xe2] sm:$0xff]
        %v655 = vld [vmem:[#allocation2 + $0xf2] sm:$0xff]
        %v656 = vld [vmem:[#allocation2 + $0xfa] sm:$0xff]
        %v657 = vld [vmem:[#allocation2 + $0x10a] sm:$0xff]
        %v658 = vld [vmem:[#allocation2 + $0x112] sm:$0xff]
        %v659 = vld [vmem:[#allocation2 + $0x122] sm:$0xff]
        %v660 = vld [vmem:[#allocation2 + $0x12a] sm:$0xff]
        %v661 = vld [vmem:[#allocation2 + $0x13a] sm:$0xff]
        %v662 = vld [vmem:[#allocation2 + $0x142] sm:$0xff]
        %v663 = vld [vmem:[#allocation2 + $0x152] sm:$0xff]
        %v664 = vld [vmem:[#allocation2 + $0x15a] sm:$0xff]
        %v665 = vld [vmem:[#allocation2 + $0x16a] sm:$0xff]
        %v666 = vld [vmem:[#allocation2 + $0x172] sm:$0xff]
        %699 = vrot.lane.b32.xlu0 %v635, 8
        %v700 = vpop.permute.xlu0 %699
        %701 = vrot.lane.b32.xlu0 %v636, 8
        %v702 = vpop.permute.xlu0 %701
        %703 = vrot.lane.b32.xlu0 %v637, 8
        %v704 = vpop.permute.xlu0 %703
        %705 = vrot.lane.b32.xlu0 %v638, 8
        %v706 = vpop.permute.xlu0 %705
        %707 = vrot.lane.b32.xlu0 %v639, 8
        %v708 = vpop.permute.xlu0 %707
        %709 = vrot.lane.b32.xlu0 %v640, 8
        %v710 = vpop.permute.xlu0 %709
        %711 = vrot.lane.b32.xlu0 %v641, 8
        %v712 = vpop.permute.xlu0 %711
        %713 = vrot.lane.b32.xlu0 %v642, 8
        %v714 = vpop.permute.xlu0 %713
        %715 = vrot.lane.b32.xlu0 %v643, 8
        %v716 = vpop.permute.xlu0 %715
        %717 = vrot.lane.b32.xlu0 %v644, 8
        %v718 = vpop.permute.xlu0 %717
        %719 = vrot.lane.b32.xlu0 %v645, 8
        %v720 = vpop.permute.xlu0 %719
        %721 = vrot.lane.b32.xlu0 %v646, 8
        %v722 = vpop.permute.xlu0 %721
        %723 = vrot.lane.b32.xlu0 %v647, 8
        %v724 = vpop.permute.xlu0 %723
        %725 = vrot.lane.b32.xlu0 %v648, 8
        %v726 = vpop.permute.xlu0 %725
        %727 = vrot.lane.b32.xlu0 %v649, 8
        %v728 = vpop.permute.xlu0 %727
        %729 = vrot.lane.b32.xlu0 %v650, 8
        %v730 = vpop.permute.xlu0 %729
        %731 = vrot.lane.b32.xlu0 %v651, 8
        %v732 = vpop.permute.xlu0 %731
        %733 = vrot.lane.b32.xlu0 %v652, 8
        %v734 = vpop.permute.xlu0 %733
        %735 = vrot.lane.b32.xlu0 %v653, 8
        %v736 = vpop.permute.xlu0 %735
        %737 = vrot.lane.b32.xlu0 %v654, 8
        %v738 = vpop.permute.xlu0 %737
        %739 = vrot.lane.b32.xlu0 %v655, 8
        %v740 = vpop.permute.xlu0 %739
        %741 = vrot.lane.b32.xlu0 %v656, 8
        %v742 = vpop.permute.xlu0 %741
        %743 = vrot.lane.b32.xlu0 %v657, 8
        %v744 = vpop.permute.xlu0 %743
        %745 = vrot.lane.b32.xlu0 %v658, 8
        %v746 = vpop.permute.xlu0 %745
        %747 = vrot.lane.b32.xlu0 %v659, 8
        %v748 = vpop.permute.xlu0 %747
        %749 = vrot.lane.b32.xlu0 %v660, 8
        %v750 = vpop.permute.xlu0 %749
        %751 = vrot.lane.b32.xlu0 %v661, 8
        %v752 = vpop.permute.xlu0 %751
        %753 = vrot.lane.b32.xlu0 %v662, 8
        %v754 = vpop.permute.xlu0 %753
        %755 = vrot.lane.b32.xlu0 %v663, 8
        %v756 = vpop.permute.xlu0 %755
        %757 = vrot.lane.b32.xlu0 %v664, 8
        %v758 = vpop.permute.xlu0 %757
        %759 = vrot.lane.b32.xlu0 %v665, 8
        %v760 = vpop.permute.xlu0 %759
        %761 = vrot.lane.b32.xlu0 %v666, 8
        %v762 = vpop.permute.xlu0 %761
        %vm795 = vcmask 97344
        %796 = vst.msk [vmem:[#allocation3] sm:$0xff] %vm795, %v700
        %797 = vst.msk [vmem:[#allocation3 + $0x8] sm:$0xff] %vm795, %v702
        %798 = vst.msk [vmem:[#allocation3 + $0x10] sm:$0xff] %vm795, %v704
        %799 = vst.msk [vmem:[#allocation3 + $0x18] sm:$0xff] %vm795, %v706
        %800 = vst.msk [vmem:[#allocation3 + $0x20] sm:$0xff] %vm795, %v708
        %801 = vst.msk [vmem:[#allocation3 + $0x28] sm:$0xff] %vm795, %v710
        %802 = vst.msk [vmem:[#allocation3 + $0x30] sm:$0xff] %vm795, %v712
        %803 = vst.msk [vmem:[#allocation3 + $0x38] sm:$0xff] %vm795, %v714
        %804 = vst.msk [vmem:[#allocation3 + $0x40] sm:$0xff] %vm795, %v716
        %805 = vst.msk [vmem:[#allocation3 + $0x48] sm:$0xff] %vm795, %v718
        %806 = vst.msk [vmem:[#allocation3 + $0x50] sm:$0xff] %vm795, %v720
        %807 = vst.msk [vmem:[#allocation3 + $0x58] sm:$0xff] %vm795, %v722
        %808 = vst.msk [vmem:[#allocation3 + $0x60] sm:$0xff] %vm795, %v724
        %809 = vst.msk [vmem:[#allocation3 + $0x68] sm:$0xff] %vm795, %v726
        %810 = vst.msk [vmem:[#allocation3 + $0x70] sm:$0xff] %vm795, %v728
        %811 = vst.msk [vmem:[#allocation3 + $0x78] sm:$0xff] %vm795, %v730
        %812 = vst.msk [vmem:[#allocation3 + $0x80] sm:$0xff] %vm795, %v732
        %813 = vst.msk [vmem:[#allocation3 + $0x88] sm:$0xff] %vm795, %v734
        %814 = vst.msk [vmem:[#allocation3 + $0x90] sm:$0xff] %vm795, %v736
        %815 = vst.msk [vmem:[#allocation3 + $0x98] sm:$0xff] %vm795, %v738
        %816 = vst.msk [vmem:[#allocation3 + $0xa0] sm:$0xff] %vm795, %v740
        %817 = vst.msk [vmem:[#allocation3 + $0xa8] sm:$0xff] %vm795, %v742
        %818 = vst.msk [vmem:[#allocation3 + $0xb0] sm:$0xff] %vm795, %v744
        %819 = vst.msk [vmem:[#allocation3 + $0xb8] sm:$0xff] %vm795, %v746
        %820 = vst.msk [vmem:[#allocation3 + $0xc0] sm:$0xff] %vm795, %v748
        %821 = vst.msk [vmem:[#allocation3 + $0xc8] sm:$0xff] %vm795, %v750
        %822 = vst.msk [vmem:[#allocation3 + $0xd0] sm:$0xff] %vm795, %v752
        %823 = vst.msk [vmem:[#allocation3 + $0xd8] sm:$0xff] %vm795, %v754
        %824 = vst.msk [vmem:[#allocation3 + $0xe0] sm:$0xff] %vm795, %v756
        %825 = vst.msk [vmem:[#allocation3 + $0xe8] sm:$0xff] %vm795, %v758
        %826 = vst.msk [vmem:[#allocation3 + $0xf0] sm:$0xff] %vm795, %v760
        %827 = vst.msk [vmem:[#allocation3 + $0xf8] sm:$0xff] %vm795, %v762
        %v828 = vld [vmem:[%s345] sm:$0xff]
        %v829 = vld [vmem:[%s345 + $0x8] sm:$0xff]
        %v830 = vld [vmem:[%s345 + $0x18] sm:$0xff]
        %v831 = vld [vmem:[%s345 + $0x20] sm:$0xff]
        %v832 = vld [vmem:[%s345 + $0x30] sm:$0xff]
        %v833 = vld [vmem:[%s345 + $0x38] sm:$0xff]
        %v834 = vld [vmem:[%s345 + $0x48] sm:$0xff]
        %v835 = vld [vmem:[%s345 + $0x50] sm:$0xff]
        %v836 = vld [vmem:[%s345 + $0x60] sm:$0xff]
        %v837 = vld [vmem:[%s345 + $0x68] sm:$0xff]
        %v838 = vld [vmem:[%s345 + $0x78] sm:$0xff]
        %v839 = vld [vmem:[%s345 + $0x80] sm:$0xff]
        %v840 = vld [vmem:[%s345 + $0x90] sm:$0xff]
        %v841 = vld [vmem:[%s345 + $0x98] sm:$0xff]
        %v842 = vld [vmem:[%s345 + $0xa8] sm:$0xff]
        %v843 = vld [vmem:[%s345 + $0xb0] sm:$0xff]
        %v844 = vld [vmem:[%s345 + $0xc0] sm:$0xff]
        %v845 = vld [vmem:[%s345 + $0xc8] sm:$0xff]
        %v846 = vld [vmem:[%s345 + $0xd8] sm:$0xff]
        %v847 = vld [vmem:[%s345 + $0xe0] sm:$0xff]
        %v848 = vld [vmem:[%s345 + $0xf0] sm:$0xff]
        %v849 = vld [vmem:[%s345 + $0xf8] sm:$0xff]
        %v850 = vld [vmem:[%s345 + $0x108] sm:$0xff]
        %v851 = vld [vmem:[%s345 + $0x110] sm:$0xff]
        %v852 = vld [vmem:[%s345 + $0x120] sm:$0xff]
        %v853 = vld [vmem:[%s345 + $0x128] sm:$0xff]
        %v854 = vld [vmem:[%s345 + $0x138] sm:$0xff]
        %v855 = vld [vmem:[%s345 + $0x140] sm:$0xff]
        %v856 = vld [vmem:[%s345 + $0x150] sm:$0xff]
        %v857 = vld [vmem:[%s345 + $0x158] sm:$0xff]
        %v858 = vld [vmem:[%s345 + $0x168] sm:$0xff]
        %v859 = vld [vmem:[%s345 + $0x170] sm:$0xff]
        %892 = vrot.lane.b32.xlu0 %v828, 12
        %v893 = vpop.permute.xlu0 %892
        %894 = vrot.lane.b32.xlu0 %v829, 12
        %v895 = vpop.permute.xlu0 %894
        %896 = vrot.lane.b32.xlu0 %v830, 12
        %v897 = vpop.permute.xlu0 %896
        %898 = vrot.lane.b32.xlu0 %v831, 12
        %v899 = vpop.permute.xlu0 %898
        %900 = vrot.lane.b32.xlu0 %v832, 12
        %v901 = vpop.permute.xlu0 %900
        %902 = vrot.lane.b32.xlu0 %v833, 12
        %v903 = vpop.permute.xlu0 %902
        %904 = vrot.lane.b32.xlu0 %v834, 12
        %v905 = vpop.permute.xlu0 %904
        %906 = vrot.lane.b32.xlu0 %v835, 12
        %v907 = vpop.permute.xlu0 %906
        %908 = vrot.lane.b32.xlu0 %v836, 12
        %v909 = vpop.permute.xlu0 %908
        %910 = vrot.lane.b32.xlu0 %v837, 12
        %v911 = vpop.permute.xlu0 %910
        %912 = vrot.lane.b32.xlu0 %v838, 12
        %v913 = vpop.permute.xlu0 %912
        %914 = vrot.lane.b32.xlu0 %v839, 12
        %v915 = vpop.permute.xlu0 %914
        %916 = vrot.lane.b32.xlu0 %v840, 12
        %v917 = vpop.permute.xlu0 %916
        %918 = vrot.lane.b32.xlu0 %v841, 12
        %v919 = vpop.permute.xlu0 %918
        %920 = vrot.lane.b32.xlu0 %v842, 12
        %v921 = vpop.permute.xlu0 %920
        %922 = vrot.lane.b32.xlu0 %v843, 12
        %v923 = vpop.permute.xlu0 %922
        %924 = vrot.lane.b32.xlu0 %v844, 12
        %v925 = vpop.permute.xlu0 %924
        %926 = vrot.lane.b32.xlu0 %v845, 12
        %v927 = vpop.permute.xlu0 %926
        %928 = vrot.lane.b32.xlu0 %v846, 12
        %v929 = vpop.permute.xlu0 %928
        %930 = vrot.lane.b32.xlu0 %v847, 12
        %v931 = vpop.permute.xlu0 %930
        %932 = vrot.lane.b32.xlu0 %v848, 12
        %v933 = vpop.permute.xlu0 %932
        %934 = vrot.lane.b32.xlu0 %v849, 12
        %v935 = vpop.permute.xlu0 %934
        %936 = vrot.lane.b32.xlu0 %v850, 12
        %v937 = vpop.permute.xlu0 %936
        %938 = vrot.lane.b32.xlu0 %v851, 12
        %v939 = vpop.permute.xlu0 %938
        %940 = vrot.lane.b32.xlu0 %v852, 12
        %v941 = vpop.permute.xlu0 %940
        %942 = vrot.lane.b32.xlu0 %v853, 12
        %v943 = vpop.permute.xlu0 %942
        %944 = vrot.lane.b32.xlu0 %v854, 12
        %v945 = vpop.permute.xlu0 %944
        %946 = vrot.lane.b32.xlu0 %v855, 12
        %v947 = vpop.permute.xlu0 %946
        %948 = vrot.lane.b32.xlu0 %v856, 12
        %v949 = vpop.permute.xlu0 %948
        %950 = vrot.lane.b32.xlu0 %v857, 12
        %v951 = vpop.permute.xlu0 %950
        %952 = vrot.lane.b32.xlu0 %v858, 12
        %v953 = vpop.permute.xlu0 %952
        %954 = vrot.lane.b32.xlu0 %v859, 12
        %v955 = vpop.permute.xlu0 %954
        %vm988 = vcmask 130144
        %989 = vst.msk [vmem:[#allocation3] sm:$0xff] %vm988, %v893
        %990 = vst.msk [vmem:[#allocation3 + $0x8] sm:$0xff] %vm988, %v895
        %991 = vst.msk [vmem:[#allocation3 + $0x10] sm:$0xff] %vm988, %v897
        %992 = vst.msk [vmem:[#allocation3 + $0x18] sm:$0xff] %vm988, %v899
        %993 = vst.msk [vmem:[#allocation3 + $0x20] sm:$0xff] %vm988, %v901
        %994 = vst.msk [vmem:[#allocation3 + $0x28] sm:$0xff] %vm988, %v903
        %995 = vst.msk [vmem:[#allocation3 + $0x30] sm:$0xff] %vm988, %v905
        %996 = vst.msk [vmem:[#allocation3 + $0x38] sm:$0xff] %vm988, %v907
        %997 = vst.msk [vmem:[#allocation3 + $0x40] sm:$0xff] %vm988, %v909
        %998 = vst.msk [vmem:[#allocation3 + $0x48] sm:$0xff] %vm988, %v911
        %999 = vst.msk [vmem:[#allocation3 + $0x50] sm:$0xff] %vm988, %v913
        %1000 = vst.msk [vmem:[#allocation3 + $0x58] sm:$0xff] %vm988, %v915
        %1001 = vst.msk [vmem:[#allocation3 + $0x60] sm:$0xff] %vm988, %v917
        %1002 = vst.msk [vmem:[#allocation3 + $0x68] sm:$0xff] %vm988, %v919
        %1003 = vst.msk [vmem:[#allocation3 + $0x70] sm:$0xff] %vm988, %v921
        %1004 = vst.msk [vmem:[#allocation3 + $0x78] sm:$0xff] %vm988, %v923
        %1005 = vst.msk [vmem:[#allocation3 + $0x80] sm:$0xff] %vm988, %v925
        %1006 = vst.msk [vmem:[#allocation3 + $0x88] sm:$0xff] %vm988, %v927
        %1007 = vst.msk [vmem:[#allocation3 + $0x90] sm:$0xff] %vm988, %v929
        %1008 = vst.msk [vmem:[#allocation3 + $0x98] sm:$0xff] %vm988, %v931
        %1009 = vst.msk [vmem:[#allocation3 + $0xa0] sm:$0xff] %vm988, %v933
        %1010 = vst.msk [vmem:[#allocation3 + $0xa8] sm:$0xff] %vm988, %v935
        %1011 = vst.msk [vmem:[#allocation3 + $0xb0] sm:$0xff] %vm988, %v937
        %1012 = vst.msk [vmem:[#allocation3 + $0xb8] sm:$0xff] %vm988, %v939
        %1013 = vst.msk [vmem:[#allocation3 + $0xc0] sm:$0xff] %vm988, %v941
        %1014 = vst.msk [vmem:[#allocation3 + $0xc8] sm:$0xff] %vm988, %v943
        %1015 = vst.msk [vmem:[#allocation3 + $0xd0] sm:$0xff] %vm988, %v945
        %1016 = vst.msk [vmem:[#allocation3 + $0xd8] sm:$0xff] %vm988, %v947
        %1017 = vst.msk [vmem:[#allocation3 + $0xe0] sm:$0xff] %vm988, %v949
        %1018 = vst.msk [vmem:[#allocation3 + $0xe8] sm:$0xff] %vm988, %v951
        %1019 = vst.msk [vmem:[#allocation3 + $0xf0] sm:$0xff] %vm988, %v953
        %1020 = vst.msk [vmem:[#allocation3 + $0xf8] sm:$0xff] %vm988, %v955
        %v1021 = vld [vmem:[%s345 + $0x1] sm:$0xff]
        %v1022 = vld [vmem:[%s345 + $0x9] sm:$0xff]
        %v1023 = vld [vmem:[%s345 + $0x19] sm:$0xff]
        %v1024 = vld [vmem:[%s345 + $0x21] sm:$0xff]
        %v1025 = vld [vmem:[%s345 + $0x31] sm:$0xff]
        %v1026 = vld [vmem:[%s345 + $0x39] sm:$0xff]
        %v1027 = vld [vmem:[%s345 + $0x49] sm:$0xff]
        %v1028 = vld [vmem:[%s345 + $0x51] sm:$0xff]
        %v1029 = vld [vmem:[%s345 + $0x61] sm:$0xff]
        %v1030 = vld [vmem:[%s345 + $0x69] sm:$0xff]
        %v1031 = vld [vmem:[%s345 + $0x79] sm:$0xff]
        %v1032 = vld [vmem:[%s345 + $0x81] sm:$0xff]
        %v1033 = vld [vmem:[%s345 + $0x91] sm:$0xff]
        %v1034 = vld [vmem:[%s345 + $0x99] sm:$0xff]
        %v1035 = vld [vmem:[%s345 + $0xa9] sm:$0xff]
        %v1036 = vld [vmem:[%s345 + $0xb1] sm:$0xff]
        %v1037 = vld [vmem:[%s345 + $0xc1] sm:$0xff]
        %v1038 = vld [vmem:[%s345 + $0xc9] sm:$0xff]
        %v1039 = vld [vmem:[%s345 + $0xd9] sm:$0xff]
        %v1040 = vld [vmem:[%s345 + $0xe1] sm:$0xff]
        %v1041 = vld [vmem:[%s345 + $0xf1] sm:$0xff]
        %v1042 = vld [vmem:[%s345 + $0xf9] sm:$0xff]
        %v1043 = vld [vmem:[%s345 + $0x109] sm:$0xff]
        %v1044 = vld [vmem:[%s345 + $0x111] sm:$0xff]
        %v1045 = vld [vmem:[%s345 + $0x121] sm:$0xff]
        %v1046 = vld [vmem:[%s345 + $0x129] sm:$0xff]
        %v1047 = vld [vmem:[%s345 + $0x139] sm:$0xff]
        %v1048 = vld [vmem:[%s345 + $0x141] sm:$0xff]
        %v1049 = vld [vmem:[%s345 + $0x151] sm:$0xff]
        %v1050 = vld [vmem:[%s345 + $0x159] sm:$0xff]
        %v1051 = vld [vmem:[%s345 + $0x169] sm:$0xff]
        %v1052 = vld [vmem:[%s345 + $0x171] sm:$0xff]
        %1085 = vrot.lane.b32.xlu0 %v1021, 16
        %v1086 = vpop.permute.xlu0 %1085
        %1087 = vrot.lane.b32.xlu0 %v1022, 16
        %v1088 = vpop.permute.xlu0 %1087
        %1089 = vrot.lane.b32.xlu0 %v1023, 16
        %v1090 = vpop.permute.xlu0 %1089
        %1091 = vrot.lane.b32.xlu0 %v1024, 16
        %v1092 = vpop.permute.xlu0 %1091
        %1093 = vrot.lane.b32.xlu0 %v1025, 16
        %v1094 = vpop.permute.xlu0 %1093
        %1095 = vrot.lane.b32.xlu0 %v1026, 16
        %v1096 = vpop.permute.xlu0 %1095
        %1097 = vrot.lane.b32.xlu0 %v1027, 16
        %v1098 = vpop.permute.xlu0 %1097
        %1099 = vrot.lane.b32.xlu0 %v1028, 16
        %v1100 = vpop.permute.xlu0 %1099
        %1101 = vrot.lane.b32.xlu0 %v1029, 16
        %v1102 = vpop.permute.xlu0 %1101
        %1103 = vrot.lane.b32.xlu0 %v1030, 16
        %v1104 = vpop.permute.xlu0 %1103
        %1105 = vrot.lane.b32.xlu0 %v1031, 16
        %v1106 = vpop.permute.xlu0 %1105
        %1107 = vrot.lane.b32.xlu0 %v1032, 16
        %v1108 = vpop.permute.xlu0 %1107
        %1109 = vrot.lane.b32.xlu0 %v1033, 16
        %v1110 = vpop.permute.xlu0 %1109
        %1111 = vrot.lane.b32.xlu0 %v1034, 16
        %v1112 = vpop.permute.xlu0 %1111
        %1113 = vrot.lane.b32.xlu0 %v1035, 16
        %v1114 = vpop.permute.xlu0 %1113
        %1115 = vrot.lane.b32.xlu0 %v1036, 16
        %v1116 = vpop.permute.xlu0 %1115
        %1117 = vrot.lane.b32.xlu0 %v1037, 16
        %v1118 = vpop.permute.xlu0 %1117
        %1119 = vrot.lane.b32.xlu0 %v1038, 16
        %v1120 = vpop.permute.xlu0 %1119
        %1121 = vrot.lane.b32.xlu0 %v1039, 16
        %v1122 = vpop.permute.xlu0 %1121
        %1123 = vrot.lane.b32.xlu0 %v1040, 16
        %v1124 = vpop.permute.xlu0 %1123
        %1125 = vrot.lane.b32.xlu0 %v1041, 16
        %v1126 = vpop.permute.xlu0 %1125
        %1127 = vrot.lane.b32.xlu0 %v1042, 16
        %v1128 = vpop.permute.xlu0 %1127
        %1129 = vrot.lane.b32.xlu0 %v1043, 16
        %v1130 = vpop.permute.xlu0 %1129
        %1131 = vrot.lane.b32.xlu0 %v1044, 16
        %v1132 = vpop.permute.xlu0 %1131
        %1133 = vrot.lane.b32.xlu0 %v1045, 16
        %v1134 = vpop.permute.xlu0 %1133
        %1135 = vrot.lane.b32.xlu0 %v1046, 16
        %v1136 = vpop.permute.xlu0 %1135
        %1137 = vrot.lane.b32.xlu0 %v1047, 16
        %v1138 = vpop.permute.xlu0 %1137
        %1139 = vrot.lane.b32.xlu0 %v1048, 16
        %v1140 = vpop.permute.xlu0 %1139
        %1141 = vrot.lane.b32.xlu0 %v1049, 16
        %v1142 = vpop.permute.xlu0 %1141
        %1143 = vrot.lane.b32.xlu0 %v1050, 16
        %v1144 = vpop.permute.xlu0 %1143
        %1145 = vrot.lane.b32.xlu0 %v1051, 16
        %v1146 = vpop.permute.xlu0 %1145
        %1147 = vrot.lane.b32.xlu0 %v1052, 16
        %v1148 = vpop.permute.xlu0 %1147
        %vm1181 = vcmask 162944
        %1182 = vst.msk [vmem:[#allocation3] sm:$0xff] %vm1181, %v1086
        %1183 = vst.msk [vmem:[#allocation3 + $0x8] sm:$0xff] %vm1181, %v1088
        %1184 = vst.msk [vmem:[#allocation3 + $0x10] sm:$0xff] %vm1181, %v1090
        %1185 = vst.msk [vmem:[#allocation3 + $0x18] sm:$0xff] %vm1181, %v1092
        %1186 = vst.msk [vmem:[#allocation3 + $0x20] sm:$0xff] %vm1181, %v1094
        %1187 = vst.msk [vmem:[#allocation3 + $0x28] sm:$0xff] %vm1181, %v1096
        %1188 = vst.msk [vmem:[#allocation3 + $0x30] sm:$0xff] %vm1181, %v1098
        %1189 = vst.msk [vmem:[#allocation3 + $0x38] sm:$0xff] %vm1181, %v1100
        %1190 = vst.msk [vmem:[#allocation3 + $0x40] sm:$0xff] %vm1181, %v1102
        %1191 = vst.msk [vmem:[#allocation3 + $0x48] sm:$0xff] %vm1181, %v1104
        %1192 = vst.msk [vmem:[#allocation3 + $0x50] sm:$0xff] %vm1181, %v1106
        %1193 = vst.msk [vmem:[#allocation3 + $0x58] sm:$0xff] %vm1181, %v1108
        %1194 = vst.msk [vmem:[#allocation3 + $0x60] sm:$0xff] %vm1181, %v1110
        %1195 = vst.msk [vmem:[#allocation3 + $0x68] sm:$0xff] %vm1181, %v1112
        %1196 = vst.msk [vmem:[#allocation3 + $0x70] sm:$0xff] %vm1181, %v1114
        %1197 = vst.msk [vmem:[#allocation3 + $0x78] sm:$0xff] %vm1181, %v1116
        %1198 = vst.msk [vmem:[#allocation3 + $0x80] sm:$0xff] %vm1181, %v1118
        %1199 = vst.msk [vmem:[#allocation3 + $0x88] sm:$0xff] %vm1181, %v1120
        %1200 = vst.msk [vmem:[#allocation3 + $0x90] sm:$0xff] %vm1181, %v1122
        %1201 = vst.msk [vmem:[#allocation3 + $0x98] sm:$0xff] %vm1181, %v1124
        %1202 = vst.msk [vmem:[#allocation3 + $0xa0] sm:$0xff] %vm1181, %v1126
        %1203 = vst.msk [vmem:[#allocation3 + $0xa8] sm:$0xff] %vm1181, %v1128
        %1204 = vst.msk [vmem:[#allocation3 + $0xb0] sm:$0xff] %vm1181, %v1130
        %1205 = vst.msk [vmem:[#allocation3 + $0xb8] sm:$0xff] %vm1181, %v1132
        %1206 = vst.msk [vmem:[#allocation3 + $0xc0] sm:$0xff] %vm1181, %v1134
        %1207 = vst.msk [vmem:[#allocation3 + $0xc8] sm:$0xff] %vm1181, %v1136
        %1208 = vst.msk [vmem:[#allocation3 + $0xd0] sm:$0xff] %vm1181, %v1138
        %1209 = vst.msk [vmem:[#allocation3 + $0xd8] sm:$0xff] %vm1181, %v1140
        %1210 = vst.msk [vmem:[#allocation3 + $0xe0] sm:$0xff] %vm1181, %v1142
        %1211 = vst.msk [vmem:[#allocation3 + $0xe8] sm:$0xff] %vm1181, %v1144
        %1212 = vst.msk [vmem:[#allocation3 + $0xf0] sm:$0xff] %vm1181, %v1146
        %1213 = vst.msk [vmem:[#allocation3 + $0xf8] sm:$0xff] %vm1181, %v1148
        %v1214 = vld [vmem:[%s345 + $0x2] sm:$0xff]
        %v1215 = vld [vmem:[%s345 + $0xa] sm:$0xff]
        %v1216 = vld [vmem:[%s345 + $0x1a] sm:$0xff]
        %v1217 = vld [vmem:[%s345 + $0x22] sm:$0xff]
        %v1218 = vld [vmem:[%s345 + $0x32] sm:$0xff]
        %v1219 = vld [vmem:[%s345 + $0x3a] sm:$0xff]
        %v1220 = vld [vmem:[%s345 + $0x4a] sm:$0xff]
        %v1221 = vld [vmem:[%s345 + $0x52] sm:$0xff]
        %v1222 = vld [vmem:[%s345 + $0x62] sm:$0xff]
        %v1223 = vld [vmem:[%s345 + $0x6a] sm:$0xff]
        %v1224 = vld [vmem:[%s345 + $0x7a] sm:$0xff]
        %v1225 = vld [vmem:[%s345 + $0x82] sm:$0xff]
        %v1226 = vld [vmem:[%s345 + $0x92] sm:$0xff]
        %v1227 = vld [vmem:[%s345 + $0x9a] sm:$0xff]
        %v1228 = vld [vmem:[%s345 + $0xaa] sm:$0xff]
        %v1229 = vld [vmem:[%s345 + $0xb2] sm:$0xff]
        %v1230 = vld [vmem:[%s345 + $0xc2] sm:$0xff]
        %v1231 = vld [vmem:[%s345 + $0xca] sm:$0xff]
        %v1232 = vld [vmem:[%s345 + $0xda] sm:$0xff]
        %v1233 = vld [vmem:[%s345 + $0xe2] sm:$0xff]
        %v1234 = vld [vmem:[%s345 + $0xf2] sm:$0xff]
        %v1235 = vld [vmem:[%s345 + $0xfa] sm:$0xff]
        %v1236 = vld [vmem:[%s345 + $0x10a] sm:$0xff]
        %v1237 = vld [vmem:[%s345 + $0x112] sm:$0xff]
        %v1238 = vld [vmem:[%s345 + $0x122] sm:$0xff]
        %v1239 = vld [vmem:[%s345 + $0x12a] sm:$0xff]
        %v1240 = vld [vmem:[%s345 + $0x13a] sm:$0xff]
        %v1241 = vld [vmem:[%s345 + $0x142] sm:$0xff]
        %v1242 = vld [vmem:[%s345 + $0x152] sm:$0xff]
        %v1243 = vld [vmem:[%s345 + $0x15a] sm:$0xff]
        %v1244 = vld [vmem:[%s345 + $0x16a] sm:$0xff]
        %v1245 = vld [vmem:[%s345 + $0x172] sm:$0xff]
        %1278 = vrot.lane.b32.xlu0 %v1214, 20
        %v1279 = vpop.permute.xlu0 %1278
        %1280 = vrot.lane.b32.xlu0 %v1215, 20
        %v1281 = vpop.permute.xlu0 %1280
        %1282 = vrot.lane.b32.xlu0 %v1216, 20
        %v1283 = vpop.permute.xlu0 %1282
        %1284 = vrot.lane.b32.xlu0 %v1217, 20
        %v1285 = vpop.permute.xlu0 %1284
        %1286 = vrot.lane.b32.xlu0 %v1218, 20
        %v1287 = vpop.permute.xlu0 %1286
        %1288 = vrot.lane.b32.xlu0 %v1219, 20
        %v1289 = vpop.permute.xlu0 %1288
        %1290 = vrot.lane.b32.xlu0 %v1220, 20
        %v1291 = vpop.permute.xlu0 %1290
        %1292 = vrot.lane.b32.xlu0 %v1221, 20
        %v1293 = vpop.permute.xlu0 %1292
        %1294 = vrot.lane.b32.xlu0 %v1222, 20
        %v1295 = vpop.permute.xlu0 %1294
        %1296 = vrot.lane.b32.xlu0 %v1223, 20
        %v1297 = vpop.permute.xlu0 %1296
        %1298 = vrot.lane.b32.xlu0 %v1224, 20
        %v1299 = vpop.permute.xlu0 %1298
        %1300 = vrot.lane.b32.xlu0 %v1225, 20
        %v1301 = vpop.permute.xlu0 %1300
        %1302 = vrot.lane.b32.xlu0 %v1226, 20
        %v1303 = vpop.permute.xlu0 %1302
        %1304 = vrot.lane.b32.xlu0 %v1227, 20
        %v1305 = vpop.permute.xlu0 %1304
        %1306 = vrot.lane.b32.xlu0 %v1228, 20
        %v1307 = vpop.permute.xlu0 %1306
        %1308 = vrot.lane.b32.xlu0 %v1229, 20
        %v1309 = vpop.permute.xlu0 %1308
        %1310 = vrot.lane.b32.xlu0 %v1230, 20
        %v1311 = vpop.permute.xlu0 %1310
        %1312 = vrot.lane.b32.xlu0 %v1231, 20
        %v1313 = vpop.permute.xlu0 %1312
        %1314 = vrot.lane.b32.xlu0 %v1232, 20
        %v1315 = vpop.permute.xlu0 %1314
        %1316 = vrot.lane.b32.xlu0 %v1233, 20
        %v1317 = vpop.permute.xlu0 %1316
        %1318 = vrot.lane.b32.xlu0 %v1234, 20
        %v1319 = vpop.permute.xlu0 %1318
        %1320 = vrot.lane.b32.xlu0 %v1235, 20
        %v1321 = vpop.permute.xlu0 %1320
        %1322 = vrot.lane.b32.xlu0 %v1236, 20
        %v1323 = vpop.permute.xlu0 %1322
        %1324 = vrot.lane.b32.xlu0 %v1237, 20
        %v1325 = vpop.permute.xlu0 %1324
        %1326 = vrot.lane.b32.xlu0 %v1238, 20
        %v1327 = vpop.permute.xlu0 %1326
        %1328 = vrot.lane.b32.xlu0 %v1239, 20
        %v1329 = vpop.permute.xlu0 %1328
        %1330 = vrot.lane.b32.xlu0 %v1240, 20
        %v1331 = vpop.permute.xlu0 %1330
        %1332 = vrot.lane.b32.xlu0 %v1241, 20
        %v1333 = vpop.permute.xlu0 %1332
        %1334 = vrot.lane.b32.xlu0 %v1242, 20
        %v1335 = vpop.permute.xlu0 %1334
        %1336 = vrot.lane.b32.xlu0 %v1243, 20
        %v1337 = vpop.permute.xlu0 %1336
        %1338 = vrot.lane.b32.xlu0 %v1244, 20
        %v1339 = vpop.permute.xlu0 %1338
        %1340 = vrot.lane.b32.xlu0 %v1245, 20
        %v1341 = vpop.permute.xlu0 %1340
        %vm1374 = vcmask 195744
        %1375 = vst.msk [vmem:[#allocation3] sm:$0xff] %vm1374, %v1279
        %1376 = vst.msk [vmem:[#allocation3 + $0x8] sm:$0xff] %vm1374, %v1281
        %1377 = vst.msk [vmem:[#allocation3 + $0x10] sm:$0xff] %vm1374, %v1283
        %1378 = vst.msk [vmem:[#allocation3 + $0x18] sm:$0xff] %vm1374, %v1285
        %1379 = vst.msk [vmem:[#allocation3 + $0x20] sm:$0xff] %vm1374, %v1287
        %1380 = vst.msk [vmem:[#allocation3 + $0x28] sm:$0xff] %vm1374, %v1289
        %1381 = vst.msk [vmem:[#allocation3 + $0x30] sm:$0xff] %vm1374, %v1291
        %1382 = vst.msk [vmem:[#allocation3 + $0x38] sm:$0xff] %vm1374, %v1293
        %1383 = vst.msk [vmem:[#allocation3 + $0x40] sm:$0xff] %vm1374, %v1295
        %1384 = vst.msk [vmem:[#allocation3 + $0x48] sm:$0xff] %vm1374, %v1297
        %1385 = vst.msk [vmem:[#allocation3 + $0x50] sm:$0xff] %vm1374, %v1299
        %1386 = vst.msk [vmem:[#allocation3 + $0x58] sm:$0xff] %vm1374, %v1301
        %1387 = vst.msk [vmem:[#allocation3 + $0x60] sm:$0xff] %vm1374, %v1303
        %1388 = vst.msk [vmem:[#allocation3 + $0x68] sm:$0xff] %vm1374, %v1305
        %1389 = vst.msk [vmem:[#allocation3 + $0x70] sm:$0xff] %vm1374, %v1307
        %1390 = vst.msk [vmem:[#allocation3 + $0x78] sm:$0xff] %vm1374, %v1309
        %1391 = vst.msk [vmem:[#allocation3 + $0x80] sm:$0xff] %vm1374, %v1311
        %1392 = vst.msk [vmem:[#allocation3 + $0x88] sm:$0xff] %vm1374, %v1313
        %1393 = vst.msk [vmem:[#allocation3 + $0x90] sm:$0xff] %vm1374, %v1315
        %1394 = vst.msk [vmem:[#allocation3 + $0x98] sm:$0xff] %vm1374, %v1317
        %1395 = vst.msk [vmem:[#allocation3 + $0xa0] sm:$0xff] %vm1374, %v1319
        %1396 = vst.msk [vmem:[#allocation3 + $0xa8] sm:$0xff] %vm1374, %v1321
        %1397 = vst.msk [vmem:[#allocation3 + $0xb0] sm:$0xff] %vm1374, %v1323
        %1398 = vst.msk [vmem:[#allocation3 + $0xb8] sm:$0xff] %vm1374, %v1325
        %1399 = vst.msk [vmem:[#allocation3 + $0xc0] sm:$0xff] %vm1374, %v1327
        %1400 = vst.msk [vmem:[#allocation3 + $0xc8] sm:$0xff] %vm1374, %v1329
        %1401 = vst.msk [vmem:[#allocation3 + $0xd0] sm:$0xff] %vm1374, %v1331
        %1402 = vst.msk [vmem:[#allocation3 + $0xd8] sm:$0xff] %vm1374, %v1333
        %1403 = vst.msk [vmem:[#allocation3 + $0xe0] sm:$0xff] %vm1374, %v1335
        %1404 = vst.msk [vmem:[#allocation3 + $0xe8] sm:$0xff] %vm1374, %v1337
        %1405 = vst.msk [vmem:[#allocation3 + $0xf0] sm:$0xff] %vm1374, %v1339
        %1406 = vst.msk [vmem:[#allocation3 + $0xf8] sm:$0xff] %vm1374, %v1341
        %s1407 = scalar_lea.vmem [#allocation2], 48
        %v1408 = vld [vmem:[%s1407] sm:$0xff]
        %v1409 = vld [vmem:[%s1407 + $0x8] sm:$0xff]
        %v1410 = vld [vmem:[%s1407 + $0x18] sm:$0xff]
        %v1411 = vld [vmem:[%s1407 + $0x20] sm:$0xff]
        %v1412 = vld [vmem:[%s1407 + $0x30] sm:$0xff]
        %v1413 = vld [vmem:[%s1407 + $0x38] sm:$0xff]
        %v1414 = vld [vmem:[%s1407 + $0x48] sm:$0xff]
        %v1415 = vld [vmem:[%s1407 + $0x50] sm:$0xff]
        %v1416 = vld [vmem:[%s1407 + $0x60] sm:$0xff]
        %v1417 = vld [vmem:[%s1407 + $0x68] sm:$0xff]
        %v1418 = vld [vmem:[%s1407 + $0x78] sm:$0xff]
        %v1419 = vld [vmem:[%s1407 + $0x80] sm:$0xff]
        %v1420 = vld [vmem:[%s1407 + $0x90] sm:$0xff]
        %v1421 = vld [vmem:[%s1407 + $0x98] sm:$0xff]
        %v1422 = vld [vmem:[%s1407 + $0xa8] sm:$0xff]
        %v1423 = vld [vmem:[%s1407 + $0xb0] sm:$0xff]
        %v1424 = vld [vmem:[%s1407 + $0xc0] sm:$0xff]
        %v1425 = vld [vmem:[%s1407 + $0xc8] sm:$0xff]
        %v1426 = vld [vmem:[%s1407 + $0xd8] sm:$0xff]
        %v1427 = vld [vmem:[%s1407 + $0xe0] sm:$0xff]
        %v1428 = vld [vmem:[%s1407 + $0xf0] sm:$0xff]
        %v1429 = vld [vmem:[%s1407 + $0xf8] sm:$0xff]
        %v1430 = vld [vmem:[%s1407 + $0x108] sm:$0xff]
        %v1431 = vld [vmem:[%s1407 + $0x110] sm:$0xff]
        %v1432 = vld [vmem:[%s1407 + $0x120] sm:$0xff]
        %v1433 = vld [vmem:[%s1407 + $0x128] sm:$0xff]
        %v1434 = vld [vmem:[%s1407 + $0x138] sm:$0xff]
        %v1435 = vld [vmem:[%s1407 + $0x140] sm:$0xff]
        %v1436 = vld [vmem:[%s1407 + $0x150] sm:$0xff]
        %v1437 = vld [vmem:[%s1407 + $0x158] sm:$0xff]
        %v1438 = vld [vmem:[%s1407 + $0x168] sm:$0xff]
        %v1439 = vld [vmem:[%s1407 + $0x170] sm:$0xff]
        %1472 = vrot.lane.b32.xlu0 %v1408, 24
        %v1473 = vpop.permute.xlu0 %1472
        %1474 = vrot.lane.b32.xlu0 %v1409, 24
        %v1475 = vpop.permute.xlu0 %1474
        %1476 = vrot.lane.b32.xlu0 %v1410, 24
        %v1477 = vpop.permute.xlu0 %1476
        %1478 = vrot.lane.b32.xlu0 %v1411, 24
        %v1479 = vpop.permute.xlu0 %1478
        %1480 = vrot.lane.b32.xlu0 %v1412, 24
        %v1481 = vpop.permute.xlu0 %1480
        %1482 = vrot.lane.b32.xlu0 %v1413, 24
        %v1483 = vpop.permute.xlu0 %1482
        %1484 = vrot.lane.b32.xlu0 %v1414, 24
        %v1485 = vpop.permute.xlu0 %1484
        %1486 = vrot.lane.b32.xlu0 %v1415, 24
        %v1487 = vpop.permute.xlu0 %1486
        %1488 = vrot.lane.b32.xlu0 %v1416, 24
        %v1489 = vpop.permute.xlu0 %1488
        %1490 = vrot.lane.b32.xlu0 %v1417, 24
        %v1491 = vpop.permute.xlu0 %1490
        %1492 = vrot.lane.b32.xlu0 %v1418, 24
        %v1493 = vpop.permute.xlu0 %1492
        %1494 = vrot.lane.b32.xlu0 %v1419, 24
        %v1495 = vpop.permute.xlu0 %1494
        %1496 = vrot.lane.b32.xlu0 %v1420, 24
        %v1497 = vpop.permute.xlu0 %1496
        %1498 = vrot.lane.b32.xlu0 %v1421, 24
        %v1499 = vpop.permute.xlu0 %1498
        %1500 = vrot.lane.b32.xlu0 %v1422, 24
        %v1501 = vpop.permute.xlu0 %1500
        %1502 = vrot.lane.b32.xlu0 %v1423, 24
        %v1503 = vpop.permute.xlu0 %1502
        %1504 = vrot.lane.b32.xlu0 %v1424, 24
        %v1505 = vpop.permute.xlu0 %1504
        %1506 = vrot.lane.b32.xlu0 %v1425, 24
        %v1507 = vpop.permute.xlu0 %1506
        %1508 = vrot.lane.b32.xlu0 %v1426, 24
        %v1509 = vpop.permute.xlu0 %1508
        %1510 = vrot.lane.b32.xlu0 %v1427, 24
        %v1511 = vpop.permute.xlu0 %1510
        %1512 = vrot.lane.b32.xlu0 %v1428, 24
        %v1513 = vpop.permute.xlu0 %1512
        %1514 = vrot.lane.b32.xlu0 %v1429, 24
        %v1515 = vpop.permute.xlu0 %1514
        %1516 = vrot.lane.b32.xlu0 %v1430, 24
        %v1517 = vpop.permute.xlu0 %1516
        %1518 = vrot.lane.b32.xlu0 %v1431, 24
        %v1519 = vpop.permute.xlu0 %1518
        %1520 = vrot.lane.b32.xlu0 %v1432, 24
        %v1521 = vpop.permute.xlu0 %1520
        %1522 = vrot.lane.b32.xlu0 %v1433, 24
        %v1523 = vpop.permute.xlu0 %1522
        %1524 = vrot.lane.b32.xlu0 %v1434, 24
        %v1525 = vpop.permute.xlu0 %1524
        %1526 = vrot.lane.b32.xlu0 %v1435, 24
        %v1527 = vpop.permute.xlu0 %1526
        %1528 = vrot.lane.b32.xlu0 %v1436, 24
        %v1529 = vpop.permute.xlu0 %1528
        %1530 = vrot.lane.b32.xlu0 %v1437, 24
        %v1531 = vpop.permute.xlu0 %1530
        %1532 = vrot.lane.b32.xlu0 %v1438, 24
        %v1533 = vpop.permute.xlu0 %1532
        %1534 = vrot.lane.b32.xlu0 %v1439, 24
        %v1535 = vpop.permute.xlu0 %1534
        %vm1568 = vcmask 228544
        %1569 = vst.msk [vmem:[#allocation3] sm:$0xff] %vm1568, %v1473
        %1570 = vst.msk [vmem:[#allocation3 + $0x8] sm:$0xff] %vm1568, %v1475
        %1571 = vst.msk [vmem:[#allocation3 + $0x10] sm:$0xff] %vm1568, %v1477
        %1572 = vst.msk [vmem:[#allocation3 + $0x18] sm:$0xff] %vm1568, %v1479
        %1573 = vst.msk [vmem:[#allocation3 + $0x20] sm:$0xff] %vm1568, %v1481
        %1574 = vst.msk [vmem:[#allocation3 + $0x28] sm:$0xff] %vm1568, %v1483
        %1575 = vst.msk [vmem:[#allocation3 + $0x30] sm:$0xff] %vm1568, %v1485
        %1576 = vst.msk [vmem:[#allocation3 + $0x38] sm:$0xff] %vm1568, %v1487
        %1577 = vst.msk [vmem:[#allocation3 + $0x40] sm:$0xff] %vm1568, %v1489
        %1578 = vst.msk [vmem:[#allocation3 + $0x48] sm:$0xff] %vm1568, %v1491
        %1579 = vst.msk [vmem:[#allocation3 + $0x50] sm:$0xff] %vm1568, %v1493
        %1580 = vst.msk [vmem:[#allocation3 + $0x58] sm:$0xff] %vm1568, %v1495
        %1581 = vst.msk [vmem:[#allocation3 + $0x60] sm:$0xff] %vm1568, %v1497
        %1582 = vst.msk [vmem:[#allocation3 + $0x68] sm:$0xff] %vm1568, %v1499
        %1583 = vst.msk [vmem:[#allocation3 + $0x70] sm:$0xff] %vm1568, %v1501
        %1584 = vst.msk [vmem:[#allocation3 + $0x78] sm:$0xff] %vm1568, %v1503
        %1585 = vst.msk [vmem:[#allocation3 + $0x80] sm:$0xff] %vm1568, %v1505
        %1586 = vst.msk [vmem:[#allocation3 + $0x88] sm:$0xff] %vm1568, %v1507
        %1587 = vst.msk [vmem:[#allocation3 + $0x90] sm:$0xff] %vm1568, %v1509
        %1588 = vst.msk [vmem:[#allocation3 + $0x98] sm:$0xff] %vm1568, %v1511
        %1589 = vst.msk [vmem:[#allocation3 + $0xa0] sm:$0xff] %vm1568, %v1513
        %1590 = vst.msk [vmem:[#allocation3 + $0xa8] sm:$0xff] %vm1568, %v1515
        %1591 = vst.msk [vmem:[#allocation3 + $0xb0] sm:$0xff] %vm1568, %v1517
        %1592 = vst.msk [vmem:[#allocation3 + $0xb8] sm:$0xff] %vm1568, %v1519
        %1593 = vst.msk [vmem:[#allocation3 + $0xc0] sm:$0xff] %vm1568, %v1521
        %1594 = vst.msk [vmem:[#allocation3 + $0xc8] sm:$0xff] %vm1568, %v1523
        %1595 = vst.msk [vmem:[#allocation3 + $0xd0] sm:$0xff] %vm1568, %v1525
        %1596 = vst.msk [vmem:[#allocation3 + $0xd8] sm:$0xff] %vm1568, %v1527
        %1597 = vst.msk [vmem:[#allocation3 + $0xe0] sm:$0xff] %vm1568, %v1529
        %1598 = vst.msk [vmem:[#allocation3 + $0xe8] sm:$0xff] %vm1568, %v1531
        %1599 = vst.msk [vmem:[#allocation3 + $0xf0] sm:$0xff] %vm1568, %v1533
        %1600 = vst.msk [vmem:[#allocation3 + $0xf8] sm:$0xff] %vm1568, %v1535
        %v1601 = vld [vmem:[%s1407 + $0x1] sm:$0xff]
        %v1602 = vld [vmem:[%s1407 + $0x9] sm:$0xff]
        %v1603 = vld [vmem:[%s1407 + $0x19] sm:$0xff]
        %v1604 = vld [vmem:[%s1407 + $0x21] sm:$0xff]
        %v1605 = vld [vmem:[%s1407 + $0x31] sm:$0xff]
        %v1606 = vld [vmem:[%s1407 + $0x39] sm:$0xff]
        %v1607 = vld [vmem:[%s1407 + $0x49] sm:$0xff]
        %v1608 = vld [vmem:[%s1407 + $0x51] sm:$0xff]
        %v1609 = vld [vmem:[%s1407 + $0x61] sm:$0xff]
        %v1610 = vld [vmem:[%s1407 + $0x69] sm:$0xff]
        %v1611 = vld [vmem:[%s1407 + $0x79] sm:$0xff]
        %v1612 = vld [vmem:[%s1407 + $0x81] sm:$0xff]
        %v1613 = vld [vmem:[%s1407 + $0x91] sm:$0xff]
        %v1614 = vld [vmem:[%s1407 + $0x99] sm:$0xff]
        %v1615 = vld [vmem:[%s1407 + $0xa9] sm:$0xff]
        %v1616 = vld [vmem:[%s1407 + $0xb1] sm:$0xff]
        %v1617 = vld [vmem:[%s1407 + $0xc1] sm:$0xff]
        %v1618 = vld [vmem:[%s1407 + $0xc9] sm:$0xff]
        %v1619 = vld [vmem:[%s1407 + $0xd9] sm:$0xff]
        %v1620 = vld [vmem:[%s1407 + $0xe1] sm:$0xff]
        %v1621 = vld [vmem:[%s1407 + $0xf1] sm:$0xff]
        %v1622 = vld [vmem:[%s1407 + $0xf9] sm:$0xff]
        %v1623 = vld [vmem:[%s1407 + $0x109] sm:$0xff]
        %v1624 = vld [vmem:[%s1407 + $0x111] sm:$0xff]
        %v1625 = vld [vmem:[%s1407 + $0x121] sm:$0xff]
        %v1626 = vld [vmem:[%s1407 + $0x129] sm:$0xff]
        %v1627 = vld [vmem:[%s1407 + $0x139] sm:$0xff]
        %v1628 = vld [vmem:[%s1407 + $0x141] sm:$0xff]
        %v1629 = vld [vmem:[%s1407 + $0x151] sm:$0xff]
        %v1630 = vld [vmem:[%s1407 + $0x159] sm:$0xff]
        %v1631 = vld [vmem:[%s1407 + $0x169] sm:$0xff]
        %v1632 = vld [vmem:[%s1407 + $0x171] sm:$0xff]
        %1665 = vrot.lane.b32.xlu0 %v1601, 28
        %v1666 = vpop.permute.xlu0 %1665
        %1667 = vrot.lane.b32.xlu0 %v1602, 28
        %v1668 = vpop.permute.xlu0 %1667
        %1669 = vrot.lane.b32.xlu0 %v1603, 28
        %v1670 = vpop.permute.xlu0 %1669
        %1671 = vrot.lane.b32.xlu0 %v1604, 28
        %v1672 = vpop.permute.xlu0 %1671
        %1673 = vrot.lane.b32.xlu0 %v1605, 28
        %v1674 = vpop.permute.xlu0 %1673
        %1675 = vrot.lane.b32.xlu0 %v1606, 28
        %v1676 = vpop.permute.xlu0 %1675
        %1677 = vrot.lane.b32.xlu0 %v1607, 28
        %v1678 = vpop.permute.xlu0 %1677
        %1679 = vrot.lane.b32.xlu0 %v1608, 28
        %v1680 = vpop.permute.xlu0 %1679
        %1681 = vrot.lane.b32.xlu0 %v1609, 28
        %v1682 = vpop.permute.xlu0 %1681
        %1683 = vrot.lane.b32.xlu0 %v1610, 28
        %v1684 = vpop.permute.xlu0 %1683
        %1685 = vrot.lane.b32.xlu0 %v1611, 28
        %v1686 = vpop.permute.xlu0 %1685
        %1687 = vrot.lane.b32.xlu0 %v1612, 28
        %v1688 = vpop.permute.xlu0 %1687
        %1689 = vrot.lane.b32.xlu0 %v1613, 28
        %v1690 = vpop.permute.xlu0 %1689
        %1691 = vrot.lane.b32.xlu0 %v1614, 28
        %v1692 = vpop.permute.xlu0 %1691
        %1693 = vrot.lane.b32.xlu0 %v1615, 28
        %v1694 = vpop.permute.xlu0 %1693
        %1695 = vrot.lane.b32.xlu0 %v1616, 28
        %v1696 = vpop.permute.xlu0 %1695
        %1697 = vrot.lane.b32.xlu0 %v1617, 28
        %v1698 = vpop.permute.xlu0 %1697
        %1699 = vrot.lane.b32.xlu0 %v1618, 28
        %v1700 = vpop.permute.xlu0 %1699
        %1701 = vrot.lane.b32.xlu0 %v1619, 28
        %v1702 = vpop.permute.xlu0 %1701
        %1703 = vrot.lane.b32.xlu0 %v1620, 28
        %v1704 = vpop.permute.xlu0 %1703
        %1705 = vrot.lane.b32.xlu0 %v1621, 28
        %v1706 = vpop.permute.xlu0 %1705
        %1707 = vrot.lane.b32.xlu0 %v1622, 28
        %v1708 = vpop.permute.xlu0 %1707
        %1709 = vrot.lane.b32.xlu0 %v1623, 28
        %v1710 = vpop.permute.xlu0 %1709
        %1711 = vrot.lane.b32.xlu0 %v1624, 28
        %v1712 = vpop.permute.xlu0 %1711
        %1713 = vrot.lane.b32.xlu0 %v1625, 28
        %v1714 = vpop.permute.xlu0 %1713
        %1715 = vrot.lane.b32.xlu0 %v1626, 28
        %v1716 = vpop.permute.xlu0 %1715
        %1717 = vrot.lane.b32.xlu0 %v1627, 28
        %v1718 = vpop.permute.xlu0 %1717
        %1719 = vrot.lane.b32.xlu0 %v1628, 28
        %v1720 = vpop.permute.xlu0 %1719
        %1721 = vrot.lane.b32.xlu0 %v1629, 28
        %v1722 = vpop.permute.xlu0 %1721
        %1723 = vrot.lane.b32.xlu0 %v1630, 28
        %v1724 = vpop.permute.xlu0 %1723
        %1725 = vrot.lane.b32.xlu0 %v1631, 28
        %v1726 = vpop.permute.xlu0 %1725
        %1727 = vrot.lane.b32.xlu0 %v1632, 28
        %v1728 = vpop.permute.xlu0 %1727
        %vm1761 = vcmask 261344
        %1762 = vst.msk [vmem:[#allocation3] sm:$0xff] %vm1761, %v1666
        %1763 = vst.msk [vmem:[#allocation3 + $0x8] sm:$0xff] %vm1761, %v1668
        %1764 = vst.msk [vmem:[#allocation3 + $0x10] sm:$0xff] %vm1761, %v1670
        %1765 = vst.msk [vmem:[#allocation3 + $0x18] sm:$0xff] %vm1761, %v1672
        %1766 = vst.msk [vmem:[#allocation3 + $0x20] sm:$0xff] %vm1761, %v1674
        %1767 = vst.msk [vmem:[#allocation3 + $0x28] sm:$0xff] %vm1761, %v1676
        %1768 = vst.msk [vmem:[#allocation3 + $0x30] sm:$0xff] %vm1761, %v1678
        %1769 = vst.msk [vmem:[#allocation3 + $0x38] sm:$0xff] %vm1761, %v1680
        %1770 = vst.msk [vmem:[#allocation3 + $0x40] sm:$0xff] %vm1761, %v1682
        %1771 = vst.msk [vmem:[#allocation3 + $0x48] sm:$0xff] %vm1761, %v1684
        %1772 = vst.msk [vmem:[#allocation3 + $0x50] sm:$0xff] %vm1761, %v1686
        %1773 = vst.msk [vmem:[#allocation3 + $0x58] sm:$0xff] %vm1761, %v1688
        %1774 = vst.msk [vmem:[#allocation3 + $0x60] sm:$0xff] %vm1761, %v1690
        %1775 = vst.msk [vmem:[#allocation3 + $0x68] sm:$0xff] %vm1761, %v1692
        %1776 = vst.msk [vmem:[#allocation3 + $0x70] sm:$0xff] %vm1761, %v1694
        %1777 = vst.msk [vmem:[#allocation3 + $0x78] sm:$0xff] %vm1761, %v1696
        %1778 = vst.msk [vmem:[#allocation3 + $0x80] sm:$0xff] %vm1761, %v1698
        %1779 = vst.msk [vmem:[#allocation3 + $0x88] sm:$0xff] %vm1761, %v1700
        %1780 = vst.msk [vmem:[#allocation3 + $0x90] sm:$0xff] %vm1761, %v1702
        %1781 = vst.msk [vmem:[#allocation3 + $0x98] sm:$0xff] %vm1761, %v1704
        %1782 = vst.msk [vmem:[#allocation3 + $0xa0] sm:$0xff] %vm1761, %v1706
        %1783 = vst.msk [vmem:[#allocation3 + $0xa8] sm:$0xff] %vm1761, %v1708
        %1784 = vst.msk [vmem:[#allocation3 + $0xb0] sm:$0xff] %vm1761, %v1710
        %1785 = vst.msk [vmem:[#allocation3 + $0xb8] sm:$0xff] %vm1761, %v1712
        %1786 = vst.msk [vmem:[#allocation3 + $0xc0] sm:$0xff] %vm1761, %v1714
        %1787 = vst.msk [vmem:[#allocation3 + $0xc8] sm:$0xff] %vm1761, %v1716
        %1788 = vst.msk [vmem:[#allocation3 + $0xd0] sm:$0xff] %vm1761, %v1718
        %1789 = vst.msk [vmem:[#allocation3 + $0xd8] sm:$0xff] %vm1761, %v1720
        %1790 = vst.msk [vmem:[#allocation3 + $0xe0] sm:$0xff] %vm1761, %v1722
        %1791 = vst.msk [vmem:[#allocation3 + $0xe8] sm:$0xff] %vm1761, %v1724
        %1792 = vst.msk [vmem:[#allocation3 + $0xf0] sm:$0xff] %vm1761, %v1726
        %1793 = vst.msk [vmem:[#allocation3 + $0xf8] sm:$0xff] %vm1761, %v1728
        %v1794 = vld [vmem:[%s1407 + $0x2] sm:$0xff]
        %v1795 = vld [vmem:[%s1407 + $0xa] sm:$0xff]
        %v1796 = vld [vmem:[%s1407 + $0x1a] sm:$0xff]
        %v1797 = vld [vmem:[%s1407 + $0x22] sm:$0xff]
        %v1798 = vld [vmem:[%s1407 + $0x32] sm:$0xff]
        %v1799 = vld [vmem:[%s1407 + $0x3a] sm:$0xff]
        %v1800 = vld [vmem:[%s1407 + $0x4a] sm:$0xff]
        %v1801 = vld [vmem:[%s1407 + $0x52] sm:$0xff]
        %v1802 = vld [vmem:[%s1407 + $0x62] sm:$0xff]
        %v1803 = vld [vmem:[%s1407 + $0x6a] sm:$0xff]
        %v1804 = vld [vmem:[%s1407 + $0x7a] sm:$0xff]
        %v1805 = vld [vmem:[%s1407 + $0x82] sm:$0xff]
        %v1806 = vld [vmem:[%s1407 + $0x92] sm:$0xff]
        %v1807 = vld [vmem:[%s1407 + $0x9a] sm:$0xff]
        %v1808 = vld [vmem:[%s1407 + $0xaa] sm:$0xff]
        %v1809 = vld [vmem:[%s1407 + $0xb2] sm:$0xff]
        %v1810 = vld [vmem:[%s1407 + $0xc2] sm:$0xff]
        %v1811 = vld [vmem:[%s1407 + $0xca] sm:$0xff]
        %v1812 = vld [vmem:[%s1407 + $0xda] sm:$0xff]
        %v1813 = vld [vmem:[%s1407 + $0xe2] sm:$0xff]
        %v1814 = vld [vmem:[%s1407 + $0xf2] sm:$0xff]
        %v1815 = vld [vmem:[%s1407 + $0xfa] sm:$0xff]
        %v1816 = vld [vmem:[%s1407 + $0x10a] sm:$0xff]
        %v1817 = vld [vmem:[%s1407 + $0x112] sm:$0xff]
        %v1818 = vld [vmem:[%s1407 + $0x122] sm:$0xff]
        %v1819 = vld [vmem:[%s1407 + $0x12a] sm:$0xff]
        %v1820 = vld [vmem:[%s1407 + $0x13a] sm:$0xff]
        %v1821 = vld [vmem:[%s1407 + $0x142] sm:$0xff]
        %v1822 = vld [vmem:[%s1407 + $0x152] sm:$0xff]
        %v1823 = vld [vmem:[%s1407 + $0x15a] sm:$0xff]
        %v1824 = vld [vmem:[%s1407 + $0x16a] sm:$0xff]
        %v1825 = vld [vmem:[%s1407 + $0x172] sm:$0xff]
        %1858 = vrot.lane.b32.xlu0 %v1794, 32
        %v1859 = vpop.permute.xlu0 %1858
        %1860 = vrot.lane.b32.xlu0 %v1795, 32
        %v1861 = vpop.permute.xlu0 %1860
        %1862 = vrot.lane.b32.xlu0 %v1796, 32
        %v1863 = vpop.permute.xlu0 %1862
        %1864 = vrot.lane.b32.xlu0 %v1797, 32
        %v1865 = vpop.permute.xlu0 %1864
        %1866 = vrot.lane.b32.xlu0 %v1798, 32
        %v1867 = vpop.permute.xlu0 %1866
        %1868 = vrot.lane.b32.xlu0 %v1799, 32
        %v1869 = vpop.permute.xlu0 %1868
        %1870 = vrot.lane.b32.xlu0 %v1800, 32
        %v1871 = vpop.permute.xlu0 %1870
        %1872 = vrot.lane.b32.xlu0 %v1801, 32
        %v1873 = vpop.permute.xlu0 %1872
        %1874 = vrot.lane.b32.xlu0 %v1802, 32
        %v1875 = vpop.permute.xlu0 %1874
        %1876 = vrot.lane.b32.xlu0 %v1803, 32
        %v1877 = vpop.permute.xlu0 %1876
        %1878 = vrot.lane.b32.xlu0 %v1804, 32
        %v1879 = vpop.permute.xlu0 %1878
        %1880 = vrot.lane.b32.xlu0 %v1805, 32
        %v1881 = vpop.permute.xlu0 %1880
        %1882 = vrot.lane.b32.xlu0 %v1806, 32
        %v1883 = vpop.permute.xlu0 %1882
        %1884 = vrot.lane.b32.xlu0 %v1807, 32
        %v1885 = vpop.permute.xlu0 %1884
        %1886 = vrot.lane.b32.xlu0 %v1808, 32
        %v1887 = vpop.permute.xlu0 %1886
        %1888 = vrot.lane.b32.xlu0 %v1809, 32
        %v1889 = vpop.permute.xlu0 %1888
        %1890 = vrot.lane.b32.xlu0 %v1810, 32
        %v1891 = vpop.permute.xlu0 %1890
        %1892 = vrot.lane.b32.xlu0 %v1811, 32
        %v1893 = vpop.permute.xlu0 %1892
        %1894 = vrot.lane.b32.xlu0 %v1812, 32
        %v1895 = vpop.permute.xlu0 %1894
        %1896 = vrot.lane.b32.xlu0 %v1813, 32
        %v1897 = vpop.permute.xlu0 %1896
        %1898 = vrot.lane.b32.xlu0 %v1814, 32
        %v1899 = vpop.permute.xlu0 %1898
        %1900 = vrot.lane.b32.xlu0 %v1815, 32
        %v1901 = vpop.permute.xlu0 %1900
        %1902 = vrot.lane.b32.xlu0 %v1816, 32
        %v1903 = vpop.permute.xlu0 %1902
        %1904 = vrot.lane.b32.xlu0 %v1817, 32
        %v1905 = vpop.permute.xlu0 %1904
        %1906 = vrot.lane.b32.xlu0 %v1818, 32
        %v1907 = vpop.permute.xlu0 %1906
        %1908 = vrot.lane.b32.xlu0 %v1819, 32
        %v1909 = vpop.permute.xlu0 %1908
        %1910 = vrot.lane.b32.xlu0 %v1820, 32
        %v1911 = vpop.permute.xlu0 %1910
        %1912 = vrot.lane.b32.xlu0 %v1821, 32
        %v1913 = vpop.permute.xlu0 %1912
        %1914 = vrot.lane.b32.xlu0 %v1822, 32
        %v1915 = vpop.permute.xlu0 %1914
        %1916 = vrot.lane.b32.xlu0 %v1823, 32
        %v1917 = vpop.permute.xlu0 %1916
        %1918 = vrot.lane.b32.xlu0 %v1824, 32
        %v1919 = vpop.permute.xlu0 %1918
        %1920 = vrot.lane.b32.xlu0 %v1825, 32
        %v1921 = vpop.permute.xlu0 %1920
        %vm1954 = vcmask 294144
        %1955 = vst.msk [vmem:[#allocation3] sm:$0xff] %vm1954, %v1859
        %1956 = vst.msk [vmem:[#allocation3 + $0x8] sm:$0xff] %vm1954, %v1861
        %1957 = vst.msk [vmem:[#allocation3 + $0x10] sm:$0xff] %vm1954, %v1863
        %1958 = vst.msk [vmem:[#allocation3 + $0x18] sm:$0xff] %vm1954, %v1865
        %1959 = vst.msk [vmem:[#allocation3 + $0x20] sm:$0xff] %vm1954, %v1867
        %1960 = vst.msk [vmem:[#allocation3 + $0x28] sm:$0xff] %vm1954, %v1869
        %1961 = vst.msk [vmem:[#allocation3 + $0x30] sm:$0xff] %vm1954, %v1871
        %1962 = vst.msk [vmem:[#allocation3 + $0x38] sm:$0xff] %vm1954, %v1873
        %1963 = vst.msk [vmem:[#allocation3 + $0x40] sm:$0xff] %vm1954, %v1875
        %1964 = vst.msk [vmem:[#allocation3 + $0x48] sm:$0xff] %vm1954, %v1877
        %1965 = vst.msk [vmem:[#allocation3 + $0x50] sm:$0xff] %vm1954, %v1879
        %1966 = vst.msk [vmem:[#allocation3 + $0x58] sm:$0xff] %vm1954, %v1881
        %1967 = vst.msk [vmem:[#allocation3 + $0x60] sm:$0xff] %vm1954, %v1883
        %1968 = vst.msk [vmem:[#allocation3 + $0x68] sm:$0xff] %vm1954, %v1885
        %1969 = vst.msk [vmem:[#allocation3 + $0x70] sm:$0xff] %vm1954, %v1887
        %1970 = vst.msk [vmem:[#allocation3 + $0x78] sm:$0xff] %vm1954, %v1889
        %1971 = vst.msk [vmem:[#allocation3 + $0x80] sm:$0xff] %vm1954, %v1891
        %1972 = vst.msk [vmem:[#allocation3 + $0x88] sm:$0xff] %vm1954, %v1893
        %1973 = vst.msk [vmem:[#allocation3 + $0x90] sm:$0xff] %vm1954, %v1895
        %1974 = vst.msk [vmem:[#allocation3 + $0x98] sm:$0xff] %vm1954, %v1897
        %1975 = vst.msk [vmem:[#allocation3 + $0xa0] sm:$0xff] %vm1954, %v1899
        %1976 = vst.msk [vmem:[#allocation3 + $0xa8] sm:$0xff] %vm1954, %v1901
        %1977 = vst.msk [vmem:[#allocation3 + $0xb0] sm:$0xff] %vm1954, %v1903
        %1978 = vst.msk [vmem:[#allocation3 + $0xb8] sm:$0xff] %vm1954, %v1905
        %1979 = vst.msk [vmem:[#allocation3 + $0xc0] sm:$0xff] %vm1954, %v1907
        %1980 = vst.msk [vmem:[#allocation3 + $0xc8] sm:$0xff] %vm1954, %v1909
        %1981 = vst.msk [vmem:[#allocation3 + $0xd0] sm:$0xff] %vm1954, %v1911
        %1982 = vst.msk [vmem:[#allocation3 + $0xd8] sm:$0xff] %vm1954, %v1913
        %1983 = vst.msk [vmem:[#allocation3 + $0xe0] sm:$0xff] %vm1954, %v1915
        %1984 = vst.msk [vmem:[#allocation3 + $0xe8] sm:$0xff] %vm1954, %v1917
        %1985 = vst.msk [vmem:[#allocation3 + $0xf0] sm:$0xff] %vm1954, %v1919
        %1986 = vst.msk [vmem:[#allocation3 + $0xf8] sm:$0xff] %vm1954, %v1921
      $region40: #{tpu_custom_call.1} parent=35 // pred_fallthru
        _
      %v1987 = vld [vmem:[#allocation3] sm:$0xff]
      %v1988 = vld [vmem:[#allocation3 + $0x8] sm:$0xff]
      %v1989 = vld [vmem:[#allocation3 + $0x10] sm:$0xff]
      %v1990 = vld [vmem:[#allocation3 + $0x18] sm:$0xff]
      %v1991 = vld [vmem:[#allocation3 + $0x20] sm:$0xff]
      %v1992 = vld [vmem:[#allocation3 + $0x28] sm:$0xff]
      %v1993 = vld [vmem:[#allocation3 + $0x30] sm:$0xff]
      %v1994 = vld [vmem:[#allocation3 + $0x38] sm:$0xff]
      %v1995 = vld [vmem:[#allocation3 + $0x40] sm:$0xff]
      %v1996 = vld [vmem:[#allocation3 + $0x48] sm:$0xff]
      %v1997 = vld [vmem:[#allocation3 + $0x50] sm:$0xff]
      %v1998 = vld [vmem:[#allocation3 + $0x58] sm:$0xff]
      %v1999 = vld [vmem:[#allocation3 + $0x60] sm:$0xff]
      %v2000 = vld [vmem:[#allocation3 + $0x68] sm:$0xff]
      %v2001 = vld [vmem:[#allocation3 + $0x70] sm:$0xff]
      %v2002 = vld [vmem:[#allocation3 + $0x78] sm:$0xff]
      %v2003 = vld [vmem:[#allocation3 + $0x80] sm:$0xff]
      %v2004 = vld [vmem:[#allocation3 + $0x88] sm:$0xff]
      %v2005 = vld [vmem:[#allocation3 + $0x90] sm:$0xff]
      %v2006 = vld [vmem:[#allocation3 + $0x98] sm:$0xff]
      %v2007 = vld [vmem:[#allocation3 + $0xa0] sm:$0xff]
      %v2008 = vld [vmem:[#allocation3 + $0xa8] sm:$0xff]
      %v2009 = vld [vmem:[#allocation3 + $0xb0] sm:$0xff]
      %v2010 = vld [vmem:[#allocation3 + $0xb8] sm:$0xff]
      %v2011 = vld [vmem:[#allocation3 + $0xc0] sm:$0xff]
      %v2012 = vld [vmem:[#allocation3 + $0xc8] sm:$0xff]
      %v2013 = vld [vmem:[#allocation3 + $0xd0] sm:$0xff]
      %v2014 = vld [vmem:[#allocation3 + $0xd8] sm:$0xff]
      %v2015 = vld [vmem:[#allocation3 + $0xe0] sm:$0xff]
      %v2016 = vld [vmem:[#allocation3 + $0xe8] sm:$0xff]
      %v2017 = vld [vmem:[#allocation3 + $0xf0] sm:$0xff]
      %v2018 = vld [vmem:[#allocation3 + $0xf8] sm:$0xff]
      %v2019 = vld [vmem:[%s248] sm:$0xff]
      %v2020 = vld [vmem:[%s248 + $0x8] sm:$0xff]
      %v2021 = vld [vmem:[%s248 + $0x10] sm:$0xff]
      %v2022 = vld [vmem:[%s248 + $0x18] sm:$0xff]
      %v2023 = vld [vmem:[%s248 + $0x20] sm:$0xf]
      %vm2024 = vcmask 293888
      %v2026 = vsel %vm2024, %v1987, 0
      %v2029 = vsel %vm2024, %v1988, 0
      %v2032 = vsel %vm2024, %v1989, 0
      %v2035 = vsel %vm2024, %v1990, 0
      %v2038 = vsel %vm2024, %v1991, 0
      %v2041 = vsel %vm2024, %v1992, 0
      %v2044 = vsel %vm2024, %v1993, 0
      %v2047 = vsel %vm2024, %v1994, 0
      %v2050 = vsel %vm2024, %v1995, 0
      %v2053 = vsel %vm2024, %v1996, 0
      %v2056 = vsel %vm2024, %v1997, 0
      %v2059 = vsel %vm2024, %v1998, 0
      %v2062 = vsel %vm2024, %v1999, 0
      %v2065 = vsel %vm2024, %v2000, 0
      %v2068 = vsel %vm2024, %v2001, 0
      %v2071 = vsel %vm2024, %v2002, 0
      %v2074 = vsel %vm2024, %v2003, 0
      %v2077 = vsel %vm2024, %v2004, 0
      %v2080 = vsel %vm2024, %v2005, 0
      %v2083 = vsel %vm2024, %v2006, 0
      %v2086 = vsel %vm2024, %v2007, 0
      %v2089 = vsel %vm2024, %v2008, 0
      %v2092 = vsel %vm2024, %v2009, 0
      %v2095 = vsel %vm2024, %v2010, 0
      %v2098 = vsel %vm2024, %v2011, 0
      %v2101 = vsel %vm2024, %v2012, 0
      %v2104 = vsel %vm2024, %v2013, 0
      %v2107 = vsel %vm2024, %v2014, 0
      %v2110 = vsel %vm2024, %v2015, 0
      %v2113 = vsel %vm2024, %v2016, 0
      %v2116 = vsel %vm2024, %v2017, 0
      %v2119 = vsel %vm2024, %v2018, 0
      %vm2121 = vcmask 1043456
      %v2123 = vsel %vm2121, %v2023, 0
      %2125 = vmatprep.subr.mxu0 0.0
      %2126 = vmatpush1.msra.mxu0 0.0
      %2127 = vmatprep.subr.mxu0 0.0
      %2128 = vmatpush1.msra.mxu0 0.0
      %2129 = vmatprep.subr.mxu0 0.0
      %2130 = vmatpush1.msra.mxu0 0.0
      %2131 = vmatprep.subr.mxu0 0.0
      %2132 = vmatpush1.msra.mxu0 0.0
      %2133 = vmatprep.subr.mxu0 0.0
      %2134 = vmatpush1.msra.mxu0 0.0
      %2135 = vmatprep.subr.mxu0 0.0
      %2136 = vmatpush1.msra.mxu0 0.0
      %2137 = vmatprep.subr.mxu0 0.0
      %2138 = vmatpush1.msra.mxu0 0.0
      %2139 = vmatprep.subr.mxu0 0.0
      %2140 = vmatpush1.msra.mxu0 0.0
      %2141 = vmatprep.subr.mxu0 0.0
      %2142 = vmatpush1.msra.mxu0 0.0
      %2143 = vmatprep.subr.mxu0 0.0
      %2144 = vmatpush1.msra.mxu0 0.0
      %2145 = vmatprep.subr.mxu0 0.0
      %2146 = vmatpush1.msra.mxu0 0.0
      %2147 = vmatprep.subr.mxu0 0.0
      %2148 = vmatpush1.msra.mxu0 %v2123
      %2149 = vmatprep.subr.mxu0 0.0
      %2150 = vmatpush1.msra.mxu0 %v2022
      %2151 = vmatprep.subr.mxu0 0.0
      %2152 = vmatpush1.msra.mxu0 %v2021
      %2153 = vmatprep.subr.mxu0 0.0
      %2154 = vmatpush1.msra.mxu0 %v2020
      %2155 = vmatprep.subr.mxu0 0.0
      %2156 = vmatpush1.msra.mxu0 %v2019
      %2157 = vmatprep.subr.mxu0 0.0
      %2158 = vmatpush2.msra.mxu0 0.0
      %2159 = vmatprep.subr.mxu0 0.0
      %2160 = vmatpush2.msra.mxu0 0.0
      %2161 = vmatprep.subr.mxu0 0.0
      %2162 = vmatpush2.msra.mxu0 0.0
      %2163 = vmatprep.subr.mxu0 0.0
      %2164 = vmatpush2.msra.mxu0 0.0
      %2165 = vmatprep.subr.mxu0 0.0
      %2166 = vmatpush2.msra.mxu0 0.0
      %2167 = vmatprep.subr.mxu0 0.0
      %2168 = vmatpush2.msra.mxu0 0.0
      %2169 = vmatprep.subr.mxu0 0.0
      %2170 = vmatpush2.msra.mxu0 0.0
      %2171 = vmatprep.subr.mxu0 0.0
      %2172 = vmatpush2.msra.mxu0 0.0
      %2173 = vmatprep.subr.mxu0 0.0
      %2174 = vmatpush2.msra.mxu0 0.0
      %2175 = vmatprep.subr.mxu0 0.0
      %2176 = vmatpush2.msra.mxu0 0.0
      %2177 = vmatprep.subr.mxu0 0.0
      %2178 = vmatpush2.msra.mxu0 0.0
      %2179 = vmatprep.subr.mxu0 0.0
      %2180 = vmatpush2.msra.mxu0 0.0
      %2181 = vmatprep.subr.mxu0 0.0
      %2182 = vmatpush2.msra.mxu0 0.0
      %2183 = vmatprep.subr.mxu0 0.0
      %2184 = vmatpush2.msra.mxu0 0.0
      %2185 = vmatprep.subr.mxu0 0.0
      %2186 = vmatpush2.msra.mxu0 0.0
      %2187 = vmatprep.subr.mxu0 0.0
      %2188 = vmatpush2.msra.mxu0 0.0
      %2189 = vmatprep.mubr.f32.mxu0 0.0
      %2190 = vmatmul.mubr.f32.gmra.mxu0 %v2026
      %v2191 = vpop.f32.mrf.mxu0
      %v2192 = vadd.f32 0.0, %v2191
      %v2193 = vpop.f32.mrf.mxu0
      %2194 = vmatprep.mubr.f32.mxu0 0.0
      %2195 = vmatmul.mubr.f32.gmra.mxu0 %v2029
      %v2196 = vpop.f32.mrf.mxu0
      %v2197 = vadd.f32 0.0, %v2196
      %v2198 = vpop.f32.mrf.mxu0
      %2199 = vmatprep.mubr.f32.mxu0 0.0
      %2200 = vmatmul.mubr.f32.gmra.mxu0 %v2032
      %v2201 = vpop.f32.mrf.mxu0
      %v2202 = vadd.f32 0.0, %v2201
      %v2203 = vpop.f32.mrf.mxu0
      %2204 = vmatprep.mubr.f32.mxu0 0.0
      %2205 = vmatmul.mubr.f32.gmra.mxu0 %v2035
      %v2206 = vpop.f32.mrf.mxu0
      %v2207 = vadd.f32 0.0, %v2206
      %v2208 = vpop.f32.mrf.mxu0
      %2209 = vmatprep.mubr.f32.mxu0 0.0
      %2210 = vmatmul.mubr.f32.gmra.mxu0 %v2038
      %v2211 = vpop.f32.mrf.mxu0
      %v2212 = vadd.f32 0.0, %v2211
      %v2213 = vpop.f32.mrf.mxu0
      %2214 = vmatprep.mubr.f32.mxu0 0.0
      %2215 = vmatmul.mubr.f32.gmra.mxu0 %v2041
      %v2216 = vpop.f32.mrf.mxu0
      %v2217 = vadd.f32 0.0, %v2216
      %v2218 = vpop.f32.mrf.mxu0
      %2219 = vmatprep.mubr.f32.mxu0 0.0
      %2220 = vmatmul.mubr.f32.gmra.mxu0 %v2044
      %v2221 = vpop.f32.mrf.mxu0
      %v2222 = vadd.f32 0.0, %v2221
      %v2223 = vpop.f32.mrf.mxu0
      %2224 = vmatprep.mubr.f32.mxu0 0.0
      %2225 = vmatmul.mubr.f32.gmra.mxu0 %v2047
      %v2226 = vpop.f32.mrf.mxu0
      %v2227 = vadd.f32 0.0, %v2226
      %v2228 = vpop.f32.mrf.mxu0
      %2229 = vmatprep.mubr.f32.mxu0 0.0
      %2230 = vmatmul.mubr.f32.gmra.mxu0 %v2050
      %v2231 = vpop.f32.mrf.mxu0
      %v2232 = vadd.f32 0.0, %v2231
      %v2233 = vpop.f32.mrf.mxu0
      %2234 = vmatprep.mubr.f32.mxu0 0.0
      %2235 = vmatmul.mubr.f32.gmra.mxu0 %v2053
      %v2236 = vpop.f32.mrf.mxu0
      %v2237 = vadd.f32 0.0, %v2236
      %v2238 = vpop.f32.mrf.mxu0
      %2239 = vmatprep.mubr.f32.mxu0 0.0
      %2240 = vmatmul.mubr.f32.gmra.mxu0 %v2056
      %v2241 = vpop.f32.mrf.mxu0
      %v2242 = vadd.f32 0.0, %v2241
      %v2243 = vpop.f32.mrf.mxu0
      %2244 = vmatprep.mubr.f32.mxu0 0.0
      %2245 = vmatmul.mubr.f32.gmra.mxu0 %v2059
      %v2246 = vpop.f32.mrf.mxu0
      %v2247 = vadd.f32 0.0, %v2246
      %v2248 = vpop.f32.mrf.mxu0
      %2249 = vmatprep.mubr.f32.mxu0 0.0
      %2250 = vmatmul.mubr.f32.gmra.mxu0 %v2062
      %v2251 = vpop.f32.mrf.mxu0
      %v2252 = vadd.f32 0.0, %v2251
      %v2253 = vpop.f32.mrf.mxu0
      %2254 = vmatprep.mubr.f32.mxu0 0.0
      %2255 = vmatmul.mubr.f32.gmra.mxu0 %v2065
      %v2256 = vpop.f32.mrf.mxu0
      %v2257 = vadd.f32 0.0, %v2256
      %v2258 = vpop.f32.mrf.mxu0
      %2259 = vmatprep.mubr.f32.mxu0 0.0
      %2260 = vmatmul.mubr.f32.gmra.mxu0 %v2068
      %v2261 = vpop.f32.mrf.mxu0
      %v2262 = vadd.f32 0.0, %v2261
      %v2263 = vpop.f32.mrf.mxu0
      %2264 = vmatprep.mubr.f32.mxu0 0.0
      %2265 = vmatmul.mubr.f32.gmra.mxu0 %v2071
      %v2266 = vpop.f32.mrf.mxu0
      %v2267 = vadd.f32 0.0, %v2266
      %v2268 = vpop.f32.mrf.mxu0
      %2269 = vmatprep.mubr.f32.mxu0 0.0
      %2270 = vmatmul.mubr.f32.gmra.mxu0 %v2074
      %v2271 = vpop.f32.mrf.mxu0
      %v2272 = vadd.f32 0.0, %v2271
      %v2273 = vpop.f32.mrf.mxu0
      %2274 = vmatprep.mubr.f32.mxu0 0.0
      %2275 = vmatmul.mubr.f32.gmra.mxu0 %v2077
      %v2276 = vpop.f32.mrf.mxu0
      %v2277 = vadd.f32 0.0, %v2276
      %v2278 = vpop.f32.mrf.mxu0
      %2279 = vmatprep.mubr.f32.mxu0 0.0
      %2280 = vmatmul.mubr.f32.gmra.mxu0 %v2080
      %v2281 = vpop.f32.mrf.mxu0
      %v2282 = vadd.f32 0.0, %v2281
      %v2283 = vpop.f32.mrf.mxu0
      %2284 = vmatprep.mubr.f32.mxu0 0.0
      %2285 = vmatmul.mubr.f32.gmra.mxu0 %v2083
      %v2286 = vpop.f32.mrf.mxu0
      %v2287 = vadd.f32 0.0, %v2286
      %v2288 = vpop.f32.mrf.mxu0
      %2289 = vmatprep.mubr.f32.mxu0 0.0
      %2290 = vmatmul.mubr.f32.gmra.mxu0 %v2086
      %v2291 = vpop.f32.mrf.mxu0
      %v2292 = vadd.f32 0.0, %v2291
      %v2293 = vpop.f32.mrf.mxu0
      %2294 = vmatprep.mubr.f32.mxu0 0.0
      %2295 = vmatmul.mubr.f32.gmra.mxu0 %v2089
      %v2296 = vpop.f32.mrf.mxu0
      %v2297 = vadd.f32 0.0, %v2296
      %v2298 = vpop.f32.mrf.mxu0
      %2299 = vmatprep.mubr.f32.mxu0 0.0
      %2300 = vmatmul.mubr.f32.gmra.mxu0 %v2092
      %v2301 = vpop.f32.mrf.mxu0
      %v2302 = vadd.f32 0.0, %v2301
      %v2303 = vpop.f32.mrf.mxu0
      %2304 = vmatprep.mubr.f32.mxu0 0.0
      %2305 = vmatmul.mubr.f32.gmra.mxu0 %v2095
      %v2306 = vpop.f32.mrf.mxu0
      %v2307 = vadd.f32 0.0, %v2306
      %v2308 = vpop.f32.mrf.mxu0
      %2309 = vmatprep.mubr.f32.mxu0 0.0
      %2310 = vmatmul.mubr.f32.gmra.mxu0 %v2098
      %v2311 = vpop.f32.mrf.mxu0
      %v2312 = vadd.f32 0.0, %v2311
      %v2313 = vpop.f32.mrf.mxu0
      %2314 = vmatprep.mubr.f32.mxu0 0.0
      %2315 = vmatmul.mubr.f32.gmra.mxu0 %v2101
      %v2316 = vpop.f32.mrf.mxu0
      %v2317 = vadd.f32 0.0, %v2316
      %v2318 = vpop.f32.mrf.mxu0
      %2319 = vmatprep.mubr.f32.mxu0 0.0
      %2320 = vmatmul.mubr.f32.gmra.mxu0 %v2104
      %v2321 = vpop.f32.mrf.mxu0
      %v2322 = vadd.f32 0.0, %v2321
      %v2323 = vpop.f32.mrf.mxu0
      %2324 = vmatprep.mubr.f32.mxu0 0.0
      %2325 = vmatmul.mubr.f32.gmra.mxu0 %v2107
      %v2326 = vpop.f32.mrf.mxu0
      %v2327 = vadd.f32 0.0, %v2326
      %v2328 = vpop.f32.mrf.mxu0
      %2329 = vmatprep.mubr.f32.mxu0 0.0
      %2330 = vmatmul.mubr.f32.gmra.mxu0 %v2110
      %v2331 = vpop.f32.mrf.mxu0
      %v2332 = vadd.f32 0.0, %v2331
      %v2333 = vpop.f32.mrf.mxu0
      %2334 = vmatprep.mubr.f32.mxu0 0.0
      %2335 = vmatmul.mubr.f32.gmra.mxu0 %v2113
      %v2336 = vpop.f32.mrf.mxu0
      %v2337 = vadd.f32 0.0, %v2336
      %v2338 = vpop.f32.mrf.mxu0
      %2339 = vmatprep.mubr.f32.mxu0 0.0
      %2340 = vmatmul.mubr.f32.gmra.mxu0 %v2116
      %v2341 = vpop.f32.mrf.mxu0
      %v2342 = vadd.f32 0.0, %v2341
      %v2343 = vpop.f32.mrf.mxu0
      %2344 = vmatprep.mubr.f32.mxu0 0.0
      %2345 = vmatmul.mubr.f32.gmra.mxu0 %v2119
      %v2346 = vpop.f32.mrf.mxu0
      %v2347 = vadd.f32 0.0, %v2346
      %v2348 = vpop.f32.mrf.mxu0
      %2349 = vdwg.mxu0
      %v2350 = vld [vmem:[%s251] sm:$0x1]
      %v2352 = vlaneseq
      %v2353 = vshrl.u32 %v2352, 7
      %v2354 = vsub.s32 0, %v2353
      %v2355 = vrot.slane %v2350, %v2354
      %v2357 = vmul.f32 %v2192, %v2355
      %v2358 = vmul.f32 %v2197, %v2355
      %v2359 = vmul.f32 %v2202, %v2355
      %v2360 = vmul.f32 %v2207, %v2355
      %v2361 = vmul.f32 %v2212, %v2355
      %v2362 = vmul.f32 %v2217, %v2355
      %v2363 = vmul.f32 %v2222, %v2355
      %v2364 = vmul.f32 %v2227, %v2355
      %v2365 = vmul.f32 %v2232, %v2355
      %v2366 = vmul.f32 %v2237, %v2355
      %v2367 = vmul.f32 %v2242, %v2355
      %v2368 = vmul.f32 %v2247, %v2355
      %v2369 = vmul.f32 %v2252, %v2355
      %v2370 = vmul.f32 %v2257, %v2355
      %v2371 = vmul.f32 %v2262, %v2355
      %v2372 = vmul.f32 %v2267, %v2355
      %v2373 = vmul.f32 %v2272, %v2355
      %v2374 = vmul.f32 %v2277, %v2355
      %v2375 = vmul.f32 %v2282, %v2355
      %v2376 = vmul.f32 %v2287, %v2355
      %v2377 = vmul.f32 %v2292, %v2355
      %v2378 = vmul.f32 %v2297, %v2355
      %v2379 = vmul.f32 %v2302, %v2355
      %v2380 = vmul.f32 %v2307, %v2355
      %v2381 = vmul.f32 %v2312, %v2355
      %v2382 = vmul.f32 %v2317, %v2355
      %v2383 = vmul.f32 %v2322, %v2355
      %v2384 = vmul.f32 %v2327, %v2355
      %v2385 = vmul.f32 %v2332, %v2355
      %v2386 = vmul.f32 %v2337, %v2355
      %v2387 = vmul.f32 %v2342, %v2355
      %v2388 = vmul.f32 %v2347, %v2355
      %v2389 = vld [vmem:[%s254] sm:$0x1]
      %v2391 = vlaneseq
      %v2392 = vshrl.u32 %v2391, 7
      %v2393 = vsub.s32 0, %v2392
      %v2394 = vrot.slane %v2389, %v2393
      %v2396 = vadd.f32 %v2357, %v2394
      %v2397 = vadd.f32 %v2358, %v2394
      %v2398 = vadd.f32 %v2359, %v2394
      %v2399 = vadd.f32 %v2360, %v2394
      %v2400 = vadd.f32 %v2361, %v2394
      %v2401 = vadd.f32 %v2362, %v2394
      %v2402 = vadd.f32 %v2363, %v2394
      %v2403 = vadd.f32 %v2364, %v2394
      %v2404 = vadd.f32 %v2365, %v2394
      %v2405 = vadd.f32 %v2366, %v2394
      %v2406 = vadd.f32 %v2367, %v2394
      %v2407 = vadd.f32 %v2368, %v2394
      %v2408 = vadd.f32 %v2369, %v2394
      %v2409 = vadd.f32 %v2370, %v2394
      %v2410 = vadd.f32 %v2371, %v2394
      %v2411 = vadd.f32 %v2372, %v2394
      %v2412 = vadd.f32 %v2373, %v2394
      %v2413 = vadd.f32 %v2374, %v2394
      %v2414 = vadd.f32 %v2375, %v2394
      %v2415 = vadd.f32 %v2376, %v2394
      %v2416 = vadd.f32 %v2377, %v2394
      %v2417 = vadd.f32 %v2378, %v2394
      %v2418 = vadd.f32 %v2379, %v2394
      %v2419 = vadd.f32 %v2380, %v2394
      %v2420 = vadd.f32 %v2381, %v2394
      %v2421 = vadd.f32 %v2382, %v2394
      %v2422 = vadd.f32 %v2383, %v2394
      %v2423 = vadd.f32 %v2384, %v2394
      %v2424 = vadd.f32 %v2385, %v2394
      %v2425 = vadd.f32 %v2386, %v2394
      %v2426 = vadd.f32 %v2387, %v2394
      %v2427 = vadd.f32 %v2388, %v2394
      %v2428 = vmax.f32 %v2396, 0.0
      %v2429 = vmax.f32 %v2397, 0.0
      %v2430 = vmax.f32 %v2398, 0.0
      %v2431 = vmax.f32 %v2399, 0.0
      %v2432 = vmax.f32 %v2400, 0.0
      %v2433 = vmax.f32 %v2401, 0.0
      %v2434 = vmax.f32 %v2402, 0.0
      %v2435 = vmax.f32 %v2403, 0.0
      %v2436 = vmax.f32 %v2404, 0.0
      %v2437 = vmax.f32 %v2405, 0.0
      %v2438 = vmax.f32 %v2406, 0.0
      %v2439 = vmax.f32 %v2407, 0.0
      %v2440 = vmax.f32 %v2408, 0.0
      %v2441 = vmax.f32 %v2409, 0.0
      %v2442 = vmax.f32 %v2410, 0.0
      %v2443 = vmax.f32 %v2411, 0.0
      %v2444 = vmax.f32 %v2412, 0.0
      %v2445 = vmax.f32 %v2413, 0.0
      %v2446 = vmax.f32 %v2414, 0.0
      %v2447 = vmax.f32 %v2415, 0.0
      %v2448 = vmax.f32 %v2416, 0.0
      %v2449 = vmax.f32 %v2417, 0.0
      %v2450 = vmax.f32 %v2418, 0.0
      %v2451 = vmax.f32 %v2419, 0.0
      %v2452 = vmax.f32 %v2420, 0.0
      %v2453 = vmax.f32 %v2421, 0.0
      %v2454 = vmax.f32 %v2422, 0.0
      %v2455 = vmax.f32 %v2423, 0.0
      %v2456 = vmax.f32 %v2424, 0.0
      %v2457 = vmax.f32 %v2425, 0.0
      %v2458 = vmax.f32 %v2426, 0.0
      %v2459 = vmax.f32 %v2427, 0.0
      %vm2460 = vcmask 64512
      %2461 = vst.msk [vmem:[%s262] sm:$0xff] %vm2460, %v2428
      %2462 = vst.msk [vmem:[%s262 + $0x8] sm:$0xff] %vm2460, %v2429
      %2463 = vst.msk [vmem:[%s262 + $0x10] sm:$0xff] %vm2460, %v2430
      %2464 = vst.msk [vmem:[%s262 + $0x18] sm:$0xff] %vm2460, %v2431
      %2465 = vst.msk [vmem:[%s262 + $0x20] sm:$0xff] %vm2460, %v2432
      %2466 = vst.msk [vmem:[%s262 + $0x28] sm:$0xff] %vm2460, %v2433
      %2467 = vst.msk [vmem:[%s262 + $0x30] sm:$0xff] %vm2460, %v2434
      %2468 = vst.msk [vmem:[%s262 + $0x38] sm:$0xff] %vm2460, %v2435
      %2469 = vst.msk [vmem:[%s262 + $0x40] sm:$0xff] %vm2460, %v2436
      %2470 = vst.msk [vmem:[%s262 + $0x48] sm:$0xff] %vm2460, %v2437
      %2471 = vst.msk [vmem:[%s262 + $0x50] sm:$0xff] %vm2460, %v2438
      %2472 = vst.msk [vmem:[%s262 + $0x58] sm:$0xff] %vm2460, %v2439
      %2473 = vst.msk [vmem:[%s262 + $0x60] sm:$0xff] %vm2460, %v2440
      %2474 = vst.msk [vmem:[%s262 + $0x68] sm:$0xff] %vm2460, %v2441
      %2475 = vst.msk [vmem:[%s262 + $0x70] sm:$0xff] %vm2460, %v2442
      %2476 = vst.msk [vmem:[%s262 + $0x78] sm:$0xff] %vm2460, %v2443
      %2477 = vst.msk [vmem:[%s262 + $0x80] sm:$0xff] %vm2460, %v2444
      %2478 = vst.msk [vmem:[%s262 + $0x88] sm:$0xff] %vm2460, %v2445
      %2479 = vst.msk [vmem:[%s262 + $0x90] sm:$0xff] %vm2460, %v2446
      %2480 = vst.msk [vmem:[%s262 + $0x98] sm:$0xff] %vm2460, %v2447
      %2481 = vst.msk [vmem:[%s262 + $0xa0] sm:$0xff] %vm2460, %v2448
      %2482 = vst.msk [vmem:[%s262 + $0xa8] sm:$0xff] %vm2460, %v2449
      %2483 = vst.msk [vmem:[%s262 + $0xb0] sm:$0xff] %vm2460, %v2450
      %2484 = vst.msk [vmem:[%s262 + $0xb8] sm:$0xff] %vm2460, %v2451
      %2485 = vst.msk [vmem:[%s262 + $0xc0] sm:$0xff] %vm2460, %v2452
      %2486 = vst.msk [vmem:[%s262 + $0xc8] sm:$0xff] %vm2460, %v2453
      %2487 = vst.msk [vmem:[%s262 + $0xd0] sm:$0xff] %vm2460, %v2454
      %2488 = vst.msk [vmem:[%s262 + $0xd8] sm:$0xff] %vm2460, %v2455
      %2489 = vst.msk [vmem:[%s262 + $0xe0] sm:$0xff] %vm2460, %v2456
      %2490 = vst.msk [vmem:[%s262 + $0xe8] sm:$0xff] %vm2460, %v2457
      %2491 = vst.msk [vmem:[%s262 + $0xf0] sm:$0xff] %vm2460, %v2458
      %2492 = vst.msk [vmem:[%s262 + $0xf8] sm:$0xff] %vm2460, %v2459
      %p2493 = scmp.lt.s32.totalorder %s19, 1
      %s2494 = scalar_select %p2493, %s19, 1
      %p2495 = scmp.lt.s32.totalorder %s20, 0
      %s2496 = scalar_select %p2495, %s20, 0
      %s2497 = smul.addr %s2494, 32
      %s2498 = sadd.s32 %s2496, %s2497
      %s2499 = smul.addr %s2498, 8
      %s2500 = scalar_lea.vmem %s4, %s2499
      // Predicated region
      $region41: #{tpu_custom_call.1} parent=35 // pred_check
        %p2501 = pneg %p151
      $region42: #{tpu_custom_call.1} parent=35 // pred_check_branch
        %2503 = sbr.rel (%p2501) target = $region44
      $region43: #{tpu_custom_call.1} parent=35 // pred_region
        _
      $region44: #{tpu_custom_call.1} parent=35 // pred_fallthru
        _
    $region36: #{tpu_custom_call.1} parent=5 // pred_fallthru
      _
    %p2504 = scmp.le.s32.totalorder 2, %s10
    // Predicated region
    $region45: #{tpu_custom_call.1} parent=5 // pred_check
      %p2505 = pneg %p2504
    $region46: #{tpu_custom_call.1} parent=5 // pred_check_branch
      %2507 = sbr.rel (%p2505) target = $region48
    $region47: #{tpu_custom_call.1} parent=5 // pred_region
      %s2508 = ssub.s32 %s10, 2
      // Predicated region
      $region49: #{tpu_custom_call.1} parent=47 // pred_check
        %p2509 = pneg %p157
      $region50: #{tpu_custom_call.1} parent=47 // pred_check_branch
        %2511 = sbr.rel (%p2509) target = $region52
      $region51: #{tpu_custom_call.1} parent=47 // pred_region
        %p2512 = scmp.lt.s32.totalorder %s21, 1
        %s2513 = scalar_select %p2512, %s21, 1
        %p2514 = scmp.lt.s32.totalorder %s22, 0
        %s2515 = scalar_select %p2514, %s22, 0
        %s2516 = smul.addr %s2513, 32
        %s2517 = sadd.s32 %s2515, %s2516
        %s2518 = smul.addr %s2517, 8
        %s2519 = scalar_lea.vmem %s4, %s2518
      $region52: #{tpu_custom_call.1} parent=47 // pred_fallthru
        _
    $region48: #{tpu_custom_call.1} parent=5 // pred_fallthru
      _
  $region6: #{tpu_custom_call.1} parent=0 // loop_footer
    %s14 = sadd.s32 1, %s10
  $region7: #{tpu_custom_call.1} parent=0 // loop_footer_branch
    %9 = sbr.rel target = $region3
  $region8: #{tpu_custom_call.1} parent=0 // loop_exit
    _

// kernel: tpu_custom_call.1
$region0: #{tpu_custom_call.1}
  #allocation0 [shape = 'u32[]', space=smem, size = 0x4, offset = 0x4, fixed_abs, tag = 'smem constant byte address 0x4 - core index']
  #allocation1 [shape = 'u32[144,128]{1,0:T(1,128)}', space=vmem, size = 0x12000, scoped, tag = 'internal scratch']
  #allocation2 [shape = 'f32[1,18,18,4]{3,2,1,0:T(8,128)}', space=vmem, size = 0x36000, scoped, tag = 'scratch operand']
  %s0 = inlined_call_operand.vmem [shape: f32[2,16,16,4], index: 0, kind: input, shape index: {}]
  %s1 = inlined_call_operand.vmem [shape: f32[36,128], index: 1, kind: input, shape index: {}]
  %s2 = inlined_call_operand.vmem [shape: f32[1,128], index: 2, kind: input, shape index: {}]
  %s3 = inlined_call_operand.vmem [shape: f32[1,128], index: 3, kind: input, shape index: {}]
  %s4 = inlined_call_operand.vmem [shape: f32[2,16,16,8], index: 4, kind: output, shape index: {}]
  %s5 = sld [smem:[#allocation0]]
  $region53: #{tpu_custom_call.1} parent=0
    _
  %s7 = ssub.s32 1, %s5
  %s8 = scalar_select 0, %s7, %s5
  loop: start=0, step=1, limit=4
  $region2: #{tpu_custom_call.1} parent=0 // loop_pre_header
    _
  $region3: #{tpu_custom_call.1} parent=0 // loop_header
    %s10 = sphi 0, %s14
    %p11 = scmp.ge.s32.totalorder %s10, 4
    %s17 = sphi 0, %s29
    %s18 = sphi 0, %s25
    %s19 = sphi 0, %s17
    %s20 = sphi 0, %s18
    %s21 = sphi 0, %s19
    %s22 = sphi 0, %s20
    %s32 = sphi 0, %s34
    %s35 = sphi 0, %s32
    %s36 = sphi 0, %s35
    %s52 = sphi 0, %s36
    %s58 = sphi 0, %s60
    %s61 = sphi 0, %s58
    %s62 = sphi 0, %s61
    %s78 = sphi 0, %s62
    %s84 = sphi 0, %s86
    %s87 = sphi 0, %s84
    %s88 = sphi 0, %s87
    %s104 = sphi 0, %s88
    %s110 = sphi 0, %s112
    %s113 = sphi 0, %s110
    %s114 = sphi 0, %s113
    %s130 = sphi 0, %s114
    %s138 = sphi 0, %s140
    %s141 = sphi 0, %s138
    %s142 = sphi 0, %s141
    %s158 = sphi 0, %s142
  $region4: #{tpu_custom_call.1} parent=0 // loop_header_branch
    %13 = sbr.rel (%p11) target = $region8
  $region5: #{tpu_custom_call.1} parent=0 // loop_body
    %s15 = ssub.s32 %s10, 1
    %s16 = ssub.s32 %s10, 2
    %s23 = sadd.s32 1, %s18
    %p24 = scmp.ge.s32.totalorder %s23, 1
    %s25 = scalar_select %p24, 0, %s23
    %s26 = sadd.s32 1, %s17
    %s27 = scalar_select %p24, %s26, %s17
    %p28 = scmp.ge.s32.totalorder %s27, 2
    %s29 = scalar_select %p28, 0, %s27
    %s30 = ssub.s32 %s17, %s29
    %p31 = scmp.eq.s32.totalorder %s30, 0
    %s33 = sadd.s32 %s32, 1
    %s34 = scalar_select %p31, %s32, %s33
    %p37 = pneg %p31
    %p38 = scmp.eq.s32.totalorder %s10, 1
    %p39 = por %p37, %p38
    %p40 = scmp.ne.s32.totalorder %s32, %s35
    %p41 = scmp.eq.s32.totalorder %s10, 0
    %p42 = por %p40, %p41
    %p43 = scmp.ne.s32.totalorder %s32, %s35
    %p44 = scmp.eq.s32.totalorder %s15, 1
    %p45 = por %p43, %p44
    %p46 = scmp.ne.s32.totalorder %s35, %s36
    %p47 = scmp.eq.s32.totalorder %s15, 0
    %p48 = por %p46, %p47
    %p49 = scmp.ne.s32.totalorder %s35, %s36
    %p50 = scmp.eq.s32.totalorder %s16, 1
    %p51 = por %p49, %p50
    %p53 = scmp.ne.s32.totalorder %s36, %s52
    %p54 = scmp.eq.s32.totalorder %s16, 0
    %p55 = por %p53, %p54
    %s56 = ssub.s32 %s18, %s25
    %p57 = scmp.eq.s32.totalorder %s56, 0
    %s59 = sadd.s32 %s58, 1
    %s60 = scalar_select %p57, %s58, %s59
    %p63 = pneg %p57
    %p64 = scmp.eq.s32.totalorder %s10, 1
    %p65 = por %p63, %p64
    %p66 = scmp.ne.s32.totalorder %s58, %s61
    %p67 = scmp.eq.s32.totalorder %s10, 0
    %p68 = por %p66, %p67
    %p69 = scmp.ne.s32.totalorder %s58, %s61
    %p70 = scmp.eq.s32.totalorder %s15, 1
    %p71 = por %p69, %p70
    %p72 = scmp.ne.s32.totalorder %s61, %s62
    %p73 = scmp.eq.s32.totalorder %s15, 0
    %p74 = por %p72, %p73
    %p75 = scmp.ne.s32.totalorder %s61, %s62
    %p76 = scmp.eq.s32.totalorder %s16, 1
    %p77 = por %p75, %p76
    %p79 = scmp.ne.s32.totalorder %s62, %s78
    %p80 = scmp.eq.s32.totalorder %s16, 0
    %p81 = por %p79, %p80
    %s82 = ssub.s32 %s18, %s25
    %p83 = scmp.eq.s32.totalorder %s82, 0
    %s85 = sadd.s32 %s84, 1
    %s86 = scalar_select %p83, %s84, %s85
    %p89 = pneg %p83
    %p90 = scmp.eq.s32.totalorder %s10, 1
    %p91 = por %p89, %p90
    %p92 = scmp.ne.s32.totalorder %s84, %s87
    %p93 = scmp.eq.s32.totalorder %s10, 0
    %p94 = por %p92, %p93
    %p95 = scmp.ne.s32.totalorder %s84, %s87
    %p96 = scmp.eq.s32.totalorder %s15, 1
    %p97 = por %p95, %p96
    %p98 = scmp.ne.s32.totalorder %s87, %s88
    %p99 = scmp.eq.s32.totalorder %s15, 0
    %p100 = por %p98, %p99
    %p101 = scmp.ne.s32.totalorder %s87, %s88
    %p102 = scmp.eq.s32.totalorder %s16, 1
    %p103 = por %p101, %p102
    %p105 = scmp.ne.s32.totalorder %s88, %s104
    %p106 = scmp.eq.s32.totalorder %s16, 0
    %p107 = por %p105, %p106
    %s108 = ssub.s32 %s18, %s25
    %p109 = scmp.eq.s32.totalorder %s108, 0
    %s111 = sadd.s32 %s110, 1
    %s112 = scalar_select %p109, %s110, %s111
    %p115 = pneg %p109
    %p116 = scmp.eq.s32.totalorder %s10, 1
    %p117 = por %p115, %p116
    %p118 = scmp.ne.s32.totalorder %s110, %s113
    %p119 = scmp.eq.s32.totalorder %s10, 0
    %p120 = por %p118, %p119
    %p121 = scmp.ne.s32.totalorder %s110, %s113
    %p122 = scmp.eq.s32.totalorder %s15, 1
    %p123 = por %p121, %p122
    %p124 = scmp.ne.s32.totalorder %s113, %s114
    %p125 = scmp.eq.s32.totalorder %s15, 0
    %p126 = por %p124, %p125
    %p127 = scmp.ne.s32.totalorder %s113, %s114
    %p128 = scmp.eq.s32.totalorder %s16, 1
    %p129 = por %p127, %p128
    %p131 = scmp.ne.s32.totalorder %s114, %s130
    %p132 = scmp.eq.s32.totalorder %s16, 0
    %p133 = por %p131, %p132
    %s134 = ssub.s32 %s17, %s29
    %s135 = ssub.s32 %s18, %s25
    %s136 = sor.u32 %s134, %s135
    %p137 = scmp.eq.s32.totalorder %s136, 0
    %s139 = sadd.s32 %s138, 1
    %s140 = scalar_select %p137, %s138, %s139
    %p143 = pneg %p137
    %p144 = scmp.eq.s32.totalorder %s10, 1
    %p145 = por %p143, %p144
    %p146 = scmp.ne.s32.totalorder %s138, %s141
    %p147 = scmp.eq.s32.totalorder %s10, 0
    %p148 = por %p146, %p147
    %p149 = scmp.ne.s32.totalorder %s138, %s141
    %p150 = scmp.eq.s32.totalorder %s15, 1
    %p151 = por %p149, %p150
    %p152 = scmp.ne.s32.totalorder %s141, %s142
    %p153 = scmp.eq.s32.totalorder %s15, 0
    %p154 = por %p152, %p153
    %p155 = scmp.ne.s32.totalorder %s141, %s142
    %p156 = scmp.eq.s32.totalorder %s16, 1
    %p157 = por %p155, %p156
    %p159 = scmp.ne.s32.totalorder %s142, %s158
    %p160 = scmp.eq.s32.totalorder %s16, 0
    %p161 = por %p159, %p160
    %p162 = scmp.le.s32.totalorder 1, %s10
    %p163 = scmp.lt.s32.totalorder %s10, 3
    %p164 = pnand %p162, %p163
    %p165 = pneg %p164
    // Predicated region
    $region9: #{tpu_custom_call.1} parent=5 // pred_check
      _
    $region10: #{tpu_custom_call.1} parent=5 // pred_check_branch
      %167 = sbr.rel (%p164) target = $region12
    $region11: #{tpu_custom_call.1} parent=5 // pred_region
      %s168 = ssub.s32 %s10, 1
      // Predicated region
      $region13: #{tpu_custom_call.1} parent=11 // pred_check
        %p169 = pneg %p74
      $region14: #{tpu_custom_call.1} parent=11 // pred_check_branch
        %171 = sbr.rel (%p169) target = $region16
      $region15: #{tpu_custom_call.1} parent=11 // pred_region
        %p172 = scmp.lt.s32.totalorder %s20, 0
        %s173 = scalar_select %p172, %s20, 0
        %s174 = smul.addr %s173, 8
        %s175 = scalar_lea.vmem %s1, %s174
      $region16: #{tpu_custom_call.1} parent=11 // pred_fallthru
        _
      // Predicated region
      $region17: #{tpu_custom_call.1} parent=11 // pred_check
        %p176 = pneg %p100
      $region18: #{tpu_custom_call.1} parent=11 // pred_check_branch
        %178 = sbr.rel (%p176) target = $region20
      $region19: #{tpu_custom_call.1} parent=11 // pred_region
        %p179 = scmp.lt.s32.totalorder %s20, 0
        %s180 = scalar_select %p179, %s20, 0
        %s181 = scalar_lea.vmem %s2, %s180
      $region20: #{tpu_custom_call.1} parent=11 // pred_fallthru
        _
      // Predicated region
      $region21: #{tpu_custom_call.1} parent=11 // pred_check
        %p182 = pneg %p126
      $region22: #{tpu_custom_call.1} parent=11 // pred_check_branch
        %184 = sbr.rel (%p182) target = $region24
      $region23: #{tpu_custom_call.1} parent=11 // pred_region
        %p185 = scmp.lt.s32.totalorder %s20, 0
        %s186 = scalar_select %p185, %s20, 0
        %s187 = scalar_lea.vmem %s3, %s186
      $region24: #{tpu_custom_call.1} parent=11 // pred_fallthru
        _
    $region12: #{tpu_custom_call.1} parent=5 // pred_fallthru
      _
    %p188 = scmp.lt.s32.totalorder %s10, 2
    // Predicated region
    $region25: #{tpu_custom_call.1} parent=5 // pred_check
      %p189 = pneg %p188
    $region26: #{tpu_custom_call.1} parent=5 // pred_check_branch
      %191 = sbr.rel (%p189) target = $region28
    $region27: #{tpu_custom_call.1} parent=5 // pred_region
      // Predicated region
      $region29: #{tpu_custom_call.1} parent=27 // pred_check
        %p192 = pneg %p42
      $region30: #{tpu_custom_call.1} parent=27 // pred_check_branch
        %194 = sbr.rel (%p192) target = $region32
      $region31: #{tpu_custom_call.1} parent=27 // pred_region
        %p195 = scmp.lt.s32.totalorder %s17, 1
        %s196 = scalar_select %p195, %s17, 1
        %s197 = smul.addr %s196, 32
        %s198 = smul.addr %s197, 8
        %s199 = scalar_lea.vmem %s0, %s198
      $region32: #{tpu_custom_call.1} parent=27 // pred_fallthru
        _
    $region28: #{tpu_custom_call.1} parent=5 // pred_fallthru
      _
    %p200 = scmp.le.s32.totalorder 1, %s10
    %p201 = scmp.lt.s32.totalorder %s10, 3
    %p202 = pnand %p200, %p201
    %p203 = pneg %p202
    // Predicated region
    $region33: #{tpu_custom_call.1} parent=5 // pred_check
      _
    $region34: #{tpu_custom_call.1} parent=5 // pred_check_branch
      %205 = sbr.rel (%p202) target = $region36
    $region35: #{tpu_custom_call.1} parent=5 // pred_region
      %s206 = ssub.s32 %s10, 1
      %p207 = scmp.lt.s32.totalorder %s19, 1
      %s208 = scalar_select %p207, %s19, 1
      %s209 = smul.addr %s208, 32
      %s210 = smul.addr %s209, 8
      %s211 = scalar_lea.vmem %s0, %s210
      %p212 = pneg %p48
      %p213 = pneg %p45
      %p214 = scmp.lt.s32.totalorder %s20, 0
      %s215 = scalar_select %p214, %s20, 0
      %s216 = smul.addr %s215, 8
      %s217 = scalar_lea.vmem %s1, %s216
      %p218 = pneg %p74
      %p219 = pneg %p71
      %p220 = scmp.lt.s32.totalorder %s20, 0
      %s221 = scalar_select %p220, %s20, 0
      %s222 = scalar_lea.vmem %s2, %s221
      %p223 = pneg %p100
      %p224 = pneg %p97
      %p225 = scmp.lt.s32.totalorder %s20, 0
      %s226 = scalar_select %p225, %s20, 0
      %s227 = scalar_lea.vmem %s3, %s226
      %p228 = pneg %p126
      %p229 = pneg %p123
      %p230 = pneg %p154
      %p231 = pneg %p151
      %p232 = scmp.lt.s32.totalorder %s19, 1
      %s233 = scalar_select %p232, %s19, 1
      %p234 = scmp.lt.s32.totalorder %s20, 0
      %s235 = scalar_select %p234, %s20, 0
      %s236 = smul.addr %s233, 32
      %s237 = sadd.s32 %s235, %s236
      %s238 = smul.addr %s237, 8
      %s239 = scalar_lea.vmem %s4, %s238
      %p240 = scmp.lt.s32.totalorder %s19, 1
      %s241 = scalar_select %p240, %s19, 1
      %s242 = smul.addr %s241, 32
      %s243 = smul.addr %s242, 8
      %s244 = scalar_lea.vmem %s0, %s243
      %p245 = scmp.lt.s32.totalorder %s20, 0
      %s246 = scalar_select %p245, %s20, 0
      %s247 = smul.addr %s246, 8
      %s248 = scalar_lea.vmem %s1, %s247
      %p249 = scmp.lt.s32.totalorder %s20, 0
      %s250 = scalar_select %p249, %s20, 0
      %s251 = scalar_lea.vmem %s2, %s250
      %p252 = scmp.lt.s32.totalorder %s20, 0
      %s253 = scalar_select %p252, %s20, 0
      %s254 = scalar_lea.vmem %s3, %s253
      %p255 = scmp.lt.s32.totalorder %s19, 1
      %s256 = scalar_select %p255, %s19, 1
      %p257 = scmp.lt.s32.totalorder %s20, 0
      %s258 = scalar_select %p257, %s20, 0
      %s259 = smul.addr %s256, 32
      %s260 = sadd.s32 %s258, %s259
      %s261 = smul.addr %s260, 8
      %s262 = scalar_lea.vmem %s4, %s261
      %p263 = scmp.eq.s32.totalorder %s20, 0
      // Predicated region
      $region37: #{tpu_custom_call.1} parent=35 // pred_check
        %p264 = pneg %p263
      $region38: #{tpu_custom_call.1} parent=35 // pred_check_branch
        %266 = sbr.rel (%p264) target = $region40
      $region39: #{tpu_custom_call.1} parent=35 // pred_region
        %vm267 = vcmask 31744
        %268 = vst.msk [vmem:[#allocation2] sm:$0xff] %vm267, 0.0
        %269 = vst.msk [vmem:[#allocation2 + $0x8] sm:$0xff] %vm267, 0.0
        %vm270 = vcmask 25600
        %271 = vst.msk [vmem:[#allocation2 + $0x10] sm:$0x3] %vm270, 0.0
        %s272 = scalar_lea.vmem [#allocation2], 408
        %273 = vst.msk [vmem:[%s272] sm:$0xff] %vm267, 0.0
        %274 = vst.msk [vmem:[%s272 + $0x8] sm:$0xff] %vm267, 0.0
        %275 = vst.msk [vmem:[%s272 + $0x10] sm:$0x3] %vm270, 0.0
        %vm276 = vcmask 24576
        %277 = vst.msk [vmem:[#allocation2] sm:$0x1] %vm276, 0.0
        %278 = vst.msk [vmem:[#allocation2 + $0x18] sm:$0x1] %vm276, 0.0
        %279 = vst.msk [vmem:[#allocation2 + $0x30] sm:$0x1] %vm276, 0.0
        %280 = vst.msk [vmem:[#allocation2 + $0x48] sm:$0x1] %vm276, 0.0
        %281 = vst.msk [vmem:[#allocation2 + $0x60] sm:$0x1] %vm276, 0.0
        %282 = vst.msk [vmem:[#allocation2 + $0x78] sm:$0x1] %vm276, 0.0
        %283 = vst.msk [vmem:[#allocation2 + $0x90] sm:$0x1] %vm276, 0.0
        %284 = vst.msk [vmem:[#allocation2 + $0xa8] sm:$0x1] %vm276, 0.0
        %285 = vst.msk [vmem:[#allocation2 + $0xc0] sm:$0x1] %vm276, 0.0
        %286 = vst.msk [vmem:[#allocation2 + $0xd8] sm:$0x1] %vm276, 0.0
        %287 = vst.msk [vmem:[#allocation2 + $0xf0] sm:$0x1] %vm276, 0.0
        %288 = vst.msk [vmem:[#allocation2 + $0x108] sm:$0x1] %vm276, 0.0
        %289 = vst.msk [vmem:[#allocation2 + $0x120] sm:$0x1] %vm276, 0.0
        %290 = vst.msk [vmem:[#allocation2 + $0x138] sm:$0x1] %vm276, 0.0
        %291 = vst.msk [vmem:[#allocation2 + $0x150] sm:$0x1] %vm276, 0.0
        %292 = vst.msk [vmem:[#allocation2 + $0x168] sm:$0x1] %vm276, 0.0
        %293 = vst.msk [vmem:[#allocation2 + $0x180] sm:$0x1] %vm276, 0.0
        %294 = vst.msk [vmem:[#allocation2 + $0x198] sm:$0x1] %vm276, 0.0
        %295 = vst.msk [vmem:[#allocation2 + $0x11] sm:$0x1] %vm276, 0.0
        %296 = vst.msk [vmem:[#allocation2 + $0x29] sm:$0x1] %vm276, 0.0
        %297 = vst.msk [vmem:[#allocation2 + $0x41] sm:$0x1] %vm276, 0.0
        %298 = vst.msk [vmem:[#allocation2 + $0x59] sm:$0x1] %vm276, 0.0
        %299 = vst.msk [vmem:[#allocation2 + $0x71] sm:$0x1] %vm276, 0.0
        %300 = vst.msk [vmem:[#allocation2 + $0x89] sm:$0x1] %vm276, 0.0
        %301 = vst.msk [vmem:[#allocation2 + $0xa1] sm:$0x1] %vm276, 0.0
        %302 = vst.msk [vmem:[#allocation2 + $0xb9] sm:$0x1] %vm276, 0.0
        %303 = vst.msk [vmem:[#allocation2 + $0xd1] sm:$0x1] %vm276, 0.0
        %304 = vst.msk [vmem:[#allocation2 + $0xe9] sm:$0x1] %vm276, 0.0
        %305 = vst.msk [vmem:[#allocation2 + $0x101] sm:$0x1] %vm276, 0.0
        %306 = vst.msk [vmem:[#allocation2 + $0x119] sm:$0x1] %vm276, 0.0
        %307 = vst.msk [vmem:[#allocation2 + $0x131] sm:$0x1] %vm276, 0.0
        %308 = vst.msk [vmem:[#allocation2 + $0x149] sm:$0x1] %vm276, 0.0
        %309 = vst.msk [vmem:[#allocation2 + $0x161] sm:$0x1] %vm276, 0.0
        %310 = vst.msk [vmem:[#allocation2 + $0x179] sm:$0x1] %vm276, 0.0
        %311 = vst.msk [vmem:[#allocation2 + $0x191] sm:$0x1] %vm276, 0.0
        %312 = vst.msk [vmem:[#allocation2 + $0x1a9] sm:$0x1] %vm276, 0.0
        %v313 = vld [vmem:[%s244] sm:$0xff]
        %v314 = vld [vmem:[%s244 + $0x8] sm:$0xff]
        %v315 = vld [vmem:[%s244 + $0x10] sm:$0xff]
        %v316 = vld [vmem:[%s244 + $0x18] sm:$0xff]
        %v317 = vld [vmem:[%s244 + $0x20] sm:$0xff]
        %v318 = vld [vmem:[%s244 + $0x28] sm:$0xff]
        %v319 = vld [vmem:[%s244 + $0x30] sm:$0xff]
        %v320 = vld [vmem:[%s244 + $0x38] sm:$0xff]
        %v321 = vld [vmem:[%s244 + $0x40] sm:$0xff]
        %v322 = vld [vmem:[%s244 + $0x48] sm:$0xff]
        %v323 = vld [vmem:[%s244 + $0x50] sm:$0xff]
        %v324 = vld [vmem:[%s244 + $0x58] sm:$0xff]
        %v325 = vld [vmem:[%s244 + $0x60] sm:$0xff]
        %v326 = vld [vmem:[%s244 + $0x68] sm:$0xff]
        %v327 = vld [vmem:[%s244 + $0x70] sm:$0xff]
        %v328 = vld [vmem:[%s244 + $0x78] sm:$0xff]
        %v329 = vld [vmem:[%s244 + $0x80] sm:$0xff]
        %v330 = vld [vmem:[%s244 + $0x88] sm:$0xff]
        %v331 = vld [vmem:[%s244 + $0x90] sm:$0xff]
        %v332 = vld [vmem:[%s244 + $0x98] sm:$0xff]
        %v333 = vld [vmem:[%s244 + $0xa0] sm:$0xff]
        %v334 = vld [vmem:[%s244 + $0xa8] sm:$0xff]
        %v335 = vld [vmem:[%s244 + $0xb0] sm:$0xff]
        %v336 = vld [vmem:[%s244 + $0xb8] sm:$0xff]
        %v337 = vld [vmem:[%s244 + $0xc0] sm:$0xff]
        %v338 = vld [vmem:[%s244 + $0xc8] sm:$0xff]
        %v339 = vld [vmem:[%s244 + $0xd0] sm:$0xff]
        %v340 = vld [vmem:[%s244 + $0xd8] sm:$0xff]
        %v341 = vld [vmem:[%s244 + $0xe0] sm:$0xff]
        %v342 = vld [vmem:[%s244 + $0xe8] sm:$0xff]
        %v343 = vld [vmem:[%s244 + $0xf0] sm:$0xff]
        %v344 = vld [vmem:[%s244 + $0xf8] sm:$0xff]
        %s345 = scalar_lea.vmem [#allocation2], 24
        %346 = vst.msk [vmem:[%s345 + $0x1] sm:$0xff] %vm267, %v313
        %347 = vst.msk [vmem:[%s345 + $0x9] sm:$0xff] %vm267, %v314
        %348 = vst.msk [vmem:[%s345 + $0x19] sm:$0xff] %vm267, %v315
        %349 = vst.msk [vmem:[%s345 + $0x21] sm:$0xff] %vm267, %v316
        %350 = vst.msk [vmem:[%s345 + $0x31] sm:$0xff] %vm267, %v317
        %351 = vst.msk [vmem:[%s345 + $0x39] sm:$0xff] %vm267, %v318
        %352 = vst.msk [vmem:[%s345 + $0x49] sm:$0xff] %vm267, %v319
        %353 = vst.msk [vmem:[%s345 + $0x51] sm:$0xff] %vm267, %v320
        %354 = vst.msk [vmem:[%s345 + $0x61] sm:$0xff] %vm267, %v321
        %355 = vst.msk [vmem:[%s345 + $0x69] sm:$0xff] %vm267, %v322
        %356 = vst.msk [vmem:[%s345 + $0x79] sm:$0xff] %vm267, %v323
        %357 = vst.msk [vmem:[%s345 + $0x81] sm:$0xff] %vm267, %v324
        %358 = vst.msk [vmem:[%s345 + $0x91] sm:$0xff] %vm267, %v325
        %359 = vst.msk [vmem:[%s345 + $0x99] sm:$0xff] %vm267, %v326
        %360 = vst.msk [vmem:[%s345 + $0xa9] sm:$0xff] %vm267, %v327
        %361 = vst.msk [vmem:[%s345 + $0xb1] sm:$0xff] %vm267, %v328
        %362 = vst.msk [vmem:[%s345 + $0xc1] sm:$0xff] %vm267, %v329
        %363 = vst.msk [vmem:[%s345 + $0xc9] sm:$0xff] %vm267, %v330
        %364 = vst.msk [vmem:[%s345 + $0xd9] sm:$0xff] %vm267, %v331
        %365 = vst.msk [vmem:[%s345 + $0xe1] sm:$0xff] %vm267, %v332
        %366 = vst.msk [vmem:[%s345 + $0xf1] sm:$0xff] %vm267, %v333
        %367 = vst.msk [vmem:[%s345 + $0xf9] sm:$0xff] %vm267, %v334
        %368 = vst.msk [vmem:[%s345 + $0x109] sm:$0xff] %vm267, %v335
        %369 = vst.msk [vmem:[%s345 + $0x111] sm:$0xff] %vm267, %v336
        %370 = vst.msk [vmem:[%s345 + $0x121] sm:$0xff] %vm267, %v337
        %371 = vst.msk [vmem:[%s345 + $0x129] sm:$0xff] %vm267, %v338
        %372 = vst.msk [vmem:[%s345 + $0x139] sm:$0xff] %vm267, %v339
        %373 = vst.msk [vmem:[%s345 + $0x141] sm:$0xff] %vm267, %v340
        %374 = vst.msk [vmem:[%s345 + $0x151] sm:$0xff] %vm267, %v341
        %375 = vst.msk [vmem:[%s345 + $0x159] sm:$0xff] %vm267, %v342
        %376 = vst.msk [vmem:[%s345 + $0x169] sm:$0xff] %vm267, %v343
        %377 = vst.msk [vmem:[%s345 + $0x171] sm:$0xff] %vm267, %v344
      $region40: #{tpu_custom_call.1} parent=35 // pred_fallthru
        _
      %v378 = vld [vmem:[#allocation2] sm:$0xff]
      %v379 = vld [vmem:[#allocation2 + $0x8] sm:$0xff]
      %v380 = vld [vmem:[#allocation2 + $0x18] sm:$0xff]
      %v381 = vld [vmem:[#allocation2 + $0x20] sm:$0xff]
      %v382 = vld [vmem:[#allocation2 + $0x30] sm:$0xff]
      %v383 = vld [vmem:[#allocation2 + $0x38] sm:$0xff]
      %v384 = vld [vmem:[#allocation2 + $0x48] sm:$0xff]
      %v385 = vld [vmem:[#allocation2 + $0x50] sm:$0xff]
      %v386 = vld [vmem:[#allocation2 + $0x60] sm:$0xff]
      %v387 = vld [vmem:[#allocation2 + $0x68] sm:$0xff]
      %v388 = vld [vmem:[#allocation2 + $0x78] sm:$0xff]
      %v389 = vld [vmem:[#allocation2 + $0x80] sm:$0xff]
      %v390 = vld [vmem:[#allocation2 + $0x90] sm:$0xff]
      %v391 = vld [vmem:[#allocation2 + $0x98] sm:$0xff]
      %v392 = vld [vmem:[#allocation2 + $0xa8] sm:$0xff]
      %v393 = vld [vmem:[#allocation2 + $0xb0] sm:$0xff]
      %v394 = vld [vmem:[#allocation2 + $0xc0] sm:$0xff]
      %v395 = vld [vmem:[#allocation2 + $0xc8] sm:$0xff]
      %v396 = vld [vmem:[#allocation2 + $0xd8] sm:$0xff]
      %v397 = vld [vmem:[#allocation2 + $0xe0] sm:$0xff]
      %v398 = vld [vmem:[#allocation2 + $0xf0] sm:$0xff]
      %v399 = vld [vmem:[#allocation2 + $0xf8] sm:$0xff]
      %v400 = vld [vmem:[#allocation2 + $0x108] sm:$0xff]
      %v401 = vld [vmem:[#allocation2 + $0x110] sm:$0xff]
      %v402 = vld [vmem:[#allocation2 + $0x120] sm:$0xff]
      %v403 = vld [vmem:[#allocation2 + $0x128] sm:$0xff]
      %v404 = vld [vmem:[#allocation2 + $0x138] sm:$0xff]
      %v405 = vld [vmem:[#allocation2 + $0x140] sm:$0xff]
      %v406 = vld [vmem:[#allocation2 + $0x150] sm:$0xff]
      %v407 = vld [vmem:[#allocation2 + $0x158] sm:$0xff]
      %v408 = vld [vmem:[#allocation2 + $0x168] sm:$0xff]
      %v409 = vld [vmem:[#allocation2 + $0x170] sm:$0xff]
      %v410 = vld [vmem:[%s248] sm:$0xf]
      %v411 = vld [vmem:[#allocation2 + $0x1] sm:$0xff]
      %v412 = vld [vmem:[#allocation2 + $0x9] sm:$0xff]
      %v413 = vld [vmem:[#allocation2 + $0x19] sm:$0xff]
      %v414 = vld [vmem:[#allocation2 + $0x21] sm:$0xff]
      %v415 = vld [vmem:[#allocation2 + $0x31] sm:$0xff]
      %v416 = vld [vmem:[#allocation2 + $0x39] sm:$0xff]
      %v417 = vld [vmem:[#allocation2 + $0x49] sm:$0xff]
      %v418 = vld [vmem:[#allocation2 + $0x51] sm:$0xff]
      %v419 = vld [vmem:[#allocation2 + $0x61] sm:$0xff]
      %v420 = vld [vmem:[#allocation2 + $0x69] sm:$0xff]
      %v421 = vld [vmem:[#allocation2 + $0x79] sm:$0xff]
      %v422 = vld [vmem:[#allocation2 + $0x81] sm:$0xff]
      %v423 = vld [vmem:[#allocation2 + $0x91] sm:$0xff]
      %v424 = vld [vmem:[#allocation2 + $0x99] sm:$0xff]
      %v425 = vld [vmem:[#allocation2 + $0xa9] sm:$0xff]
      %v426 = vld [vmem:[#allocation2 + $0xb1] sm:$0xff]
      %v427 = vld [vmem:[#allocation2 + $0xc1] sm:$0xff]
      %v428 = vld [vmem:[#allocation2 + $0xc9] sm:$0xff]
      %v429 = vld [vmem:[#allocation2 + $0xd9] sm:$0xff]
      %v430 = vld [vmem:[#allocation2 + $0xe1] sm:$0xff]
      %v431 = vld [vmem:[#allocation2 + $0xf1] sm:$0xff]
      %v432 = vld [vmem:[#allocation2 + $0xf9] sm:$0xff]
      %v433 = vld [vmem:[#allocation2 + $0x109] sm:$0xff]
      %v434 = vld [vmem:[#allocation2 + $0x111] sm:$0xff]
      %v435 = vld [vmem:[#allocation2 + $0x121] sm:$0xff]
      %v436 = vld [vmem:[#allocation2 + $0x129] sm:$0xff]
      %v437 = vld [vmem:[#allocation2 + $0x139] sm:$0xff]
      %v438 = vld [vmem:[#allocation2 + $0x141] sm:$0xff]
      %v439 = vld [vmem:[#allocation2 + $0x151] sm:$0xff]
      %v440 = vld [vmem:[#allocation2 + $0x159] sm:$0xff]
      %v441 = vld [vmem:[#allocation2 + $0x169] sm:$0xff]
      %v442 = vld [vmem:[#allocation2 + $0x171] sm:$0xff]
      %v443 = vld [vmem:[%s248 + $0x4] sm:$0xf]
      %vm444 = vcmask 31744
      %v446 = vsel %vm444, %v411, 0
      %v449 = vsel %vm444, %v412, 0
      %v452 = vsel %vm444, %v413, 0
      %v455 = vsel %vm444, %v414, 0
      %v458 = vsel %vm444, %v415, 0
      %v461 = vsel %vm444, %v416, 0
      %v464 = vsel %vm444, %v417, 0
      %v467 = vsel %vm444, %v418, 0
      %v470 = vsel %vm444, %v419, 0
      %v473 = vsel %vm444, %v420, 0
      %v476 = vsel %vm444, %v421, 0
      %v479 = vsel %vm444, %v422, 0
      %v482 = vsel %vm444, %v423, 0
      %v485 = vsel %vm444, %v424, 0
      %v488 = vsel %vm444, %v425, 0
      %v491 = vsel %vm444, %v426, 0
      %v494 = vsel %vm444, %v427, 0
      %v497 = vsel %vm444, %v428, 0
      %v500 = vsel %vm444, %v429, 0
      %v503 = vsel %vm444, %v430, 0
      %v506 = vsel %vm444, %v431, 0
      %v509 = vsel %vm444, %v432, 0
      %v512 = vsel %vm444, %v433, 0
      %v515 = vsel %vm444, %v434, 0
      %v518 = vsel %vm444, %v435, 0
      %v521 = vsel %vm444, %v436, 0
      %v524 = vsel %vm444, %v437, 0
      %v527 = vsel %vm444, %v438, 0
      %v530 = vsel %vm444, %v439, 0
      %v533 = vsel %vm444, %v440, 0
      %v536 = vsel %vm444, %v441, 0
      %v539 = vsel %vm444, %v442, 0
      %vm541 = vcmask 1043456
      %v543 = vsel %vm541, %v443, 0
      %545 = vmatprep.subr.mxu0 0.0
      %546 = vmatpush1.msra.mxu0 0.0
      %547 = vmatprep.subr.mxu0 0.0
      %548 = vmatpush1.msra.mxu0 0.0
      %549 = vmatprep.subr.mxu0 0.0
      %550 = vmatpush1.msra.mxu0 0.0
      %551 = vmatprep.subr.mxu0 0.0
      %552 = vmatpush1.msra.mxu0 0.0
      %553 = vmatprep.subr.mxu0 0.0
      %554 = vmatpush1.msra.mxu0 0.0
      %555 = vmatprep.subr.mxu0 0.0
      %556 = vmatpush1.msra.mxu0 0.0
      %557 = vmatprep.subr.mxu0 0.0
      %558 = vmatpush1.msra.mxu0 0.0
      %559 = vmatprep.subr.mxu0 0.0
      %560 = vmatpush1.msra.mxu0 0.0
      %561 = vmatprep.subr.mxu0 0.0
      %562 = vmatpush1.msra.mxu0 0.0
      %563 = vmatprep.subr.mxu0 0.0
      %564 = vmatpush1.msra.mxu0 0.0
      %565 = vmatprep.subr.mxu0 0.0
      %566 = vmatpush1.msra.mxu0 0.0
      %567 = vmatprep.subr.mxu0 0.0
      %568 = vmatpush1.msra.mxu0 0.0
      %569 = vmatprep.subr.mxu0 0.0
      %570 = vmatpush1.msra.mxu0 0.0
      %571 = vmatprep.subr.mxu0 0.0
      %572 = vmatpush1.msra.mxu0 0.0
      %573 = vmatprep.subr.mxu0 0.0
      %574 = vmatpush1.msra.mxu0 0.0
      %575 = vmatprep.subr.mxu0 0.0
      %576 = vmatpush1.msra.mxu0 %v543
      %577 = vmatprep.subr.mxu0 0.0
      %578 = vmatpush2.msra.mxu0 0.0
      %579 = vmatprep.subr.mxu0 0.0
      %580 = vmatpush2.msra.mxu0 0.0
      %581 = vmatprep.subr.mxu0 0.0
      %582 = vmatpush2.msra.mxu0 0.0
      %583 = vmatprep.subr.mxu0 0.0
      %584 = vmatpush2.msra.mxu0 0.0
      %585 = vmatprep.subr.mxu0 0.0
      %586 = vmatpush2.msra.mxu0 0.0
      %587 = vmatprep.subr.mxu0 0.0
      %588 = vmatpush2.msra.mxu0 0.0
      %589 = vmatprep.subr.mxu0 0.0
      %590 = vmatpush2.msra.mxu0 0.0
      %591 = vmatprep.subr.mxu0 0.0
      %592 = vmatpush2.msra.mxu0 0.0
      %593 = vmatprep.subr.mxu0 0.0
      %594 = vmatpush2.msra.mxu0 0.0
      %595 = vmatprep.subr.mxu0 0.0
      %596 = vmatpush2.msra.mxu0 0.0
      %597 = vmatprep.subr.mxu0 0.0
      %598 = vmatpush2.msra.mxu0 0.0
      %599 = vmatprep.subr.mxu0 0.0
      %600 = vmatpush2.msra.mxu0 0.0
      %601 = vmatprep.subr.mxu0 0.0
      %602 = vmatpush2.msra.mxu0 0.0
      %603 = vmatprep.subr.mxu0 0.0
      %604 = vmatpush2.msra.mxu0 0.0
      %605 = vmatprep.subr.mxu0 0.0
      %606 = vmatpush2.msra.mxu0 0.0
      %607 = vmatprep.subr.mxu0 0.0
      %608 = vmatpush2.msra.mxu0 0.0
      %609 = vmatprep.mubr.f32.mxu0 0.0
      %610 = vmatmul.mubr.f32.gmra.mxu0 %v446
      %v611 = vpop.f32.mrf.mxu0
      %v612 = vadd.f32 0.0, %v611
      %v613 = vpop.f32.mrf.mxu0
      %614 = vmatprep.mubr.f32.mxu0 0.0
      %615 = vmatmul.mubr.f32.gmra.mxu0 %v449
      %v616 = vpop.f32.mrf.mxu0
      %v617 = vadd.f32 0.0, %v616
      %v618 = vpop.f32.mrf.mxu0
      %619 = vmatprep.mubr.f32.mxu0 0.0
      %620 = vmatmul.mubr.f32.gmra.mxu0 %v452
      %v621 = vpop.f32.mrf.mxu0
      %v622 = vadd.f32 0.0, %v621
      %v623 = vpop.f32.mrf.mxu0
      %624 = vmatprep.mubr.f32.mxu0 0.0
      %625 = vmatmul.mubr.f32.gmra.mxu0 %v455
      %v626 = vpop.f32.mrf.mxu0
      %v627 = vadd.f32 0.0, %v626
      %v628 = vpop.f32.mrf.mxu0
      %629 = vmatprep.mubr.f32.mxu0 0.0
      %630 = vmatmul.mubr.f32.gmra.mxu0 %v458
      %v631 = vpop.f32.mrf.mxu0
      %v632 = vadd.f32 0.0, %v631
      %v633 = vpop.f32.mrf.mxu0
      %634 = vmatprep.mubr.f32.mxu0 0.0
      %635 = vmatmul.mubr.f32.gmra.mxu0 %v461
      %v636 = vpop.f32.mrf.mxu0
      %v637 = vadd.f32 0.0, %v636
      %v638 = vpop.f32.mrf.mxu0
      %639 = vmatprep.mubr.f32.mxu0 0.0
      %640 = vmatmul.mubr.f32.gmra.mxu0 %v464
      %v641 = vpop.f32.mrf.mxu0
      %v642 = vadd.f32 0.0, %v641
      %v643 = vpop.f32.mrf.mxu0
      %644 = vmatprep.mubr.f32.mxu0 0.0
      %645 = vmatmul.mubr.f32.gmra.mxu0 %v467
      %v646 = vpop.f32.mrf.mxu0
      %v647 = vadd.f32 0.0, %v646
      %v648 = vpop.f32.mrf.mxu0
      %649 = vmatprep.mubr.f32.mxu0 0.0
      %650 = vmatmul.mubr.f32.gmra.mxu0 %v470
      %v651 = vpop.f32.mrf.mxu0
      %v652 = vadd.f32 0.0, %v651
      %v653 = vpop.f32.mrf.mxu0
      %654 = vmatprep.mubr.f32.mxu0 0.0
      %655 = vmatmul.mubr.f32.gmra.mxu0 %v473
      %v656 = vpop.f32.mrf.mxu0
      %v657 = vadd.f32 0.0, %v656
      %v658 = vpop.f32.mrf.mxu0
      %659 = vmatprep.mubr.f32.mxu0 0.0
      %660 = vmatmul.mubr.f32.gmra.mxu0 %v476
      %v661 = vpop.f32.mrf.mxu0
      %v662 = vadd.f32 0.0, %v661
      %v663 = vpop.f32.mrf.mxu0
      %664 = vmatprep.mubr.f32.mxu0 0.0
      %665 = vmatmul.mubr.f32.gmra.mxu0 %v479
      %v666 = vpop.f32.mrf.mxu0
      %v667 = vadd.f32 0.0, %v666
      %v668 = vpop.f32.mrf.mxu0
      %669 = vmatprep.mubr.f32.mxu0 0.0
      %670 = vmatmul.mubr.f32.gmra.mxu0 %v482
      %v671 = vpop.f32.mrf.mxu0
      %v672 = vadd.f32 0.0, %v671
      %v673 = vpop.f32.mrf.mxu0
      %674 = vmatprep.mubr.f32.mxu0 0.0
      %675 = vmatmul.mubr.f32.gmra.mxu0 %v485
      %v676 = vpop.f32.mrf.mxu0
      %v677 = vadd.f32 0.0, %v676
      %v678 = vpop.f32.mrf.mxu0
      %679 = vmatprep.mubr.f32.mxu0 0.0
      %680 = vmatmul.mubr.f32.gmra.mxu0 %v488
      %v681 = vpop.f32.mrf.mxu0
      %v682 = vadd.f32 0.0, %v681
      %v683 = vpop.f32.mrf.mxu0
      %684 = vmatprep.mubr.f32.mxu0 0.0
      %685 = vmatmul.mubr.f32.gmra.mxu0 %v491
      %v686 = vpop.f32.mrf.mxu0
      %v687 = vadd.f32 0.0, %v686
      %v688 = vpop.f32.mrf.mxu0
      %689 = vmatprep.mubr.f32.mxu0 0.0
      %690 = vmatmul.mubr.f32.gmra.mxu0 %v494
      %v691 = vpop.f32.mrf.mxu0
      %v692 = vadd.f32 0.0, %v691
      %v693 = vpop.f32.mrf.mxu0
      %694 = vmatprep.mubr.f32.mxu0 0.0
      %695 = vmatmul.mubr.f32.gmra.mxu0 %v497
      %v696 = vpop.f32.mrf.mxu0
      %v697 = vadd.f32 0.0, %v696
      %v698 = vpop.f32.mrf.mxu0
      %699 = vmatprep.mubr.f32.mxu0 0.0
      %700 = vmatmul.mubr.f32.gmra.mxu0 %v500
      %v701 = vpop.f32.mrf.mxu0
      %v702 = vadd.f32 0.0, %v701
      %v703 = vpop.f32.mrf.mxu0
      %704 = vmatprep.mubr.f32.mxu0 0.0
      %705 = vmatmul.mubr.f32.gmra.mxu0 %v503
      %v706 = vpop.f32.mrf.mxu0
      %v707 = vadd.f32 0.0, %v706
      %v708 = vpop.f32.mrf.mxu0
      %709 = vmatprep.mubr.f32.mxu0 0.0
      %710 = vmatmul.mubr.f32.gmra.mxu0 %v506
      %v711 = vpop.f32.mrf.mxu0
      %v712 = vadd.f32 0.0, %v711
      %v713 = vpop.f32.mrf.mxu0
      %714 = vmatprep.mubr.f32.mxu0 0.0
      %715 = vmatmul.mubr.f32.gmra.mxu0 %v509
      %v716 = vpop.f32.mrf.mxu0
      %v717 = vadd.f32 0.0, %v716
      %v718 = vpop.f32.mrf.mxu0
      %719 = vmatprep.mubr.f32.mxu0 0.0
      %720 = vmatmul.mubr.f32.gmra.mxu0 %v512
      %v721 = vpop.f32.mrf.mxu0
      %v722 = vadd.f32 0.0, %v721
      %v723 = vpop.f32.mrf.mxu0
      %724 = vmatprep.mubr.f32.mxu0 0.0
      %725 = vmatmul.mubr.f32.gmra.mxu0 %v515
      %v726 = vpop.f32.mrf.mxu0
      %v727 = vadd.f32 0.0, %v726
      %v728 = vpop.f32.mrf.mxu0
      %729 = vmatprep.mubr.f32.mxu0 0.0
      %730 = vmatmul.mubr.f32.gmra.mxu0 %v518
      %v731 = vpop.f32.mrf.mxu0
      %v732 = vadd.f32 0.0, %v731
      %v733 = vpop.f32.mrf.mxu0
      %734 = vmatprep.mubr.f32.mxu0 0.0
      %735 = vmatmul.mubr.f32.gmra.mxu0 %v521
      %v736 = vpop.f32.mrf.mxu0
      %v737 = vadd.f32 0.0, %v736
      %v738 = vpop.f32.mrf.mxu0
      %739 = vmatprep.mubr.f32.mxu0 0.0
      %740 = vmatmul.mubr.f32.gmra.mxu0 %v524
      %v741 = vpop.f32.mrf.mxu0
      %v742 = vadd.f32 0.0, %v741
      %v743 = vpop.f32.mrf.mxu0
      %744 = vmatprep.mubr.f32.mxu0 0.0
      %745 = vmatmul.mubr.f32.gmra.mxu0 %v527
      %v746 = vpop.f32.mrf.mxu0
      %v747 = vadd.f32 0.0, %v746
      %v748 = vpop.f32.mrf.mxu0
      %749 = vmatprep.mubr.f32.mxu0 0.0
      %750 = vmatmul.mubr.f32.gmra.mxu0 %v530
      %v751 = vpop.f32.mrf.mxu0
      %v752 = vadd.f32 0.0, %v751
      %v753 = vpop.f32.mrf.mxu0
      %754 = vmatprep.mubr.f32.mxu0 0.0
      %755 = vmatmul.mubr.f32.gmra.mxu0 %v533
      %v756 = vpop.f32.mrf.mxu0
      %v757 = vadd.f32 0.0, %v756
      %v758 = vpop.f32.mrf.mxu0
      %759 = vmatprep.mubr.f32.mxu0 0.0
      %760 = vmatmul.mubr.f32.gmra.mxu0 %v536
      %v761 = vpop.f32.mrf.mxu0
      %v762 = vadd.f32 0.0, %v761
      %v763 = vpop.f32.mrf.mxu0
      %764 = vmatprep.mubr.f32.mxu0 0.0
      %765 = vmatmul.mubr.f32.gmra.mxu0 %v539
      %v766 = vpop.f32.mrf.mxu0
      %v767 = vadd.f32 0.0, %v766
      %v768 = vpop.f32.mrf.mxu0
      %769 = vdwg.mxu0
      %v771 = vsel %vm444, %v378, 0
      %v774 = vsel %vm444, %v379, 0
      %v777 = vsel %vm444, %v380, 0
      %v780 = vsel %vm444, %v381, 0
      %v783 = vsel %vm444, %v382, 0
      %v786 = vsel %vm444, %v383, 0
      %v789 = vsel %vm444, %v384, 0
      %v792 = vsel %vm444, %v385, 0
      %v795 = vsel %vm444, %v386, 0
      %v798 = vsel %vm444, %v387, 0
      %v801 = vsel %vm444, %v388, 0
      %v804 = vsel %vm444, %v389, 0
      %v807 = vsel %vm444, %v390, 0
      %v810 = vsel %vm444, %v391, 0
      %v813 = vsel %vm444, %v392, 0
      %v816 = vsel %vm444, %v393, 0
      %v819 = vsel %vm444, %v394, 0
      %v822 = vsel %vm444, %v395, 0
      %v825 = vsel %vm444, %v396, 0
      %v828 = vsel %vm444, %v397, 0
      %v831 = vsel %vm444, %v398, 0
      %v834 = vsel %vm444, %v399, 0
      %v837 = vsel %vm444, %v400, 0
      %v840 = vsel %vm444, %v401, 0
      %v843 = vsel %vm444, %v402, 0
      %v846 = vsel %vm444, %v403, 0
      %v849 = vsel %vm444, %v404, 0
      %v852 = vsel %vm444, %v405, 0
      %v855 = vsel %vm444, %v406, 0
      %v858 = vsel %vm444, %v407, 0
      %v861 = vsel %vm444, %v408, 0
      %v864 = vsel %vm444, %v409, 0
      %v867 = vsel %vm541, %v410, 0
      %869 = vmatprep.subr.mxu0 0.0
      %870 = vmatpush1.msra.mxu0 0.0
      %871 = vmatprep.subr.mxu0 0.0
      %872 = vmatpush1.msra.mxu0 0.0
      %873 = vmatprep.subr.mxu0 0.0
      %874 = vmatpush1.msra.mxu0 0.0
      %875 = vmatprep.subr.mxu0 0.0
      %876 = vmatpush1.msra.mxu0 0.0
      %877 = vmatprep.subr.mxu0 0.0
      %878 = vmatpush1.msra.mxu0 0.0
      %879 = vmatprep.subr.mxu0 0.0
      %880 = vmatpush1.msra.mxu0 0.0
      %881 = vmatprep.subr.mxu0 0.0
      %882 = vmatpush1.msra.mxu0 0.0
      %883 = vmatprep.subr.mxu0 0.0
      %884 = vmatpush1.msra.mxu0 0.0
      %885 = vmatprep.subr.mxu0 0.0
      %886 = vmatpush1.msra.mxu0 0.0
      %887 = vmatprep.subr.mxu0 0.0
      %888 = vmatpush1.msra.mxu0 0.0
      %889 = vmatprep.subr.mxu0 0.0
      %890 = vmatpush1.msra.mxu0 0.0
      %891 = vmatprep.subr.mxu0 0.0
      %892 = vmatpush1.msra.mxu0 0.0
      %893 = vmatprep.subr.mxu0 0.0
      %894 = vmatpush1.msra.mxu0 0.0
      %895 = vmatprep.subr.mxu0 0.0
      %896 = vmatpush1.msra.mxu0 0.0
      %897 = vmatprep.subr.mxu0 0.0
      %898 = vmatpush1.msra.mxu0 0.0
      %899 = vmatprep.subr.mxu0 0.0
      %900 = vmatpush1.msra.mxu0 %v867
      %901 = vmatprep.subr.mxu0 0.0
      %902 = vmatpush2.msra.mxu0 0.0
      %903 = vmatprep.subr.mxu0 0.0
      %904 = vmatpush2.msra.mxu0 0.0
      %905 = vmatprep.subr.mxu0 0.0
      %906 = vmatpush2.msra.mxu0 0.0
      %907 = vmatprep.subr.mxu0 0.0
      %908 = vmatpush2.msra.mxu0 0.0
      %909 = vmatprep.subr.mxu0 0.0
      %910 = vmatpush2.msra.mxu0 0.0
      %911 = vmatprep.subr.mxu0 0.0
      %912 = vmatpush2.msra.mxu0 0.0
      %913 = vmatprep.subr.mxu0 0.0
      %914 = vmatpush2.msra.mxu0 0.0
      %915 = vmatprep.subr.mxu0 0.0
      %916 = vmatpush2.msra.mxu0 0.0
      %917 = vmatprep.subr.mxu0 0.0
      %918 = vmatpush2.msra.mxu0 0.0
      %919 = vmatprep.subr.mxu0 0.0
      %920 = vmatpush2.msra.mxu0 0.0
      %921 = vmatprep.subr.mxu0 0.0
      %922 = vmatpush2.msra.mxu0 0.0
      %923 = vmatprep.subr.mxu0 0.0
      %924 = vmatpush2.msra.mxu0 0.0
      %925 = vmatprep.subr.mxu0 0.0
      %926 = vmatpush2.msra.mxu0 0.0
      %927 = vmatprep.subr.mxu0 0.0
      %928 = vmatpush2.msra.mxu0 0.0
      %929 = vmatprep.subr.mxu0 0.0
      %930 = vmatpush2.msra.mxu0 0.0
      %931 = vmatprep.subr.mxu0 0.0
      %932 = vmatpush2.msra.mxu0 0.0
      %933 = vmatprep.mubr.f32.mxu0 0.0
      %934 = vmatmul.mubr.f32.gmra.mxu0 %v771
      %v935 = vpop.f32.mrf.mxu0
      %v936 = vadd.f32 %v612, %v935
      %v937 = vpop.f32.mrf.mxu0
      %938 = vmatprep.mubr.f32.mxu0 0.0
      %939 = vmatmul.mubr.f32.gmra.mxu0 %v774
      %v940 = vpop.f32.mrf.mxu0
      %v941 = vadd.f32 %v617, %v940
      %v942 = vpop.f32.mrf.mxu0
      %943 = vmatprep.mubr.f32.mxu0 0.0
      %944 = vmatmul.mubr.f32.gmra.mxu0 %v777
      %v945 = vpop.f32.mrf.mxu0
      %v946 = vadd.f32 %v622, %v945
      %v947 = vpop.f32.mrf.mxu0
      %948 = vmatprep.mubr.f32.mxu0 0.0
      %949 = vmatmul.mubr.f32.gmra.mxu0 %v780
      %v950 = vpop.f32.mrf.mxu0
      %v951 = vadd.f32 %v627, %v950
      %v952 = vpop.f32.mrf.mxu0
      %953 = vmatprep.mubr.f32.mxu0 0.0
      %954 = vmatmul.mubr.f32.gmra.mxu0 %v783
      %v955 = vpop.f32.mrf.mxu0
      %v956 = vadd.f32 %v632, %v955
      %v957 = vpop.f32.mrf.mxu0
      %958 = vmatprep.mubr.f32.mxu0 0.0
      %959 = vmatmul.mubr.f32.gmra.mxu0 %v786
      %v960 = vpop.f32.mrf.mxu0
      %v961 = vadd.f32 %v637, %v960
      %v962 = vpop.f32.mrf.mxu0
      %963 = vmatprep.mubr.f32.mxu0 0.0
      %964 = vmatmul.mubr.f32.gmra.mxu0 %v789
      %v965 = vpop.f32.mrf.mxu0
      %v966 = vadd.f32 %v642, %v965
      %v967 = vpop.f32.mrf.mxu0
      %968 = vmatprep.mubr.f32.mxu0 0.0
      %969 = vmatmul.mubr.f32.gmra.mxu0 %v792
      %v970 = vpop.f32.mrf.mxu0
      %v971 = vadd.f32 %v647, %v970
      %v972 = vpop.f32.mrf.mxu0
      %973 = vmatprep.mubr.f32.mxu0 0.0
      %974 = vmatmul.mubr.f32.gmra.mxu0 %v795
      %v975 = vpop.f32.mrf.mxu0
      %v976 = vadd.f32 %v652, %v975
      %v977 = vpop.f32.mrf.mxu0
      %978 = vmatprep.mubr.f32.mxu0 0.0
      %979 = vmatmul.mubr.f32.gmra.mxu0 %v798
      %v980 = vpop.f32.mrf.mxu0
      %v981 = vadd.f32 %v657, %v980
      %v982 = vpop.f32.mrf.mxu0
      %983 = vmatprep.mubr.f32.mxu0 0.0
      %984 = vmatmul.mubr.f32.gmra.mxu0 %v801
      %v985 = vpop.f32.mrf.mxu0
      %v986 = vadd.f32 %v662, %v985
      %v987 = vpop.f32.mrf.mxu0
      %988 = vmatprep.mubr.f32.mxu0 0.0
      %989 = vmatmul.mubr.f32.gmra.mxu0 %v804
      %v990 = vpop.f32.mrf.mxu0
      %v991 = vadd.f32 %v667, %v990
      %v992 = vpop.f32.mrf.mxu0
      %993 = vmatprep.mubr.f32.mxu0 0.0
      %994 = vmatmul.mubr.f32.gmra.mxu0 %v807
      %v995 = vpop.f32.mrf.mxu0
      %v996 = vadd.f32 %v672, %v995
      %v997 = vpop.f32.mrf.mxu0
      %998 = vmatprep.mubr.f32.mxu0 0.0
      %999 = vmatmul.mubr.f32.gmra.mxu0 %v810
      %v1000 = vpop.f32.mrf.mxu0
      %v1001 = vadd.f32 %v677, %v1000
      %v1002 = vpop.f32.mrf.mxu0
      %1003 = vmatprep.mubr.f32.mxu0 0.0
      %1004 = vmatmul.mubr.f32.gmra.mxu0 %v813
      %v1005 = vpop.f32.mrf.mxu0
      %v1006 = vadd.f32 %v682, %v1005
      %v1007 = vpop.f32.mrf.mxu0
      %1008 = vmatprep.mubr.f32.mxu0 0.0
      %1009 = vmatmul.mubr.f32.gmra.mxu0 %v816
      %v1010 = vpop.f32.mrf.mxu0
      %v1011 = vadd.f32 %v687, %v1010
      %v1012 = vpop.f32.mrf.mxu0
      %1013 = vmatprep.mubr.f32.mxu0 0.0
      %1014 = vmatmul.mubr.f32.gmra.mxu0 %v819
      %v1015 = vpop.f32.mrf.mxu0
      %v1016 = vadd.f32 %v692, %v1015
      %v1017 = vpop.f32.mrf.mxu0
      %1018 = vmatprep.mubr.f32.mxu0 0.0
      %1019 = vmatmul.mubr.f32.gmra.mxu0 %v822
      %v1020 = vpop.f32.mrf.mxu0
      %v1021 = vadd.f32 %v697, %v1020
      %v1022 = vpop.f32.mrf.mxu0
      %1023 = vmatprep.mubr.f32.mxu0 0.0
      %1024 = vmatmul.mubr.f32.gmra.mxu0 %v825
      %v1025 = vpop.f32.mrf.mxu0
      %v1026 = vadd.f32 %v702, %v1025
      %v1027 = vpop.f32.mrf.mxu0
      %1028 = vmatprep.mubr.f32.mxu0 0.0
      %1029 = vmatmul.mubr.f32.gmra.mxu0 %v828
      %v1030 = vpop.f32.mrf.mxu0
      %v1031 = vadd.f32 %v707, %v1030
      %v1032 = vpop.f32.mrf.mxu0
      %1033 = vmatprep.mubr.f32.mxu0 0.0
      %1034 = vmatmul.mubr.f32.gmra.mxu0 %v831
      %v1035 = vpop.f32.mrf.mxu0
      %v1036 = vadd.f32 %v712, %v1035
      %v1037 = vpop.f32.mrf.mxu0
      %1038 = vmatprep.mubr.f32.mxu0 0.0
      %1039 = vmatmul.mubr.f32.gmra.mxu0 %v834
      %v1040 = vpop.f32.mrf.mxu0
      %v1041 = vadd.f32 %v717, %v1040
      %v1042 = vpop.f32.mrf.mxu0
      %1043 = vmatprep.mubr.f32.mxu0 0.0
      %1044 = vmatmul.mubr.f32.gmra.mxu0 %v837
      %v1045 = vpop.f32.mrf.mxu0
      %v1046 = vadd.f32 %v722, %v1045
      %v1047 = vpop.f32.mrf.mxu0
      %1048 = vmatprep.mubr.f32.mxu0 0.0
      %1049 = vmatmul.mubr.f32.gmra.mxu0 %v840
      %v1050 = vpop.f32.mrf.mxu0
      %v1051 = vadd.f32 %v727, %v1050
      %v1052 = vpop.f32.mrf.mxu0
      %1053 = vmatprep.mubr.f32.mxu0 0.0
      %1054 = vmatmul.mubr.f32.gmra.mxu0 %v843
      %v1055 = vpop.f32.mrf.mxu0
      %v1056 = vadd.f32 %v732, %v1055
      %v1057 = vpop.f32.mrf.mxu0
      %1058 = vmatprep.mubr.f32.mxu0 0.0
      %1059 = vmatmul.mubr.f32.gmra.mxu0 %v846
      %v1060 = vpop.f32.mrf.mxu0
      %v1061 = vadd.f32 %v737, %v1060
      %v1062 = vpop.f32.mrf.mxu0
      %1063 = vmatprep.mubr.f32.mxu0 0.0
      %1064 = vmatmul.mubr.f32.gmra.mxu0 %v849
      %v1065 = vpop.f32.mrf.mxu0
      %v1066 = vadd.f32 %v742, %v1065
      %v1067 = vpop.f32.mrf.mxu0
      %1068 = vmatprep.mubr.f32.mxu0 0.0
      %1069 = vmatmul.mubr.f32.gmra.mxu0 %v852
      %v1070 = vpop.f32.mrf.mxu0
      %v1071 = vadd.f32 %v747, %v1070
      %v1072 = vpop.f32.mrf.mxu0
      %1073 = vmatprep.mubr.f32.mxu0 0.0
      %1074 = vmatmul.mubr.f32.gmra.mxu0 %v855
      %v1075 = vpop.f32.mrf.mxu0
      %v1076 = vadd.f32 %v752, %v1075
      %v1077 = vpop.f32.mrf.mxu0
      %1078 = vmatprep.mubr.f32.mxu0 0.0
      %1079 = vmatmul.mubr.f32.gmra.mxu0 %v858
      %v1080 = vpop.f32.mrf.mxu0
      %v1081 = vadd.f32 %v757, %v1080
      %v1082 = vpop.f32.mrf.mxu0
      %1083 = vmatprep.mubr.f32.mxu0 0.0
      %1084 = vmatmul.mubr.f32.gmra.mxu0 %v861
      %v1085 = vpop.f32.mrf.mxu0
      %v1086 = vadd.f32 %v762, %v1085
      %v1087 = vpop.f32.mrf.mxu0
      %1088 = vmatprep.mubr.f32.mxu0 0.0
      %1089 = vmatmul.mubr.f32.gmra.mxu0 %v864
      %v1090 = vpop.f32.mrf.mxu0
      %v1091 = vadd.f32 %v767, %v1090
      %v1092 = vpop.f32.mrf.mxu0
      %1093 = vdwg.mxu0
      %v1094 = vld [vmem:[#allocation2 + $0x2] sm:$0xff]
      %v1095 = vld [vmem:[#allocation2 + $0xa] sm:$0xff]
      %v1096 = vld [vmem:[#allocation2 + $0x1a] sm:$0xff]
      %v1097 = vld [vmem:[#allocation2 + $0x22] sm:$0xff]
      %v1098 = vld [vmem:[#allocation2 + $0x32] sm:$0xff]
      %v1099 = vld [vmem:[#allocation2 + $0x3a] sm:$0xff]
      %v1100 = vld [vmem:[#allocation2 + $0x4a] sm:$0xff]
      %v1101 = vld [vmem:[#allocation2 + $0x52] sm:$0xff]
      %v1102 = vld [vmem:[#allocation2 + $0x62] sm:$0xff]
      %v1103 = vld [vmem:[#allocation2 + $0x6a] sm:$0xff]
      %v1104 = vld [vmem:[#allocation2 + $0x7a] sm:$0xff]
      %v1105 = vld [vmem:[#allocation2 + $0x82] sm:$0xff]
      %v1106 = vld [vmem:[#allocation2 + $0x92] sm:$0xff]
      %v1107 = vld [vmem:[#allocation2 + $0x9a] sm:$0xff]
      %v1108 = vld [vmem:[#allocation2 + $0xaa] sm:$0xff]
      %v1109 = vld [vmem:[#allocation2 + $0xb2] sm:$0xff]
      %v1110 = vld [vmem:[#allocation2 + $0xc2] sm:$0xff]
      %v1111 = vld [vmem:[#allocation2 + $0xca] sm:$0xff]
      %v1112 = vld [vmem:[#allocation2 + $0xda] sm:$0xff]
      %v1113 = vld [vmem:[#allocation2 + $0xe2] sm:$0xff]
      %v1114 = vld [vmem:[#allocation2 + $0xf2] sm:$0xff]
      %v1115 = vld [vmem:[#allocation2 + $0xfa] sm:$0xff]
      %v1116 = vld [vmem:[#allocation2 + $0x10a] sm:$0xff]
      %v1117 = vld [vmem:[#allocation2 + $0x112] sm:$0xff]
      %v1118 = vld [vmem:[#allocation2 + $0x122] sm:$0xff]
      %v1119 = vld [vmem:[#allocation2 + $0x12a] sm:$0xff]
      %v1120 = vld [vmem:[#allocation2 + $0x13a] sm:$0xff]
      %v1121 = vld [vmem:[#allocation2 + $0x142] sm:$0xff]
      %v1122 = vld [vmem:[#allocation2 + $0x152] sm:$0xff]
      %v1123 = vld [vmem:[#allocation2 + $0x15a] sm:$0xff]
      %v1124 = vld [vmem:[#allocation2 + $0x16a] sm:$0xff]
      %v1125 = vld [vmem:[#allocation2 + $0x172] sm:$0xff]
      %v1126 = vld [vmem:[%s248 + $0x8] sm:$0xf]
      %v1128 = vsel %vm444, %v1094, 0
      %v1131 = vsel %vm444, %v1095, 0
      %v1134 = vsel %vm444, %v1096, 0
      %v1137 = vsel %vm444, %v1097, 0
      %v1140 = vsel %vm444, %v1098, 0
      %v1143 = vsel %vm444, %v1099, 0
      %v1146 = vsel %vm444, %v1100, 0
      %v1149 = vsel %vm444, %v1101, 0
      %v1152 = vsel %vm444, %v1102, 0
      %v1155 = vsel %vm444, %v1103, 0
      %v1158 = vsel %vm444, %v1104, 0
      %v1161 = vsel %vm444, %v1105, 0
      %v1164 = vsel %vm444, %v1106, 0
      %v1167 = vsel %vm444, %v1107, 0
      %v1170 = vsel %vm444, %v1108, 0
      %v1173 = vsel %vm444, %v1109, 0
      %v1176 = vsel %vm444, %v1110, 0
      %v1179 = vsel %vm444, %v1111, 0
      %v1182 = vsel %vm444, %v1112, 0
      %v1185 = vsel %vm444, %v1113, 0
      %v1188 = vsel %vm444, %v1114, 0
      %v1191 = vsel %vm444, %v1115, 0
      %v1194 = vsel %vm444, %v1116, 0
      %v1197 = vsel %vm444, %v1117, 0
      %v1200 = vsel %vm444, %v1118, 0
      %v1203 = vsel %vm444, %v1119, 0
      %v1206 = vsel %vm444, %v1120, 0
      %v1209 = vsel %vm444, %v1121, 0
      %v1212 = vsel %vm444, %v1122, 0
      %v1215 = vsel %vm444, %v1123, 0
      %v1218 = vsel %vm444, %v1124, 0
      %v1221 = vsel %vm444, %v1125, 0
      %v1224 = vsel %vm541, %v1126, 0
      %1226 = vmatprep.subr.mxu0 0.0
      %1227 = vmatpush1.msra.mxu0 0.0
      %1228 = vmatprep.subr.mxu0 0.0
      %1229 = vmatpush1.msra.mxu0 0.0
      %1230 = vmatprep.subr.mxu0 0.0
      %1231 = vmatpush1.msra.mxu0 0.0
      %1232 = vmatprep.subr.mxu0 0.0
      %1233 = vmatpush1.msra.mxu0 0.0
      %1234 = vmatprep.subr.mxu0 0.0
      %1235 = vmatpush1.msra.mxu0 0.0
      %1236 = vmatprep.subr.mxu0 0.0
      %1237 = vmatpush1.msra.mxu0 0.0
      %1238 = vmatprep.subr.mxu0 0.0
      %1239 = vmatpush1.msra.mxu0 0.0
      %1240 = vmatprep.subr.mxu0 0.0
      %1241 = vmatpush1.msra.mxu0 0.0
      %1242 = vmatprep.subr.mxu0 0.0
      %1243 = vmatpush1.msra.mxu0 0.0
      %1244 = vmatprep.subr.mxu0 0.0
      %1245 = vmatpush1.msra.mxu0 0.0
      %1246 = vmatprep.subr.mxu0 0.0
      %1247 = vmatpush1.msra.mxu0 0.0
      %1248 = vmatprep.subr.mxu0 0.0
      %1249 = vmatpush1.msra.mxu0 0.0
      %1250 = vmatprep.subr.mxu0 0.0
      %1251 = vmatpush1.msra.mxu0 0.0
      %1252 = vmatprep.subr.mxu0 0.0
      %1253 = vmatpush1.msra.mxu0 0.0
      %1254 = vmatprep.subr.mxu0 0.0
      %1255 = vmatpush1.msra.mxu0 0.0
      %1256 = vmatprep.subr.mxu0 0.0
      %1257 = vmatpush1.msra.mxu0 %v1224
      %1258 = vmatprep.subr.mxu0 0.0
      %1259 = vmatpush2.msra.mxu0 0.0
      %1260 = vmatprep.subr.mxu0 0.0
      %1261 = vmatpush2.msra.mxu0 0.0
      %1262 = vmatprep.subr.mxu0 0.0
      %1263 = vmatpush2.msra.mxu0 0.0
      %1264 = vmatprep.subr.mxu0 0.0
      %1265 = vmatpush2.msra.mxu0 0.0
      %1266 = vmatprep.subr.mxu0 0.0
      %1267 = vmatpush2.msra.mxu0 0.0
      %1268 = vmatprep.subr.mxu0 0.0
      %1269 = vmatpush2.msra.mxu0 0.0
      %1270 = vmatprep.subr.mxu0 0.0
      %1271 = vmatpush2.msra.mxu0 0.0
      %1272 = vmatprep.subr.mxu0 0.0
      %1273 = vmatpush2.msra.mxu0 0.0
      %1274 = vmatprep.subr.mxu0 0.0
      %1275 = vmatpush2.msra.mxu0 0.0
      %1276 = vmatprep.subr.mxu0 0.0
      %1277 = vmatpush2.msra.mxu0 0.0
      %1278 = vmatprep.subr.mxu0 0.0
      %1279 = vmatpush2.msra.mxu0 0.0
      %1280 = vmatprep.subr.mxu0 0.0
      %1281 = vmatpush2.msra.mxu0 0.0
      %1282 = vmatprep.subr.mxu0 0.0
      %1283 = vmatpush2.msra.mxu0 0.0
      %1284 = vmatprep.subr.mxu0 0.0
      %1285 = vmatpush2.msra.mxu0 0.0
      %1286 = vmatprep.subr.mxu0 0.0
      %1287 = vmatpush2.msra.mxu0 0.0
      %1288 = vmatprep.subr.mxu0 0.0
      %1289 = vmatpush2.msra.mxu0 0.0
      %1290 = vmatprep.mubr.f32.mxu0 0.0
      %1291 = vmatmul.mubr.f32.gmra.mxu0 %v1128
      %v1292 = vpop.f32.mrf.mxu0
      %v1293 = vadd.f32 0.0, %v1292
      %v1294 = vpop.f32.mrf.mxu0
      %1295 = vmatprep.mubr.f32.mxu0 0.0
      %1296 = vmatmul.mubr.f32.gmra.mxu0 %v1131
      %v1297 = vpop.f32.mrf.mxu0
      %v1298 = vadd.f32 0.0, %v1297
      %v1299 = vpop.f32.mrf.mxu0
      %1300 = vmatprep.mubr.f32.mxu0 0.0
      %1301 = vmatmul.mubr.f32.gmra.mxu0 %v1134
      %v1302 = vpop.f32.mrf.mxu0
      %v1303 = vadd.f32 0.0, %v1302
      %v1304 = vpop.f32.mrf.mxu0
      %1305 = vmatprep.mubr.f32.mxu0 0.0
      %1306 = vmatmul.mubr.f32.gmra.mxu0 %v1137
      %v1307 = vpop.f32.mrf.mxu0
      %v1308 = vadd.f32 0.0, %v1307
      %v1309 = vpop.f32.mrf.mxu0
      %1310 = vmatprep.mubr.f32.mxu0 0.0
      %1311 = vmatmul.mubr.f32.gmra.mxu0 %v1140
      %v1312 = vpop.f32.mrf.mxu0
      %v1313 = vadd.f32 0.0, %v1312
      %v1314 = vpop.f32.mrf.mxu0
      %1315 = vmatprep.mubr.f32.mxu0 0.0
      %1316 = vmatmul.mubr.f32.gmra.mxu0 %v1143
      %v1317 = vpop.f32.mrf.mxu0
      %v1318 = vadd.f32 0.0, %v1317
      %v1319 = vpop.f32.mrf.mxu0
      %1320 = vmatprep.mubr.f32.mxu0 0.0
      %1321 = vmatmul.mubr.f32.gmra.mxu0 %v1146
      %v1322 = vpop.f32.mrf.mxu0
      %v1323 = vadd.f32 0.0, %v1322
      %v1324 = vpop.f32.mrf.mxu0
      %1325 = vmatprep.mubr.f32.mxu0 0.0
      %1326 = vmatmul.mubr.f32.gmra.mxu0 %v1149
      %v1327 = vpop.f32.mrf.mxu0
      %v1328 = vadd.f32 0.0, %v1327
      %v1329 = vpop.f32.mrf.mxu0
      %1330 = vmatprep.mubr.f32.mxu0 0.0
      %1331 = vmatmul.mubr.f32.gmra.mxu0 %v1152
      %v1332 = vpop.f32.mrf.mxu0
      %v1333 = vadd.f32 0.0, %v1332
      %v1334 = vpop.f32.mrf.mxu0
      %1335 = vmatprep.mubr.f32.mxu0 0.0
      %1336 = vmatmul.mubr.f32.gmra.mxu0 %v1155
      %v1337 = vpop.f32.mrf.mxu0
      %v1338 = vadd.f32 0.0, %v1337
      %v1339 = vpop.f32.mrf.mxu0
      %1340 = vmatprep.mubr.f32.mxu0 0.0
      %1341 = vmatmul.mubr.f32.gmra.mxu0 %v1158
      %v1342 = vpop.f32.mrf.mxu0
      %v1343 = vadd.f32 0.0, %v1342
      %v1344 = vpop.f32.mrf.mxu0
      %1345 = vmatprep.mubr.f32.mxu0 0.0
      %1346 = vmatmul.mubr.f32.gmra.mxu0 %v1161
      %v1347 = vpop.f32.mrf.mxu0
      %v1348 = vadd.f32 0.0, %v1347
      %v1349 = vpop.f32.mrf.mxu0
      %1350 = vmatprep.mubr.f32.mxu0 0.0
      %1351 = vmatmul.mubr.f32.gmra.mxu0 %v1164
      %v1352 = vpop.f32.mrf.mxu0
      %v1353 = vadd.f32 0.0, %v1352
      %v1354 = vpop.f32.mrf.mxu0
      %1355 = vmatprep.mubr.f32.mxu0 0.0
      %1356 = vmatmul.mubr.f32.gmra.mxu0 %v1167
      %v1357 = vpop.f32.mrf.mxu0
      %v1358 = vadd.f32 0.0, %v1357
      %v1359 = vpop.f32.mrf.mxu0
      %1360 = vmatprep.mubr.f32.mxu0 0.0
      %1361 = vmatmul.mubr.f32.gmra.mxu0 %v1170
      %v1362 = vpop.f32.mrf.mxu0
      %v1363 = vadd.f32 0.0, %v1362
      %v1364 = vpop.f32.mrf.mxu0
      %1365 = vmatprep.mubr.f32.mxu0 0.0
      %1366 = vmatmul.mubr.f32.gmra.mxu0 %v1173
      %v1367 = vpop.f32.mrf.mxu0
      %v1368 = vadd.f32 0.0, %v1367
      %v1369 = vpop.f32.mrf.mxu0
      %1370 = vmatprep.mubr.f32.mxu0 0.0
      %1371 = vmatmul.mubr.f32.gmra.mxu0 %v1176
      %v1372 = vpop.f32.mrf.mxu0
      %v1373 = vadd.f32 0.0, %v1372
      %v1374 = vpop.f32.mrf.mxu0
      %1375 = vmatprep.mubr.f32.mxu0 0.0
      %1376 = vmatmul.mubr.f32.gmra.mxu0 %v1179
      %v1377 = vpop.f32.mrf.mxu0
      %v1378 = vadd.f32 0.0, %v1377
      %v1379 = vpop.f32.mrf.mxu0
      %1380 = vmatprep.mubr.f32.mxu0 0.0
      %1381 = vmatmul.mubr.f32.gmra.mxu0 %v1182
      %v1382 = vpop.f32.mrf.mxu0
      %v1383 = vadd.f32 0.0, %v1382
      %v1384 = vpop.f32.mrf.mxu0
      %1385 = vmatprep.mubr.f32.mxu0 0.0
      %1386 = vmatmul.mubr.f32.gmra.mxu0 %v1185
      %v1387 = vpop.f32.mrf.mxu0
      %v1388 = vadd.f32 0.0, %v1387
      %v1389 = vpop.f32.mrf.mxu0
      %1390 = vmatprep.mubr.f32.mxu0 0.0
      %1391 = vmatmul.mubr.f32.gmra.mxu0 %v1188
      %v1392 = vpop.f32.mrf.mxu0
      %v1393 = vadd.f32 0.0, %v1392
      %v1394 = vpop.f32.mrf.mxu0
      %1395 = vmatprep.mubr.f32.mxu0 0.0
      %1396 = vmatmul.mubr.f32.gmra.mxu0 %v1191
      %v1397 = vpop.f32.mrf.mxu0
      %v1398 = vadd.f32 0.0, %v1397
      %v1399 = vpop.f32.mrf.mxu0
      %1400 = vmatprep.mubr.f32.mxu0 0.0
      %1401 = vmatmul.mubr.f32.gmra.mxu0 %v1194
      %v1402 = vpop.f32.mrf.mxu0
      %v1403 = vadd.f32 0.0, %v1402
      %v1404 = vpop.f32.mrf.mxu0
      %1405 = vmatprep.mubr.f32.mxu0 0.0
      %1406 = vmatmul.mubr.f32.gmra.mxu0 %v1197
      %v1407 = vpop.f32.mrf.mxu0
      %v1408 = vadd.f32 0.0, %v1407
      %v1409 = vpop.f32.mrf.mxu0
      %1410 = vmatprep.mubr.f32.mxu0 0.0
      %1411 = vmatmul.mubr.f32.gmra.mxu0 %v1200
      %v1412 = vpop.f32.mrf.mxu0
      %v1413 = vadd.f32 0.0, %v1412
      %v1414 = vpop.f32.mrf.mxu0
      %1415 = vmatprep.mubr.f32.mxu0 0.0
      %1416 = vmatmul.mubr.f32.gmra.mxu0 %v1203
      %v1417 = vpop.f32.mrf.mxu0
      %v1418 = vadd.f32 0.0, %v1417
      %v1419 = vpop.f32.mrf.mxu0
      %1420 = vmatprep.mubr.f32.mxu0 0.0
      %1421 = vmatmul.mubr.f32.gmra.mxu0 %v1206
      %v1422 = vpop.f32.mrf.mxu0
      %v1423 = vadd.f32 0.0, %v1422
      %v1424 = vpop.f32.mrf.mxu0
      %1425 = vmatprep.mubr.f32.mxu0 0.0
      %1426 = vmatmul.mubr.f32.gmra.mxu0 %v1209
      %v1427 = vpop.f32.mrf.mxu0
      %v1428 = vadd.f32 0.0, %v1427
      %v1429 = vpop.f32.mrf.mxu0
      %1430 = vmatprep.mubr.f32.mxu0 0.0
      %1431 = vmatmul.mubr.f32.gmra.mxu0 %v1212
      %v1432 = vpop.f32.mrf.mxu0
      %v1433 = vadd.f32 0.0, %v1432
      %v1434 = vpop.f32.mrf.mxu0
      %1435 = vmatprep.mubr.f32.mxu0 0.0
      %1436 = vmatmul.mubr.f32.gmra.mxu0 %v1215
      %v1437 = vpop.f32.mrf.mxu0
      %v1438 = vadd.f32 0.0, %v1437
      %v1439 = vpop.f32.mrf.mxu0
      %1440 = vmatprep.mubr.f32.mxu0 0.0
      %1441 = vmatmul.mubr.f32.gmra.mxu0 %v1218
      %v1442 = vpop.f32.mrf.mxu0
      %v1443 = vadd.f32 0.0, %v1442
      %v1444 = vpop.f32.mrf.mxu0
      %1445 = vmatprep.mubr.f32.mxu0 0.0
      %1446 = vmatmul.mubr.f32.gmra.mxu0 %v1221
      %v1447 = vpop.f32.mrf.mxu0
      %v1448 = vadd.f32 0.0, %v1447
      %v1449 = vpop.f32.mrf.mxu0
      %1450 = vdwg.mxu0
      %v1451 = vadd.f32 %v936, %v1293
      %v1452 = vadd.f32 %v941, %v1298
      %v1453 = vadd.f32 %v946, %v1303
      %v1454 = vadd.f32 %v951, %v1308
      %v1455 = vadd.f32 %v956, %v1313
      %v1456 = vadd.f32 %v961, %v1318
      %v1457 = vadd.f32 %v966, %v1323
      %v1458 = vadd.f32 %v971, %v1328
      %v1459 = vadd.f32 %v976, %v1333
      %v1460 = vadd.f32 %v981, %v1338
      %v1461 = vadd.f32 %v986, %v1343
      %v1462 = vadd.f32 %v991, %v1348
      %v1463 = vadd.f32 %v996, %v1353
      %v1464 = vadd.f32 %v1001, %v1358
      %v1465 = vadd.f32 %v1006, %v1363
      %v1466 = vadd.f32 %v1011, %v1368
      %v1467 = vadd.f32 %v1016, %v1373
      %v1468 = vadd.f32 %v1021, %v1378
      %v1469 = vadd.f32 %v1026, %v1383
      %v1470 = vadd.f32 %v1031, %v1388
      %v1471 = vadd.f32 %v1036, %v1393
      %v1472 = vadd.f32 %v1041, %v1398
      %v1473 = vadd.f32 %v1046, %v1403
      %v1474 = vadd.f32 %v1051, %v1408
      %v1475 = vadd.f32 %v1056, %v1413
      %v1476 = vadd.f32 %v1061, %v1418
      %v1477 = vadd.f32 %v1066, %v1423
      %v1478 = vadd.f32 %v1071, %v1428
      %v1479 = vadd.f32 %v1076, %v1433
      %v1480 = vadd.f32 %v1081, %v1438
      %v1481 = vadd.f32 %v1086, %v1443
      %v1482 = vadd.f32 %v1091, %v1448
      %s1483 = scalar_lea.vmem [#allocation2], 24
      %v1484 = vld [vmem:[%s1483] sm:$0xff]
      %v1485 = vld [vmem:[%s1483 + $0x8] sm:$0xff]
      %v1486 = vld [vmem:[%s1483 + $0x18] sm:$0xff]
      %v1487 = vld [vmem:[%s1483 + $0x20] sm:$0xff]
      %v1488 = vld [vmem:[%s1483 + $0x30] sm:$0xff]
      %v1489 = vld [vmem:[%s1483 + $0x38] sm:$0xff]
      %v1490 = vld [vmem:[%s1483 + $0x48] sm:$0xff]
      %v1491 = vld [vmem:[%s1483 + $0x50] sm:$0xff]
      %v1492 = vld [vmem:[%s1483 + $0x60] sm:$0xff]
      %v1493 = vld [vmem:[%s1483 + $0x68] sm:$0xff]
      %v1494 = vld [vmem:[%s1483 + $0x78] sm:$0xff]
      %v1495 = vld [vmem:[%s1483 + $0x80] sm:$0xff]
      %v1496 = vld [vmem:[%s1483 + $0x90] sm:$0xff]
      %v1497 = vld [vmem:[%s1483 + $0x98] sm:$0xff]
      %v1498 = vld [vmem:[%s1483 + $0xa8] sm:$0xff]
      %v1499 = vld [vmem:[%s1483 + $0xb0] sm:$0xff]
      %v1500 = vld [vmem:[%s1483 + $0xc0] sm:$0xff]
      %v1501 = vld [vmem:[%s1483 + $0xc8] sm:$0xff]
      %v1502 = vld [vmem:[%s1483 + $0xd8] sm:$0xff]
      %v1503 = vld [vmem:[%s1483 + $0xe0] sm:$0xff]
      %v1504 = vld [vmem:[%s1483 + $0xf0] sm:$0xff]
      %v1505 = vld [vmem:[%s1483 + $0xf8] sm:$0xff]
      %v1506 = vld [vmem:[%s1483 + $0x108] sm:$0xff]
      %v1507 = vld [vmem:[%s1483 + $0x110] sm:$0xff]
      %v1508 = vld [vmem:[%s1483 + $0x120] sm:$0xff]
      %v1509 = vld [vmem:[%s1483 + $0x128] sm:$0xff]
      %v1510 = vld [vmem:[%s1483 + $0x138] sm:$0xff]
      %v1511 = vld [vmem:[%s1483 + $0x140] sm:$0xff]
      %v1512 = vld [vmem:[%s1483 + $0x150] sm:$0xff]
      %v1513 = vld [vmem:[%s1483 + $0x158] sm:$0xff]
      %v1514 = vld [vmem:[%s1483 + $0x168] sm:$0xff]
      %v1515 = vld [vmem:[%s1483 + $0x170] sm:$0xff]
      %v1516 = vld [vmem:[%s248 + $0xc] sm:$0xf]
      %v1518 = vsel %vm444, %v1484, 0
      %v1521 = vsel %vm444, %v1485, 0
      %v1524 = vsel %vm444, %v1486, 0
      %v1527 = vsel %vm444, %v1487, 0
      %v1530 = vsel %vm444, %v1488, 0
      %v1533 = vsel %vm444, %v1489, 0
      %v1536 = vsel %vm444, %v1490, 0
      %v1539 = vsel %vm444, %v1491, 0
      %v1542 = vsel %vm444, %v1492, 0
      %v1545 = vsel %vm444, %v1493, 0
      %v1548 = vsel %vm444, %v1494, 0
      %v1551 = vsel %vm444, %v1495, 0
      %v1554 = vsel %vm444, %v1496, 0
      %v1557 = vsel %vm444, %v1497, 0
      %v1560 = vsel %vm444, %v1498, 0
      %v1563 = vsel %vm444, %v1499, 0
      %v1566 = vsel %vm444, %v1500, 0
      %v1569 = vsel %vm444, %v1501, 0
      %v1572 = vsel %vm444, %v1502, 0
      %v1575 = vsel %vm444, %v1503, 0
      %v1578 = vsel %vm444, %v1504, 0
      %v1581 = vsel %vm444, %v1505, 0
      %v1584 = vsel %vm444, %v1506, 0
      %v1587 = vsel %vm444, %v1507, 0
      %v1590 = vsel %vm444, %v1508, 0
      %v1593 = vsel %vm444, %v1509, 0
      %v1596 = vsel %vm444, %v1510, 0
      %v1599 = vsel %vm444, %v1511, 0
      %v1602 = vsel %vm444, %v1512, 0
      %v1605 = vsel %vm444, %v1513, 0
      %v1608 = vsel %vm444, %v1514, 0
      %v1611 = vsel %vm444, %v1515, 0
      %v1614 = vsel %vm541, %v1516, 0
      %1616 = vmatprep.subr.mxu0 0.0
      %1617 = vmatpush1.msra.mxu0 0.0
      %1618 = vmatprep.subr.mxu0 0.0
      %1619 = vmatpush1.msra.mxu0 0.0
      %1620 = vmatprep.subr.mxu0 0.0
      %1621 = vmatpush1.msra.mxu0 0.0
      %1622 = vmatprep.subr.mxu0 0.0
      %1623 = vmatpush1.msra.mxu0 0.0
      %1624 = vmatprep.subr.mxu0 0.0
      %1625 = vmatpush1.msra.mxu0 0.0
      %1626 = vmatprep.subr.mxu0 0.0
      %1627 = vmatpush1.msra.mxu0 0.0
      %1628 = vmatprep.subr.mxu0 0.0
      %1629 = vmatpush1.msra.mxu0 0.0
      %1630 = vmatprep.subr.mxu0 0.0
      %1631 = vmatpush1.msra.mxu0 0.0
      %1632 = vmatprep.subr.mxu0 0.0
      %1633 = vmatpush1.msra.mxu0 0.0
      %1634 = vmatprep.subr.mxu0 0.0
      %1635 = vmatpush1.msra.mxu0 0.0
      %1636 = vmatprep.subr.mxu0 0.0
      %1637 = vmatpush1.msra.mxu0 0.0
      %1638 = vmatprep.subr.mxu0 0.0
      %1639 = vmatpush1.msra.mxu0 0.0
      %1640 = vmatprep.subr.mxu0 0.0
      %1641 = vmatpush1.msra.mxu0 0.0
      %1642 = vmatprep.subr.mxu0 0.0
      %1643 = vmatpush1.msra.mxu0 0.0
      %1644 = vmatprep.subr.mxu0 0.0
      %1645 = vmatpush1.msra.mxu0 0.0
      %1646 = vmatprep.subr.mxu0 0.0
      %1647 = vmatpush1.msra.mxu0 %v1614
      %1648 = vmatprep.subr.mxu0 0.0
      %1649 = vmatpush2.msra.mxu0 0.0
      %1650 = vmatprep.subr.mxu0 0.0
      %1651 = vmatpush2.msra.mxu0 0.0
      %1652 = vmatprep.subr.mxu0 0.0
      %1653 = vmatpush2.msra.mxu0 0.0
      %1654 = vmatprep.subr.mxu0 0.0
      %1655 = vmatpush2.msra.mxu0 0.0
      %1656 = vmatprep.subr.mxu0 0.0
      %1657 = vmatpush2.msra.mxu0 0.0
      %1658 = vmatprep.subr.mxu0 0.0
      %1659 = vmatpush2.msra.mxu0 0.0
      %1660 = vmatprep.subr.mxu0 0.0
      %1661 = vmatpush2.msra.mxu0 0.0
      %1662 = vmatprep.subr.mxu0 0.0
      %1663 = vmatpush2.msra.mxu0 0.0
      %1664 = vmatprep.subr.mxu0 0.0
      %1665 = vmatpush2.msra.mxu0 0.0
      %1666 = vmatprep.subr.mxu0 0.0
      %1667 = vmatpush2.msra.mxu0 0.0
      %1668 = vmatprep.subr.mxu0 0.0
      %1669 = vmatpush2.msra.mxu0 0.0
      %1670 = vmatprep.subr.mxu0 0.0
      %1671 = vmatpush2.msra.mxu0 0.0
      %1672 = vmatprep.subr.mxu0 0.0
      %1673 = vmatpush2.msra.mxu0 0.0
      %1674 = vmatprep.subr.mxu0 0.0
      %1675 = vmatpush2.msra.mxu0 0.0
      %1676 = vmatprep.subr.mxu0 0.0
      %1677 = vmatpush2.msra.mxu0 0.0
      %1678 = vmatprep.subr.mxu0 0.0
      %1679 = vmatpush2.msra.mxu0 0.0
      %1680 = vmatprep.mubr.f32.mxu0 0.0
      %1681 = vmatmul.mubr.f32.gmra.mxu0 %v1518
      %v1682 = vpop.f32.mrf.mxu0
      %v1683 = vadd.f32 0.0, %v1682
      %v1684 = vpop.f32.mrf.mxu0
      %1685 = vmatprep.mubr.f32.mxu0 0.0
      %1686 = vmatmul.mubr.f32.gmra.mxu0 %v1521
      %v1687 = vpop.f32.mrf.mxu0
      %v1688 = vadd.f32 0.0, %v1687
      %v1689 = vpop.f32.mrf.mxu0
      %1690 = vmatprep.mubr.f32.mxu0 0.0
      %1691 = vmatmul.mubr.f32.gmra.mxu0 %v1524
      %v1692 = vpop.f32.mrf.mxu0
      %v1693 = vadd.f32 0.0, %v1692
      %v1694 = vpop.f32.mrf.mxu0
      %1695 = vmatprep.mubr.f32.mxu0 0.0
      %1696 = vmatmul.mubr.f32.gmra.mxu0 %v1527
      %v1697 = vpop.f32.mrf.mxu0
      %v1698 = vadd.f32 0.0, %v1697
      %v1699 = vpop.f32.mrf.mxu0
      %1700 = vmatprep.mubr.f32.mxu0 0.0
      %1701 = vmatmul.mubr.f32.gmra.mxu0 %v1530
      %v1702 = vpop.f32.mrf.mxu0
      %v1703 = vadd.f32 0.0, %v1702
      %v1704 = vpop.f32.mrf.mxu0
      %1705 = vmatprep.mubr.f32.mxu0 0.0
      %1706 = vmatmul.mubr.f32.gmra.mxu0 %v1533
      %v1707 = vpop.f32.mrf.mxu0
      %v1708 = vadd.f32 0.0, %v1707
      %v1709 = vpop.f32.mrf.mxu0
      %1710 = vmatprep.mubr.f32.mxu0 0.0
      %1711 = vmatmul.mubr.f32.gmra.mxu0 %v1536
      %v1712 = vpop.f32.mrf.mxu0
      %v1713 = vadd.f32 0.0, %v1712
      %v1714 = vpop.f32.mrf.mxu0
      %1715 = vmatprep.mubr.f32.mxu0 0.0
      %1716 = vmatmul.mubr.f32.gmra.mxu0 %v1539
      %v1717 = vpop.f32.mrf.mxu0
      %v1718 = vadd.f32 0.0, %v1717
      %v1719 = vpop.f32.mrf.mxu0
      %1720 = vmatprep.mubr.f32.mxu0 0.0
      %1721 = vmatmul.mubr.f32.gmra.mxu0 %v1542
      %v1722 = vpop.f32.mrf.mxu0
      %v1723 = vadd.f32 0.0, %v1722
      %v1724 = vpop.f32.mrf.mxu0
      %1725 = vmatprep.mubr.f32.mxu0 0.0
      %1726 = vmatmul.mubr.f32.gmra.mxu0 %v1545
      %v1727 = vpop.f32.mrf.mxu0
      %v1728 = vadd.f32 0.0, %v1727
      %v1729 = vpop.f32.mrf.mxu0
      %1730 = vmatprep.mubr.f32.mxu0 0.0
      %1731 = vmatmul.mubr.f32.gmra.mxu0 %v1548
      %v1732 = vpop.f32.mrf.mxu0
      %v1733 = vadd.f32 0.0, %v1732
      %v1734 = vpop.f32.mrf.mxu0
      %1735 = vmatprep.mubr.f32.mxu0 0.0
      %1736 = vmatmul.mubr.f32.gmra.mxu0 %v1551
      %v1737 = vpop.f32.mrf.mxu0
      %v1738 = vadd.f32 0.0, %v1737
      %v1739 = vpop.f32.mrf.mxu0
      %1740 = vmatprep.mubr.f32.mxu0 0.0
      %1741 = vmatmul.mubr.f32.gmra.mxu0 %v1554
      %v1742 = vpop.f32.mrf.mxu0
      %v1743 = vadd.f32 0.0, %v1742
      %v1744 = vpop.f32.mrf.mxu0
      %1745 = vmatprep.mubr.f32.mxu0 0.0
      %1746 = vmatmul.mubr.f32.gmra.mxu0 %v1557
      %v1747 = vpop.f32.mrf.mxu0
      %v1748 = vadd.f32 0.0, %v1747
      %v1749 = vpop.f32.mrf.mxu0
      %1750 = vmatprep.mubr.f32.mxu0 0.0
      %1751 = vmatmul.mubr.f32.gmra.mxu0 %v1560
      %v1752 = vpop.f32.mrf.mxu0
      %v1753 = vadd.f32 0.0, %v1752
      %v1754 = vpop.f32.mrf.mxu0
      %1755 = vmatprep.mubr.f32.mxu0 0.0
      %1756 = vmatmul.mubr.f32.gmra.mxu0 %v1563
      %v1757 = vpop.f32.mrf.mxu0
      %v1758 = vadd.f32 0.0, %v1757
      %v1759 = vpop.f32.mrf.mxu0
      %1760 = vmatprep.mubr.f32.mxu0 0.0
      %1761 = vmatmul.mubr.f32.gmra.mxu0 %v1566
      %v1762 = vpop.f32.mrf.mxu0
      %v1763 = vadd.f32 0.0, %v1762
      %v1764 = vpop.f32.mrf.mxu0
      %1765 = vmatprep.mubr.f32.mxu0 0.0
      %1766 = vmatmul.mubr.f32.gmra.mxu0 %v1569
      %v1767 = vpop.f32.mrf.mxu0
      %v1768 = vadd.f32 0.0, %v1767
      %v1769 = vpop.f32.mrf.mxu0
      %1770 = vmatprep.mubr.f32.mxu0 0.0
      %1771 = vmatmul.mubr.f32.gmra.mxu0 %v1572
      %v1772 = vpop.f32.mrf.mxu0
      %v1773 = vadd.f32 0.0, %v1772
      %v1774 = vpop.f32.mrf.mxu0
      %1775 = vmatprep.mubr.f32.mxu0 0.0
      %1776 = vmatmul.mubr.f32.gmra.mxu0 %v1575
      %v1777 = vpop.f32.mrf.mxu0
      %v1778 = vadd.f32 0.0, %v1777
      %v1779 = vpop.f32.mrf.mxu0
      %1780 = vmatprep.mubr.f32.mxu0 0.0
      %1781 = vmatmul.mubr.f32.gmra.mxu0 %v1578
      %v1782 = vpop.f32.mrf.mxu0
      %v1783 = vadd.f32 0.0, %v1782
      %v1784 = vpop.f32.mrf.mxu0
      %1785 = vmatprep.mubr.f32.mxu0 0.0
      %1786 = vmatmul.mubr.f32.gmra.mxu0 %v1581
      %v1787 = vpop.f32.mrf.mxu0
      %v1788 = vadd.f32 0.0, %v1787
      %v1789 = vpop.f32.mrf.mxu0
      %1790 = vmatprep.mubr.f32.mxu0 0.0
      %1791 = vmatmul.mubr.f32.gmra.mxu0 %v1584
      %v1792 = vpop.f32.mrf.mxu0
      %v1793 = vadd.f32 0.0, %v1792
      %v1794 = vpop.f32.mrf.mxu0
      %1795 = vmatprep.mubr.f32.mxu0 0.0
      %1796 = vmatmul.mubr.f32.gmra.mxu0 %v1587
      %v1797 = vpop.f32.mrf.mxu0
      %v1798 = vadd.f32 0.0, %v1797
      %v1799 = vpop.f32.mrf.mxu0
      %1800 = vmatprep.mubr.f32.mxu0 0.0
      %1801 = vmatmul.mubr.f32.gmra.mxu0 %v1590
      %v1802 = vpop.f32.mrf.mxu0
      %v1803 = vadd.f32 0.0, %v1802
      %v1804 = vpop.f32.mrf.mxu0
      %1805 = vmatprep.mubr.f32.mxu0 0.0
      %1806 = vmatmul.mubr.f32.gmra.mxu0 %v1593
      %v1807 = vpop.f32.mrf.mxu0
      %v1808 = vadd.f32 0.0, %v1807
      %v1809 = vpop.f32.mrf.mxu0
      %1810 = vmatprep.mubr.f32.mxu0 0.0
      %1811 = vmatmul.mubr.f32.gmra.mxu0 %v1596
      %v1812 = vpop.f32.mrf.mxu0
      %v1813 = vadd.f32 0.0, %v1812
      %v1814 = vpop.f32.mrf.mxu0
      %1815 = vmatprep.mubr.f32.mxu0 0.0
      %1816 = vmatmul.mubr.f32.gmra.mxu0 %v1599
      %v1817 = vpop.f32.mrf.mxu0
      %v1818 = vadd.f32 0.0, %v1817
      %v1819 = vpop.f32.mrf.mxu0
      %1820 = vmatprep.mubr.f32.mxu0 0.0
      %1821 = vmatmul.mubr.f32.gmra.mxu0 %v1602
      %v1822 = vpop.f32.mrf.mxu0
      %v1823 = vadd.f32 0.0, %v1822
      %v1824 = vpop.f32.mrf.mxu0
      %1825 = vmatprep.mubr.f32.mxu0 0.0
      %1826 = vmatmul.mubr.f32.gmra.mxu0 %v1605
      %v1827 = vpop.f32.mrf.mxu0
      %v1828 = vadd.f32 0.0, %v1827
      %v1829 = vpop.f32.mrf.mxu0
      %1830 = vmatprep.mubr.f32.mxu0 0.0
      %1831 = vmatmul.mubr.f32.gmra.mxu0 %v1608
      %v1832 = vpop.f32.mrf.mxu0
      %v1833 = vadd.f32 0.0, %v1832
      %v1834 = vpop.f32.mrf.mxu0
      %1835 = vmatprep.mubr.f32.mxu0 0.0
      %1836 = vmatmul.mubr.f32.gmra.mxu0 %v1611
      %v1837 = vpop.f32.mrf.mxu0
      %v1838 = vadd.f32 0.0, %v1837
      %v1839 = vpop.f32.mrf.mxu0
      %1840 = vdwg.mxu0
      %v1841 = vadd.f32 %v1451, %v1683
      %v1842 = vadd.f32 %v1452, %v1688
      %v1843 = vadd.f32 %v1453, %v1693
      %v1844 = vadd.f32 %v1454, %v1698
      %v1845 = vadd.f32 %v1455, %v1703
      %v1846 = vadd.f32 %v1456, %v1708
      %v1847 = vadd.f32 %v1457, %v1713
      %v1848 = vadd.f32 %v1458, %v1718
      %v1849 = vadd.f32 %v1459, %v1723
      %v1850 = vadd.f32 %v1460, %v1728
      %v1851 = vadd.f32 %v1461, %v1733
      %v1852 = vadd.f32 %v1462, %v1738
      %v1853 = vadd.f32 %v1463, %v1743
      %v1854 = vadd.f32 %v1464, %v1748
      %v1855 = vadd.f32 %v1465, %v1753
      %v1856 = vadd.f32 %v1466, %v1758
      %v1857 = vadd.f32 %v1467, %v1763
      %v1858 = vadd.f32 %v1468, %v1768
      %v1859 = vadd.f32 %v1469, %v1773
      %v1860 = vadd.f32 %v1470, %v1778
      %v1861 = vadd.f32 %v1471, %v1783
      %v1862 = vadd.f32 %v1472, %v1788
      %v1863 = vadd.f32 %v1473, %v1793
      %v1864 = vadd.f32 %v1474, %v1798
      %v1865 = vadd.f32 %v1475, %v1803
      %v1866 = vadd.f32 %v1476, %v1808
      %v1867 = vadd.f32 %v1477, %v1813
      %v1868 = vadd.f32 %v1478, %v1818
      %v1869 = vadd.f32 %v1479, %v1823
      %v1870 = vadd.f32 %v1480, %v1828
      %v1871 = vadd.f32 %v1481, %v1833
      %v1872 = vadd.f32 %v1482, %v1838
      %v1873 = vld [vmem:[%s1483 + $0x1] sm:$0xff]
      %v1874 = vld [vmem:[%s1483 + $0x9] sm:$0xff]
      %v1875 = vld [vmem:[%s1483 + $0x19] sm:$0xff]
      %v1876 = vld [vmem:[%s1483 + $0x21] sm:$0xff]
      %v1877 = vld [vmem:[%s1483 + $0x31] sm:$0xff]
      %v1878 = vld [vmem:[%s1483 + $0x39] sm:$0xff]
      %v1879 = vld [vmem:[%s1483 + $0x49] sm:$0xff]
      %v1880 = vld [vmem:[%s1483 + $0x51] sm:$0xff]
      %v1881 = vld [vmem:[%s1483 + $0x61] sm:$0xff]
      %v1882 = vld [vmem:[%s1483 + $0x69] sm:$0xff]
      %v1883 = vld [vmem:[%s1483 + $0x79] sm:$0xff]
      %v1884 = vld [vmem:[%s1483 + $0x81] sm:$0xff]
      %v1885 = vld [vmem:[%s1483 + $0x91] sm:$0xff]
      %v1886 = vld [vmem:[%s1483 + $0x99] sm:$0xff]
      %v1887 = vld [vmem:[%s1483 + $0xa9] sm:$0xff]
      %v1888 = vld [vmem:[%s1483 + $0xb1] sm:$0xff]
      %v1889 = vld [vmem:[%s1483 + $0xc1] sm:$0xff]
      %v1890 = vld [vmem:[%s1483 + $0xc9] sm:$0xff]
      %v1891 = vld [vmem:[%s1483 + $0xd9] sm:$0xff]
      %v1892 = vld [vmem:[%s1483 + $0xe1] sm:$0xff]
      %v1893 = vld [vmem:[%s1483 + $0xf1] sm:$0xff]
      %v1894 = vld [vmem:[%s1483 + $0xf9] sm:$0xff]
      %v1895 = vld [vmem:[%s1483 + $0x109] sm:$0xff]
      %v1896 = vld [vmem:[%s1483 + $0x111] sm:$0xff]
      %v1897 = vld [vmem:[%s1483 + $0x121] sm:$0xff]
      %v1898 = vld [vmem:[%s1483 + $0x129] sm:$0xff]
      %v1899 = vld [vmem:[%s1483 + $0x139] sm:$0xff]
      %v1900 = vld [vmem:[%s1483 + $0x141] sm:$0xff]
      %v1901 = vld [vmem:[%s1483 + $0x151] sm:$0xff]
      %v1902 = vld [vmem:[%s1483 + $0x159] sm:$0xff]
      %v1903 = vld [vmem:[%s1483 + $0x169] sm:$0xff]
      %v1904 = vld [vmem:[%s1483 + $0x171] sm:$0xff]
      %v1905 = vld [vmem:[%s248 + $0x10] sm:$0xf]
      %v1907 = vsel %vm444, %v1873, 0
      %v1910 = vsel %vm444, %v1874, 0
      %v1913 = vsel %vm444, %v1875, 0
      %v1916 = vsel %vm444, %v1876, 0
      %v1919 = vsel %vm444, %v1877, 0
      %v1922 = vsel %vm444, %v1878, 0
      %v1925 = vsel %vm444, %v1879, 0
      %v1928 = vsel %vm444, %v1880, 0
      %v1931 = vsel %vm444, %v1881, 0
      %v1934 = vsel %vm444, %v1882, 0
      %v1937 = vsel %vm444, %v1883, 0
      %v1940 = vsel %vm444, %v1884, 0
      %v1943 = vsel %vm444, %v1885, 0
      %v1946 = vsel %vm444, %v1886, 0
      %v1949 = vsel %vm444, %v1887, 0
      %v1952 = vsel %vm444, %v1888, 0
      %v1955 = vsel %vm444, %v1889, 0
      %v1958 = vsel %vm444, %v1890, 0
      %v1961 = vsel %vm444, %v1891, 0
      %v1964 = vsel %vm444, %v1892, 0
      %v1967 = vsel %vm444, %v1893, 0
      %v1970 = vsel %vm444, %v1894, 0
      %v1973 = vsel %vm444, %v1895, 0
      %v1976 = vsel %vm444, %v1896, 0
      %v1979 = vsel %vm444, %v1897, 0
      %v1982 = vsel %vm444, %v1898, 0
      %v1985 = vsel %vm444, %v1899, 0
      %v1988 = vsel %vm444, %v1900, 0
      %v1991 = vsel %vm444, %v1901, 0
      %v1994 = vsel %vm444, %v1902, 0
      %v1997 = vsel %vm444, %v1903, 0
      %v2000 = vsel %vm444, %v1904, 0
      %v2003 = vsel %vm541, %v1905, 0
      %2005 = vmatprep.subr.mxu0 0.0
      %2006 = vmatpush1.msra.mxu0 0.0
      %2007 = vmatprep.subr.mxu0 0.0
      %2008 = vmatpush1.msra.mxu0 0.0
      %2009 = vmatprep.subr.mxu0 0.0
      %2010 = vmatpush1.msra.mxu0 0.0
      %2011 = vmatprep.subr.mxu0 0.0
      %2012 = vmatpush1.msra.mxu0 0.0
      %2013 = vmatprep.subr.mxu0 0.0
      %2014 = vmatpush1.msra.mxu0 0.0
      %2015 = vmatprep.subr.mxu0 0.0
      %2016 = vmatpush1.msra.mxu0 0.0
      %2017 = vmatprep.subr.mxu0 0.0
      %2018 = vmatpush1.msra.mxu0 0.0
      %2019 = vmatprep.subr.mxu0 0.0
      %2020 = vmatpush1.msra.mxu0 0.0
      %2021 = vmatprep.subr.mxu0 0.0
      %2022 = vmatpush1.msra.mxu0 0.0
      %2023 = vmatprep.subr.mxu0 0.0
      %2024 = vmatpush1.msra.mxu0 0.0
      %2025 = vmatprep.subr.mxu0 0.0
      %2026 = vmatpush1.msra.mxu0 0.0
      %2027 = vmatprep.subr.mxu0 0.0
      %2028 = vmatpush1.msra.mxu0 0.0
      %2029 = vmatprep.subr.mxu0 0.0
      %2030 = vmatpush1.msra.mxu0 0.0
      %2031 = vmatprep.subr.mxu0 0.0
      %2032 = vmatpush1.msra.mxu0 0.0
      %2033 = vmatprep.subr.mxu0 0.0
      %2034 = vmatpush1.msra.mxu0 0.0
      %2035 = vmatprep.subr.mxu0 0.0
      %2036 = vmatpush1.msra.mxu0 %v2003
      %2037 = vmatprep.subr.mxu0 0.0
      %2038 = vmatpush2.msra.mxu0 0.0
      %2039 = vmatprep.subr.mxu0 0.0
      %2040 = vmatpush2.msra.mxu0 0.0
      %2041 = vmatprep.subr.mxu0 0.0
      %2042 = vmatpush2.msra.mxu0 0.0
      %2043 = vmatprep.subr.mxu0 0.0
      %2044 = vmatpush2.msra.mxu0 0.0
      %2045 = vmatprep.subr.mxu0 0.0
      %2046 = vmatpush2.msra.mxu0 0.0
      %2047 = vmatprep.subr.mxu0 0.0
      %2048 = vmatpush2.msra.mxu0 0.0
      %2049 = vmatprep.subr.mxu0 0.0
      %2050 = vmatpush2.msra.mxu0 0.0
      %2051 = vmatprep.subr.mxu0 0.0
      %2052 = vmatpush2.msra.mxu0 0.0
      %2053 = vmatprep.subr.mxu0 0.0
      %2054 = vmatpush2.msra.mxu0 0.0
      %2055 = vmatprep.subr.mxu0 0.0
      %2056 = vmatpush2.msra.mxu0 0.0
      %2057 = vmatprep.subr.mxu0 0.0
      %2058 = vmatpush2.msra.mxu0 0.0
      %2059 = vmatprep.subr.mxu0 0.0
      %2060 = vmatpush2.msra.mxu0 0.0
      %2061 = vmatprep.subr.mxu0 0.0
      %2062 = vmatpush2.msra.mxu0 0.0
      %2063 = vmatprep.subr.mxu0 0.0
      %2064 = vmatpush2.msra.mxu0 0.0
      %2065 = vmatprep.subr.mxu0 0.0
      %2066 = vmatpush2.msra.mxu0 0.0
      %2067 = vmatprep.subr.mxu0 0.0
      %2068 = vmatpush2.msra.mxu0 0.0
      %2069 = vmatprep.mubr.f32.mxu0 0.0
      %2070 = vmatmul.mubr.f32.gmra.mxu0 %v1907
      %v2071 = vpop.f32.mrf.mxu0
      %v2072 = vadd.f32 0.0, %v2071
      %v2073 = vpop.f32.mrf.mxu0
      %2074 = vmatprep.mubr.f32.mxu0 0.0
      %2075 = vmatmul.mubr.f32.gmra.mxu0 %v1910
      %v2076 = vpop.f32.mrf.mxu0
      %v2077 = vadd.f32 0.0, %v2076
      %v2078 = vpop.f32.mrf.mxu0
      %2079 = vmatprep.mubr.f32.mxu0 0.0
      %2080 = vmatmul.mubr.f32.gmra.mxu0 %v1913
      %v2081 = vpop.f32.mrf.mxu0
      %v2082 = vadd.f32 0.0, %v2081
      %v2083 = vpop.f32.mrf.mxu0
      %2084 = vmatprep.mubr.f32.mxu0 0.0
      %2085 = vmatmul.mubr.f32.gmra.mxu0 %v1916
      %v2086 = vpop.f32.mrf.mxu0
      %v2087 = vadd.f32 0.0, %v2086
      %v2088 = vpop.f32.mrf.mxu0
      %2089 = vmatprep.mubr.f32.mxu0 0.0
      %2090 = vmatmul.mubr.f32.gmra.mxu0 %v1919
      %v2091 = vpop.f32.mrf.mxu0
      %v2092 = vadd.f32 0.0, %v2091
      %v2093 = vpop.f32.mrf.mxu0
      %2094 = vmatprep.mubr.f32.mxu0 0.0
      %2095 = vmatmul.mubr.f32.gmra.mxu0 %v1922
      %v2096 = vpop.f32.mrf.mxu0
      %v2097 = vadd.f32 0.0, %v2096
      %v2098 = vpop.f32.mrf.mxu0
      %2099 = vmatprep.mubr.f32.mxu0 0.0
      %2100 = vmatmul.mubr.f32.gmra.mxu0 %v1925
      %v2101 = vpop.f32.mrf.mxu0
      %v2102 = vadd.f32 0.0, %v2101
      %v2103 = vpop.f32.mrf.mxu0
      %2104 = vmatprep.mubr.f32.mxu0 0.0
      %2105 = vmatmul.mubr.f32.gmra.mxu0 %v1928
      %v2106 = vpop.f32.mrf.mxu0
      %v2107 = vadd.f32 0.0, %v2106
      %v2108 = vpop.f32.mrf.mxu0
      %2109 = vmatprep.mubr.f32.mxu0 0.0
      %2110 = vmatmul.mubr.f32.gmra.mxu0 %v1931
      %v2111 = vpop.f32.mrf.mxu0
      %v2112 = vadd.f32 0.0, %v2111
      %v2113 = vpop.f32.mrf.mxu0
      %2114 = vmatprep.mubr.f32.mxu0 0.0
      %2115 = vmatmul.mubr.f32.gmra.mxu0 %v1934
      %v2116 = vpop.f32.mrf.mxu0
      %v2117 = vadd.f32 0.0, %v2116
      %v2118 = vpop.f32.mrf.mxu0
      %2119 = vmatprep.mubr.f32.mxu0 0.0
      %2120 = vmatmul.mubr.f32.gmra.mxu0 %v1937
      %v2121 = vpop.f32.mrf.mxu0
      %v2122 = vadd.f32 0.0, %v2121
      %v2123 = vpop.f32.mrf.mxu0
      %2124 = vmatprep.mubr.f32.mxu0 0.0
      %2125 = vmatmul.mubr.f32.gmra.mxu0 %v1940
      %v2126 = vpop.f32.mrf.mxu0
      %v2127 = vadd.f32 0.0, %v2126
      %v2128 = vpop.f32.mrf.mxu0
      %2129 = vmatprep.mubr.f32.mxu0 0.0
      %2130 = vmatmul.mubr.f32.gmra.mxu0 %v1943
      %v2131 = vpop.f32.mrf.mxu0
      %v2132 = vadd.f32 0.0, %v2131
      %v2133 = vpop.f32.mrf.mxu0
      %2134 = vmatprep.mubr.f32.mxu0 0.0
      %2135 = vmatmul.mubr.f32.gmra.mxu0 %v1946
      %v2136 = vpop.f32.mrf.mxu0
      %v2137 = vadd.f32 0.0, %v2136
      %v2138 = vpop.f32.mrf.mxu0
      %2139 = vmatprep.mubr.f32.mxu0 0.0
      %2140 = vmatmul.mubr.f32.gmra.mxu0 %v1949
      %v2141 = vpop.f32.mrf.mxu0
      %v2142 = vadd.f32 0.0, %v2141
      %v2143 = vpop.f32.mrf.mxu0
      %2144 = vmatprep.mubr.f32.mxu0 0.0
      %2145 = vmatmul.mubr.f32.gmra.mxu0 %v1952
      %v2146 = vpop.f32.mrf.mxu0
      %v2147 = vadd.f32 0.0, %v2146
      %v2148 = vpop.f32.mrf.mxu0
      %2149 = vmatprep.mubr.f32.mxu0 0.0
      %2150 = vmatmul.mubr.f32.gmra.mxu0 %v1955
      %v2151 = vpop.f32.mrf.mxu0
      %v2152 = vadd.f32 0.0, %v2151
      %v2153 = vpop.f32.mrf.mxu0
      %2154 = vmatprep.mubr.f32.mxu0 0.0
      %2155 = vmatmul.mubr.f32.gmra.mxu0 %v1958
      %v2156 = vpop.f32.mrf.mxu0
      %v2157 = vadd.f32 0.0, %v2156
      %v2158 = vpop.f32.mrf.mxu0
      %2159 = vmatprep.mubr.f32.mxu0 0.0
      %2160 = vmatmul.mubr.f32.gmra.mxu0 %v1961
      %v2161 = vpop.f32.mrf.mxu0
      %v2162 = vadd.f32 0.0, %v2161
      %v2163 = vpop.f32.mrf.mxu0
      %2164 = vmatprep.mubr.f32.mxu0 0.0
      %2165 = vmatmul.mubr.f32.gmra.mxu0 %v1964
      %v2166 = vpop.f32.mrf.mxu0
      %v2167 = vadd.f32 0.0, %v2166
      %v2168 = vpop.f32.mrf.mxu0
      %2169 = vmatprep.mubr.f32.mxu0 0.0
      %2170 = vmatmul.mubr.f32.gmra.mxu0 %v1967
      %v2171 = vpop.f32.mrf.mxu0
      %v2172 = vadd.f32 0.0, %v2171
      %v2173 = vpop.f32.mrf.mxu0
      %2174 = vmatprep.mubr.f32.mxu0 0.0
      %2175 = vmatmul.mubr.f32.gmra.mxu0 %v1970
      %v2176 = vpop.f32.mrf.mxu0
      %v2177 = vadd.f32 0.0, %v2176
      %v2178 = vpop.f32.mrf.mxu0
      %2179 = vmatprep.mubr.f32.mxu0 0.0
      %2180 = vmatmul.mubr.f32.gmra.mxu0 %v1973
      %v2181 = vpop.f32.mrf.mxu0
      %v2182 = vadd.f32 0.0, %v2181
      %v2183 = vpop.f32.mrf.mxu0
      %2184 = vmatprep.mubr.f32.mxu0 0.0
      %2185 = vmatmul.mubr.f32.gmra.mxu0 %v1976
      %v2186 = vpop.f32.mrf.mxu0
      %v2187 = vadd.f32 0.0, %v2186
      %v2188 = vpop.f32.mrf.mxu0
      %2189 = vmatprep.mubr.f32.mxu0 0.0
      %2190 = vmatmul.mubr.f32.gmra.mxu0 %v1979
      %v2191 = vpop.f32.mrf.mxu0
      %v2192 = vadd.f32 0.0, %v2191
      %v2193 = vpop.f32.mrf.mxu0
      %2194 = vmatprep.mubr.f32.mxu0 0.0
      %2195 = vmatmul.mubr.f32.gmra.mxu0 %v1982
      %v2196 = vpop.f32.mrf.mxu0
      %v2197 = vadd.f32 0.0, %v2196
      %v2198 = vpop.f32.mrf.mxu0
      %2199 = vmatprep.mubr.f32.mxu0 0.0
      %2200 = vmatmul.mubr.f32.gmra.mxu0 %v1985
      %v2201 = vpop.f32.mrf.mxu0
      %v2202 = vadd.f32 0.0, %v2201
      %v2203 = vpop.f32.mrf.mxu0
      %2204 = vmatprep.mubr.f32.mxu0 0.0
      %2205 = vmatmul.mubr.f32.gmra.mxu0 %v1988
      %v2206 = vpop.f32.mrf.mxu0
      %v2207 = vadd.f32 0.0, %v2206
      %v2208 = vpop.f32.mrf.mxu0
      %2209 = vmatprep.mubr.f32.mxu0 0.0
      %2210 = vmatmul.mubr.f32.gmra.mxu0 %v1991
      %v2211 = vpop.f32.mrf.mxu0
      %v2212 = vadd.f32 0.0, %v2211
      %v2213 = vpop.f32.mrf.mxu0
      %2214 = vmatprep.mubr.f32.mxu0 0.0
      %2215 = vmatmul.mubr.f32.gmra.mxu0 %v1994
      %v2216 = vpop.f32.mrf.mxu0
      %v2217 = vadd.f32 0.0, %v2216
      %v2218 = vpop.f32.mrf.mxu0
      %2219 = vmatprep.mubr.f32.mxu0 0.0
      %2220 = vmatmul.mubr.f32.gmra.mxu0 %v1997
      %v2221 = vpop.f32.mrf.mxu0
      %v2222 = vadd.f32 0.0, %v2221
      %v2223 = vpop.f32.mrf.mxu0
      %2224 = vmatprep.mubr.f32.mxu0 0.0
      %2225 = vmatmul.mubr.f32.gmra.mxu0 %v2000
      %v2226 = vpop.f32.mrf.mxu0
      %v2227 = vadd.f32 0.0, %v2226
      %v2228 = vpop.f32.mrf.mxu0
      %2229 = vdwg.mxu0
      %v2230 = vadd.f32 %v1841, %v2072
      %v2231 = vadd.f32 %v1842, %v2077
      %v2232 = vadd.f32 %v1843, %v2082
      %v2233 = vadd.f32 %v1844, %v2087
      %v2234 = vadd.f32 %v1845, %v2092
      %v2235 = vadd.f32 %v1846, %v2097
      %v2236 = vadd.f32 %v1847, %v2102
      %v2237 = vadd.f32 %v1848, %v2107
      %v2238 = vadd.f32 %v1849, %v2112
      %v2239 = vadd.f32 %v1850, %v2117
      %v2240 = vadd.f32 %v1851, %v2122
      %v2241 = vadd.f32 %v1852, %v2127
      %v2242 = vadd.f32 %v1853, %v2132
      %v2243 = vadd.f32 %v1854, %v2137
      %v2244 = vadd.f32 %v1855, %v2142
      %v2245 = vadd.f32 %v1856, %v2147
      %v2246 = vadd.f32 %v1857, %v2152
      %v2247 = vadd.f32 %v1858, %v2157
      %v2248 = vadd.f32 %v1859, %v2162
      %v2249 = vadd.f32 %v1860, %v2167
      %v2250 = vadd.f32 %v1861, %v2172
      %v2251 = vadd.f32 %v1862, %v2177
      %v2252 = vadd.f32 %v1863, %v2182
      %v2253 = vadd.f32 %v1864, %v2187
      %v2254 = vadd.f32 %v1865, %v2192
      %v2255 = vadd.f32 %v1866, %v2197
      %v2256 = vadd.f32 %v1867, %v2202
      %v2257 = vadd.f32 %v1868, %v2207
      %v2258 = vadd.f32 %v1869, %v2212
      %v2259 = vadd.f32 %v1870, %v2217
      %v2260 = vadd.f32 %v1871, %v2222
      %v2261 = vadd.f32 %v1872, %v2227
      %v2262 = vld [vmem:[%s1483 + $0x2] sm:$0xff]
      %v2263 = vld [vmem:[%s1483 + $0xa] sm:$0xff]
      %v2264 = vld [vmem:[%s1483 + $0x1a] sm:$0xff]
      %v2265 = vld [vmem:[%s1483 + $0x22] sm:$0xff]
      %v2266 = vld [vmem:[%s1483 + $0x32] sm:$0xff]
      %v2267 = vld [vmem:[%s1483 + $0x3a] sm:$0xff]
      %v2268 = vld [vmem:[%s1483 + $0x4a] sm:$0xff]
      %v2269 = vld [vmem:[%s1483 + $0x52] sm:$0xff]
      %v2270 = vld [vmem:[%s1483 + $0x62] sm:$0xff]
      %v2271 = vld [vmem:[%s1483 + $0x6a] sm:$0xff]
      %v2272 = vld [vmem:[%s1483 + $0x7a] sm:$0xff]
      %v2273 = vld [vmem:[%s1483 + $0x82] sm:$0xff]
      %v2274 = vld [vmem:[%s1483 + $0x92] sm:$0xff]
      %v2275 = vld [vmem:[%s1483 + $0x9a] sm:$0xff]
      %v2276 = vld [vmem:[%s1483 + $0xaa] sm:$0xff]
      %v2277 = vld [vmem:[%s1483 + $0xb2] sm:$0xff]
      %v2278 = vld [vmem:[%s1483 + $0xc2] sm:$0xff]
      %v2279 = vld [vmem:[%s1483 + $0xca] sm:$0xff]
      %v2280 = vld [vmem:[%s1483 + $0xda] sm:$0xff]
      %v2281 = vld [vmem:[%s1483 + $0xe2] sm:$0xff]
      %v2282 = vld [vmem:[%s1483 + $0xf2] sm:$0xff]
      %v2283 = vld [vmem:[%s1483 + $0xfa] sm:$0xff]
      %v2284 = vld [vmem:[%s1483 + $0x10a] sm:$0xff]
      %v2285 = vld [vmem:[%s1483 + $0x112] sm:$0xff]
      %v2286 = vld [vmem:[%s1483 + $0x122] sm:$0xff]
      %v2287 = vld [vmem:[%s1483 + $0x12a] sm:$0xff]
      %v2288 = vld [vmem:[%s1483 + $0x13a] sm:$0xff]
      %v2289 = vld [vmem:[%s1483 + $0x142] sm:$0xff]
      %v2290 = vld [vmem:[%s1483 + $0x152] sm:$0xff]
      %v2291 = vld [vmem:[%s1483 + $0x15a] sm:$0xff]
      %v2292 = vld [vmem:[%s1483 + $0x16a] sm:$0xff]
      %v2293 = vld [vmem:[%s1483 + $0x172] sm:$0xff]
      %v2294 = vld [vmem:[%s248 + $0x14] sm:$0xf]
      %v2296 = vsel %vm444, %v2262, 0
      %v2299 = vsel %vm444, %v2263, 0
      %v2302 = vsel %vm444, %v2264, 0
      %v2305 = vsel %vm444, %v2265, 0
      %v2308 = vsel %vm444, %v2266, 0
      %v2311 = vsel %vm444, %v2267, 0
      %v2314 = vsel %vm444, %v2268, 0
      %v2317 = vsel %vm444, %v2269, 0
      %v2320 = vsel %vm444, %v2270, 0
      %v2323 = vsel %vm444, %v2271, 0
      %v2326 = vsel %vm444, %v2272, 0
      %v2329 = vsel %vm444, %v2273, 0
      %v2332 = vsel %vm444, %v2274, 0
      %v2335 = vsel %vm444, %v2275, 0
      %v2338 = vsel %vm444, %v2276, 0
      %v2341 = vsel %vm444, %v2277, 0
      %v2344 = vsel %vm444, %v2278, 0
      %v2347 = vsel %vm444, %v2279, 0
      %v2350 = vsel %vm444, %v2280, 0
      %v2353 = vsel %vm444, %v2281, 0
      %v2356 = vsel %vm444, %v2282, 0
      %v2359 = vsel %vm444, %v2283, 0
      %v2362 = vsel %vm444, %v2284, 0
      %v2365 = vsel %vm444, %v2285, 0
      %v2368 = vsel %vm444, %v2286, 0
      %v2371 = vsel %vm444, %v2287, 0
      %v2374 = vsel %vm444, %v2288, 0
      %v2377 = vsel %vm444, %v2289, 0
      %v2380 = vsel %vm444, %v2290, 0
      %v2383 = vsel %vm444, %v2291, 0
      %v2386 = vsel %vm444, %v2292, 0
      %v2389 = vsel %vm444, %v2293, 0
      %v2392 = vsel %vm541, %v2294, 0
      %2394 = vmatprep.subr.mxu0 0.0
      %2395 = vmatpush1.msra.mxu0 0.0
      %2396 = vmatprep.subr.mxu0 0.0
      %2397 = vmatpush1.msra.mxu0 0.0
      %2398 = vmatprep.subr.mxu0 0.0
      %2399 = vmatpush1.msra.mxu0 0.0
      %2400 = vmatprep.subr.mxu0 0.0
      %2401 = vmatpush1.msra.mxu0 0.0
      %2402 = vmatprep.subr.mxu0 0.0
      %2403 = vmatpush1.msra.mxu0 0.0
      %2404 = vmatprep.subr.mxu0 0.0
      %2405 = vmatpush1.msra.mxu0 0.0
      %2406 = vmatprep.subr.mxu0 0.0
      %2407 = vmatpush1.msra.mxu0 0.0
      %2408 = vmatprep.subr.mxu0 0.0
      %2409 = vmatpush1.msra.mxu0 0.0
      %2410 = vmatprep.subr.mxu0 0.0
      %2411 = vmatpush1.msra.mxu0 0.0
      %2412 = vmatprep.subr.mxu0 0.0
      %2413 = vmatpush1.msra.mxu0 0.0
      %2414 = vmatprep.subr.mxu0 0.0
      %2415 = vmatpush1.msra.mxu0 0.0
      %2416 = vmatprep.subr.mxu0 0.0
      %2417 = vmatpush1.msra.mxu0 0.0
      %2418 = vmatprep.subr.mxu0 0.0
      %2419 = vmatpush1.msra.mxu0 0.0
      %2420 = vmatprep.subr.mxu0 0.0
      %2421 = vmatpush1.msra.mxu0 0.0
      %2422 = vmatprep.subr.mxu0 0.0
      %2423 = vmatpush1.msra.mxu0 0.0
      %2424 = vmatprep.subr.mxu0 0.0
      %2425 = vmatpush1.msra.mxu0 %v2392
      %2426 = vmatprep.subr.mxu0 0.0
      %2427 = vmatpush2.msra.mxu0 0.0
      %2428 = vmatprep.subr.mxu0 0.0
      %2429 = vmatpush2.msra.mxu0 0.0
      %2430 = vmatprep.subr.mxu0 0.0
      %2431 = vmatpush2.msra.mxu0 0.0
      %2432 = vmatprep.subr.mxu0 0.0
      %2433 = vmatpush2.msra.mxu0 0.0
      %2434 = vmatprep.subr.mxu0 0.0
      %2435 = vmatpush2.msra.mxu0 0.0
      %2436 = vmatprep.subr.mxu0 0.0
      %2437 = vmatpush2.msra.mxu0 0.0
      %2438 = vmatprep.subr.mxu0 0.0
      %2439 = vmatpush2.msra.mxu0 0.0
      %2440 = vmatprep.subr.mxu0 0.0
      %2441 = vmatpush2.msra.mxu0 0.0
      %2442 = vmatprep.subr.mxu0 0.0
      %2443 = vmatpush2.msra.mxu0 0.0
      %2444 = vmatprep.subr.mxu0 0.0
      %2445 = vmatpush2.msra.mxu0 0.0
      %2446 = vmatprep.subr.mxu0 0.0
      %2447 = vmatpush2.msra.mxu0 0.0
      %2448 = vmatprep.subr.mxu0 0.0
      %2449 = vmatpush2.msra.mxu0 0.0
      %2450 = vmatprep.subr.mxu0 0.0
      %2451 = vmatpush2.msra.mxu0 0.0
      %2452 = vmatprep.subr.mxu0 0.0
      %2453 = vmatpush2.msra.mxu0 0.0
      %2454 = vmatprep.subr.mxu0 0.0
      %2455 = vmatpush2.msra.mxu0 0.0
      %2456 = vmatprep.subr.mxu0 0.0
      %2457 = vmatpush2.msra.mxu0 0.0
      %2458 = vmatprep.mubr.f32.mxu0 0.0
      %2459 = vmatmul.mubr.f32.gmra.mxu0 %v2296
      %v2460 = vpop.f32.mrf.mxu0
      %v2461 = vadd.f32 0.0, %v2460
      %v2462 = vpop.f32.mrf.mxu0
      %2463 = vmatprep.mubr.f32.mxu0 0.0
      %2464 = vmatmul.mubr.f32.gmra.mxu0 %v2299
      %v2465 = vpop.f32.mrf.mxu0
      %v2466 = vadd.f32 0.0, %v2465
      %v2467 = vpop.f32.mrf.mxu0
      %2468 = vmatprep.mubr.f32.mxu0 0.0
      %2469 = vmatmul.mubr.f32.gmra.mxu0 %v2302
      %v2470 = vpop.f32.mrf.mxu0
      %v2471 = vadd.f32 0.0, %v2470
      %v2472 = vpop.f32.mrf.mxu0
      %2473 = vmatprep.mubr.f32.mxu0 0.0
      %2474 = vmatmul.mubr.f32.gmra.mxu0 %v2305
      %v2475 = vpop.f32.mrf.mxu0
      %v2476 = vadd.f32 0.0, %v2475
      %v2477 = vpop.f32.mrf.mxu0
      %2478 = vmatprep.mubr.f32.mxu0 0.0
      %2479 = vmatmul.mubr.f32.gmra.mxu0 %v2308
      %v2480 = vpop.f32.mrf.mxu0
      %v2481 = vadd.f32 0.0, %v2480
      %v2482 = vpop.f32.mrf.mxu0
      %2483 = vmatprep.mubr.f32.mxu0 0.0
      %2484 = vmatmul.mubr.f32.gmra.mxu0 %v2311
      %v2485 = vpop.f32.mrf.mxu0
      %v2486 = vadd.f32 0.0, %v2485
      %v2487 = vpop.f32.mrf.mxu0
      %2488 = vmatprep.mubr.f32.mxu0 0.0
      %2489 = vmatmul.mubr.f32.gmra.mxu0 %v2314
      %v2490 = vpop.f32.mrf.mxu0
      %v2491 = vadd.f32 0.0, %v2490
      %v2492 = vpop.f32.mrf.mxu0
      %2493 = vmatprep.mubr.f32.mxu0 0.0
      %2494 = vmatmul.mubr.f32.gmra.mxu0 %v2317
      %v2495 = vpop.f32.mrf.mxu0
      %v2496 = vadd.f32 0.0, %v2495
      %v2497 = vpop.f32.mrf.mxu0
      %2498 = vmatprep.mubr.f32.mxu0 0.0
      %2499 = vmatmul.mubr.f32.gmra.mxu0 %v2320
      %v2500 = vpop.f32.mrf.mxu0
      %v2501 = vadd.f32 0.0, %v2500
      %v2502 = vpop.f32.mrf.mxu0
      %2503 = vmatprep.mubr.f32.mxu0 0.0
      %2504 = vmatmul.mubr.f32.gmra.mxu0 %v2323
      %v2505 = vpop.f32.mrf.mxu0
      %v2506 = vadd.f32 0.0, %v2505
      %v2507 = vpop.f32.mrf.mxu0
      %2508 = vmatprep.mubr.f32.mxu0 0.0
      %2509 = vmatmul.mubr.f32.gmra.mxu0 %v2326
      %v2510 = vpop.f32.mrf.mxu0
      %v2511 = vadd.f32 0.0, %v2510
      %v2512 = vpop.f32.mrf.mxu0
      %2513 = vmatprep.mubr.f32.mxu0 0.0
      %2514 = vmatmul.mubr.f32.gmra.mxu0 %v2329
      %v2515 = vpop.f32.mrf.mxu0
      %v2516 = vadd.f32 0.0, %v2515
      %v2517 = vpop.f32.mrf.mxu0
      %2518 = vmatprep.mubr.f32.mxu0 0.0
      %2519 = vmatmul.mubr.f32.gmra.mxu0 %v2332
      %v2520 = vpop.f32.mrf.mxu0
      %v2521 = vadd.f32 0.0, %v2520
      %v2522 = vpop.f32.mrf.mxu0
      %2523 = vmatprep.mubr.f32.mxu0 0.0
      %2524 = vmatmul.mubr.f32.gmra.mxu0 %v2335
      %v2525 = vpop.f32.mrf.mxu0
      %v2526 = vadd.f32 0.0, %v2525
      %v2527 = vpop.f32.mrf.mxu0
      %2528 = vmatprep.mubr.f32.mxu0 0.0
      %2529 = vmatmul.mubr.f32.gmra.mxu0 %v2338
      %v2530 = vpop.f32.mrf.mxu0
      %v2531 = vadd.f32 0.0, %v2530
      %v2532 = vpop.f32.mrf.mxu0
      %2533 = vmatprep.mubr.f32.mxu0 0.0
      %2534 = vmatmul.mubr.f32.gmra.mxu0 %v2341
      %v2535 = vpop.f32.mrf.mxu0
      %v2536 = vadd.f32 0.0, %v2535
      %v2537 = vpop.f32.mrf.mxu0
      %2538 = vmatprep.mubr.f32.mxu0 0.0
      %2539 = vmatmul.mubr.f32.gmra.mxu0 %v2344
      %v2540 = vpop.f32.mrf.mxu0
      %v2541 = vadd.f32 0.0, %v2540
      %v2542 = vpop.f32.mrf.mxu0
      %2543 = vmatprep.mubr.f32.mxu0 0.0
      %2544 = vmatmul.mubr.f32.gmra.mxu0 %v2347
      %v2545 = vpop.f32.mrf.mxu0
      %v2546 = vadd.f32 0.0, %v2545
      %v2547 = vpop.f32.mrf.mxu0
      %2548 = vmatprep.mubr.f32.mxu0 0.0
      %2549 = vmatmul.mubr.f32.gmra.mxu0 %v2350
      %v2550 = vpop.f32.mrf.mxu0
      %v2551 = vadd.f32 0.0, %v2550
      %v2552 = vpop.f32.mrf.mxu0
      %2553 = vmatprep.mubr.f32.mxu0 0.0
      %2554 = vmatmul.mubr.f32.gmra.mxu0 %v2353
      %v2555 = vpop.f32.mrf.mxu0
      %v2556 = vadd.f32 0.0, %v2555
      %v2557 = vpop.f32.mrf.mxu0
      %2558 = vmatprep.mubr.f32.mxu0 0.0
      %2559 = vmatmul.mubr.f32.gmra.mxu0 %v2356
      %v2560 = vpop.f32.mrf.mxu0
      %v2561 = vadd.f32 0.0, %v2560
      %v2562 = vpop.f32.mrf.mxu0
      %2563 = vmatprep.mubr.f32.mxu0 0.0
      %2564 = vmatmul.mubr.f32.gmra.mxu0 %v2359
      %v2565 = vpop.f32.mrf.mxu0
      %v2566 = vadd.f32 0.0, %v2565
      %v2567 = vpop.f32.mrf.mxu0
      %2568 = vmatprep.mubr.f32.mxu0 0.0
      %2569 = vmatmul.mubr.f32.gmra.mxu0 %v2362
      %v2570 = vpop.f32.mrf.mxu0
      %v2571 = vadd.f32 0.0, %v2570
      %v2572 = vpop.f32.mrf.mxu0
      %2573 = vmatprep.mubr.f32.mxu0 0.0
      %2574 = vmatmul.mubr.f32.gmra.mxu0 %v2365
      %v2575 = vpop.f32.mrf.mxu0
      %v2576 = vadd.f32 0.0, %v2575
      %v2577 = vpop.f32.mrf.mxu0
      %2578 = vmatprep.mubr.f32.mxu0 0.0
      %2579 = vmatmul.mubr.f32.gmra.mxu0 %v2368
      %v2580 = vpop.f32.mrf.mxu0
      %v2581 = vadd.f32 0.0, %v2580
      %v2582 = vpop.f32.mrf.mxu0
      %2583 = vmatprep.mubr.f32.mxu0 0.0
      %2584 = vmatmul.mubr.f32.gmra.mxu0 %v2371
      %v2585 = vpop.f32.mrf.mxu0
      %v2586 = vadd.f32 0.0, %v2585
      %v2587 = vpop.f32.mrf.mxu0
      %2588 = vmatprep.mubr.f32.mxu0 0.0
      %2589 = vmatmul.mubr.f32.gmra.mxu0 %v2374
      %v2590 = vpop.f32.mrf.mxu0
      %v2591 = vadd.f32 0.0, %v2590
      %v2592 = vpop.f32.mrf.mxu0
      %2593 = vmatprep.mubr.f32.mxu0 0.0
      %2594 = vmatmul.mubr.f32.gmra.mxu0 %v2377
      %v2595 = vpop.f32.mrf.mxu0
      %v2596 = vadd.f32 0.0, %v2595
      %v2597 = vpop.f32.mrf.mxu0
      %2598 = vmatprep.mubr.f32.mxu0 0.0
      %2599 = vmatmul.mubr.f32.gmra.mxu0 %v2380
      %v2600 = vpop.f32.mrf.mxu0
      %v2601 = vadd.f32 0.0, %v2600
      %v2602 = vpop.f32.mrf.mxu0
      %2603 = vmatprep.mubr.f32.mxu0 0.0
      %2604 = vmatmul.mubr.f32.gmra.mxu0 %v2383
      %v2605 = vpop.f32.mrf.mxu0
      %v2606 = vadd.f32 0.0, %v2605
      %v2607 = vpop.f32.mrf.mxu0
      %2608 = vmatprep.mubr.f32.mxu0 0.0
      %2609 = vmatmul.mubr.f32.gmra.mxu0 %v2386
      %v2610 = vpop.f32.mrf.mxu0
      %v2611 = vadd.f32 0.0, %v2610
      %v2612 = vpop.f32.mrf.mxu0
      %2613 = vmatprep.mubr.f32.mxu0 0.0
      %2614 = vmatmul.mubr.f32.gmra.mxu0 %v2389
      %v2615 = vpop.f32.mrf.mxu0
      %v2616 = vadd.f32 0.0, %v2615
      %v2617 = vpop.f32.mrf.mxu0
      %2618 = vdwg.mxu0
      %v2619 = vadd.f32 %v2230, %v2461
      %v2620 = vadd.f32 %v2231, %v2466
      %v2621 = vadd.f32 %v2232, %v2471
      %v2622 = vadd.f32 %v2233, %v2476
      %v2623 = vadd.f32 %v2234, %v2481
      %v2624 = vadd.f32 %v2235, %v2486
      %v2625 = vadd.f32 %v2236, %v2491
      %v2626 = vadd.f32 %v2237, %v2496
      %v2627 = vadd.f32 %v2238, %v2501
      %v2628 = vadd.f32 %v2239, %v2506
      %v2629 = vadd.f32 %v2240, %v2511
      %v2630 = vadd.f32 %v2241, %v2516
      %v2631 = vadd.f32 %v2242, %v2521
      %v2632 = vadd.f32 %v2243, %v2526
      %v2633 = vadd.f32 %v2244, %v2531
      %v2634 = vadd.f32 %v2245, %v2536
      %v2635 = vadd.f32 %v2246, %v2541
      %v2636 = vadd.f32 %v2247, %v2546
      %v2637 = vadd.f32 %v2248, %v2551
      %v2638 = vadd.f32 %v2249, %v2556
      %v2639 = vadd.f32 %v2250, %v2561
      %v2640 = vadd.f32 %v2251, %v2566
      %v2641 = vadd.f32 %v2252, %v2571
      %v2642 = vadd.f32 %v2253, %v2576
      %v2643 = vadd.f32 %v2254, %v2581
      %v2644 = vadd.f32 %v2255, %v2586
      %v2645 = vadd.f32 %v2256, %v2591
      %v2646 = vadd.f32 %v2257, %v2596
      %v2647 = vadd.f32 %v2258, %v2601
      %v2648 = vadd.f32 %v2259, %v2606
      %v2649 = vadd.f32 %v2260, %v2611
      %v2650 = vadd.f32 %v2261, %v2616
      %s2651 = scalar_lea.vmem [#allocation2], 48
      %v2652 = vld [vmem:[%s2651] sm:$0xff]
      %v2653 = vld [vmem:[%s2651 + $0x8] sm:$0xff]
      %v2654 = vld [vmem:[%s2651 + $0x18] sm:$0xff]
      %v2655 = vld [vmem:[%s2651 + $0x20] sm:$0xff]
      %v2656 = vld [vmem:[%s2651 + $0x30] sm:$0xff]
      %v2657 = vld [vmem:[%s2651 + $0x38] sm:$0xff]
      %v2658 = vld [vmem:[%s2651 + $0x48] sm:$0xff]
      %v2659 = vld [vmem:[%s2651 + $0x50] sm:$0xff]
      %v2660 = vld [vmem:[%s2651 + $0x60] sm:$0xff]
      %v2661 = vld [vmem:[%s2651 + $0x68] sm:$0xff]
      %v2662 = vld [vmem:[%s2651 + $0x78] sm:$0xff]
      %v2663 = vld [vmem:[%s2651 + $0x80] sm:$0xff]
      %v2664 = vld [vmem:[%s2651 + $0x90] sm:$0xff]
      %v2665 = vld [vmem:[%s2651 + $0x98] sm:$0xff]
      %v2666 = vld [vmem:[%s2651 + $0xa8] sm:$0xff]
      %v2667 = vld [vmem:[%s2651 + $0xb0] sm:$0xff]
      %v2668 = vld [vmem:[%s2651 + $0xc0] sm:$0xff]
      %v2669 = vld [vmem:[%s2651 + $0xc8] sm:$0xff]
      %v2670 = vld [vmem:[%s2651 + $0xd8] sm:$0xff]
      %v2671 = vld [vmem:[%s2651 + $0xe0] sm:$0xff]
      %v2672 = vld [vmem:[%s2651 + $0xf0] sm:$0xff]
      %v2673 = vld [vmem:[%s2651 + $0xf8] sm:$0xff]
      %v2674 = vld [vmem:[%s2651 + $0x108] sm:$0xff]
      %v2675 = vld [vmem:[%s2651 + $0x110] sm:$0xff]
      %v2676 = vld [vmem:[%s2651 + $0x120] sm:$0xff]
      %v2677 = vld [vmem:[%s2651 + $0x128] sm:$0xff]
      %v2678 = vld [vmem:[%s2651 + $0x138] sm:$0xff]
      %v2679 = vld [vmem:[%s2651 + $0x140] sm:$0xff]
      %v2680 = vld [vmem:[%s2651 + $0x150] sm:$0xff]
      %v2681 = vld [vmem:[%s2651 + $0x158] sm:$0xff]
      %v2682 = vld [vmem:[%s2651 + $0x168] sm:$0xff]
      %v2683 = vld [vmem:[%s2651 + $0x170] sm:$0xff]
      %v2684 = vld [vmem:[%s248 + $0x18] sm:$0xf]
      %v2686 = vsel %vm444, %v2652, 0
      %v2689 = vsel %vm444, %v2653, 0
      %v2692 = vsel %vm444, %v2654, 0
      %v2695 = vsel %vm444, %v2655, 0
      %v2698 = vsel %vm444, %v2656, 0
      %v2701 = vsel %vm444, %v2657, 0
      %v2704 = vsel %vm444, %v2658, 0
      %v2707 = vsel %vm444, %v2659, 0
      %v2710 = vsel %vm444, %v2660, 0
      %v2713 = vsel %vm444, %v2661, 0
      %v2716 = vsel %vm444, %v2662, 0
      %v2719 = vsel %vm444, %v2663, 0
      %v2722 = vsel %vm444, %v2664, 0
      %v2725 = vsel %vm444, %v2665, 0
      %v2728 = vsel %vm444, %v2666, 0
      %v2731 = vsel %vm444, %v2667, 0
      %v2734 = vsel %vm444, %v2668, 0
      %v2737 = vsel %vm444, %v2669, 0
      %v2740 = vsel %vm444, %v2670, 0
      %v2743 = vsel %vm444, %v2671, 0
      %v2746 = vsel %vm444, %v2672, 0
      %v2749 = vsel %vm444, %v2673, 0
      %v2752 = vsel %vm444, %v2674, 0
      %v2755 = vsel %vm444, %v2675, 0
      %v2758 = vsel %vm444, %v2676, 0
      %v2761 = vsel %vm444, %v2677, 0
      %v2764 = vsel %vm444, %v2678, 0
      %v2767 = vsel %vm444, %v2679, 0
      %v2770 = vsel %vm444, %v2680, 0
      %v2773 = vsel %vm444, %v2681, 0
      %v2776 = vsel %vm444, %v2682, 0
      %v2779 = vsel %vm444, %v2683, 0
      %v2782 = vsel %vm541, %v2684, 0
      %2784 = vmatprep.subr.mxu0 0.0
      %2785 = vmatpush1.msra.mxu0 0.0
      %2786 = vmatprep.subr.mxu0 0.0
      %2787 = vmatpush1.msra.mxu0 0.0
      %2788 = vmatprep.subr.mxu0 0.0
      %2789 = vmatpush1.msra.mxu0 0.0
      %2790 = vmatprep.subr.mxu0 0.0
      %2791 = vmatpush1.msra.mxu0 0.0
      %2792 = vmatprep.subr.mxu0 0.0
      %2793 = vmatpush1.msra.mxu0 0.0
      %2794 = vmatprep.subr.mxu0 0.0
      %2795 = vmatpush1.msra.mxu0 0.0
      %2796 = vmatprep.subr.mxu0 0.0
      %2797 = vmatpush1.msra.mxu0 0.0
      %2798 = vmatprep.subr.mxu0 0.0
      %2799 = vmatpush1.msra.mxu0 0.0
      %2800 = vmatprep.subr.mxu0 0.0
      %2801 = vmatpush1.msra.mxu0 0.0
      %2802 = vmatprep.subr.mxu0 0.0
      %2803 = vmatpush1.msra.mxu0 0.0
      %2804 = vmatprep.subr.mxu0 0.0
      %2805 = vmatpush1.msra.mxu0 0.0
      %2806 = vmatprep.subr.mxu0 0.0
      %2807 = vmatpush1.msra.mxu0 0.0
      %2808 = vmatprep.subr.mxu0 0.0
      %2809 = vmatpush1.msra.mxu0 0.0
      %2810 = vmatprep.subr.mxu0 0.0
      %2811 = vmatpush1.msra.mxu0 0.0
      %2812 = vmatprep.subr.mxu0 0.0
      %2813 = vmatpush1.msra.mxu0 0.0
      %2814 = vmatprep.subr.mxu0 0.0
      %2815 = vmatpush1.msra.mxu0 %v2782
      %2816 = vmatprep.subr.mxu0 0.0
      %2817 = vmatpush2.msra.mxu0 0.0
      %2818 = vmatprep.subr.mxu0 0.0
      %2819 = vmatpush2.msra.mxu0 0.0
      %2820 = vmatprep.subr.mxu0 0.0
      %2821 = vmatpush2.msra.mxu0 0.0
      %2822 = vmatprep.subr.mxu0 0.0
      %2823 = vmatpush2.msra.mxu0 0.0
      %2824 = vmatprep.subr.mxu0 0.0
      %2825 = vmatpush2.msra.mxu0 0.0
      %2826 = vmatprep.subr.mxu0 0.0
      %2827 = vmatpush2.msra.mxu0 0.0
      %2828 = vmatprep.subr.mxu0 0.0
      %2829 = vmatpush2.msra.mxu0 0.0
      %2830 = vmatprep.subr.mxu0 0.0
      %2831 = vmatpush2.msra.mxu0 0.0
      %2832 = vmatprep.subr.mxu0 0.0
      %2833 = vmatpush2.msra.mxu0 0.0
      %2834 = vmatprep.subr.mxu0 0.0
      %2835 = vmatpush2.msra.mxu0 0.0
      %2836 = vmatprep.subr.mxu0 0.0
      %2837 = vmatpush2.msra.mxu0 0.0
      %2838 = vmatprep.subr.mxu0 0.0
      %2839 = vmatpush2.msra.mxu0 0.0
      %2840 = vmatprep.subr.mxu0 0.0
      %2841 = vmatpush2.msra.mxu0 0.0
      %2842 = vmatprep.subr.mxu0 0.0
      %2843 = vmatpush2.msra.mxu0 0.0
      %2844 = vmatprep.subr.mxu0 0.0
      %2845 = vmatpush2.msra.mxu0 0.0
      %2846 = vmatprep.subr.mxu0 0.0
      %2847 = vmatpush2.msra.mxu0 0.0
      %2848 = vmatprep.mubr.f32.mxu0 0.0
      %2849 = vmatmul.mubr.f32.gmra.mxu0 %v2686
      %v2850 = vpop.f32.mrf.mxu0
      %v2851 = vadd.f32 0.0, %v2850
      %v2852 = vpop.f32.mrf.mxu0
      %2853 = vmatprep.mubr.f32.mxu0 0.0
      %2854 = vmatmul.mubr.f32.gmra.mxu0 %v2689
      %v2855 = vpop.f32.mrf.mxu0
      %v2856 = vadd.f32 0.0, %v2855
      %v2857 = vpop.f32.mrf.mxu0
      %2858 = vmatprep.mubr.f32.mxu0 0.0
      %2859 = vmatmul.mubr.f32.gmra.mxu0 %v2692
      %v2860 = vpop.f32.mrf.mxu0
      %v2861 = vadd.f32 0.0, %v2860
      %v2862 = vpop.f32.mrf.mxu0
      %2863 = vmatprep.mubr.f32.mxu0 0.0
      %2864 = vmatmul.mubr.f32.gmra.mxu0 %v2695
      %v2865 = vpop.f32.mrf.mxu0
      %v2866 = vadd.f32 0.0, %v2865
      %v2867 = vpop.f32.mrf.mxu0
      %2868 = vmatprep.mubr.f32.mxu0 0.0
      %2869 = vmatmul.mubr.f32.gmra.mxu0 %v2698
      %v2870 = vpop.f32.mrf.mxu0
      %v2871 = vadd.f32 0.0, %v2870
      %v2872 = vpop.f32.mrf.mxu0
      %2873 = vmatprep.mubr.f32.mxu0 0.0
      %2874 = vmatmul.mubr.f32.gmra.mxu0 %v2701
      %v2875 = vpop.f32.mrf.mxu0
      %v2876 = vadd.f32 0.0, %v2875
      %v2877 = vpop.f32.mrf.mxu0
      %2878 = vmatprep.mubr.f32.mxu0 0.0
      %2879 = vmatmul.mubr.f32.gmra.mxu0 %v2704
      %v2880 = vpop.f32.mrf.mxu0
      %v2881 = vadd.f32 0.0, %v2880
      %v2882 = vpop.f32.mrf.mxu0
      %2883 = vmatprep.mubr.f32.mxu0 0.0
      %2884 = vmatmul.mubr.f32.gmra.mxu0 %v2707
      %v2885 = vpop.f32.mrf.mxu0
      %v2886 = vadd.f32 0.0, %v2885
      %v2887 = vpop.f32.mrf.mxu0
      %2888 = vmatprep.mubr.f32.mxu0 0.0
      %2889 = vmatmul.mubr.f32.gmra.mxu0 %v2710
      %v2890 = vpop.f32.mrf.mxu0
      %v2891 = vadd.f32 0.0, %v2890
      %v2892 = vpop.f32.mrf.mxu0
      %2893 = vmatprep.mubr.f32.mxu0 0.0
      %2894 = vmatmul.mubr.f32.gmra.mxu0 %v2713
      %v2895 = vpop.f32.mrf.mxu0
      %v2896 = vadd.f32 0.0, %v2895
      %v2897 = vpop.f32.mrf.mxu0
      %2898 = vmatprep.mubr.f32.mxu0 0.0
      %2899 = vmatmul.mubr.f32.gmra.mxu0 %v2716
      %v2900 = vpop.f32.mrf.mxu0
      %v2901 = vadd.f32 0.0, %v2900
      %v2902 = vpop.f32.mrf.mxu0
      %2903 = vmatprep.mubr.f32.mxu0 0.0
      %2904 = vmatmul.mubr.f32.gmra.mxu0 %v2719
      %v2905 = vpop.f32.mrf.mxu0
      %v2906 = vadd.f32 0.0, %v2905
      %v2907 = vpop.f32.mrf.mxu0
      %2908 = vmatprep.mubr.f32.mxu0 0.0
      %2909 = vmatmul.mubr.f32.gmra.mxu0 %v2722
      %v2910 = vpop.f32.mrf.mxu0
      %v2911 = vadd.f32 0.0, %v2910
      %v2912 = vpop.f32.mrf.mxu0
      %2913 = vmatprep.mubr.f32.mxu0 0.0
      %2914 = vmatmul.mubr.f32.gmra.mxu0 %v2725
      %v2915 = vpop.f32.mrf.mxu0
      %v2916 = vadd.f32 0.0, %v2915
      %v2917 = vpop.f32.mrf.mxu0
      %2918 = vmatprep.mubr.f32.mxu0 0.0
      %2919 = vmatmul.mubr.f32.gmra.mxu0 %v2728
      %v2920 = vpop.f32.mrf.mxu0
      %v2921 = vadd.f32 0.0, %v2920
      %v2922 = vpop.f32.mrf.mxu0
      %2923 = vmatprep.mubr.f32.mxu0 0.0
      %2924 = vmatmul.mubr.f32.gmra.mxu0 %v2731
      %v2925 = vpop.f32.mrf.mxu0
      %v2926 = vadd.f32 0.0, %v2925
      %v2927 = vpop.f32.mrf.mxu0
      %2928 = vmatprep.mubr.f32.mxu0 0.0
      %2929 = vmatmul.mubr.f32.gmra.mxu0 %v2734
      %v2930 = vpop.f32.mrf.mxu0
      %v2931 = vadd.f32 0.0, %v2930
      %v2932 = vpop.f32.mrf.mxu0
      %2933 = vmatprep.mubr.f32.mxu0 0.0
      %2934 = vmatmul.mubr.f32.gmra.mxu0 %v2737
      %v2935 = vpop.f32.mrf.mxu0
      %v2936 = vadd.f32 0.0, %v2935
      %v2937 = vpop.f32.mrf.mxu0
      %2938 = vmatprep.mubr.f32.mxu0 0.0
      %2939 = vmatmul.mubr.f32.gmra.mxu0 %v2740
      %v2940 = vpop.f32.mrf.mxu0
      %v2941 = vadd.f32 0.0, %v2940
      %v2942 = vpop.f32.mrf.mxu0
      %2943 = vmatprep.mubr.f32.mxu0 0.0
      %2944 = vmatmul.mubr.f32.gmra.mxu0 %v2743
      %v2945 = vpop.f32.mrf.mxu0
      %v2946 = vadd.f32 0.0, %v2945
      %v2947 = vpop.f32.mrf.mxu0
      %2948 = vmatprep.mubr.f32.mxu0 0.0
      %2949 = vmatmul.mubr.f32.gmra.mxu0 %v2746
      %v2950 = vpop.f32.mrf.mxu0
      %v2951 = vadd.f32 0.0, %v2950
      %v2952 = vpop.f32.mrf.mxu0
      %2953 = vmatprep.mubr.f32.mxu0 0.0
      %2954 = vmatmul.mubr.f32.gmra.mxu0 %v2749
      %v2955 = vpop.f32.mrf.mxu0
      %v2956 = vadd.f32 0.0, %v2955
      %v2957 = vpop.f32.mrf.mxu0
      %2958 = vmatprep.mubr.f32.mxu0 0.0
      %2959 = vmatmul.mubr.f32.gmra.mxu0 %v2752
      %v2960 = vpop.f32.mrf.mxu0
      %v2961 = vadd.f32 0.0, %v2960
      %v2962 = vpop.f32.mrf.mxu0
      %2963 = vmatprep.mubr.f32.mxu0 0.0
      %2964 = vmatmul.mubr.f32.gmra.mxu0 %v2755
      %v2965 = vpop.f32.mrf.mxu0
      %v2966 = vadd.f32 0.0, %v2965
      %v2967 = vpop.f32.mrf.mxu0
      %2968 = vmatprep.mubr.f32.mxu0 0.0
      %2969 = vmatmul.mubr.f32.gmra.mxu0 %v2758
      %v2970 = vpop.f32.mrf.mxu0
      %v2971 = vadd.f32 0.0, %v2970
      %v2972 = vpop.f32.mrf.mxu0
      %2973 = vmatprep.mubr.f32.mxu0 0.0
      %2974 = vmatmul.mubr.f32.gmra.mxu0 %v2761
      %v2975 = vpop.f32.mrf.mxu0
      %v2976 = vadd.f32 0.0, %v2975
      %v2977 = vpop.f32.mrf.mxu0
      %2978 = vmatprep.mubr.f32.mxu0 0.0
      %2979 = vmatmul.mubr.f32.gmra.mxu0 %v2764
      %v2980 = vpop.f32.mrf.mxu0
      %v2981 = vadd.f32 0.0, %v2980
      %v2982 = vpop.f32.mrf.mxu0
      %2983 = vmatprep.mubr.f32.mxu0 0.0
      %2984 = vmatmul.mubr.f32.gmra.mxu0 %v2767
      %v2985 = vpop.f32.mrf.mxu0
      %v2986 = vadd.f32 0.0, %v2985
      %v2987 = vpop.f32.mrf.mxu0
      %2988 = vmatprep.mubr.f32.mxu0 0.0
      %2989 = vmatmul.mubr.f32.gmra.mxu0 %v2770
      %v2990 = vpop.f32.mrf.mxu0
      %v2991 = vadd.f32 0.0, %v2990
      %v2992 = vpop.f32.mrf.mxu0
      %2993 = vmatprep.mubr.f32.mxu0 0.0
      %2994 = vmatmul.mubr.f32.gmra.mxu0 %v2773
      %v2995 = vpop.f32.mrf.mxu0
      %v2996 = vadd.f32 0.0, %v2995
      %v2997 = vpop.f32.mrf.mxu0
      %2998 = vmatprep.mubr.f32.mxu0 0.0
      %2999 = vmatmul.mubr.f32.gmra.mxu0 %v2776
      %v3000 = vpop.f32.mrf.mxu0
      %v3001 = vadd.f32 0.0, %v3000
      %v3002 = vpop.f32.mrf.mxu0
      %3003 = vmatprep.mubr.f32.mxu0 0.0
      %3004 = vmatmul.mubr.f32.gmra.mxu0 %v2779
      %v3005 = vpop.f32.mrf.mxu0
      %v3006 = vadd.f32 0.0, %v3005
      %v3007 = vpop.f32.mrf.mxu0
      %3008 = vdwg.mxu0
      %v3009 = vadd.f32 %v2619, %v2851
      %v3010 = vadd.f32 %v2620, %v2856
      %v3011 = vadd.f32 %v2621, %v2861
      %v3012 = vadd.f32 %v2622, %v2866
      %v3013 = vadd.f32 %v2623, %v2871
      %v3014 = vadd.f32 %v2624, %v2876
      %v3015 = vadd.f32 %v2625, %v2881
      %v3016 = vadd.f32 %v2626, %v2886
      %v3017 = vadd.f32 %v2627, %v2891
      %v3018 = vadd.f32 %v2628, %v2896
      %v3019 = vadd.f32 %v2629, %v2901
      %v3020 = vadd.f32 %v2630, %v2906
      %v3021 = vadd.f32 %v2631, %v2911
      %v3022 = vadd.f32 %v2632, %v2916
      %v3023 = vadd.f32 %v2633, %v2921
      %v3024 = vadd.f32 %v2634, %v2926
      %v3025 = vadd.f32 %v2635, %v2931
      %v3026 = vadd.f32 %v2636, %v2936
      %v3027 = vadd.f32 %v2637, %v2941
      %v3028 = vadd.f32 %v2638, %v2946
      %v3029 = vadd.f32 %v2639, %v2951
      %v3030 = vadd.f32 %v2640, %v2956
      %v3031 = vadd.f32 %v2641, %v2961
      %v3032 = vadd.f32 %v2642, %v2966
      %v3033 = vadd.f32 %v2643, %v2971
      %v3034 = vadd.f32 %v2644, %v2976
      %v3035 = vadd.f32 %v2645, %v2981
      %v3036 = vadd.f32 %v2646, %v2986
      %v3037 = vadd.f32 %v2647, %v2991
      %v3038 = vadd.f32 %v2648, %v2996
      %v3039 = vadd.f32 %v2649, %v3001
      %v3040 = vadd.f32 %v2650, %v3006
      %v3041 = vld [vmem:[%s2651 + $0x1] sm:$0xff]
      %v3042 = vld [vmem:[%s2651 + $0x9] sm:$0xff]
      %v3043 = vld [vmem:[%s2651 + $0x19] sm:$0xff]
      %v3044 = vld [vmem:[%s2651 + $0x21] sm:$0xff]
      %v3045 = vld [vmem:[%s2651 + $0x31] sm:$0xff]
      %v3046 = vld [vmem:[%s2651 + $0x39] sm:$0xff]
      %v3047 = vld [vmem:[%s2651 + $0x49] sm:$0xff]
      %v3048 = vld [vmem:[%s2651 + $0x51] sm:$0xff]
      %v3049 = vld [vmem:[%s2651 + $0x61] sm:$0xff]
      %v3050 = vld [vmem:[%s2651 + $0x69] sm:$0xff]
      %v3051 = vld [vmem:[%s2651 + $0x79] sm:$0xff]
      %v3052 = vld [vmem:[%s2651 + $0x81] sm:$0xff]
      %v3053 = vld [vmem:[%s2651 + $0x91] sm:$0xff]
      %v3054 = vld [vmem:[%s2651 + $0x99] sm:$0xff]
      %v3055 = vld [vmem:[%s2651 + $0xa9] sm:$0xff]
      %v3056 = vld [vmem:[%s2651 + $0xb1] sm:$0xff]
      %v3057 = vld [vmem:[%s2651 + $0xc1] sm:$0xff]
      %v3058 = vld [vmem:[%s2651 + $0xc9] sm:$0xff]
      %v3059 = vld [vmem:[%s2651 + $0xd9] sm:$0xff]
      %v3060 = vld [vmem:[%s2651 + $0xe1] sm:$0xff]
      %v3061 = vld [vmem:[%s2651 + $0xf1] sm:$0xff]
      %v3062 = vld [vmem:[%s2651 + $0xf9] sm:$0xff]
      %v3063 = vld [vmem:[%s2651 + $0x109] sm:$0xff]
      %v3064 = vld [vmem:[%s2651 + $0x111] sm:$0xff]
      %v3065 = vld [vmem:[%s2651 + $0x121] sm:$0xff]
      %v3066 = vld [vmem:[%s2651 + $0x129] sm:$0xff]
      %v3067 = vld [vmem:[%s2651 + $0x139] sm:$0xff]
      %v3068 = vld [vmem:[%s2651 + $0x141] sm:$0xff]
      %v3069 = vld [vmem:[%s2651 + $0x151] sm:$0xff]
      %v3070 = vld [vmem:[%s2651 + $0x159] sm:$0xff]
      %v3071 = vld [vmem:[%s2651 + $0x169] sm:$0xff]
      %v3072 = vld [vmem:[%s2651 + $0x171] sm:$0xff]
      %v3073 = vld [vmem:[%s248 + $0x1c] sm:$0xf]
      %v3075 = vsel %vm444, %v3041, 0
      %v3078 = vsel %vm444, %v3042, 0
      %v3081 = vsel %vm444, %v3043, 0
      %v3084 = vsel %vm444, %v3044, 0
      %v3087 = vsel %vm444, %v3045, 0
      %v3090 = vsel %vm444, %v3046, 0
      %v3093 = vsel %vm444, %v3047, 0
      %v3096 = vsel %vm444, %v3048, 0
      %v3099 = vsel %vm444, %v3049, 0
      %v3102 = vsel %vm444, %v3050, 0
      %v3105 = vsel %vm444, %v3051, 0
      %v3108 = vsel %vm444, %v3052, 0
      %v3111 = vsel %vm444, %v3053, 0
      %v3114 = vsel %vm444, %v3054, 0
      %v3117 = vsel %vm444, %v3055, 0
      %v3120 = vsel %vm444, %v3056, 0
      %v3123 = vsel %vm444, %v3057, 0
      %v3126 = vsel %vm444, %v3058, 0
      %v3129 = vsel %vm444, %v3059, 0
      %v3132 = vsel %vm444, %v3060, 0
      %v3135 = vsel %vm444, %v3061, 0
      %v3138 = vsel %vm444, %v3062, 0
      %v3141 = vsel %vm444, %v3063, 0
      %v3144 = vsel %vm444, %v3064, 0
      %v3147 = vsel %vm444, %v3065, 0
      %v3150 = vsel %vm444, %v3066, 0
      %v3153 = vsel %vm444, %v3067, 0
      %v3156 = vsel %vm444, %v3068, 0
      %v3159 = vsel %vm444, %v3069, 0
      %v3162 = vsel %vm444, %v3070, 0
      %v3165 = vsel %vm444, %v3071, 0
      %v3168 = vsel %vm444, %v3072, 0
      %v3171 = vsel %vm541, %v3073, 0
      %3173 = vmatprep.subr.mxu0 0.0
      %3174 = vmatpush1.msra.mxu0 0.0
      %3175 = vmatprep.subr.mxu0 0.0
      %3176 = vmatpush1.msra.mxu0 0.0
      %3177 = vmatprep.subr.mxu0 0.0
      %3178 = vmatpush1.msra.mxu0 0.0
      %3179 = vmatprep.subr.mxu0 0.0
      %3180 = vmatpush1.msra.mxu0 0.0
      %3181 = vmatprep.subr.mxu0 0.0
      %3182 = vmatpush1.msra.mxu0 0.0
      %3183 = vmatprep.subr.mxu0 0.0
      %3184 = vmatpush1.msra.mxu0 0.0
      %3185 = vmatprep.subr.mxu0 0.0
      %3186 = vmatpush1.msra.mxu0 0.0
      %3187 = vmatprep.subr.mxu0 0.0
      %3188 = vmatpush1.msra.mxu0 0.0
      %3189 = vmatprep.subr.mxu0 0.0
      %3190 = vmatpush1.msra.mxu0 0.0
      %3191 = vmatprep.subr.mxu0 0.0
      %3192 = vmatpush1.msra.mxu0 0.0
      %3193 = vmatprep.subr.mxu0 0.0
      %3194 = vmatpush1.msra.mxu0 0.0
      %3195 = vmatprep.subr.mxu0 0.0
      %3196 = vmatpush1.msra.mxu0 0.0
      %3197 = vmatprep.subr.mxu0 0.0
      %3198 = vmatpush1.msra.mxu0 0.0
      %3199 = vmatprep.subr.mxu0 0.0
      %3200 = vmatpush1.msra.mxu0 0.0
      %3201 = vmatprep.subr.mxu0 0.0
      %3202 = vmatpush1.msra.mxu0 0.0
      %3203 = vmatprep.subr.mxu0 0.0
      %3204 = vmatpush1.msra.mxu0 %v3171
      %3205 = vmatprep.subr.mxu0 0.0
      %3206 = vmatpush2.msra.mxu0 0.0
      %3207 = vmatprep.subr.mxu0 0.0
      %3208 = vmatpush2.msra.mxu0 0.0
      %3209 = vmatprep.subr.mxu0 0.0
      %3210 = vmatpush2.msra.mxu0 0.0
      %3211 = vmatprep.subr.mxu0 0.0
      %3212 = vmatpush2.msra.mxu0 0.0
      %3213 = vmatprep.subr.mxu0 0.0
      %3214 = vmatpush2.msra.mxu0 0.0
      %3215 = vmatprep.subr.mxu0 0.0
      %3216 = vmatpush2.msra.mxu0 0.0
      %3217 = vmatprep.subr.mxu0 0.0
      %3218 = vmatpush2.msra.mxu0 0.0
      %3219 = vmatprep.subr.mxu0 0.0
      %3220 = vmatpush2.msra.mxu0 0.0
      %3221 = vmatprep.subr.mxu0 0.0
      %3222 = vmatpush2.msra.mxu0 0.0
      %3223 = vmatprep.subr.mxu0 0.0
      %3224 = vmatpush2.msra.mxu0 0.0
      %3225 = vmatprep.subr.mxu0 0.0
      %3226 = vmatpush2.msra.mxu0 0.0
      %3227 = vmatprep.subr.mxu0 0.0
      %3228 = vmatpush2.msra.mxu0 0.0
      %3229 = vmatprep.subr.mxu0 0.0
      %3230 = vmatpush2.msra.mxu0 0.0
      %3231 = vmatprep.subr.mxu0 0.0
      %3232 = vmatpush2.msra.mxu0 0.0
      %3233 = vmatprep.subr.mxu0 0.0
      %3234 = vmatpush2.msra.mxu0 0.0
      %3235 = vmatprep.subr.mxu0 0.0
      %3236 = vmatpush2.msra.mxu0 0.0
      %3237 = vmatprep.mubr.f32.mxu0 0.0
      %3238 = vmatmul.mubr.f32.gmra.mxu0 %v3075
      %v3239 = vpop.f32.mrf.mxu0
      %v3240 = vadd.f32 0.0, %v3239
      %v3241 = vpop.f32.mrf.mxu0
      %3242 = vmatprep.mubr.f32.mxu0 0.0
      %3243 = vmatmul.mubr.f32.gmra.mxu0 %v3078
      %v3244 = vpop.f32.mrf.mxu0
      %v3245 = vadd.f32 0.0, %v3244
      %v3246 = vpop.f32.mrf.mxu0
      %3247 = vmatprep.mubr.f32.mxu0 0.0
      %3248 = vmatmul.mubr.f32.gmra.mxu0 %v3081
      %v3249 = vpop.f32.mrf.mxu0
      %v3250 = vadd.f32 0.0, %v3249
      %v3251 = vpop.f32.mrf.mxu0
      %3252 = vmatprep.mubr.f32.mxu0 0.0
      %3253 = vmatmul.mubr.f32.gmra.mxu0 %v3084
      %v3254 = vpop.f32.mrf.mxu0
      %v3255 = vadd.f32 0.0, %v3254
      %v3256 = vpop.f32.mrf.mxu0
      %3257 = vmatprep.mubr.f32.mxu0 0.0
      %3258 = vmatmul.mubr.f32.gmra.mxu0 %v3087
      %v3259 = vpop.f32.mrf.mxu0
      %v3260 = vadd.f32 0.0, %v3259
      %v3261 = vpop.f32.mrf.mxu0
      %3262 = vmatprep.mubr.f32.mxu0 0.0
      %3263 = vmatmul.mubr.f32.gmra.mxu0 %v3090
      %v3264 = vpop.f32.mrf.mxu0
      %v3265 = vadd.f32 0.0, %v3264
      %v3266 = vpop.f32.mrf.mxu0
      %3267 = vmatprep.mubr.f32.mxu0 0.0
      %3268 = vmatmul.mubr.f32.gmra.mxu0 %v3093
      %v3269 = vpop.f32.mrf.mxu0
      %v3270 = vadd.f32 0.0, %v3269
      %v3271 = vpop.f32.mrf.mxu0
      %3272 = vmatprep.mubr.f32.mxu0 0.0
      %3273 = vmatmul.mubr.f32.gmra.mxu0 %v3096
      %v3274 = vpop.f32.mrf.mxu0
      %v3275 = vadd.f32 0.0, %v3274
      %v3276 = vpop.f32.mrf.mxu0
      %3277 = vmatprep.mubr.f32.mxu0 0.0
      %3278 = vmatmul.mubr.f32.gmra.mxu0 %v3099
      %v3279 = vpop.f32.mrf.mxu0
      %v3280 = vadd.f32 0.0, %v3279
      %v3281 = vpop.f32.mrf.mxu0
      %3282 = vmatprep.mubr.f32.mxu0 0.0
      %3283 = vmatmul.mubr.f32.gmra.mxu0 %v3102
      %v3284 = vpop.f32.mrf.mxu0
      %v3285 = vadd.f32 0.0, %v3284
      %v3286 = vpop.f32.mrf.mxu0
      %3287 = vmatprep.mubr.f32.mxu0 0.0
      %3288 = vmatmul.mubr.f32.gmra.mxu0 %v3105
      %v3289 = vpop.f32.mrf.mxu0
      %v3290 = vadd.f32 0.0, %v3289
      %v3291 = vpop.f32.mrf.mxu0
      %3292 = vmatprep.mubr.f32.mxu0 0.0
      %3293 = vmatmul.mubr.f32.gmra.mxu0 %v3108
      %v3294 = vpop.f32.mrf.mxu0
      %v3295 = vadd.f32 0.0, %v3294
      %v3296 = vpop.f32.mrf.mxu0
      %3297 = vmatprep.mubr.f32.mxu0 0.0
      %3298 = vmatmul.mubr.f32.gmra.mxu0 %v3111
      %v3299 = vpop.f32.mrf.mxu0
      %v3300 = vadd.f32 0.0, %v3299
      %v3301 = vpop.f32.mrf.mxu0
      %3302 = vmatprep.mubr.f32.mxu0 0.0
      %3303 = vmatmul.mubr.f32.gmra.mxu0 %v3114
      %v3304 = vpop.f32.mrf.mxu0
      %v3305 = vadd.f32 0.0, %v3304
      %v3306 = vpop.f32.mrf.mxu0
      %3307 = vmatprep.mubr.f32.mxu0 0.0
      %3308 = vmatmul.mubr.f32.gmra.mxu0 %v3117
      %v3309 = vpop.f32.mrf.mxu0
      %v3310 = vadd.f32 0.0, %v3309
      %v3311 = vpop.f32.mrf.mxu0
      %3312 = vmatprep.mubr.f32.mxu0 0.0
      %3313 = vmatmul.mubr.f32.gmra.mxu0 %v3120
      %v3314 = vpop.f32.mrf.mxu0
      %v3315 = vadd.f32 0.0, %v3314
      %v3316 = vpop.f32.mrf.mxu0
      %3317 = vmatprep.mubr.f32.mxu0 0.0
      %3318 = vmatmul.mubr.f32.gmra.mxu0 %v3123
      %v3319 = vpop.f32.mrf.mxu0
      %v3320 = vadd.f32 0.0, %v3319
      %v3321 = vpop.f32.mrf.mxu0
      %3322 = vmatprep.mubr.f32.mxu0 0.0
      %3323 = vmatmul.mubr.f32.gmra.mxu0 %v3126
      %v3324 = vpop.f32.mrf.mxu0
      %v3325 = vadd.f32 0.0, %v3324
      %v3326 = vpop.f32.mrf.mxu0
      %3327 = vmatprep.mubr.f32.mxu0 0.0
      %3328 = vmatmul.mubr.f32.gmra.mxu0 %v3129
      %v3329 = vpop.f32.mrf.mxu0
      %v3330 = vadd.f32 0.0, %v3329
      %v3331 = vpop.f32.mrf.mxu0
      %3332 = vmatprep.mubr.f32.mxu0 0.0
      %3333 = vmatmul.mubr.f32.gmra.mxu0 %v3132
      %v3334 = vpop.f32.mrf.mxu0
      %v3335 = vadd.f32 0.0, %v3334
      %v3336 = vpop.f32.mrf.mxu0
      %3337 = vmatprep.mubr.f32.mxu0 0.0
      %3338 = vmatmul.mubr.f32.gmra.mxu0 %v3135
      %v3339 = vpop.f32.mrf.mxu0
      %v3340 = vadd.f32 0.0, %v3339
      %v3341 = vpop.f32.mrf.mxu0
      %3342 = vmatprep.mubr.f32.mxu0 0.0
      %3343 = vmatmul.mubr.f32.gmra.mxu0 %v3138
      %v3344 = vpop.f32.mrf.mxu0
      %v3345 = vadd.f32 0.0, %v3344
      %v3346 = vpop.f32.mrf.mxu0
      %3347 = vmatprep.mubr.f32.mxu0 0.0
      %3348 = vmatmul.mubr.f32.gmra.mxu0 %v3141
      %v3349 = vpop.f32.mrf.mxu0
      %v3350 = vadd.f32 0.0, %v3349
      %v3351 = vpop.f32.mrf.mxu0
      %3352 = vmatprep.mubr.f32.mxu0 0.0
      %3353 = vmatmul.mubr.f32.gmra.mxu0 %v3144
      %v3354 = vpop.f32.mrf.mxu0
      %v3355 = vadd.f32 0.0, %v3354
      %v3356 = vpop.f32.mrf.mxu0
      %3357 = vmatprep.mubr.f32.mxu0 0.0
      %3358 = vmatmul.mubr.f32.gmra.mxu0 %v3147
      %v3359 = vpop.f32.mrf.mxu0
      %v3360 = vadd.f32 0.0, %v3359
      %v3361 = vpop.f32.mrf.mxu0
      %3362 = vmatprep.mubr.f32.mxu0 0.0
      %3363 = vmatmul.mubr.f32.gmra.mxu0 %v3150
      %v3364 = vpop.f32.mrf.mxu0
      %v3365 = vadd.f32 0.0, %v3364
      %v3366 = vpop.f32.mrf.mxu0
      %3367 = vmatprep.mubr.f32.mxu0 0.0
      %3368 = vmatmul.mubr.f32.gmra.mxu0 %v3153
      %v3369 = vpop.f32.mrf.mxu0
      %v3370 = vadd.f32 0.0, %v3369
      %v3371 = vpop.f32.mrf.mxu0
      %3372 = vmatprep.mubr.f32.mxu0 0.0
      %3373 = vmatmul.mubr.f32.gmra.mxu0 %v3156
      %v3374 = vpop.f32.mrf.mxu0
      %v3375 = vadd.f32 0.0, %v3374
      %v3376 = vpop.f32.mrf.mxu0
      %3377 = vmatprep.mubr.f32.mxu0 0.0
      %3378 = vmatmul.mubr.f32.gmra.mxu0 %v3159
      %v3379 = vpop.f32.mrf.mxu0
      %v3380 = vadd.f32 0.0, %v3379
      %v3381 = vpop.f32.mrf.mxu0
      %3382 = vmatprep.mubr.f32.mxu0 0.0
      %3383 = vmatmul.mubr.f32.gmra.mxu0 %v3162
      %v3384 = vpop.f32.mrf.mxu0
      %v3385 = vadd.f32 0.0, %v3384
      %v3386 = vpop.f32.mrf.mxu0
      %3387 = vmatprep.mubr.f32.mxu0 0.0
      %3388 = vmatmul.mubr.f32.gmra.mxu0 %v3165
      %v3389 = vpop.f32.mrf.mxu0
      %v3390 = vadd.f32 0.0, %v3389
      %v3391 = vpop.f32.mrf.mxu0
      %3392 = vmatprep.mubr.f32.mxu0 0.0
      %3393 = vmatmul.mubr.f32.gmra.mxu0 %v3168
      %v3394 = vpop.f32.mrf.mxu0
      %v3395 = vadd.f32 0.0, %v3394
      %v3396 = vpop.f32.mrf.mxu0
      %3397 = vdwg.mxu0
      %v3398 = vadd.f32 %v3009, %v3240
      %v3399 = vadd.f32 %v3010, %v3245
      %v3400 = vadd.f32 %v3011, %v3250
      %v3401 = vadd.f32 %v3012, %v3255
      %v3402 = vadd.f32 %v3013, %v3260
      %v3403 = vadd.f32 %v3014, %v3265
      %v3404 = vadd.f32 %v3015, %v3270
      %v3405 = vadd.f32 %v3016, %v3275
      %v3406 = vadd.f32 %v3017, %v3280
      %v3407 = vadd.f32 %v3018, %v3285
      %v3408 = vadd.f32 %v3019, %v3290
      %v3409 = vadd.f32 %v3020, %v3295
      %v3410 = vadd.f32 %v3021, %v3300
      %v3411 = vadd.f32 %v3022, %v3305
      %v3412 = vadd.f32 %v3023, %v3310
      %v3413 = vadd.f32 %v3024, %v3315
      %v3414 = vadd.f32 %v3025, %v3320
      %v3415 = vadd.f32 %v3026, %v3325
      %v3416 = vadd.f32 %v3027, %v3330
      %v3417 = vadd.f32 %v3028, %v3335
      %v3418 = vadd.f32 %v3029, %v3340
      %v3419 = vadd.f32 %v3030, %v3345
      %v3420 = vadd.f32 %v3031, %v3350
      %v3421 = vadd.f32 %v3032, %v3355
      %v3422 = vadd.f32 %v3033, %v3360
      %v3423 = vadd.f32 %v3034, %v3365
      %v3424 = vadd.f32 %v3035, %v3370
      %v3425 = vadd.f32 %v3036, %v3375
      %v3426 = vadd.f32 %v3037, %v3380
      %v3427 = vadd.f32 %v3038, %v3385
      %v3428 = vadd.f32 %v3039, %v3390
      %v3429 = vadd.f32 %v3040, %v3395
      %v3430 = vld [vmem:[%s2651 + $0x2] sm:$0xff]
      %v3431 = vld [vmem:[%s2651 + $0xa] sm:$0xff]
      %v3432 = vld [vmem:[%s2651 + $0x1a] sm:$0xff]
      %v3433 = vld [vmem:[%s2651 + $0x22] sm:$0xff]
      %v3434 = vld [vmem:[%s2651 + $0x32] sm:$0xff]
      %v3435 = vld [vmem:[%s2651 + $0x3a] sm:$0xff]
      %v3436 = vld [vmem:[%s2651 + $0x4a] sm:$0xff]
      %v3437 = vld [vmem:[%s2651 + $0x52] sm:$0xff]
      %v3438 = vld [vmem:[%s2651 + $0x62] sm:$0xff]
      %v3439 = vld [vmem:[%s2651 + $0x6a] sm:$0xff]
      %v3440 = vld [vmem:[%s2651 + $0x7a] sm:$0xff]
      %v3441 = vld [vmem:[%s2651 + $0x82] sm:$0xff]
      %v3442 = vld [vmem:[%s2651 + $0x92] sm:$0xff]
      %v3443 = vld [vmem:[%s2651 + $0x9a] sm:$0xff]
      %v3444 = vld [vmem:[%s2651 + $0xaa] sm:$0xff]
      %v3445 = vld [vmem:[%s2651 + $0xb2] sm:$0xff]
      %v3446 = vld [vmem:[%s2651 + $0xc2] sm:$0xff]
      %v3447 = vld [vmem:[%s2651 + $0xca] sm:$0xff]
      %v3448 = vld [vmem:[%s2651 + $0xda] sm:$0xff]
      %v3449 = vld [vmem:[%s2651 + $0xe2] sm:$0xff]
      %v3450 = vld [vmem:[%s2651 + $0xf2] sm:$0xff]
      %v3451 = vld [vmem:[%s2651 + $0xfa] sm:$0xff]
      %v3452 = vld [vmem:[%s2651 + $0x10a] sm:$0xff]
      %v3453 = vld [vmem:[%s2651 + $0x112] sm:$0xff]
      %v3454 = vld [vmem:[%s2651 + $0x122] sm:$0xff]
      %v3455 = vld [vmem:[%s2651 + $0x12a] sm:$0xff]
      %v3456 = vld [vmem:[%s2651 + $0x13a] sm:$0xff]
      %v3457 = vld [vmem:[%s2651 + $0x142] sm:$0xff]
      %v3458 = vld [vmem:[%s2651 + $0x152] sm:$0xff]
      %v3459 = vld [vmem:[%s2651 + $0x15a] sm:$0xff]
      %v3460 = vld [vmem:[%s2651 + $0x16a] sm:$0xff]
      %v3461 = vld [vmem:[%s2651 + $0x172] sm:$0xff]
      %v3462 = vld [vmem:[%s248 + $0x20] sm:$0xf]
      %v3464 = vsel %vm444, %v3430, 0
      %v3467 = vsel %vm444, %v3431, 0
      %v3470 = vsel %vm444, %v3432, 0
      %v3473 = vsel %vm444, %v3433, 0
      %v3476 = vsel %vm444, %v3434, 0
      %v3479 = vsel %vm444, %v3435, 0
      %v3482 = vsel %vm444, %v3436, 0
      %v3485 = vsel %vm444, %v3437, 0
      %v3488 = vsel %vm444, %v3438, 0
      %v3491 = vsel %vm444, %v3439, 0
      %v3494 = vsel %vm444, %v3440, 0
      %v3497 = vsel %vm444, %v3441, 0
      %v3500 = vsel %vm444, %v3442, 0
      %v3503 = vsel %vm444, %v3443, 0
      %v3506 = vsel %vm444, %v3444, 0
      %v3509 = vsel %vm444, %v3445, 0
      %v3512 = vsel %vm444, %v3446, 0
      %v3515 = vsel %vm444, %v3447, 0
      %v3518 = vsel %vm444, %v3448, 0
      %v3521 = vsel %vm444, %v3449, 0
      %v3524 = vsel %vm444, %v3450, 0
      %v3527 = vsel %vm444, %v3451, 0
      %v3530 = vsel %vm444, %v3452, 0
      %v3533 = vsel %vm444, %v3453, 0
      %v3536 = vsel %vm444, %v3454, 0
      %v3539 = vsel %vm444, %v3455, 0
      %v3542 = vsel %vm444, %v3456, 0
      %v3545 = vsel %vm444, %v3457, 0
      %v3548 = vsel %vm444, %v3458, 0
      %v3551 = vsel %vm444, %v3459, 0
      %v3554 = vsel %vm444, %v3460, 0
      %v3557 = vsel %vm444, %v3461, 0
      %v3560 = vsel %vm541, %v3462, 0
      %3562 = vmatprep.subr.mxu0 0.0
      %3563 = vmatpush1.msra.mxu0 0.0
      %3564 = vmatprep.subr.mxu0 0.0
      %3565 = vmatpush1.msra.mxu0 0.0
      %3566 = vmatprep.subr.mxu0 0.0
      %3567 = vmatpush1.msra.mxu0 0.0
      %3568 = vmatprep.subr.mxu0 0.0
      %3569 = vmatpush1.msra.mxu0 0.0
      %3570 = vmatprep.subr.mxu0 0.0
      %3571 = vmatpush1.msra.mxu0 0.0
      %3572 = vmatprep.subr.mxu0 0.0
      %3573 = vmatpush1.msra.mxu0 0.0
      %3574 = vmatprep.subr.mxu0 0.0
      %3575 = vmatpush1.msra.mxu0 0.0
      %3576 = vmatprep.subr.mxu0 0.0
      %3577 = vmatpush1.msra.mxu0 0.0
      %3578 = vmatprep.subr.mxu0 0.0
      %3579 = vmatpush1.msra.mxu0 0.0
      %3580 = vmatprep.subr.mxu0 0.0
      %3581 = vmatpush1.msra.mxu0 0.0
      %3582 = vmatprep.subr.mxu0 0.0
      %3583 = vmatpush1.msra.mxu0 0.0
      %3584 = vmatprep.subr.mxu0 0.0
      %3585 = vmatpush1.msra.mxu0 0.0
      %3586 = vmatprep.subr.mxu0 0.0
      %3587 = vmatpush1.msra.mxu0 0.0
      %3588 = vmatprep.subr.mxu0 0.0
      %3589 = vmatpush1.msra.mxu0 0.0
      %3590 = vmatprep.subr.mxu0 0.0
      %3591 = vmatpush1.msra.mxu0 0.0
      %3592 = vmatprep.subr.mxu0 0.0
      %3593 = vmatpush1.msra.mxu0 %v3560
      %3594 = vmatprep.subr.mxu0 0.0
      %3595 = vmatpush2.msra.mxu0 0.0
      %3596 = vmatprep.subr.mxu0 0.0
      %3597 = vmatpush2.msra.mxu0 0.0
      %3598 = vmatprep.subr.mxu0 0.0
      %3599 = vmatpush2.msra.mxu0 0.0
      %3600 = vmatprep.subr.mxu0 0.0
      %3601 = vmatpush2.msra.mxu0 0.0
      %3602 = vmatprep.subr.mxu0 0.0
      %3603 = vmatpush2.msra.mxu0 0.0
      %3604 = vmatprep.subr.mxu0 0.0
      %3605 = vmatpush2.msra.mxu0 0.0
      %3606 = vmatprep.subr.mxu0 0.0
      %3607 = vmatpush2.msra.mxu0 0.0
      %3608 = vmatprep.subr.mxu0 0.0
      %3609 = vmatpush2.msra.mxu0 0.0
      %3610 = vmatprep.subr.mxu0 0.0
      %3611 = vmatpush2.msra.mxu0 0.0
      %3612 = vmatprep.subr.mxu0 0.0
      %3613 = vmatpush2.msra.mxu0 0.0
      %3614 = vmatprep.subr.mxu0 0.0
      %3615 = vmatpush2.msra.mxu0 0.0
      %3616 = vmatprep.subr.mxu0 0.0
      %3617 = vmatpush2.msra.mxu0 0.0
      %3618 = vmatprep.subr.mxu0 0.0
      %3619 = vmatpush2.msra.mxu0 0.0
      %3620 = vmatprep.subr.mxu0 0.0
      %3621 = vmatpush2.msra.mxu0 0.0
      %3622 = vmatprep.subr.mxu0 0.0
      %3623 = vmatpush2.msra.mxu0 0.0
      %3624 = vmatprep.subr.mxu0 0.0
      %3625 = vmatpush2.msra.mxu0 0.0
      %3626 = vmatprep.mubr.f32.mxu0 0.0
      %3627 = vmatmul.mubr.f32.gmra.mxu0 %v3464
      %v3628 = vpop.f32.mrf.mxu0
      %v3629 = vadd.f32 0.0, %v3628
      %v3630 = vpop.f32.mrf.mxu0
      %3631 = vmatprep.mubr.f32.mxu0 0.0
      %3632 = vmatmul.mubr.f32.gmra.mxu0 %v3467
      %v3633 = vpop.f32.mrf.mxu0
      %v3634 = vadd.f32 0.0, %v3633
      %v3635 = vpop.f32.mrf.mxu0
      %3636 = vmatprep.mubr.f32.mxu0 0.0
      %3637 = vmatmul.mubr.f32.gmra.mxu0 %v3470
      %v3638 = vpop.f32.mrf.mxu0
      %v3639 = vadd.f32 0.0, %v3638
      %v3640 = vpop.f32.mrf.mxu0
      %3641 = vmatprep.mubr.f32.mxu0 0.0
      %3642 = vmatmul.mubr.f32.gmra.mxu0 %v3473
      %v3643 = vpop.f32.mrf.mxu0
      %v3644 = vadd.f32 0.0, %v3643
      %v3645 = vpop.f32.mrf.mxu0
      %3646 = vmatprep.mubr.f32.mxu0 0.0
      %3647 = vmatmul.mubr.f32.gmra.mxu0 %v3476
      %v3648 = vpop.f32.mrf.mxu0
      %v3649 = vadd.f32 0.0, %v3648
      %v3650 = vpop.f32.mrf.mxu0
      %3651 = vmatprep.mubr.f32.mxu0 0.0
      %3652 = vmatmul.mubr.f32.gmra.mxu0 %v3479
      %v3653 = vpop.f32.mrf.mxu0
      %v3654 = vadd.f32 0.0, %v3653
      %v3655 = vpop.f32.mrf.mxu0
      %3656 = vmatprep.mubr.f32.mxu0 0.0
      %3657 = vmatmul.mubr.f32.gmra.mxu0 %v3482
      %v3658 = vpop.f32.mrf.mxu0
      %v3659 = vadd.f32 0.0, %v3658
      %v3660 = vpop.f32.mrf.mxu0
      %3661 = vmatprep.mubr.f32.mxu0 0.0
      %3662 = vmatmul.mubr.f32.gmra.mxu0 %v3485
      %v3663 = vpop.f32.mrf.mxu0
      %v3664 = vadd.f32 0.0, %v3663
      %v3665 = vpop.f32.mrf.mxu0
      %3666 = vmatprep.mubr.f32.mxu0 0.0
      %3667 = vmatmul.mubr.f32.gmra.mxu0 %v3488
      %v3668 = vpop.f32.mrf.mxu0
      %v3669 = vadd.f32 0.0, %v3668
      %v3670 = vpop.f32.mrf.mxu0
      %3671 = vmatprep.mubr.f32.mxu0 0.0
      %3672 = vmatmul.mubr.f32.gmra.mxu0 %v3491
      %v3673 = vpop.f32.mrf.mxu0
      %v3674 = vadd.f32 0.0, %v3673
      %v3675 = vpop.f32.mrf.mxu0
      %3676 = vmatprep.mubr.f32.mxu0 0.0
      %3677 = vmatmul.mubr.f32.gmra.mxu0 %v3494
      %v3678 = vpop.f32.mrf.mxu0
      %v3679 = vadd.f32 0.0, %v3678
      %v3680 = vpop.f32.mrf.mxu0
      %3681 = vmatprep.mubr.f32.mxu0 0.0
      %3682 = vmatmul.mubr.f32.gmra.mxu0 %v3497
      %v3683 = vpop.f32.mrf.mxu0
      %v3684 = vadd.f32 0.0, %v3683
      %v3685 = vpop.f32.mrf.mxu0
      %3686 = vmatprep.mubr.f32.mxu0 0.0
      %3687 = vmatmul.mubr.f32.gmra.mxu0 %v3500
      %v3688 = vpop.f32.mrf.mxu0
      %v3689 = vadd.f32 0.0, %v3688
      %v3690 = vpop.f32.mrf.mxu0
      %3691 = vmatprep.mubr.f32.mxu0 0.0
      %3692 = vmatmul.mubr.f32.gmra.mxu0 %v3503
      %v3693 = vpop.f32.mrf.mxu0
      %v3694 = vadd.f32 0.0, %v3693
      %v3695 = vpop.f32.mrf.mxu0
      %3696 = vmatprep.mubr.f32.mxu0 0.0
      %3697 = vmatmul.mubr.f32.gmra.mxu0 %v3506
      %v3698 = vpop.f32.mrf.mxu0
      %v3699 = vadd.f32 0.0, %v3698
      %v3700 = vpop.f32.mrf.mxu0
      %3701 = vmatprep.mubr.f32.mxu0 0.0
      %3702 = vmatmul.mubr.f32.gmra.mxu0 %v3509
      %v3703 = vpop.f32.mrf.mxu0
      %v3704 = vadd.f32 0.0, %v3703
      %v3705 = vpop.f32.mrf.mxu0
      %3706 = vmatprep.mubr.f32.mxu0 0.0
      %3707 = vmatmul.mubr.f32.gmra.mxu0 %v3512
      %v3708 = vpop.f32.mrf.mxu0
      %v3709 = vadd.f32 0.0, %v3708
      %v3710 = vpop.f32.mrf.mxu0
      %3711 = vmatprep.mubr.f32.mxu0 0.0
      %3712 = vmatmul.mubr.f32.gmra.mxu0 %v3515
      %v3713 = vpop.f32.mrf.mxu0
      %v3714 = vadd.f32 0.0, %v3713
      %v3715 = vpop.f32.mrf.mxu0
      %3716 = vmatprep.mubr.f32.mxu0 0.0
      %3717 = vmatmul.mubr.f32.gmra.mxu0 %v3518
      %v3718 = vpop.f32.mrf.mxu0
      %v3719 = vadd.f32 0.0, %v3718
      %v3720 = vpop.f32.mrf.mxu0
      %3721 = vmatprep.mubr.f32.mxu0 0.0
      %3722 = vmatmul.mubr.f32.gmra.mxu0 %v3521
      %v3723 = vpop.f32.mrf.mxu0
      %v3724 = vadd.f32 0.0, %v3723
      %v3725 = vpop.f32.mrf.mxu0
      %3726 = vmatprep.mubr.f32.mxu0 0.0
      %3727 = vmatmul.mubr.f32.gmra.mxu0 %v3524
      %v3728 = vpop.f32.mrf.mxu0
      %v3729 = vadd.f32 0.0, %v3728
      %v3730 = vpop.f32.mrf.mxu0
      %3731 = vmatprep.mubr.f32.mxu0 0.0
      %3732 = vmatmul.mubr.f32.gmra.mxu0 %v3527
      %v3733 = vpop.f32.mrf.mxu0
      %v3734 = vadd.f32 0.0, %v3733
      %v3735 = vpop.f32.mrf.mxu0
      %3736 = vmatprep.mubr.f32.mxu0 0.0
      %3737 = vmatmul.mubr.f32.gmra.mxu0 %v3530
      %v3738 = vpop.f32.mrf.mxu0
      %v3739 = vadd.f32 0.0, %v3738
      %v3740 = vpop.f32.mrf.mxu0
      %3741 = vmatprep.mubr.f32.mxu0 0.0
      %3742 = vmatmul.mubr.f32.gmra.mxu0 %v3533
      %v3743 = vpop.f32.mrf.mxu0
      %v3744 = vadd.f32 0.0, %v3743
      %v3745 = vpop.f32.mrf.mxu0
      %3746 = vmatprep.mubr.f32.mxu0 0.0
      %3747 = vmatmul.mubr.f32.gmra.mxu0 %v3536
      %v3748 = vpop.f32.mrf.mxu0
      %v3749 = vadd.f32 0.0, %v3748
      %v3750 = vpop.f32.mrf.mxu0
      %3751 = vmatprep.mubr.f32.mxu0 0.0
      %3752 = vmatmul.mubr.f32.gmra.mxu0 %v3539
      %v3753 = vpop.f32.mrf.mxu0
      %v3754 = vadd.f32 0.0, %v3753
      %v3755 = vpop.f32.mrf.mxu0
      %3756 = vmatprep.mubr.f32.mxu0 0.0
      %3757 = vmatmul.mubr.f32.gmra.mxu0 %v3542
      %v3758 = vpop.f32.mrf.mxu0
      %v3759 = vadd.f32 0.0, %v3758
      %v3760 = vpop.f32.mrf.mxu0
      %3761 = vmatprep.mubr.f32.mxu0 0.0
      %3762 = vmatmul.mubr.f32.gmra.mxu0 %v3545
      %v3763 = vpop.f32.mrf.mxu0
      %v3764 = vadd.f32 0.0, %v3763
      %v3765 = vpop.f32.mrf.mxu0
      %3766 = vmatprep.mubr.f32.mxu0 0.0
      %3767 = vmatmul.mubr.f32.gmra.mxu0 %v3548
      %v3768 = vpop.f32.mrf.mxu0
      %v3769 = vadd.f32 0.0, %v3768
      %v3770 = vpop.f32.mrf.mxu0
      %3771 = vmatprep.mubr.f32.mxu0 0.0
      %3772 = vmatmul.mubr.f32.gmra.mxu0 %v3551
      %v3773 = vpop.f32.mrf.mxu0
      %v3774 = vadd.f32 0.0, %v3773
      %v3775 = vpop.f32.mrf.mxu0
      %3776 = vmatprep.mubr.f32.mxu0 0.0
      %3777 = vmatmul.mubr.f32.gmra.mxu0 %v3554
      %v3778 = vpop.f32.mrf.mxu0
      %v3779 = vadd.f32 0.0, %v3778
      %v3780 = vpop.f32.mrf.mxu0
      %3781 = vmatprep.mubr.f32.mxu0 0.0
      %3782 = vmatmul.mubr.f32.gmra.mxu0 %v3557
      %v3783 = vpop.f32.mrf.mxu0
      %v3784 = vadd.f32 0.0, %v3783
      %v3785 = vpop.f32.mrf.mxu0
      %3786 = vdwg.mxu0
      %v3787 = vadd.f32 %v3398, %v3629
      %v3788 = vadd.f32 %v3399, %v3634
      %v3789 = vadd.f32 %v3400, %v3639
      %v3790 = vadd.f32 %v3401, %v3644
      %v3791 = vadd.f32 %v3402, %v3649
      %v3792 = vadd.f32 %v3403, %v3654
      %v3793 = vadd.f32 %v3404, %v3659
      %v3794 = vadd.f32 %v3405, %v3664
      %v3795 = vadd.f32 %v3406, %v3669
      %v3796 = vadd.f32 %v3407, %v3674
      %v3797 = vadd.f32 %v3408, %v3679
      %v3798 = vadd.f32 %v3409, %v3684
      %v3799 = vadd.f32 %v3410, %v3689
      %v3800 = vadd.f32 %v3411, %v3694
      %v3801 = vadd.f32 %v3412, %v3699
      %v3802 = vadd.f32 %v3413, %v3704
      %v3803 = vadd.f32 %v3414, %v3709
      %v3804 = vadd.f32 %v3415, %v3714
      %v3805 = vadd.f32 %v3416, %v3719
      %v3806 = vadd.f32 %v3417, %v3724
      %v3807 = vadd.f32 %v3418, %v3729
      %v3808 = vadd.f32 %v3419, %v3734
      %v3809 = vadd.f32 %v3420, %v3739
      %v3810 = vadd.f32 %v3421, %v3744
      %v3811 = vadd.f32 %v3422, %v3749
      %v3812 = vadd.f32 %v3423, %v3754
      %v3813 = vadd.f32 %v3424, %v3759
      %v3814 = vadd.f32 %v3425, %v3764
      %v3815 = vadd.f32 %v3426, %v3769
      %v3816 = vadd.f32 %v3427, %v3774
      %v3817 = vadd.f32 %v3428, %v3779
      %v3818 = vadd.f32 %v3429, %v3784
      %v3819 = vld [vmem:[%s251] sm:$0x1]
      %v3821 = vlaneseq
      %v3822 = vshrl.u32 %v3821, 7
      %v3823 = vsub.s32 0, %v3822
      %v3824 = vrot.slane %v3819, %v3823
      %v3826 = vmul.f32 %v3787, %v3824
      %v3827 = vmul.f32 %v3788, %v3824
      %v3828 = vmul.f32 %v3789, %v3824
      %v3829 = vmul.f32 %v3790, %v3824
      %v3830 = vmul.f32 %v3791, %v3824
      %v3831 = vmul.f32 %v3792, %v3824
      %v3832 = vmul.f32 %v3793, %v3824
      %v3833 = vmul.f32 %v3794, %v3824
      %v3834 = vmul.f32 %v3795, %v3824
      %v3835 = vmul.f32 %v3796, %v3824
      %v3836 = vmul.f32 %v3797, %v3824
      %v3837 = vmul.f32 %v3798, %v3824
      %v3838 = vmul.f32 %v3799, %v3824
      %v3839 = vmul.f32 %v3800, %v3824
      %v3840 = vmul.f32 %v3801, %v3824
      %v3841 = vmul.f32 %v3802, %v3824
      %v3842 = vmul.f32 %v3803, %v3824
      %v3843 = vmul.f32 %v3804, %v3824
      %v3844 = vmul.f32 %v3805, %v3824
      %v3845 = vmul.f32 %v3806, %v3824
      %v3846 = vmul.f32 %v3807, %v3824
      %v3847 = vmul.f32 %v3808, %v3824
      %v3848 = vmul.f32 %v3809, %v3824
      %v3849 = vmul.f32 %v3810, %v3824
      %v3850 = vmul.f32 %v3811, %v3824
      %v3851 = vmul.f32 %v3812, %v3824
      %v3852 = vmul.f32 %v3813, %v3824
      %v3853 = vmul.f32 %v3814, %v3824
      %v3854 = vmul.f32 %v3815, %v3824
      %v3855 = vmul.f32 %v3816, %v3824
      %v3856 = vmul.f32 %v3817, %v3824
      %v3857 = vmul.f32 %v3818, %v3824
      %v3858 = vld [vmem:[%s254] sm:$0x1]
      %v3860 = vlaneseq
      %v3861 = vshrl.u32 %v3860, 7
      %v3862 = vsub.s32 0, %v3861
      %v3863 = vrot.slane %v3858, %v3862
      %v3865 = vadd.f32 %v3826, %v3863
      %v3866 = vadd.f32 %v3827, %v3863
      %v3867 = vadd.f32 %v3828, %v3863
      %v3868 = vadd.f32 %v3829, %v3863
      %v3869 = vadd.f32 %v3830, %v3863
      %v3870 = vadd.f32 %v3831, %v3863
      %v3871 = vadd.f32 %v3832, %v3863
      %v3872 = vadd.f32 %v3833, %v3863
      %v3873 = vadd.f32 %v3834, %v3863
      %v3874 = vadd.f32 %v3835, %v3863
      %v3875 = vadd.f32 %v3836, %v3863
      %v3876 = vadd.f32 %v3837, %v3863
      %v3877 = vadd.f32 %v3838, %v3863
      %v3878 = vadd.f32 %v3839, %v3863
      %v3879 = vadd.f32 %v3840, %v3863
      %v3880 = vadd.f32 %v3841, %v3863
      %v3881 = vadd.f32 %v3842, %v3863
      %v3882 = vadd.f32 %v3843, %v3863
      %v3883 = vadd.f32 %v3844, %v3863
      %v3884 = vadd.f32 %v3845, %v3863
      %v3885 = vadd.f32 %v3846, %v3863
      %v3886 = vadd.f32 %v3847, %v3863
      %v3887 = vadd.f32 %v3848, %v3863
      %v3888 = vadd.f32 %v3849, %v3863
      %v3889 = vadd.f32 %v3850, %v3863
      %v3890 = vadd.f32 %v3851, %v3863
      %v3891 = vadd.f32 %v3852, %v3863
      %v3892 = vadd.f32 %v3853, %v3863
      %v3893 = vadd.f32 %v3854, %v3863
      %v3894 = vadd.f32 %v3855, %v3863
      %v3895 = vadd.f32 %v3856, %v3863
      %v3896 = vadd.f32 %v3857, %v3863
      %v3897 = vmax.f32 %v3865, 0.0
      %v3898 = vmax.f32 %v3866, 0.0
      %v3899 = vmax.f32 %v3867, 0.0
      %v3900 = vmax.f32 %v3868, 0.0
      %v3901 = vmax.f32 %v3869, 0.0
      %v3902 = vmax.f32 %v3870, 0.0
      %v3903 = vmax.f32 %v3871, 0.0
      %v3904 = vmax.f32 %v3872, 0.0
      %v3905 = vmax.f32 %v3873, 0.0
      %v3906 = vmax.f32 %v3874, 0.0
      %v3907 = vmax.f32 %v3875, 0.0
      %v3908 = vmax.f32 %v3876, 0.0
      %v3909 = vmax.f32 %v3877, 0.0
      %v3910 = vmax.f32 %v3878, 0.0
      %v3911 = vmax.f32 %v3879, 0.0
      %v3912 = vmax.f32 %v3880, 0.0
      %v3913 = vmax.f32 %v3881, 0.0
      %v3914 = vmax.f32 %v3882, 0.0
      %v3915 = vmax.f32 %v3883, 0.0
      %v3916 = vmax.f32 %v3884, 0.0
      %v3917 = vmax.f32 %v3885, 0.0
      %v3918 = vmax.f32 %v3886, 0.0
      %v3919 = vmax.f32 %v3887, 0.0
      %v3920 = vmax.f32 %v3888, 0.0
      %v3921 = vmax.f32 %v3889, 0.0
      %v3922 = vmax.f32 %v3890, 0.0
      %v3923 = vmax.f32 %v3891, 0.0
      %v3924 = vmax.f32 %v3892, 0.0
      %v3925 = vmax.f32 %v3893, 0.0
      %v3926 = vmax.f32 %v3894, 0.0
      %v3927 = vmax.f32 %v3895, 0.0
      %v3928 = vmax.f32 %v3896, 0.0
      %vm3929 = vcmask 64512
      %3930 = vst.msk [vmem:[%s262] sm:$0xff] %vm3929, %v3897
      %3931 = vst.msk [vmem:[%s262 + $0x8] sm:$0xff] %vm3929, %v3898
      %3932 = vst.msk [vmem:[%s262 + $0x10] sm:$0xff] %vm3929, %v3899
      %3933 = vst.msk [vmem:[%s262 + $0x18] sm:$0xff] %vm3929, %v3900
      %3934 = vst.msk [vmem:[%s262 + $0x20] sm:$0xff] %vm3929, %v3901
      %3935 = vst.msk [vmem:[%s262 + $0x28] sm:$0xff] %vm3929, %v3902
      %3936 = vst.msk [vmem:[%s262 + $0x30] sm:$0xff] %vm3929, %v3903
      %3937 = vst.msk [vmem:[%s262 + $0x38] sm:$0xff] %vm3929, %v3904
      %3938 = vst.msk [vmem:[%s262 + $0x40] sm:$0xff] %vm3929, %v3905
      %3939 = vst.msk [vmem:[%s262 + $0x48] sm:$0xff] %vm3929, %v3906
      %3940 = vst.msk [vmem:[%s262 + $0x50] sm:$0xff] %vm3929, %v3907
      %3941 = vst.msk [vmem:[%s262 + $0x58] sm:$0xff] %vm3929, %v3908
      %3942 = vst.msk [vmem:[%s262 + $0x60] sm:$0xff] %vm3929, %v3909
      %3943 = vst.msk [vmem:[%s262 + $0x68] sm:$0xff] %vm3929, %v3910
      %3944 = vst.msk [vmem:[%s262 + $0x70] sm:$0xff] %vm3929, %v3911
      %3945 = vst.msk [vmem:[%s262 + $0x78] sm:$0xff] %vm3929, %v3912
      %3946 = vst.msk [vmem:[%s262 + $0x80] sm:$0xff] %vm3929, %v3913
      %3947 = vst.msk [vmem:[%s262 + $0x88] sm:$0xff] %vm3929, %v3914
      %3948 = vst.msk [vmem:[%s262 + $0x90] sm:$0xff] %vm3929, %v3915
      %3949 = vst.msk [vmem:[%s262 + $0x98] sm:$0xff] %vm3929, %v3916
      %3950 = vst.msk [vmem:[%s262 + $0xa0] sm:$0xff] %vm3929, %v3917
      %3951 = vst.msk [vmem:[%s262 + $0xa8] sm:$0xff] %vm3929, %v3918
      %3952 = vst.msk [vmem:[%s262 + $0xb0] sm:$0xff] %vm3929, %v3919
      %3953 = vst.msk [vmem:[%s262 + $0xb8] sm:$0xff] %vm3929, %v3920
      %3954 = vst.msk [vmem:[%s262 + $0xc0] sm:$0xff] %vm3929, %v3921
      %3955 = vst.msk [vmem:[%s262 + $0xc8] sm:$0xff] %vm3929, %v3922
      %3956 = vst.msk [vmem:[%s262 + $0xd0] sm:$0xff] %vm3929, %v3923
      %3957 = vst.msk [vmem:[%s262 + $0xd8] sm:$0xff] %vm3929, %v3924
      %3958 = vst.msk [vmem:[%s262 + $0xe0] sm:$0xff] %vm3929, %v3925
      %3959 = vst.msk [vmem:[%s262 + $0xe8] sm:$0xff] %vm3929, %v3926
      %3960 = vst.msk [vmem:[%s262 + $0xf0] sm:$0xff] %vm3929, %v3927
      %3961 = vst.msk [vmem:[%s262 + $0xf8] sm:$0xff] %vm3929, %v3928
      %p3962 = scmp.lt.s32.totalorder %s19, 1
      %s3963 = scalar_select %p3962, %s19, 1
      %p3964 = scmp.lt.s32.totalorder %s20, 0
      %s3965 = scalar_select %p3964, %s20, 0
      %s3966 = smul.addr %s3963, 32
      %s3967 = sadd.s32 %s3965, %s3966
      %s3968 = smul.addr %s3967, 8
      %s3969 = scalar_lea.vmem %s4, %s3968
      // Predicated region
      $region41: #{tpu_custom_call.1} parent=35 // pred_check
        %p3970 = pneg %p151
      $region42: #{tpu_custom_call.1} parent=35 // pred_check_branch
        %3972 = sbr.rel (%p3970) target = $region44
      $region43: #{tpu_custom_call.1} parent=35 // pred_region
        _
      $region44: #{tpu_custom_call.1} parent=35 // pred_fallthru
        _
    $region36: #{tpu_custom_call.1} parent=5 // pred_fallthru
      _
    %p3973 = scmp.le.s32.totalorder 2, %s10
    // Predicated region
    $region45: #{tpu_custom_call.1} parent=5 // pred_check
      %p3974 = pneg %p3973
    $region46: #{tpu_custom_call.1} parent=5 // pred_check_branch
      %3976 = sbr.rel (%p3974) target = $region48
    $region47: #{tpu_custom_call.1} parent=5 // pred_region
      %s3977 = ssub.s32 %s10, 2
      // Predicated region
      $region49: #{tpu_custom_call.1} parent=47 // pred_check
        %p3978 = pneg %p157
      $region50: #{tpu_custom_call.1} parent=47 // pred_check_branch
        %3980 = sbr.rel (%p3978) target = $region52
      $region51: #{tpu_custom_call.1} parent=47 // pred_region
        %p3981 = scmp.lt.s32.totalorder %s21, 1
        %s3982 = scalar_select %p3981, %s21, 1
        %p3983 = scmp.lt.s32.totalorder %s22, 0
        %s3984 = scalar_select %p3983, %s22, 0
        %s3985 = smul.addr %s3982, 32
        %s3986 = sadd.s32 %s3984, %s3985
        %s3987 = smul.addr %s3986, 8
        %s3988 = scalar_lea.vmem %s4, %s3987
      $region52: #{tpu_custom_call.1} parent=47 // pred_fallthru
        _
    $region48: #{tpu_custom_call.1} parent=5 // pred_fallthru
      _
  $region6: #{tpu_custom_call.1} parent=0 // loop_footer
    %s14 = sadd.s32 1, %s10
  $region7: #{tpu_custom_call.1} parent=0 // loop_footer_branch
    %9 = sbr.rel target = $region3
  $region8: #{tpu_custom_call.1} parent=0 // loop_exit
    _

</llo_original>
